<compile_context>
chip_gen: v5e
topology: v5e:2x2
jax: 0.10.0
libtpu: 0.0.40
codegen_flags: <defaults>
</compile_context>

<pallas_src>
import jax
import jax.numpy as jnp
from jax.experimental import pallas as pl
from jax.experimental.pallas import tpu as pltpu

_LANE = 128


def _round_up(x, m):
    return ((x + m - 1) // m) * m


# ----------------------------------------------------------------------------
# DAImgHead kernel: relu(x @ W1 + b1) . w2 + b2  (+ sigmoid branch)
# ----------------------------------------------------------------------------
def _da_img_head_kernel(x_ref, w1_ref, b1_ref, w2_ref, b2_ref, out_ref, sig_ref):
    # x_ref: (tile_p, Cin) f32 | w1: (Cin, 512) bf16 | b1: (1, 512) f32
    # w2: (1, 512) f32 (conv2 weight as a row) | b2: (1, 1) f32
    x = x_ref[...].astype(jnp.bfloat16)
    h = jnp.dot(x, w1_ref[...], preferred_element_type=jnp.float32)      # MXU, f32 acc
    h = jnp.maximum(h + b1_ref[...], 0.0)                                # (tile_p, 512)
    # Second projection has N=1: do it on the VPU/XLU (mul + lane reduce) so the
    # MXU is not wasted producing a single column; emit a lane-dense result.
    r = out_ref.shape[0]                                                 # tile_p // 128
    h3 = h.reshape(r, _LANE, h.shape[-1])                                # (r, 128, 512)
    y = jnp.sum(h3 * w2_ref[...], axis=-1) + b2_ref[...]                 # (r, 128)
    out_ref[...] = y.astype(out_ref.dtype)                               # da_img_features
    sig_ref[...] = jax.nn.sigmoid(y).astype(sig_ref.dtype)               # consist branch


def da_img_head(img_features, conv1_w_bf16, conv1_b, conv2_w_row, conv2_b, *,
                tile_p=1024):
    """1x1-conv domain classifier, fused over all feature levels.

    img_features: list of (N, Cin, H, W) float32 maps (all levels share Cin).
    Returns (logits_list, sigmoid_list), each NCHW with 1 output channel.
    """
    assert tile_p % 1024 == 0, "tile_p must be a multiple of 1024 (8x128 out blocks)"
    shapes = [tuple(f.shape) for f in img_features]
    cin = shapes[0][1]

    # Concat flattened pixels of all levels: weights are DMA'd once and the
    # pipeline gets one long (parallel -> megacore-shardable) grid.
    flats = [jnp.transpose(f, (0, 2, 3, 1)).reshape(-1, cin) for f in img_features]
    x2d = flats[0] if len(flats) == 1 else jnp.concatenate(flats, axis=0)
    p = x2d.shape[0]
    p_pad = _round_up(p, tile_p)
    if p_pad != p:
        x2d = jnp.pad(x2d, ((0, p_pad - p), (0, 0)))
    rows = p_pad // _LANE
    tile_rows = tile_p // _LANE
    grid = (p_pad // tile_p,)

    out, sig = pl.pallas_call(
        _da_img_head_kernel,
        out_shape=(jax.ShapeDtypeStruct((rows, _LANE), jnp.float32),
                   jax.ShapeDtypeStruct((rows, _LANE), jnp.float32)),
        grid_spec=pltpu.PrefetchScalarGridSpec(
            num_scalar_prefetch=0,
            grid=grid,
            in_specs=[
                pl.BlockSpec((tile_p, cin), lambda i: (i, 0)),
                pl.BlockSpec((cin, 512), lambda i: (0, 0)),
                pl.BlockSpec((1, 512), lambda i: (0, 0)),
                pl.BlockSpec((1, 512), lambda i: (0, 0)),
                pl.BlockSpec((1, 1), lambda i: (0, 0)),
            ],
            out_specs=(
                pl.BlockSpec((tile_rows, _LANE), lambda i: (i, 0)),
                pl.BlockSpec((tile_rows, _LANE), lambda i: (i, 0)),
            ),
        ),
        compiler_params=pltpu.CompilerParams(
            dimension_semantics=("parallel",),
            vmem_limit_bytes=32 << 20,   # safe on v5e/v6e/v7x; headroom for big Cin
        ),
    )(x2d, conv1_w_bf16, conv1_b, conv2_w_row, conv2_b)

    out_flat = out.reshape(-1)[:p]
    sig_flat = sig.reshape(-1)[:p]
    logits, sigs = [], []
    off = 0
    for (n, _, h, w) in shapes:
        sz = n * h * w
        logits.append(out_flat[off:off + sz].reshape(n, h, w, 1).transpose(0, 3, 1, 2))
        sigs.append(sig_flat[off:off + sz].reshape(n, h, w, 1).transpose(0, 3, 1, 2))
        off += sz
    return logits, sigs


# ----------------------------------------------------------------------------
# DAInsHead kernel: fc1(relu) -> fc2(relu) -> fc3 (+ sigmoid); input pre-pooled
# ----------------------------------------------------------------------------
def _da_ins_head_kernel(x_ref, w1_ref, b1_ref, w2_ref, b2_ref, w3_ref, b3_ref,
                        out_ref, sig_ref):
    x = x_ref[...].astype(jnp.bfloat16)                                  # (tile_nr, c)
    h1 = jnp.dot(x, w1_ref[...], preferred_element_type=jnp.float32) + b1_ref[...]
    h1 = jnp.maximum(h1, 0.0)
    # TODO(synk): F.dropout(p=0.5) is identity in eval mode; training-mode
    # stochastic dropout is not implemented.
    h2 = jnp.dot(h1.astype(jnp.bfloat16), w2_ref[...],
                 preferred_element_type=jnp.float32) + b2_ref[...]
    h2 = jnp.maximum(h2, 0.0)
    # fc3 has N=1 -> VPU multiply + lane reduce instead of an MXU matmul.
    y = jnp.sum(h2 * w3_ref[...], axis=-1, keepdims=True) + b3_ref[...]  # (tile_nr, 1)
    out_ref[...] = y.astype(out_ref.dtype)                               # da_ins_features
    sig_ref[...] = jax.nn.sigmoid(y).astype(sig_ref.dtype)               # consist branch


def da_ins_head(pooled, fc1_w_bf16, fc1_b, fc2_w_bf16, fc2_b, fc3_w_row, fc3_b):
    """Instance head. pooled: (nr, c) float32 (already avg-pooled / flattened)."""
    nr, c = pooled.shape
    tile_nr = 128 if nr > 128 else max(8, _round_up(nr, 8))
    nr_pad = _round_up(nr, tile_nr)
    if nr_pad != nr:
        pooled = jnp.pad(pooled, ((0, nr_pad - nr), (0, 0)))
    grid = (nr_pad // tile_nr,)

    out, sig = pl.pallas_call(
        _da_ins_head_kernel,
        out_shape=(jax.ShapeDtypeStruct((nr_pad, 1), jnp.float32),
                   jax.ShapeDtypeStruct((nr_pad, 1), jnp.float32)),
        grid_spec=pltpu.PrefetchScalarGridSpec(
            num_scalar_prefetch=0,
            grid=grid,
            in_specs=[
                pl.BlockSpec((tile_nr, c), lambda i: (i, 0)),
                pl.BlockSpec((c, 1024), lambda i: (0, 0)),
                pl.BlockSpec((1, 1024), lambda i: (0, 0)),
                pl.BlockSpec((1024, 1024), lambda i: (0, 0)),
                pl.BlockSpec((1, 1024), lambda i: (0, 0)),
                pl.BlockSpec((1, 1024), lambda i: (0, 0)),
                pl.BlockSpec((1, 1), lambda i: (0, 0)),
            ],
            out_specs=(
                pl.BlockSpec((tile_nr, 1), lambda i: (i, 0)),
                pl.BlockSpec((tile_nr, 1), lambda i: (i, 0)),
            ),
        ),
        # weights (bf16) + activations fit comfortably in the default scoped
        # VMEM limit on all generations; no explicit 64 MiB request (v7x only
        # has 64 MiB physical VMEM per TensorCore).
        compiler_params=pltpu.CompilerParams(dimension_semantics=("parallel",)),
    )(pooled, fc1_w_bf16, fc1_b, fc2_w_bf16, fc2_b, fc3_w_row, fc3_b)
    return out[:nr], sig[:nr]


# ----------------------------------------------------------------------------
# DomainAdaptationModule_triplet forward (inference-path compute)
# ----------------------------------------------------------------------------
def init_params(key, img_in_channels, num_ins_inputs):
    ks = jax.random.split(key, 5)
    # DAImgHead: conv weights ~ N(0, 0.001), biases 0.  Stored as used by the
    # kernels: conv1 as (Cin, 512) (so the 1x1 conv is a plain matmul), conv2
    # as a (1, 512) row.
    conv1_w = 0.001 * jax.random.normal(ks[0], (img_in_channels, 512), jnp.float32)
    conv1_b = jnp.zeros((1, 512), jnp.float32)
    conv2_w = 0.001 * jax.random.normal(ks[1], (1, 512), jnp.float32)
    conv2_b = jnp.zeros((1, 1), jnp.float32)
    # DAInsHead: fc1/fc2 ~ N(0, 0.01), fc3 ~ N(0, 0.05), biases 0.  fc weights
    # stored (in, out); fc3 as a (1, 1024) row.
    fc1_w = 0.01 * jax.random.normal(ks[2], (num_ins_inputs, 1024), jnp.float32)
    fc1_b = jnp.zeros((1, 1024), jnp.float32)
    fc2_w = 0.01 * jax.random.normal(ks[3], (1024, 1024), jnp.float32)
    fc2_b = jnp.zeros((1, 1024), jnp.float32)
    fc3_w = 0.05 * jax.random.normal(ks[4], (1, 1024), jnp.float32)
    fc3_b = jnp.zeros((1, 1), jnp.float32)
    return dict(conv1_w=conv1_w, conv1_b=conv1_b, conv2_w=conv2_w, conv2_b=conv2_b,
                fc1_w=fc1_w, fc1_b=fc1_b, fc2_w=fc2_w, fc2_b=fc2_b,
                fc3_w=fc3_w, fc3_b=fc3_b)


@jax.jit
def domain_adaptation_forward(img_features, da_ins_feature, params):
    """
    img_features: list[Tensor] of NCHW feature maps (non-FPN -> length 1).
    da_ins_feature: (Nr, C, 7, 7) ROI features (resnet backbone path).

    Gradient-reversal layers are identity in the forward pass, so the plain
    and "consist" branches share the same head compute; the consist branch
    additionally applies a sigmoid (done inside the kernels).
    """
    p = params
    # bf16 copies of the matmul weights (MXU operands); accumulation stays f32.
    conv1_w_bf = p["conv1_w"].astype(jnp.bfloat16)
    fc1_w_bf = p["fc1_w"].astype(jnp.bfloat16)
    fc2_w_bf = p["fc2_w"].astype(jnp.bfloat16)

    da_img_features, da_img_consist_features = da_img_head(
        img_features, conv1_w_bf, p["conv1_b"], p["conv2_w"], p["conv2_b"])

    # AvgPool2d(kernel=7, stride=7) on a 7x7 ROI map == mean over the full
    # spatial extent, then flatten -> (Nr, C).
    assert da_ins_feature.shape[2:] == (7, 7), "resnet ROI features expected 7x7"
    pooled = jnp.mean(da_ins_feature, axis=(2, 3))
    da_ins_features, da_ins_consist_features = da_ins_head(
        pooled, fc1_w_bf, p["fc1_b"], fc2_w_bf, p["fc2_b"], p["fc3_w"], p["fc3_b"])

    # TODO(synk): loss_evaluator / triplet_loss_module / PAM_Module are external
    # modules with no provided definitions; training-time losses are not computed.
    return {
        "da_img_features": da_img_features,
        "da_img_consist_features": da_img_consist_features,
        "da_ins_features": da_ins_features,
        "da_ins_consist_features": da_ins_consist_features,
    }


# ----------------------------------------------------------------------------
# Pure-JAX f32 reference (for numerical check)
# ----------------------------------------------------------------------------
def _reference(img_features, da_ins_feature, p):
    outs = {"da_img_features": [], "da_img_consist_features": []}
    for fea in img_features:
        n, c, h, w = fea.shape
        x = jnp.transpose(fea, (0, 2, 3, 1)).reshape(-1, c)
        hact = jnp.maximum(x @ p["conv1_w"] + p["conv1_b"], 0.0)
        y = hact @ p["conv2_w"].T + p["conv2_b"]
        y = y.reshape(n, h, w, 1).transpose(0, 3, 1, 2)
        outs["da_img_features"].append(y)
        outs["da_img_consist_features"].append(jax.nn.sigmoid(y))
    pooled = jnp.mean(da_ins_feature, axis=(2, 3))
    h1 = jnp.maximum(pooled @ p["fc1_w"] + p["fc1_b"], 0.0)
    h2 = jnp.maximum(h1 @ p["fc2_w"] + p["fc2_b"], 0.0)
    y = h2 @ p["fc3_w"].T + p["fc3_b"]
    outs["da_ins_features"] = y
    outs["da_ins_consist_features"] = jax.nn.sigmoid(y)
    return outs


def _assert_close(a, b, name, rtol=5e-2):
    a = jnp.asarray(a, jnp.float32)
    b = jnp.asarray(b, jnp.float32)
    err = float(jnp.max(jnp.abs(a - b)))
    scale = float(jnp.max(jnp.abs(b))) + 1e-8
    assert err <= rtol * scale + 1e-6, f"{name}: max_err={err} vs scale={scale}"


if __name__ == "__main__":
    key = jax.random.PRNGKey(0)
    k_img, k_ins, k_par = jax.random.split(key, 3)

    # Synthetic cfg: OUT_CHANNELS=64, RES2_OUT_CHANNELS=32 -> num_ins_inputs=256,
    # resnet backbone (so the avgpool path is exercised).
    img_in_channels = 64
    num_ins_inputs = 256
    num_rois = 8

    img_features = [jax.random.normal(k_img, (2, img_in_channels, 16, 16), jnp.float32)]
    da_ins_feature = jax.random.normal(k_ins, (num_rois, num_ins_inputs, 7, 7),
                                       jnp.float32)

    params = init_params(k_par, img_in_channels, num_ins_inputs)

    out = domain_adaptation_forward(img_features, da_ins_feature, params)
    jax.block_until_ready(out)

    ref = _reference(img_features, da_ins_feature, params)
    assert out["da_img_features"][0].shape == (2, 1, 16, 16)
    assert out["da_ins_features"].shape == (num_rois, 1)
    _assert_close(out["da_img_features"][0], ref["da_img_features"][0], "img_logits")
    _assert_close(out["da_img_consist_features"][0], ref["da_img_consist_features"][0],
                  "img_sigmoid")
    _assert_close(out["da_ins_features"], ref["da_ins_features"], "ins_logits")
    _assert_close(out["da_ins_consist_features"], ref["da_ins_consist_features"],
                  "ins_sigmoid")

    print("KERNEL_OK")
</pallas_src>

<mosaic_0001>
module attributes {stable_mosaic.version = 11 : i64} {
  func.func @_da_ins_head_kernel(%arg0: i32, %arg1: memref<8x256xf32, #tpu.memory_space<vmem>>, %arg2: memref<256x1024xbf16, #tpu.memory_space<vmem>>, %arg3: memref<1x1024xf32, #tpu.memory_space<vmem>>, %arg4: memref<1024x1024xbf16, #tpu.memory_space<vmem>>, %arg5: memref<1x1024xf32, #tpu.memory_space<vmem>>, %arg6: memref<1x1024xf32, #tpu.memory_space<vmem>>, %arg7: memref<1x1xf32, #tpu.memory_space<vmem>>, %arg8: memref<8x1xf32, #tpu.memory_space<vmem>>, %arg9: memref<8x1xf32, #tpu.memory_space<vmem>>) attributes {dimension_semantics = [#tpu.dimension_semantics<parallel>], iteration_bounds = array<i64: 1>, scalar_prefetch = 0 : i64, scratch_operands = 0 : i64, tpu.core_type = #tpu.core_type<tc>, window_params = [{transform_indices = @transform_0, window_bounds = array<i64: 8, 256>}, {pipeline_mode = #tpu.pipeline_mode<synchronous>, transform_indices = @transform_1, window_bounds = array<i64: 256, 1024>}, {pipeline_mode = #tpu.pipeline_mode<synchronous>, transform_indices = @transform_2, window_bounds = array<i64: 1, 1024>}, {pipeline_mode = #tpu.pipeline_mode<synchronous>, transform_indices = @transform_3, window_bounds = array<i64: 1024, 1024>}, {pipeline_mode = #tpu.pipeline_mode<synchronous>, transform_indices = @transform_4, window_bounds = array<i64: 1, 1024>}, {pipeline_mode = #tpu.pipeline_mode<synchronous>, transform_indices = @transform_5, window_bounds = array<i64: 1, 1024>}, {pipeline_mode = #tpu.pipeline_mode<synchronous>, transform_indices = @transform_6, window_bounds = array<i64: 1, 1>}, {transform_indices = @transform_7, window_bounds = array<i64: 8, 1>}, {transform_indices = @transform_8, window_bounds = array<i64: 8, 1>}]} {
    %c0 = arith.constant 0 : index
    %c0_0 = arith.constant 0 : index
    %0 = vector.load %arg1[%c0, %c0_0] : memref<8x256xf32, #tpu.memory_space<vmem>>, vector<8x256xf32>
    %1 = arith.truncf %0 : vector<8x256xf32> to vector<8x256xbf16>
    %c0_1 = arith.constant 0 : index
    %c0_2 = arith.constant 0 : index
    %2 = vector.load %arg2[%c0_1, %c0_2] : memref<256x1024xbf16, #tpu.memory_space<vmem>>, vector<256x1024xbf16>
    %cst = arith.constant dense<0.000000e+00> : vector<8x1024xf32>
    %3 = tpu.matmul %1, %2, %cst {dimension_numbers = #tpu.dot_dimension_numbers<[1], [0], [0], [1], [0, 0, 1, 1], [], []>} : vector<8x256xbf16>, vector<256x1024xbf16>, vector<8x1024xf32> -> vector<8x1024xf32>
    %c0_3 = arith.constant 0 : index
    %c0_4 = arith.constant 0 : index
    %4 = vector.load %arg3[%c0_3, %c0_4] : memref<1x1024xf32, #tpu.memory_space<vmem>>, vector<1x1024xf32>
    %5 = vector.broadcast %4 : vector<1x1024xf32> to vector<8x1024xf32>
    %6 = arith.addf %3, %5 : vector<8x1024xf32>
    %cst_5 = arith.constant 0.000000e+00 : f32
    %7 = vector.broadcast %cst_5 : f32 to vector<8x1024xf32>
    %8 = arith.maximumf %6, %7 : vector<8x1024xf32>
    %9 = arith.truncf %8 : vector<8x1024xf32> to vector<8x1024xbf16>
    %c0_6 = arith.constant 0 : index
    %c0_7 = arith.constant 0 : index
    %10 = vector.load %arg4[%c0_6, %c0_7] : memref<1024x1024xbf16, #tpu.memory_space<vmem>>, vector<1024x1024xbf16>
    %cst_8 = arith.constant dense<0.000000e+00> : vector<8x1024xf32>
    %11 = tpu.matmul %9, %10, %cst_8 {dimension_numbers = #tpu.dot_dimension_numbers<[1], [0], [0], [1], [0, 0, 1, 1], [], []>} : vector<8x1024xbf16>, vector<1024x1024xbf16>, vector<8x1024xf32> -> vector<8x1024xf32>
    %c0_9 = arith.constant 0 : index
    %c0_10 = arith.constant 0 : index
    %12 = vector.load %arg5[%c0_9, %c0_10] : memref<1x1024xf32, #tpu.memory_space<vmem>>, vector<1x1024xf32>
    %13 = vector.broadcast %12 : vector<1x1024xf32> to vector<8x1024xf32>
    %14 = arith.addf %11, %13 : vector<8x1024xf32>
    %cst_11 = arith.constant 0.000000e+00 : f32
    %15 = vector.broadcast %cst_11 : f32 to vector<8x1024xf32>
    %16 = arith.maximumf %14, %15 : vector<8x1024xf32>
    %c0_12 = arith.constant 0 : index
    %c0_13 = arith.constant 0 : index
    %17 = vector.load %arg6[%c0_12, %c0_13] : memref<1x1024xf32, #tpu.memory_space<vmem>>, vector<1x1024xf32>
    %18 = vector.broadcast %17 : vector<1x1024xf32> to vector<8x1024xf32>
    %19 = arith.mulf %16, %18 : vector<8x1024xf32>
    %cst_14 = arith.constant dense<0.000000e+00> : vector<8xf32>
    %20 = vector.multi_reduction <add>, %19, %cst_14 [1] : vector<8x1024xf32> to vector<8xf32>
    %21 = vector.shape_cast %20 : vector<8xf32> to vector<8x1xf32>
    %c0_15 = arith.constant 0 : index
    %c0_16 = arith.constant 0 : index
    %22 = vector.load %arg7[%c0_15, %c0_16] : memref<1x1xf32, #tpu.memory_space<vmem>>, vector<1x1xf32>
    %23 = vector.broadcast %22 : vector<1x1xf32> to vector<8x1xf32>
    %24 = arith.addf %21, %23 : vector<8x1xf32>
    %c0_17 = arith.constant 0 : index
    %c0_18 = arith.constant 0 : index
    %25 = vector.load %arg8[%c0_17, %c0_18] : memref<8x1xf32, #tpu.memory_space<vmem>>, vector<8x1xf32>
    tpu.vector_store %arg8[%c0_17, %c0_18], %24 {strides = array<i32>} : memref<8x1xf32, #tpu.memory_space<vmem>>, vector<8x1xf32>,
    %26 = arith.negf %24 : vector<8x1xf32>
    %27 = math.exp %26 : vector<8x1xf32>
    %cst_19 = arith.constant 1.000000e+00 : f32
    %28 = vector.broadcast %cst_19 : f32 to vector<8x1xf32>
    %29 = arith.addf %28, %27 : vector<8x1xf32>
    %30 = arith.divf %28, %29 : vector<8x1xf32>
    %c0_20 = arith.constant 0 : index
    %c0_21 = arith.constant 0 : index
    %31 = vector.load %arg9[%c0_20, %c0_21] : memref<8x1xf32, #tpu.memory_space<vmem>>, vector<8x1xf32>
    tpu.vector_store %arg9[%c0_20, %c0_21], %30 {strides = array<i32>} : memref<8x1xf32, #tpu.memory_space<vmem>>, vector<8x1xf32>,
    return
  }
  func.func @transform_0(%arg0: i32) -> (i32, i32) {
    %c0_i32 = arith.constant 0 : i32
    %c0_i32_0 = arith.constant 0 : i32
    return %arg0, %c0_i32 : i32, i32
  }
  func.func @transform_1(%arg0: i32) -> (i32, i32) {
    %c0_i32 = arith.constant 0 : i32
    %c0_i32_0 = arith.constant 0 : i32
    %c0_i32_1 = arith.constant 0 : i32
    return %c0_i32, %c0_i32_0 : i32, i32
  }
  func.func @transform_2(%arg0: i32) -> (i32, i32) {
    %c0_i32 = arith.constant 0 : i32
    %c0_i32_0 = arith.constant 0 : i32
    %c0_i32_1 = arith.constant 0 : i32
    return %c0_i32, %c0_i32_0 : i32, i32
  }
  func.func @transform_3(%arg0: i32) -> (i32, i32) {
    %c0_i32 = arith.constant 0 : i32
    %c0_i32_0 = arith.constant 0 : i32
    %c0_i32_1 = arith.constant 0 : i32
    return %c0_i32, %c0_i32_0 : i32, i32
  }
  func.func @transform_4(%arg0: i32) -> (i32, i32) {
    %c0_i32 = arith.constant 0 : i32
    %c0_i32_0 = arith.constant 0 : i32
    %c0_i32_1 = arith.constant 0 : i32
    return %c0_i32, %c0_i32_0 : i32, i32
  }
  func.func @transform_5(%arg0: i32) -> (i32, i32) {
    %c0_i32 = arith.constant 0 : i32
    %c0_i32_0 = arith.constant 0 : i32
    %c0_i32_1 = arith.constant 0 : i32
    return %c0_i32, %c0_i32_0 : i32, i32
  }
  func.func @transform_6(%arg0: i32) -> (i32, i32) {
    %c0_i32 = arith.constant 0 : i32
    %c0_i32_0 = arith.constant 0 : i32
    %c0_i32_1 = arith.constant 0 : i32
    return %c0_i32, %c0_i32_0 : i32, i32
  }
  func.func @transform_7(%arg0: i32) -> (i32, i32) {
    %c0_i32 = arith.constant 0 : i32
    %c0_i32_0 = arith.constant 0 : i32
    return %arg0, %c0_i32 : i32, i32
  }
  func.func @transform_8(%arg0: i32) -> (i32, i32) {
    %c0_i32 = arith.constant 0 : i32
    %c0_i32_0 = arith.constant 0 : i32
    return %arg0, %c0_i32 : i32, i32
  }
}

module attributes {stable_mosaic.version = 11 : i64} {
  func.func @_da_img_head_kernel(%arg0: i32, %arg1: memref<1024x64xf32, #tpu.memory_space<vmem>>, %arg2: memref<64x512xbf16, #tpu.memory_space<vmem>>, %arg3: memref<1x512xf32, #tpu.memory_space<vmem>>, %arg4: memref<1x512xf32, #tpu.memory_space<vmem>>, %arg5: memref<1x1xf32, #tpu.memory_space<vmem>>, %arg6: memref<8x128xf32, #tpu.memory_space<vmem>>, %arg7: memref<8x128xf32, #tpu.memory_space<vmem>>) attributes {dimension_semantics = [#tpu.dimension_semantics<parallel>], iteration_bounds = array<i64: 1>, scalar_prefetch = 0 : i64, scratch_operands = 0 : i64, tpu.core_type = #tpu.core_type<tc>, window_params = [{transform_indices = @transform_0, window_bounds = array<i64: 1024, 64>}, {pipeline_mode = #tpu.pipeline_mode<synchronous>, transform_indices = @transform_1, window_bounds = array<i64: 64, 512>}, {pipeline_mode = #tpu.pipeline_mode<synchronous>, transform_indices = @transform_2, window_bounds = array<i64: 1, 512>}, {pipeline_mode = #tpu.pipeline_mode<synchronous>, transform_indices = @transform_3, window_bounds = array<i64: 1, 512>}, {pipeline_mode = #tpu.pipeline_mode<synchronous>, transform_indices = @transform_4, window_bounds = array<i64: 1, 1>}, {transform_indices = @transform_5, window_bounds = array<i64: 8, 128>}, {transform_indices = @transform_6, window_bounds = array<i64: 8, 128>}]} {
    %c0 = arith.constant 0 : index
    %c0_0 = arith.constant 0 : index
    %0 = vector.load %arg1[%c0, %c0_0] : memref<1024x64xf32, #tpu.memory_space<vmem>>, vector<1024x64xf32>
    %1 = arith.truncf %0 : vector<1024x64xf32> to vector<1024x64xbf16>
    %c0_1 = arith.constant 0 : index
    %c0_2 = arith.constant 0 : index
    %2 = vector.load %arg2[%c0_1, %c0_2] : memref<64x512xbf16, #tpu.memory_space<vmem>>, vector<64x512xbf16>
    %cst = arith.constant dense<0.000000e+00> : vector<1024x512xf32>
    %3 = tpu.matmul %1, %2, %cst {dimension_numbers = #tpu.dot_dimension_numbers<[1], [0], [0], [1], [0, 0, 1, 1], [], []>} : vector<1024x64xbf16>, vector<64x512xbf16>, vector<1024x512xf32> -> vector<1024x512xf32>
    %c0_3 = arith.constant 0 : index
    %c0_4 = arith.constant 0 : index
    %4 = vector.load %arg3[%c0_3, %c0_4] : memref<1x512xf32, #tpu.memory_space<vmem>>, vector<1x512xf32>
    %5 = vector.broadcast %4 : vector<1x512xf32> to vector<1024x512xf32>
    %6 = arith.addf %3, %5 : vector<1024x512xf32>
    %cst_5 = arith.constant 0.000000e+00 : f32
    %7 = vector.broadcast %cst_5 : f32 to vector<1024x512xf32>
    %8 = arith.maximumf %6, %7 : vector<1024x512xf32>
    %9 = vector.shape_cast %8 : vector<1024x512xf32> to vector<8x128x512xf32>
    %c0_6 = arith.constant 0 : index
    %c0_7 = arith.constant 0 : index
    %10 = vector.load %arg4[%c0_6, %c0_7] : memref<1x512xf32, #tpu.memory_space<vmem>>, vector<1x512xf32>
    %11 = vector.shape_cast %10 : vector<1x512xf32> to vector<1x1x512xf32>
    %12 = vector.broadcast %11 : vector<1x1x512xf32> to vector<8x128x512xf32>
    %13 = arith.mulf %9, %12 : vector<8x128x512xf32>
    %cst_8 = arith.constant dense<0.000000e+00> : vector<8x128xf32>
    %14 = vector.multi_reduction <add>, %13, %cst_8 [2] : vector<8x128x512xf32> to vector<8x128xf32>
    %c0_9 = arith.constant 0 : index
    %c0_10 = arith.constant 0 : index
    %15 = vector.load %arg5[%c0_9, %c0_10] : memref<1x1xf32, #tpu.memory_space<vmem>>, vector<1x1xf32>
    %16 = vector.broadcast %15 : vector<1x1xf32> to vector<8x128xf32>
    %17 = arith.addf %14, %16 : vector<8x128xf32>
    %c0_11 = arith.constant 0 : index
    %c0_12 = arith.constant 0 : index
    %18 = vector.load %arg6[%c0_11, %c0_12] : memref<8x128xf32, #tpu.memory_space<vmem>>, vector<8x128xf32>
    tpu.vector_store %arg6[%c0_11, %c0_12], %17 {strides = array<i32>} : memref<8x128xf32, #tpu.memory_space<vmem>>, vector<8x128xf32>,
    %19 = arith.negf %17 : vector<8x128xf32>
    %20 = math.exp %19 : vector<8x128xf32>
    %cst_13 = arith.constant 1.000000e+00 : f32
    %21 = vector.broadcast %cst_13 : f32 to vector<8x128xf32>
    %22 = arith.addf %21, %20 : vector<8x128xf32>
    %23 = arith.divf %21, %22 : vector<8x128xf32>
    %c0_14 = arith.constant 0 : index
    %c0_15 = arith.constant 0 : index
    %24 = vector.load %arg7[%c0_14, %c0_15] : memref<8x128xf32, #tpu.memory_space<vmem>>, vector<8x128xf32>
    tpu.vector_store %arg7[%c0_14, %c0_15], %23 {strides = array<i32>} : memref<8x128xf32, #tpu.memory_space<vmem>>, vector<8x128xf32>,
    return
  }
  func.func @transform_0(%arg0: i32) -> (i32, i32) {
    %c0_i32 = arith.constant 0 : i32
    %c0_i32_0 = arith.constant 0 : i32
    return %arg0, %c0_i32 : i32, i32
  }
  func.func @transform_1(%arg0: i32) -> (i32, i32) {
    %c0_i32 = arith.constant 0 : i32
    %c0_i32_0 = arith.constant 0 : i32
    %c0_i32_1 = arith.constant 0 : i32
    return %c0_i32, %c0_i32_0 : i32, i32
  }
  func.func @transform_2(%arg0: i32) -> (i32, i32) {
    %c0_i32 = arith.constant 0 : i32
    %c0_i32_0 = arith.constant 0 : i32
    %c0_i32_1 = arith.constant 0 : i32
    return %c0_i32, %c0_i32_0 : i32, i32
  }
  func.func @transform_3(%arg0: i32) -> (i32, i32) {
    %c0_i32 = arith.constant 0 : i32
    %c0_i32_0 = arith.constant 0 : i32
    %c0_i32_1 = arith.constant 0 : i32
    return %c0_i32, %c0_i32_0 : i32, i32
  }
  func.func @transform_4(%arg0: i32) -> (i32, i32) {
    %c0_i32 = arith.constant 0 : i32
    %c0_i32_0 = arith.constant 0 : i32
    %c0_i32_1 = arith.constant 0 : i32
    return %c0_i32, %c0_i32_0 : i32, i32
  }
  func.func @transform_5(%arg0: i32) -> (i32, i32) {
    %c0_i32 = arith.constant 0 : i32
    %c0_i32_0 = arith.constant 0 : i32
    return %arg0, %c0_i32 : i32, i32
  }
  func.func @transform_6(%arg0: i32) -> (i32, i32) {
    %c0_i32 = arith.constant 0 : i32
    %c0_i32_0 = arith.constant 0 : i32
    return %arg0, %c0_i32 : i32, i32
  }
}

</mosaic_0001>

<llo_original>
// kernel: domain_adaptation_forward.2
$region0: #{domain_adaptation_forward.2}
  #allocation0 [shape = 'u32[]', space=smem, size = 0x4, offset = 0x4, fixed_abs, tag = 'smem constant byte address 0x4 - core index']
  #allocation1 [shape = 'u32[72,128]{1,0:T(1,128)}', space=vmem, size = 0x9000, scoped, tag = 'internal scratch']
  #allocation2 [shape = 'f32[1,1]{1,0:T(1,128)S(1)}', space=vmem, size = 0x200, scoped, tag = 'scoped memory for domain_adaptation_forward.2']
  %s0 = inlined_call_operand.vmem [shape: f32[1024,64], index: 0, kind: input, shape index: {}]
  %s1 = inlined_call_operand.vmem [shape: bf16[64,512], index: 1, kind: input, shape index: {}]
  %s2 = inlined_call_operand.vmem [shape: f32[1,512], index: 2, kind: input, shape index: {}]
  %s3 = inlined_call_operand.vmem [shape: f32[1,512], index: 3, kind: input, shape index: {}]
  %s4 = inlined_call_operand.<no memory space> [shape: f32[1,1], index: 4, kind: input, shape index: {}]
  %s5 = inlined_call_operand.vmem [shape: f32[8,128], index: 5, kind: output, shape index: {0}]
  %s6 = inlined_call_operand.vmem [shape: f32[8,128], index: 6, kind: output, shape index: {1}]
  %7 = xla_tuple %s5, %s6
  %s8 = sld [smem:[#allocation0]]
  $region38: #{domain_adaptation_forward.2} parent=0
    _
  %s10 = ssub.s32 1, %s8
  %s11 = scalar_select 0, %s10, %s8
  %v12 = vstv %s4
  %13 = vst [vmem:[#allocation2] sm:$0x1] %v12
  // Predicated region
  $region2: #{domain_adaptation_forward.2} parent=0 // pred_check
    _
  $region3: #{domain_adaptation_forward.2} parent=0 // pred_check_branch
    %15 = sbr.rel (0) target = $region5
  $region4: #{domain_adaptation_forward.2} parent=0 // pred_region
    _
  $region5: #{domain_adaptation_forward.2} parent=0 // pred_fallthru
    _
  // Predicated region
  $region6: #{domain_adaptation_forward.2} parent=0 // pred_check
    _
  $region7: #{domain_adaptation_forward.2} parent=0 // pred_check_branch
    %17 = sbr.rel (0) target = $region9
  $region8: #{domain_adaptation_forward.2} parent=0 // pred_region
    _
  $region9: #{domain_adaptation_forward.2} parent=0 // pred_fallthru
    _
  // Predicated region
  $region10: #{domain_adaptation_forward.2} parent=0 // pred_check
    _
  $region11: #{domain_adaptation_forward.2} parent=0 // pred_check_branch
    %19 = sbr.rel (0) target = $region13
  $region12: #{domain_adaptation_forward.2} parent=0 // pred_region
    _
  $region13: #{domain_adaptation_forward.2} parent=0 // pred_fallthru
    _
  // Predicated region
  $region14: #{domain_adaptation_forward.2} parent=0 // pred_check
    _
  $region15: #{domain_adaptation_forward.2} parent=0 // pred_check_branch
    %21 = sbr.rel (0) target = $region17
  $region16: #{domain_adaptation_forward.2} parent=0 // pred_region
    _
  $region17: #{domain_adaptation_forward.2} parent=0 // pred_fallthru
    _
  // Predicated region
  $region18: #{domain_adaptation_forward.2} parent=0 // pred_check
    _
  $region19: #{domain_adaptation_forward.2} parent=0 // pred_check_branch
    %23 = sbr.rel (0) target = $region21
  $region20: #{domain_adaptation_forward.2} parent=0 // pred_region
    _
  $region21: #{domain_adaptation_forward.2} parent=0 // pred_fallthru
    _
  %v25 = vld [vmem:[%s0] sm:$0xff]
  %v26 = vld [vmem:[%s0 + $0x8] sm:$0xff]
  %v27 = vld [vmem:[%s0 + $0x10] sm:$0xff]
  %v28 = vld [vmem:[%s0 + $0x18] sm:$0xff]
  %v29 = vld [vmem:[%s0 + $0x20] sm:$0xff]
  %v30 = vld [vmem:[%s0 + $0x28] sm:$0xff]
  %v31 = vld [vmem:[%s0 + $0x30] sm:$0xff]
  %v32 = vld [vmem:[%s0 + $0x38] sm:$0xff]
  %v33 = vld [vmem:[%s0 + $0x40] sm:$0xff]
  %v34 = vld [vmem:[%s0 + $0x48] sm:$0xff]
  %v35 = vld [vmem:[%s0 + $0x50] sm:$0xff]
  %v36 = vld [vmem:[%s0 + $0x58] sm:$0xff]
  %v37 = vld [vmem:[%s0 + $0x60] sm:$0xff]
  %v38 = vld [vmem:[%s0 + $0x68] sm:$0xff]
  %v39 = vld [vmem:[%s0 + $0x70] sm:$0xff]
  %v40 = vld [vmem:[%s0 + $0x78] sm:$0xff]
  %v41 = vld [vmem:[%s0 + $0x80] sm:$0xff]
  %v42 = vld [vmem:[%s0 + $0x88] sm:$0xff]
  %v43 = vld [vmem:[%s0 + $0x90] sm:$0xff]
  %v44 = vld [vmem:[%s0 + $0x98] sm:$0xff]
  %v45 = vld [vmem:[%s0 + $0xa0] sm:$0xff]
  %v46 = vld [vmem:[%s0 + $0xa8] sm:$0xff]
  %v47 = vld [vmem:[%s0 + $0xb0] sm:$0xff]
  %v48 = vld [vmem:[%s0 + $0xb8] sm:$0xff]
  %v49 = vld [vmem:[%s0 + $0xc0] sm:$0xff]
  %v50 = vld [vmem:[%s0 + $0xc8] sm:$0xff]
  %v51 = vld [vmem:[%s0 + $0xd0] sm:$0xff]
  %v52 = vld [vmem:[%s0 + $0xd8] sm:$0xff]
  %v53 = vld [vmem:[%s0 + $0xe0] sm:$0xff]
  %v54 = vld [vmem:[%s0 + $0xe8] sm:$0xff]
  %v55 = vld [vmem:[%s0 + $0xf0] sm:$0xff]
  %v56 = vld [vmem:[%s0 + $0xf8] sm:$0xff]
  %v57 = vld [vmem:[%s0 + $0x100] sm:$0xff]
  %v58 = vld [vmem:[%s0 + $0x108] sm:$0xff]
  %v59 = vld [vmem:[%s0 + $0x110] sm:$0xff]
  %v60 = vld [vmem:[%s0 + $0x118] sm:$0xff]
  %v61 = vld [vmem:[%s0 + $0x120] sm:$0xff]
  %v62 = vld [vmem:[%s0 + $0x128] sm:$0xff]
  %v63 = vld [vmem:[%s0 + $0x130] sm:$0xff]
  %v64 = vld [vmem:[%s0 + $0x138] sm:$0xff]
  %v65 = vld [vmem:[%s0 + $0x140] sm:$0xff]
  %v66 = vld [vmem:[%s0 + $0x148] sm:$0xff]
  %v67 = vld [vmem:[%s0 + $0x150] sm:$0xff]
  %v68 = vld [vmem:[%s0 + $0x158] sm:$0xff]
  %v69 = vld [vmem:[%s0 + $0x160] sm:$0xff]
  %v70 = vld [vmem:[%s0 + $0x168] sm:$0xff]
  %v71 = vld [vmem:[%s0 + $0x170] sm:$0xff]
  %v72 = vld [vmem:[%s0 + $0x178] sm:$0xff]
  %v73 = vld [vmem:[%s0 + $0x180] sm:$0xff]
  %v74 = vld [vmem:[%s0 + $0x188] sm:$0xff]
  %v75 = vld [vmem:[%s0 + $0x190] sm:$0xff]
  %v76 = vld [vmem:[%s0 + $0x198] sm:$0xff]
  %v77 = vld [vmem:[%s0 + $0x1a0] sm:$0xff]
  %v78 = vld [vmem:[%s0 + $0x1a8] sm:$0xff]
  %v79 = vld [vmem:[%s0 + $0x1b0] sm:$0xff]
  %v80 = vld [vmem:[%s0 + $0x1b8] sm:$0xff]
  %v81 = vld [vmem:[%s0 + $0x1c0] sm:$0xff]
  %v82 = vld [vmem:[%s0 + $0x1c8] sm:$0xff]
  %v83 = vld [vmem:[%s0 + $0x1d0] sm:$0xff]
  %v84 = vld [vmem:[%s0 + $0x1d8] sm:$0xff]
  %v85 = vld [vmem:[%s0 + $0x1e0] sm:$0xff]
  %v86 = vld [vmem:[%s0 + $0x1e8] sm:$0xff]
  %v87 = vld [vmem:[%s0 + $0x1f0] sm:$0xff]
  %v88 = vld [vmem:[%s0 + $0x1f8] sm:$0xff]
  %v89 = vld [vmem:[%s0 + $0x200] sm:$0xff]
  %v90 = vld [vmem:[%s0 + $0x208] sm:$0xff]
  %v91 = vld [vmem:[%s0 + $0x210] sm:$0xff]
  %v92 = vld [vmem:[%s0 + $0x218] sm:$0xff]
  %v93 = vld [vmem:[%s0 + $0x220] sm:$0xff]
  %v94 = vld [vmem:[%s0 + $0x228] sm:$0xff]
  %v95 = vld [vmem:[%s0 + $0x230] sm:$0xff]
  %v96 = vld [vmem:[%s0 + $0x238] sm:$0xff]
  %v97 = vld [vmem:[%s0 + $0x240] sm:$0xff]
  %v98 = vld [vmem:[%s0 + $0x248] sm:$0xff]
  %v99 = vld [vmem:[%s0 + $0x250] sm:$0xff]
  %v100 = vld [vmem:[%s0 + $0x258] sm:$0xff]
  %v101 = vld [vmem:[%s0 + $0x260] sm:$0xff]
  %v102 = vld [vmem:[%s0 + $0x268] sm:$0xff]
  %v103 = vld [vmem:[%s0 + $0x270] sm:$0xff]
  %v104 = vld [vmem:[%s0 + $0x278] sm:$0xff]
  %v105 = vld [vmem:[%s0 + $0x280] sm:$0xff]
  %v106 = vld [vmem:[%s0 + $0x288] sm:$0xff]
  %v107 = vld [vmem:[%s0 + $0x290] sm:$0xff]
  %v108 = vld [vmem:[%s0 + $0x298] sm:$0xff]
  %v109 = vld [vmem:[%s0 + $0x2a0] sm:$0xff]
  %v110 = vld [vmem:[%s0 + $0x2a8] sm:$0xff]
  %v111 = vld [vmem:[%s0 + $0x2b0] sm:$0xff]
  %v112 = vld [vmem:[%s0 + $0x2b8] sm:$0xff]
  %v113 = vld [vmem:[%s0 + $0x2c0] sm:$0xff]
  %v114 = vld [vmem:[%s0 + $0x2c8] sm:$0xff]
  %v115 = vld [vmem:[%s0 + $0x2d0] sm:$0xff]
  %v116 = vld [vmem:[%s0 + $0x2d8] sm:$0xff]
  %v117 = vld [vmem:[%s0 + $0x2e0] sm:$0xff]
  %v118 = vld [vmem:[%s0 + $0x2e8] sm:$0xff]
  %v119 = vld [vmem:[%s0 + $0x2f0] sm:$0xff]
  %v120 = vld [vmem:[%s0 + $0x2f8] sm:$0xff]
  %v121 = vld [vmem:[%s0 + $0x300] sm:$0xff]
  %v122 = vld [vmem:[%s0 + $0x308] sm:$0xff]
  %v123 = vld [vmem:[%s0 + $0x310] sm:$0xff]
  %v124 = vld [vmem:[%s0 + $0x318] sm:$0xff]
  %v125 = vld [vmem:[%s0 + $0x320] sm:$0xff]
  %v126 = vld [vmem:[%s0 + $0x328] sm:$0xff]
  %v127 = vld [vmem:[%s0 + $0x330] sm:$0xff]
  %v128 = vld [vmem:[%s0 + $0x338] sm:$0xff]
  %v129 = vld [vmem:[%s0 + $0x340] sm:$0xff]
  %v130 = vld [vmem:[%s0 + $0x348] sm:$0xff]
  %v131 = vld [vmem:[%s0 + $0x350] sm:$0xff]
  %v132 = vld [vmem:[%s0 + $0x358] sm:$0xff]
  %v133 = vld [vmem:[%s0 + $0x360] sm:$0xff]
  %v134 = vld [vmem:[%s0 + $0x368] sm:$0xff]
  %v135 = vld [vmem:[%s0 + $0x370] sm:$0xff]
  %v136 = vld [vmem:[%s0 + $0x378] sm:$0xff]
  %v137 = vld [vmem:[%s0 + $0x380] sm:$0xff]
  %v138 = vld [vmem:[%s0 + $0x388] sm:$0xff]
  %v139 = vld [vmem:[%s0 + $0x390] sm:$0xff]
  %v140 = vld [vmem:[%s0 + $0x398] sm:$0xff]
  %v141 = vld [vmem:[%s0 + $0x3a0] sm:$0xff]
  %v142 = vld [vmem:[%s0 + $0x3a8] sm:$0xff]
  %v143 = vld [vmem:[%s0 + $0x3b0] sm:$0xff]
  %v144 = vld [vmem:[%s0 + $0x3b8] sm:$0xff]
  %v145 = vld [vmem:[%s0 + $0x3c0] sm:$0xff]
  %v146 = vld [vmem:[%s0 + $0x3c8] sm:$0xff]
  %v147 = vld [vmem:[%s0 + $0x3d0] sm:$0xff]
  %v148 = vld [vmem:[%s0 + $0x3d8] sm:$0xff]
  %v149 = vld [vmem:[%s0 + $0x3e0] sm:$0xff]
  %v150 = vld [vmem:[%s0 + $0x3e8] sm:$0xff]
  %v151 = vld [vmem:[%s0 + $0x3f0] sm:$0xff]
  %v152 = vld [vmem:[%s0 + $0x3f8] sm:$0xff]
  %v153 = vpack.c.bf16 %v26, %v25
  %v154 = vpack.c.bf16 %v28, %v27
  %v155 = vpack.c.bf16 %v30, %v29
  %v156 = vpack.c.bf16 %v32, %v31
  %v157 = vpack.c.bf16 %v34, %v33
  %v158 = vpack.c.bf16 %v36, %v35
  %v159 = vpack.c.bf16 %v38, %v37
  %v160 = vpack.c.bf16 %v40, %v39
  %v161 = vpack.c.bf16 %v42, %v41
  %v162 = vpack.c.bf16 %v44, %v43
  %v163 = vpack.c.bf16 %v46, %v45
  %v164 = vpack.c.bf16 %v48, %v47
  %v165 = vpack.c.bf16 %v50, %v49
  %v166 = vpack.c.bf16 %v52, %v51
  %v167 = vpack.c.bf16 %v54, %v53
  %v168 = vpack.c.bf16 %v56, %v55
  %v169 = vpack.c.bf16 %v58, %v57
  %v170 = vpack.c.bf16 %v60, %v59
  %v171 = vpack.c.bf16 %v62, %v61
  %v172 = vpack.c.bf16 %v64, %v63
  %v173 = vpack.c.bf16 %v66, %v65
  %v174 = vpack.c.bf16 %v68, %v67
  %v175 = vpack.c.bf16 %v70, %v69
  %v176 = vpack.c.bf16 %v72, %v71
  %v177 = vpack.c.bf16 %v74, %v73
  %v178 = vpack.c.bf16 %v76, %v75
  %v179 = vpack.c.bf16 %v78, %v77
  %v180 = vpack.c.bf16 %v80, %v79
  %v181 = vpack.c.bf16 %v82, %v81
  %v182 = vpack.c.bf16 %v84, %v83
  %v183 = vpack.c.bf16 %v86, %v85
  %v184 = vpack.c.bf16 %v88, %v87
  %v185 = vpack.c.bf16 %v90, %v89
  %v186 = vpack.c.bf16 %v92, %v91
  %v187 = vpack.c.bf16 %v94, %v93
  %v188 = vpack.c.bf16 %v96, %v95
  %v189 = vpack.c.bf16 %v98, %v97
  %v190 = vpack.c.bf16 %v100, %v99
  %v191 = vpack.c.bf16 %v102, %v101
  %v192 = vpack.c.bf16 %v104, %v103
  %v193 = vpack.c.bf16 %v106, %v105
  %v194 = vpack.c.bf16 %v108, %v107
  %v195 = vpack.c.bf16 %v110, %v109
  %v196 = vpack.c.bf16 %v112, %v111
  %v197 = vpack.c.bf16 %v114, %v113
  %v198 = vpack.c.bf16 %v116, %v115
  %v199 = vpack.c.bf16 %v118, %v117
  %v200 = vpack.c.bf16 %v120, %v119
  %v201 = vpack.c.bf16 %v122, %v121
  %v202 = vpack.c.bf16 %v124, %v123
  %v203 = vpack.c.bf16 %v126, %v125
  %v204 = vpack.c.bf16 %v128, %v127
  %v205 = vpack.c.bf16 %v130, %v129
  %v206 = vpack.c.bf16 %v132, %v131
  %v207 = vpack.c.bf16 %v134, %v133
  %v208 = vpack.c.bf16 %v136, %v135
  %v209 = vpack.c.bf16 %v138, %v137
  %v210 = vpack.c.bf16 %v140, %v139
  %v211 = vpack.c.bf16 %v142, %v141
  %v212 = vpack.c.bf16 %v144, %v143
  %v213 = vpack.c.bf16 %v146, %v145
  %v214 = vpack.c.bf16 %v148, %v147
  %v215 = vpack.c.bf16 %v150, %v149
  %v216 = vpack.c.bf16 %v152, %v151
  %v217 = vld [vmem:[%s1] sm:$0xff]
  %v218 = vld [vmem:[%s1 + $0x8] sm:$0xff]
  %v219 = vld [vmem:[%s1 + $0x10] sm:$0xff]
  %v220 = vld [vmem:[%s1 + $0x18] sm:$0xff]
  %v221 = vld [vmem:[%s1 + $0x20] sm:$0xff]
  %v222 = vld [vmem:[%s1 + $0x28] sm:$0xff]
  %v223 = vld [vmem:[%s1 + $0x30] sm:$0xff]
  %v224 = vld [vmem:[%s1 + $0x38] sm:$0xff]
  %v225 = vld [vmem:[%s1 + $0x40] sm:$0xff]
  %v226 = vld [vmem:[%s1 + $0x48] sm:$0xff]
  %v227 = vld [vmem:[%s1 + $0x50] sm:$0xff]
  %v228 = vld [vmem:[%s1 + $0x58] sm:$0xff]
  %v229 = vld [vmem:[%s1 + $0x60] sm:$0xff]
  %v230 = vld [vmem:[%s1 + $0x68] sm:$0xff]
  %v231 = vld [vmem:[%s1 + $0x70] sm:$0xff]
  %v232 = vld [vmem:[%s1 + $0x78] sm:$0xff]
  %v233 = vld [vmem:[%s2] sm:$0xf]
  %v235 = vperm.slane %v233, 0
  %v236 = vperm.slane %v233, 1
  %v237 = vperm.slane %v233, 2
  %v238 = vperm.slane %v233, 3
  %v259 = vunpack.c.l.b16 %v217
  %v260 = vunpack.c.h.b16 %v217
  %v261 = vunpack.c.l.b16 %v218
  %v262 = vunpack.c.h.b16 %v218
  %v263 = vunpack.c.l.b16 %v219
  %v264 = vunpack.c.h.b16 %v219
  %v265 = vunpack.c.l.b16 %v220
  %v266 = vunpack.c.h.b16 %v220
  %v267 = vunpack.c.l.b16 %v221
  %v268 = vunpack.c.h.b16 %v221
  %v269 = vunpack.c.l.b16 %v222
  %v270 = vunpack.c.h.b16 %v222
  %v271 = vunpack.c.l.b16 %v223
  %v272 = vunpack.c.h.b16 %v223
  %v273 = vunpack.c.l.b16 %v224
  %v274 = vunpack.c.h.b16 %v224
  %v275 = vunpack.c.l.b16 %v225
  %v276 = vunpack.c.h.b16 %v225
  %v277 = vunpack.c.l.b16 %v226
  %v278 = vunpack.c.h.b16 %v226
  %v279 = vunpack.c.l.b16 %v227
  %v280 = vunpack.c.h.b16 %v227
  %v281 = vunpack.c.l.b16 %v228
  %v282 = vunpack.c.h.b16 %v228
  %v283 = vunpack.c.l.b16 %v229
  %v284 = vunpack.c.h.b16 %v229
  %v285 = vunpack.c.l.b16 %v230
  %v286 = vunpack.c.h.b16 %v230
  %v287 = vunpack.c.l.b16 %v231
  %v288 = vunpack.c.h.b16 %v231
  %v289 = vunpack.c.l.b16 %v232
  %v290 = vunpack.c.h.b16 %v232
  %v291 = vpack.c.b16 %v263, %v259
  %v292 = vpack.c.b16 %v264, %v260
  %v293 = vpack.c.b16 %v265, %v261
  %v294 = vpack.c.b16 %v266, %v262
  %v295 = vpack.c.b16 %v271, %v267
  %v296 = vpack.c.b16 %v272, %v268
  %v297 = vpack.c.b16 %v273, %v269
  %v298 = vpack.c.b16 %v274, %v270
  %v299 = vpack.c.b16 %v279, %v275
  %v300 = vpack.c.b16 %v280, %v276
  %v301 = vpack.c.b16 %v281, %v277
  %v302 = vpack.c.b16 %v282, %v278
  %v303 = vpack.c.b16 %v287, %v283
  %v304 = vpack.c.b16 %v288, %v284
  %v305 = vpack.c.b16 %v289, %v285
  %v306 = vpack.c.b16 %v290, %v286
  %vm323 = vcmask 523264
  %v325 = vsel %vm323, %v153, 0
  %v328 = vsel %vm323, %v154, 0
  %v331 = vsel %vm323, %v155, 0
  %v334 = vsel %vm323, %v156, 0
  %v337 = vsel %vm323, %v157, 0
  %v340 = vsel %vm323, %v158, 0
  %v343 = vsel %vm323, %v159, 0
  %v346 = vsel %vm323, %v160, 0
  %v349 = vsel %vm323, %v161, 0
  %v352 = vsel %vm323, %v162, 0
  %v355 = vsel %vm323, %v163, 0
  %v358 = vsel %vm323, %v164, 0
  %v361 = vsel %vm323, %v165, 0
  %v364 = vsel %vm323, %v166, 0
  %v367 = vsel %vm323, %v167, 0
  %v370 = vsel %vm323, %v168, 0
  %v373 = vsel %vm323, %v169, 0
  %v376 = vsel %vm323, %v170, 0
  %v379 = vsel %vm323, %v171, 0
  %v382 = vsel %vm323, %v172, 0
  %v385 = vsel %vm323, %v173, 0
  %v388 = vsel %vm323, %v174, 0
  %v391 = vsel %vm323, %v175, 0
  %v394 = vsel %vm323, %v176, 0
  %v397 = vsel %vm323, %v177, 0
  %v400 = vsel %vm323, %v178, 0
  %v403 = vsel %vm323, %v179, 0
  %v406 = vsel %vm323, %v180, 0
  %v409 = vsel %vm323, %v181, 0
  %v412 = vsel %vm323, %v182, 0
  %v415 = vsel %vm323, %v183, 0
  %v418 = vsel %vm323, %v184, 0
  %v421 = vsel %vm323, %v185, 0
  %v424 = vsel %vm323, %v186, 0
  %v427 = vsel %vm323, %v187, 0
  %v430 = vsel %vm323, %v188, 0
  %v433 = vsel %vm323, %v189, 0
  %v436 = vsel %vm323, %v190, 0
  %v439 = vsel %vm323, %v191, 0
  %v442 = vsel %vm323, %v192, 0
  %v445 = vsel %vm323, %v193, 0
  %v448 = vsel %vm323, %v194, 0
  %v451 = vsel %vm323, %v195, 0
  %v454 = vsel %vm323, %v196, 0
  %v457 = vsel %vm323, %v197, 0
  %v460 = vsel %vm323, %v198, 0
  %v463 = vsel %vm323, %v199, 0
  %v466 = vsel %vm323, %v200, 0
  %v469 = vsel %vm323, %v201, 0
  %v472 = vsel %vm323, %v202, 0
  %v475 = vsel %vm323, %v203, 0
  %v478 = vsel %vm323, %v204, 0
  %v481 = vsel %vm323, %v205, 0
  %v484 = vsel %vm323, %v206, 0
  %v487 = vsel %vm323, %v207, 0
  %v490 = vsel %vm323, %v208, 0
  %v493 = vsel %vm323, %v209, 0
  %v496 = vsel %vm323, %v210, 0
  %v499 = vsel %vm323, %v211, 0
  %v502 = vsel %vm323, %v212, 0
  %v505 = vsel %vm323, %v213, 0
  %v508 = vsel %vm323, %v214, 0
  %v511 = vsel %vm323, %v215, 0
  %v514 = vsel %vm323, %v216, 0
  %516 = vmatpush.bf16.msra.mxu0 0
  %517 = vmatpush.bf16.msra.mxu0 0
  %518 = vmatpush.bf16.msra.mxu0 0
  %519 = vmatpush.bf16.msra.mxu0 0
  %520 = vmatpush.bf16.msra.mxu0 %v303
  %521 = vmatpush.bf16.msra.mxu0 %v299
  %522 = vmatpush.bf16.msra.mxu0 %v295
  %523 = vmatpush.bf16.msra.mxu0 %v291
  %524 = vmatmul.bf16.gmra.mxu0 %v325
  %v525 = vpop.f32.mrf.mxu0
  %v526 = vadd.f32 %v235, %v525
  %v527 = vpop.f32.mrf.mxu0
  %v528 = vadd.f32 %v235, %v527
  %529 = vmatmul.bf16.gmra.mxu0 %v328
  %v530 = vpop.f32.mrf.mxu0
  %v531 = vadd.f32 %v235, %v530
  %v532 = vpop.f32.mrf.mxu0
  %v533 = vadd.f32 %v235, %v532
  %534 = vmatmul.bf16.gmra.mxu0 %v331
  %v535 = vpop.f32.mrf.mxu0
  %v536 = vadd.f32 %v235, %v535
  %v537 = vpop.f32.mrf.mxu0
  %v538 = vadd.f32 %v235, %v537
  %539 = vmatmul.bf16.gmra.mxu0 %v334
  %v540 = vpop.f32.mrf.mxu0
  %v541 = vadd.f32 %v235, %v540
  %v542 = vpop.f32.mrf.mxu0
  %v543 = vadd.f32 %v235, %v542
  %544 = vmatmul.bf16.gmra.mxu0 %v337
  %v545 = vpop.f32.mrf.mxu0
  %v546 = vadd.f32 %v235, %v545
  %v547 = vpop.f32.mrf.mxu0
  %v548 = vadd.f32 %v235, %v547
  %549 = vmatmul.bf16.gmra.mxu0 %v340
  %v550 = vpop.f32.mrf.mxu0
  %v551 = vadd.f32 %v235, %v550
  %v552 = vpop.f32.mrf.mxu0
  %v553 = vadd.f32 %v235, %v552
  %554 = vmatmul.bf16.gmra.mxu0 %v343
  %v555 = vpop.f32.mrf.mxu0
  %v556 = vadd.f32 %v235, %v555
  %v557 = vpop.f32.mrf.mxu0
  %v558 = vadd.f32 %v235, %v557
  %559 = vmatmul.bf16.gmra.mxu0 %v346
  %v560 = vpop.f32.mrf.mxu0
  %v561 = vadd.f32 %v235, %v560
  %v562 = vpop.f32.mrf.mxu0
  %v563 = vadd.f32 %v235, %v562
  %564 = vmatmul.bf16.gmra.mxu0 %v349
  %v565 = vpop.f32.mrf.mxu0
  %v566 = vadd.f32 %v235, %v565
  %v567 = vpop.f32.mrf.mxu0
  %v568 = vadd.f32 %v235, %v567
  %569 = vmatmul.bf16.gmra.mxu0 %v352
  %v570 = vpop.f32.mrf.mxu0
  %v571 = vadd.f32 %v235, %v570
  %v572 = vpop.f32.mrf.mxu0
  %v573 = vadd.f32 %v235, %v572
  %574 = vmatmul.bf16.gmra.mxu0 %v355
  %v575 = vpop.f32.mrf.mxu0
  %v576 = vadd.f32 %v235, %v575
  %v577 = vpop.f32.mrf.mxu0
  %v578 = vadd.f32 %v235, %v577
  %579 = vmatmul.bf16.gmra.mxu0 %v358
  %v580 = vpop.f32.mrf.mxu0
  %v581 = vadd.f32 %v235, %v580
  %v582 = vpop.f32.mrf.mxu0
  %v583 = vadd.f32 %v235, %v582
  %584 = vmatmul.bf16.gmra.mxu0 %v361
  %v585 = vpop.f32.mrf.mxu0
  %v586 = vadd.f32 %v235, %v585
  %v587 = vpop.f32.mrf.mxu0
  %v588 = vadd.f32 %v235, %v587
  %589 = vmatmul.bf16.gmra.mxu0 %v364
  %v590 = vpop.f32.mrf.mxu0
  %v591 = vadd.f32 %v235, %v590
  %v592 = vpop.f32.mrf.mxu0
  %v593 = vadd.f32 %v235, %v592
  %594 = vmatmul.bf16.gmra.mxu0 %v367
  %v595 = vpop.f32.mrf.mxu0
  %v596 = vadd.f32 %v235, %v595
  %v597 = vpop.f32.mrf.mxu0
  %v598 = vadd.f32 %v235, %v597
  %599 = vmatmul.bf16.gmra.mxu0 %v370
  %v600 = vpop.f32.mrf.mxu0
  %v601 = vadd.f32 %v235, %v600
  %v602 = vpop.f32.mrf.mxu0
  %v603 = vadd.f32 %v235, %v602
  %604 = vmatmul.bf16.gmra.mxu0 %v373
  %v605 = vpop.f32.mrf.mxu0
  %v606 = vadd.f32 %v235, %v605
  %v607 = vpop.f32.mrf.mxu0
  %v608 = vadd.f32 %v235, %v607
  %609 = vmatmul.bf16.gmra.mxu0 %v376
  %v610 = vpop.f32.mrf.mxu0
  %v611 = vadd.f32 %v235, %v610
  %v612 = vpop.f32.mrf.mxu0
  %v613 = vadd.f32 %v235, %v612
  %614 = vmatmul.bf16.gmra.mxu0 %v379
  %v615 = vpop.f32.mrf.mxu0
  %v616 = vadd.f32 %v235, %v615
  %v617 = vpop.f32.mrf.mxu0
  %v618 = vadd.f32 %v235, %v617
  %619 = vmatmul.bf16.gmra.mxu0 %v382
  %v620 = vpop.f32.mrf.mxu0
  %v621 = vadd.f32 %v235, %v620
  %v622 = vpop.f32.mrf.mxu0
  %v623 = vadd.f32 %v235, %v622
  %624 = vmatmul.bf16.gmra.mxu0 %v385
  %v625 = vpop.f32.mrf.mxu0
  %v626 = vadd.f32 %v235, %v625
  %v627 = vpop.f32.mrf.mxu0
  %v628 = vadd.f32 %v235, %v627
  %629 = vmatmul.bf16.gmra.mxu0 %v388
  %v630 = vpop.f32.mrf.mxu0
  %v631 = vadd.f32 %v235, %v630
  %v632 = vpop.f32.mrf.mxu0
  %v633 = vadd.f32 %v235, %v632
  %634 = vmatmul.bf16.gmra.mxu0 %v391
  %v635 = vpop.f32.mrf.mxu0
  %v636 = vadd.f32 %v235, %v635
  %v637 = vpop.f32.mrf.mxu0
  %v638 = vadd.f32 %v235, %v637
  %639 = vmatmul.bf16.gmra.mxu0 %v394
  %v640 = vpop.f32.mrf.mxu0
  %v641 = vadd.f32 %v235, %v640
  %v642 = vpop.f32.mrf.mxu0
  %v643 = vadd.f32 %v235, %v642
  %644 = vmatmul.bf16.gmra.mxu0 %v397
  %v645 = vpop.f32.mrf.mxu0
  %v646 = vadd.f32 %v235, %v645
  %v647 = vpop.f32.mrf.mxu0
  %v648 = vadd.f32 %v235, %v647
  %649 = vmatmul.bf16.gmra.mxu0 %v400
  %v650 = vpop.f32.mrf.mxu0
  %v651 = vadd.f32 %v235, %v650
  %v652 = vpop.f32.mrf.mxu0
  %v653 = vadd.f32 %v235, %v652
  %654 = vmatmul.bf16.gmra.mxu0 %v403
  %v655 = vpop.f32.mrf.mxu0
  %v656 = vadd.f32 %v235, %v655
  %v657 = vpop.f32.mrf.mxu0
  %v658 = vadd.f32 %v235, %v657
  %659 = vmatmul.bf16.gmra.mxu0 %v406
  %v660 = vpop.f32.mrf.mxu0
  %v661 = vadd.f32 %v235, %v660
  %v662 = vpop.f32.mrf.mxu0
  %v663 = vadd.f32 %v235, %v662
  %664 = vmatmul.bf16.gmra.mxu0 %v409
  %v665 = vpop.f32.mrf.mxu0
  %v666 = vadd.f32 %v235, %v665
  %v667 = vpop.f32.mrf.mxu0
  %v668 = vadd.f32 %v235, %v667
  %669 = vmatmul.bf16.gmra.mxu0 %v412
  %v670 = vpop.f32.mrf.mxu0
  %v671 = vadd.f32 %v235, %v670
  %v672 = vpop.f32.mrf.mxu0
  %v673 = vadd.f32 %v235, %v672
  %674 = vmatmul.bf16.gmra.mxu0 %v415
  %v675 = vpop.f32.mrf.mxu0
  %v676 = vadd.f32 %v235, %v675
  %v677 = vpop.f32.mrf.mxu0
  %v678 = vadd.f32 %v235, %v677
  %679 = vmatmul.bf16.gmra.mxu0 %v418
  %v680 = vpop.f32.mrf.mxu0
  %v681 = vadd.f32 %v235, %v680
  %v682 = vpop.f32.mrf.mxu0
  %v683 = vadd.f32 %v235, %v682
  %684 = vmatmul.bf16.gmra.mxu0 %v421
  %v685 = vpop.f32.mrf.mxu0
  %v686 = vadd.f32 %v235, %v685
  %v687 = vpop.f32.mrf.mxu0
  %v688 = vadd.f32 %v235, %v687
  %689 = vmatmul.bf16.gmra.mxu0 %v424
  %v690 = vpop.f32.mrf.mxu0
  %v691 = vadd.f32 %v235, %v690
  %v692 = vpop.f32.mrf.mxu0
  %v693 = vadd.f32 %v235, %v692
  %694 = vmatmul.bf16.gmra.mxu0 %v427
  %v695 = vpop.f32.mrf.mxu0
  %v696 = vadd.f32 %v235, %v695
  %v697 = vpop.f32.mrf.mxu0
  %v698 = vadd.f32 %v235, %v697
  %699 = vmatmul.bf16.gmra.mxu0 %v430
  %v700 = vpop.f32.mrf.mxu0
  %v701 = vadd.f32 %v235, %v700
  %v702 = vpop.f32.mrf.mxu0
  %v703 = vadd.f32 %v235, %v702
  %704 = vmatmul.bf16.gmra.mxu0 %v433
  %v705 = vpop.f32.mrf.mxu0
  %v706 = vadd.f32 %v235, %v705
  %v707 = vpop.f32.mrf.mxu0
  %v708 = vadd.f32 %v235, %v707
  %709 = vmatmul.bf16.gmra.mxu0 %v436
  %v710 = vpop.f32.mrf.mxu0
  %v711 = vadd.f32 %v235, %v710
  %v712 = vpop.f32.mrf.mxu0
  %v713 = vadd.f32 %v235, %v712
  %714 = vmatmul.bf16.gmra.mxu0 %v439
  %v715 = vpop.f32.mrf.mxu0
  %v716 = vadd.f32 %v235, %v715
  %v717 = vpop.f32.mrf.mxu0
  %v718 = vadd.f32 %v235, %v717
  %719 = vmatmul.bf16.gmra.mxu0 %v442
  %v720 = vpop.f32.mrf.mxu0
  %v721 = vadd.f32 %v235, %v720
  %v722 = vpop.f32.mrf.mxu0
  %v723 = vadd.f32 %v235, %v722
  %724 = vmatmul.bf16.gmra.mxu0 %v445
  %v725 = vpop.f32.mrf.mxu0
  %v726 = vadd.f32 %v235, %v725
  %v727 = vpop.f32.mrf.mxu0
  %v728 = vadd.f32 %v235, %v727
  %729 = vmatmul.bf16.gmra.mxu0 %v448
  %v730 = vpop.f32.mrf.mxu0
  %v731 = vadd.f32 %v235, %v730
  %v732 = vpop.f32.mrf.mxu0
  %v733 = vadd.f32 %v235, %v732
  %734 = vmatmul.bf16.gmra.mxu0 %v451
  %v735 = vpop.f32.mrf.mxu0
  %v736 = vadd.f32 %v235, %v735
  %v737 = vpop.f32.mrf.mxu0
  %v738 = vadd.f32 %v235, %v737
  %739 = vmatmul.bf16.gmra.mxu0 %v454
  %v740 = vpop.f32.mrf.mxu0
  %v741 = vadd.f32 %v235, %v740
  %v742 = vpop.f32.mrf.mxu0
  %v743 = vadd.f32 %v235, %v742
  %744 = vmatmul.bf16.gmra.mxu0 %v457
  %v745 = vpop.f32.mrf.mxu0
  %v746 = vadd.f32 %v235, %v745
  %v747 = vpop.f32.mrf.mxu0
  %v748 = vadd.f32 %v235, %v747
  %749 = vmatmul.bf16.gmra.mxu0 %v460
  %v750 = vpop.f32.mrf.mxu0
  %v751 = vadd.f32 %v235, %v750
  %v752 = vpop.f32.mrf.mxu0
  %v753 = vadd.f32 %v235, %v752
  %754 = vmatmul.bf16.gmra.mxu0 %v463
  %v755 = vpop.f32.mrf.mxu0
  %v756 = vadd.f32 %v235, %v755
  %v757 = vpop.f32.mrf.mxu0
  %v758 = vadd.f32 %v235, %v757
  %759 = vmatmul.bf16.gmra.mxu0 %v466
  %v760 = vpop.f32.mrf.mxu0
  %v761 = vadd.f32 %v235, %v760
  %v762 = vpop.f32.mrf.mxu0
  %v763 = vadd.f32 %v235, %v762
  %764 = vmatmul.bf16.gmra.mxu0 %v469
  %v765 = vpop.f32.mrf.mxu0
  %v766 = vadd.f32 %v235, %v765
  %v767 = vpop.f32.mrf.mxu0
  %v768 = vadd.f32 %v235, %v767
  %769 = vmatmul.bf16.gmra.mxu0 %v472
  %v770 = vpop.f32.mrf.mxu0
  %v771 = vadd.f32 %v235, %v770
  %v772 = vpop.f32.mrf.mxu0
  %v773 = vadd.f32 %v235, %v772
  %774 = vmatmul.bf16.gmra.mxu0 %v475
  %v775 = vpop.f32.mrf.mxu0
  %v776 = vadd.f32 %v235, %v775
  %v777 = vpop.f32.mrf.mxu0
  %v778 = vadd.f32 %v235, %v777
  %779 = vmatmul.bf16.gmra.mxu0 %v478
  %v780 = vpop.f32.mrf.mxu0
  %v781 = vadd.f32 %v235, %v780
  %v782 = vpop.f32.mrf.mxu0
  %v783 = vadd.f32 %v235, %v782
  %784 = vmatmul.bf16.gmra.mxu0 %v481
  %v785 = vpop.f32.mrf.mxu0
  %v786 = vadd.f32 %v235, %v785
  %v787 = vpop.f32.mrf.mxu0
  %v788 = vadd.f32 %v235, %v787
  %789 = vmatmul.bf16.gmra.mxu0 %v484
  %v790 = vpop.f32.mrf.mxu0
  %v791 = vadd.f32 %v235, %v790
  %v792 = vpop.f32.mrf.mxu0
  %v793 = vadd.f32 %v235, %v792
  %794 = vmatmul.bf16.gmra.mxu0 %v487
  %v795 = vpop.f32.mrf.mxu0
  %v796 = vadd.f32 %v235, %v795
  %v797 = vpop.f32.mrf.mxu0
  %v798 = vadd.f32 %v235, %v797
  %799 = vmatmul.bf16.gmra.mxu0 %v490
  %v800 = vpop.f32.mrf.mxu0
  %v801 = vadd.f32 %v235, %v800
  %v802 = vpop.f32.mrf.mxu0
  %v803 = vadd.f32 %v235, %v802
  %804 = vmatmul.bf16.gmra.mxu0 %v493
  %v805 = vpop.f32.mrf.mxu0
  %v806 = vadd.f32 %v235, %v805
  %v807 = vpop.f32.mrf.mxu0
  %v808 = vadd.f32 %v235, %v807
  %809 = vmatmul.bf16.gmra.mxu0 %v496
  %v810 = vpop.f32.mrf.mxu0
  %v811 = vadd.f32 %v235, %v810
  %v812 = vpop.f32.mrf.mxu0
  %v813 = vadd.f32 %v235, %v812
  %814 = vmatmul.bf16.gmra.mxu0 %v499
  %v815 = vpop.f32.mrf.mxu0
  %v816 = vadd.f32 %v235, %v815
  %v817 = vpop.f32.mrf.mxu0
  %v818 = vadd.f32 %v235, %v817
  %819 = vmatmul.bf16.gmra.mxu0 %v502
  %v820 = vpop.f32.mrf.mxu0
  %v821 = vadd.f32 %v235, %v820
  %v822 = vpop.f32.mrf.mxu0
  %v823 = vadd.f32 %v235, %v822
  %824 = vmatmul.bf16.gmra.mxu0 %v505
  %v825 = vpop.f32.mrf.mxu0
  %v826 = vadd.f32 %v235, %v825
  %v827 = vpop.f32.mrf.mxu0
  %v828 = vadd.f32 %v235, %v827
  %829 = vmatmul.bf16.gmra.mxu0 %v508
  %v830 = vpop.f32.mrf.mxu0
  %v831 = vadd.f32 %v235, %v830
  %v832 = vpop.f32.mrf.mxu0
  %v833 = vadd.f32 %v235, %v832
  %834 = vmatmul.bf16.gmra.mxu0 %v511
  %v835 = vpop.f32.mrf.mxu0
  %v836 = vadd.f32 %v235, %v835
  %v837 = vpop.f32.mrf.mxu0
  %v838 = vadd.f32 %v235, %v837
  %839 = vmatmul.bf16.gmra.mxu0 %v514
  %v840 = vpop.f32.mrf.mxu0
  %v841 = vadd.f32 %v235, %v840
  %v842 = vpop.f32.mrf.mxu0
  %v843 = vadd.f32 %v235, %v842
  %844 = vdwg.mxu0
  %845 = vmatpush.bf16.msra.mxu0 0
  %846 = vmatpush.bf16.msra.mxu0 0
  %847 = vmatpush.bf16.msra.mxu0 0
  %848 = vmatpush.bf16.msra.mxu0 0
  %849 = vmatpush.bf16.msra.mxu0 %v304
  %850 = vmatpush.bf16.msra.mxu0 %v300
  %851 = vmatpush.bf16.msra.mxu0 %v296
  %852 = vmatpush.bf16.msra.mxu0 %v292
  %853 = vmatmul.bf16.gmra.mxu0 %v325
  %v854 = vpop.f32.mrf.mxu0
  %v855 = vadd.f32 %v236, %v854
  %v856 = vpop.f32.mrf.mxu0
  %v857 = vadd.f32 %v236, %v856
  %858 = vmatmul.bf16.gmra.mxu0 %v328
  %v859 = vpop.f32.mrf.mxu0
  %v860 = vadd.f32 %v236, %v859
  %v861 = vpop.f32.mrf.mxu0
  %v862 = vadd.f32 %v236, %v861
  %863 = vmatmul.bf16.gmra.mxu0 %v331
  %v864 = vpop.f32.mrf.mxu0
  %v865 = vadd.f32 %v236, %v864
  %v866 = vpop.f32.mrf.mxu0
  %v867 = vadd.f32 %v236, %v866
  %868 = vmatmul.bf16.gmra.mxu0 %v334
  %v869 = vpop.f32.mrf.mxu0
  %v870 = vadd.f32 %v236, %v869
  %v871 = vpop.f32.mrf.mxu0
  %v872 = vadd.f32 %v236, %v871
  %873 = vmatmul.bf16.gmra.mxu0 %v337
  %v874 = vpop.f32.mrf.mxu0
  %v875 = vadd.f32 %v236, %v874
  %v876 = vpop.f32.mrf.mxu0
  %v877 = vadd.f32 %v236, %v876
  %878 = vmatmul.bf16.gmra.mxu0 %v340
  %v879 = vpop.f32.mrf.mxu0
  %v880 = vadd.f32 %v236, %v879
  %v881 = vpop.f32.mrf.mxu0
  %v882 = vadd.f32 %v236, %v881
  %883 = vmatmul.bf16.gmra.mxu0 %v343
  %v884 = vpop.f32.mrf.mxu0
  %v885 = vadd.f32 %v236, %v884
  %v886 = vpop.f32.mrf.mxu0
  %v887 = vadd.f32 %v236, %v886
  %888 = vmatmul.bf16.gmra.mxu0 %v346
  %v889 = vpop.f32.mrf.mxu0
  %v890 = vadd.f32 %v236, %v889
  %v891 = vpop.f32.mrf.mxu0
  %v892 = vadd.f32 %v236, %v891
  %893 = vmatmul.bf16.gmra.mxu0 %v349
  %v894 = vpop.f32.mrf.mxu0
  %v895 = vadd.f32 %v236, %v894
  %v896 = vpop.f32.mrf.mxu0
  %v897 = vadd.f32 %v236, %v896
  %898 = vmatmul.bf16.gmra.mxu0 %v352
  %v899 = vpop.f32.mrf.mxu0
  %v900 = vadd.f32 %v236, %v899
  %v901 = vpop.f32.mrf.mxu0
  %v902 = vadd.f32 %v236, %v901
  %903 = vmatmul.bf16.gmra.mxu0 %v355
  %v904 = vpop.f32.mrf.mxu0
  %v905 = vadd.f32 %v236, %v904
  %v906 = vpop.f32.mrf.mxu0
  %v907 = vadd.f32 %v236, %v906
  %908 = vmatmul.bf16.gmra.mxu0 %v358
  %v909 = vpop.f32.mrf.mxu0
  %v910 = vadd.f32 %v236, %v909
  %v911 = vpop.f32.mrf.mxu0
  %v912 = vadd.f32 %v236, %v911
  %913 = vmatmul.bf16.gmra.mxu0 %v361
  %v914 = vpop.f32.mrf.mxu0
  %v915 = vadd.f32 %v236, %v914
  %v916 = vpop.f32.mrf.mxu0
  %v917 = vadd.f32 %v236, %v916
  %918 = vmatmul.bf16.gmra.mxu0 %v364
  %v919 = vpop.f32.mrf.mxu0
  %v920 = vadd.f32 %v236, %v919
  %v921 = vpop.f32.mrf.mxu0
  %v922 = vadd.f32 %v236, %v921
  %923 = vmatmul.bf16.gmra.mxu0 %v367
  %v924 = vpop.f32.mrf.mxu0
  %v925 = vadd.f32 %v236, %v924
  %v926 = vpop.f32.mrf.mxu0
  %v927 = vadd.f32 %v236, %v926
  %928 = vmatmul.bf16.gmra.mxu0 %v370
  %v929 = vpop.f32.mrf.mxu0
  %v930 = vadd.f32 %v236, %v929
  %v931 = vpop.f32.mrf.mxu0
  %v932 = vadd.f32 %v236, %v931
  %933 = vmatmul.bf16.gmra.mxu0 %v373
  %v934 = vpop.f32.mrf.mxu0
  %v935 = vadd.f32 %v236, %v934
  %v936 = vpop.f32.mrf.mxu0
  %v937 = vadd.f32 %v236, %v936
  %938 = vmatmul.bf16.gmra.mxu0 %v376
  %v939 = vpop.f32.mrf.mxu0
  %v940 = vadd.f32 %v236, %v939
  %v941 = vpop.f32.mrf.mxu0
  %v942 = vadd.f32 %v236, %v941
  %943 = vmatmul.bf16.gmra.mxu0 %v379
  %v944 = vpop.f32.mrf.mxu0
  %v945 = vadd.f32 %v236, %v944
  %v946 = vpop.f32.mrf.mxu0
  %v947 = vadd.f32 %v236, %v946
  %948 = vmatmul.bf16.gmra.mxu0 %v382
  %v949 = vpop.f32.mrf.mxu0
  %v950 = vadd.f32 %v236, %v949
  %v951 = vpop.f32.mrf.mxu0
  %v952 = vadd.f32 %v236, %v951
  %953 = vmatmul.bf16.gmra.mxu0 %v385
  %v954 = vpop.f32.mrf.mxu0
  %v955 = vadd.f32 %v236, %v954
  %v956 = vpop.f32.mrf.mxu0
  %v957 = vadd.f32 %v236, %v956
  %958 = vmatmul.bf16.gmra.mxu0 %v388
  %v959 = vpop.f32.mrf.mxu0
  %v960 = vadd.f32 %v236, %v959
  %v961 = vpop.f32.mrf.mxu0
  %v962 = vadd.f32 %v236, %v961
  %963 = vmatmul.bf16.gmra.mxu0 %v391
  %v964 = vpop.f32.mrf.mxu0
  %v965 = vadd.f32 %v236, %v964
  %v966 = vpop.f32.mrf.mxu0
  %v967 = vadd.f32 %v236, %v966
  %968 = vmatmul.bf16.gmra.mxu0 %v394
  %v969 = vpop.f32.mrf.mxu0
  %v970 = vadd.f32 %v236, %v969
  %v971 = vpop.f32.mrf.mxu0
  %v972 = vadd.f32 %v236, %v971
  %973 = vmatmul.bf16.gmra.mxu0 %v397
  %v974 = vpop.f32.mrf.mxu0
  %v975 = vadd.f32 %v236, %v974
  %v976 = vpop.f32.mrf.mxu0
  %v977 = vadd.f32 %v236, %v976
  %978 = vmatmul.bf16.gmra.mxu0 %v400
  %v979 = vpop.f32.mrf.mxu0
  %v980 = vadd.f32 %v236, %v979
  %v981 = vpop.f32.mrf.mxu0
  %v982 = vadd.f32 %v236, %v981
  %983 = vmatmul.bf16.gmra.mxu0 %v403
  %v984 = vpop.f32.mrf.mxu0
  %v985 = vadd.f32 %v236, %v984
  %v986 = vpop.f32.mrf.mxu0
  %v987 = vadd.f32 %v236, %v986
  %988 = vmatmul.bf16.gmra.mxu0 %v406
  %v989 = vpop.f32.mrf.mxu0
  %v990 = vadd.f32 %v236, %v989
  %v991 = vpop.f32.mrf.mxu0
  %v992 = vadd.f32 %v236, %v991
  %993 = vmatmul.bf16.gmra.mxu0 %v409
  %v994 = vpop.f32.mrf.mxu0
  %v995 = vadd.f32 %v236, %v994
  %v996 = vpop.f32.mrf.mxu0
  %v997 = vadd.f32 %v236, %v996
  %998 = vmatmul.bf16.gmra.mxu0 %v412
  %v999 = vpop.f32.mrf.mxu0
  %v1000 = vadd.f32 %v236, %v999
  %v1001 = vpop.f32.mrf.mxu0
  %v1002 = vadd.f32 %v236, %v1001
  %1003 = vmatmul.bf16.gmra.mxu0 %v415
  %v1004 = vpop.f32.mrf.mxu0
  %v1005 = vadd.f32 %v236, %v1004
  %v1006 = vpop.f32.mrf.mxu0
  %v1007 = vadd.f32 %v236, %v1006
  %1008 = vmatmul.bf16.gmra.mxu0 %v418
  %v1009 = vpop.f32.mrf.mxu0
  %v1010 = vadd.f32 %v236, %v1009
  %v1011 = vpop.f32.mrf.mxu0
  %v1012 = vadd.f32 %v236, %v1011
  %1013 = vmatmul.bf16.gmra.mxu0 %v421
  %v1014 = vpop.f32.mrf.mxu0
  %v1015 = vadd.f32 %v236, %v1014
  %v1016 = vpop.f32.mrf.mxu0
  %v1017 = vadd.f32 %v236, %v1016
  %1018 = vmatmul.bf16.gmra.mxu0 %v424
  %v1019 = vpop.f32.mrf.mxu0
  %v1020 = vadd.f32 %v236, %v1019
  %v1021 = vpop.f32.mrf.mxu0
  %v1022 = vadd.f32 %v236, %v1021
  %1023 = vmatmul.bf16.gmra.mxu0 %v427
  %v1024 = vpop.f32.mrf.mxu0
  %v1025 = vadd.f32 %v236, %v1024
  %v1026 = vpop.f32.mrf.mxu0
  %v1027 = vadd.f32 %v236, %v1026
  %1028 = vmatmul.bf16.gmra.mxu0 %v430
  %v1029 = vpop.f32.mrf.mxu0
  %v1030 = vadd.f32 %v236, %v1029
  %v1031 = vpop.f32.mrf.mxu0
  %v1032 = vadd.f32 %v236, %v1031
  %1033 = vmatmul.bf16.gmra.mxu0 %v433
  %v1034 = vpop.f32.mrf.mxu0
  %v1035 = vadd.f32 %v236, %v1034
  %v1036 = vpop.f32.mrf.mxu0
  %v1037 = vadd.f32 %v236, %v1036
  %1038 = vmatmul.bf16.gmra.mxu0 %v436
  %v1039 = vpop.f32.mrf.mxu0
  %v1040 = vadd.f32 %v236, %v1039
  %v1041 = vpop.f32.mrf.mxu0
  %v1042 = vadd.f32 %v236, %v1041
  %1043 = vmatmul.bf16.gmra.mxu0 %v439
  %v1044 = vpop.f32.mrf.mxu0
  %v1045 = vadd.f32 %v236, %v1044
  %v1046 = vpop.f32.mrf.mxu0
  %v1047 = vadd.f32 %v236, %v1046
  %1048 = vmatmul.bf16.gmra.mxu0 %v442
  %v1049 = vpop.f32.mrf.mxu0
  %v1050 = vadd.f32 %v236, %v1049
  %v1051 = vpop.f32.mrf.mxu0
  %v1052 = vadd.f32 %v236, %v1051
  %1053 = vmatmul.bf16.gmra.mxu0 %v445
  %v1054 = vpop.f32.mrf.mxu0
  %v1055 = vadd.f32 %v236, %v1054
  %v1056 = vpop.f32.mrf.mxu0
  %v1057 = vadd.f32 %v236, %v1056
  %1058 = vmatmul.bf16.gmra.mxu0 %v448
  %v1059 = vpop.f32.mrf.mxu0
  %v1060 = vadd.f32 %v236, %v1059
  %v1061 = vpop.f32.mrf.mxu0
  %v1062 = vadd.f32 %v236, %v1061
  %1063 = vmatmul.bf16.gmra.mxu0 %v451
  %v1064 = vpop.f32.mrf.mxu0
  %v1065 = vadd.f32 %v236, %v1064
  %v1066 = vpop.f32.mrf.mxu0
  %v1067 = vadd.f32 %v236, %v1066
  %1068 = vmatmul.bf16.gmra.mxu0 %v454
  %v1069 = vpop.f32.mrf.mxu0
  %v1070 = vadd.f32 %v236, %v1069
  %v1071 = vpop.f32.mrf.mxu0
  %v1072 = vadd.f32 %v236, %v1071
  %1073 = vmatmul.bf16.gmra.mxu0 %v457
  %v1074 = vpop.f32.mrf.mxu0
  %v1075 = vadd.f32 %v236, %v1074
  %v1076 = vpop.f32.mrf.mxu0
  %v1077 = vadd.f32 %v236, %v1076
  %1078 = vmatmul.bf16.gmra.mxu0 %v460
  %v1079 = vpop.f32.mrf.mxu0
  %v1080 = vadd.f32 %v236, %v1079
  %v1081 = vpop.f32.mrf.mxu0
  %v1082 = vadd.f32 %v236, %v1081
  %1083 = vmatmul.bf16.gmra.mxu0 %v463
  %v1084 = vpop.f32.mrf.mxu0
  %v1085 = vadd.f32 %v236, %v1084
  %v1086 = vpop.f32.mrf.mxu0
  %v1087 = vadd.f32 %v236, %v1086
  %1088 = vmatmul.bf16.gmra.mxu0 %v466
  %v1089 = vpop.f32.mrf.mxu0
  %v1090 = vadd.f32 %v236, %v1089
  %v1091 = vpop.f32.mrf.mxu0
  %v1092 = vadd.f32 %v236, %v1091
  %1093 = vmatmul.bf16.gmra.mxu0 %v469
  %v1094 = vpop.f32.mrf.mxu0
  %v1095 = vadd.f32 %v236, %v1094
  %v1096 = vpop.f32.mrf.mxu0
  %v1097 = vadd.f32 %v236, %v1096
  %1098 = vmatmul.bf16.gmra.mxu0 %v472
  %v1099 = vpop.f32.mrf.mxu0
  %v1100 = vadd.f32 %v236, %v1099
  %v1101 = vpop.f32.mrf.mxu0
  %v1102 = vadd.f32 %v236, %v1101
  %1103 = vmatmul.bf16.gmra.mxu0 %v475
  %v1104 = vpop.f32.mrf.mxu0
  %v1105 = vadd.f32 %v236, %v1104
  %v1106 = vpop.f32.mrf.mxu0
  %v1107 = vadd.f32 %v236, %v1106
  %1108 = vmatmul.bf16.gmra.mxu0 %v478
  %v1109 = vpop.f32.mrf.mxu0
  %v1110 = vadd.f32 %v236, %v1109
  %v1111 = vpop.f32.mrf.mxu0
  %v1112 = vadd.f32 %v236, %v1111
  %1113 = vmatmul.bf16.gmra.mxu0 %v481
  %v1114 = vpop.f32.mrf.mxu0
  %v1115 = vadd.f32 %v236, %v1114
  %v1116 = vpop.f32.mrf.mxu0
  %v1117 = vadd.f32 %v236, %v1116
  %1118 = vmatmul.bf16.gmra.mxu0 %v484
  %v1119 = vpop.f32.mrf.mxu0
  %v1120 = vadd.f32 %v236, %v1119
  %v1121 = vpop.f32.mrf.mxu0
  %v1122 = vadd.f32 %v236, %v1121
  %1123 = vmatmul.bf16.gmra.mxu0 %v487
  %v1124 = vpop.f32.mrf.mxu0
  %v1125 = vadd.f32 %v236, %v1124
  %v1126 = vpop.f32.mrf.mxu0
  %v1127 = vadd.f32 %v236, %v1126
  %1128 = vmatmul.bf16.gmra.mxu0 %v490
  %v1129 = vpop.f32.mrf.mxu0
  %v1130 = vadd.f32 %v236, %v1129
  %v1131 = vpop.f32.mrf.mxu0
  %v1132 = vadd.f32 %v236, %v1131
  %1133 = vmatmul.bf16.gmra.mxu0 %v493
  %v1134 = vpop.f32.mrf.mxu0
  %v1135 = vadd.f32 %v236, %v1134
  %v1136 = vpop.f32.mrf.mxu0
  %v1137 = vadd.f32 %v236, %v1136
  %1138 = vmatmul.bf16.gmra.mxu0 %v496
  %v1139 = vpop.f32.mrf.mxu0
  %v1140 = vadd.f32 %v236, %v1139
  %v1141 = vpop.f32.mrf.mxu0
  %v1142 = vadd.f32 %v236, %v1141
  %1143 = vmatmul.bf16.gmra.mxu0 %v499
  %v1144 = vpop.f32.mrf.mxu0
  %v1145 = vadd.f32 %v236, %v1144
  %v1146 = vpop.f32.mrf.mxu0
  %v1147 = vadd.f32 %v236, %v1146
  %1148 = vmatmul.bf16.gmra.mxu0 %v502
  %v1149 = vpop.f32.mrf.mxu0
  %v1150 = vadd.f32 %v236, %v1149
  %v1151 = vpop.f32.mrf.mxu0
  %v1152 = vadd.f32 %v236, %v1151
  %1153 = vmatmul.bf16.gmra.mxu0 %v505
  %v1154 = vpop.f32.mrf.mxu0
  %v1155 = vadd.f32 %v236, %v1154
  %v1156 = vpop.f32.mrf.mxu0
  %v1157 = vadd.f32 %v236, %v1156
  %1158 = vmatmul.bf16.gmra.mxu0 %v508
  %v1159 = vpop.f32.mrf.mxu0
  %v1160 = vadd.f32 %v236, %v1159
  %v1161 = vpop.f32.mrf.mxu0
  %v1162 = vadd.f32 %v236, %v1161
  %1163 = vmatmul.bf16.gmra.mxu0 %v511
  %v1164 = vpop.f32.mrf.mxu0
  %v1165 = vadd.f32 %v236, %v1164
  %v1166 = vpop.f32.mrf.mxu0
  %v1167 = vadd.f32 %v236, %v1166
  %1168 = vmatmul.bf16.gmra.mxu0 %v514
  %v1169 = vpop.f32.mrf.mxu0
  %v1170 = vadd.f32 %v236, %v1169
  %v1171 = vpop.f32.mrf.mxu0
  %v1172 = vadd.f32 %v236, %v1171
  %1173 = vdwg.mxu0
  %1174 = vmatpush.bf16.msra.mxu0 0
  %1175 = vmatpush.bf16.msra.mxu0 0
  %1176 = vmatpush.bf16.msra.mxu0 0
  %1177 = vmatpush.bf16.msra.mxu0 0
  %1178 = vmatpush.bf16.msra.mxu0 %v305
  %1179 = vmatpush.bf16.msra.mxu0 %v301
  %1180 = vmatpush.bf16.msra.mxu0 %v297
  %1181 = vmatpush.bf16.msra.mxu0 %v293
  %1182 = vmatmul.bf16.gmra.mxu0 %v325
  %v1183 = vpop.f32.mrf.mxu0
  %v1184 = vadd.f32 %v237, %v1183
  %v1185 = vpop.f32.mrf.mxu0
  %v1186 = vadd.f32 %v237, %v1185
  %1187 = vmatmul.bf16.gmra.mxu0 %v328
  %v1188 = vpop.f32.mrf.mxu0
  %v1189 = vadd.f32 %v237, %v1188
  %v1190 = vpop.f32.mrf.mxu0
  %v1191 = vadd.f32 %v237, %v1190
  %1192 = vmatmul.bf16.gmra.mxu0 %v331
  %v1193 = vpop.f32.mrf.mxu0
  %v1194 = vadd.f32 %v237, %v1193
  %v1195 = vpop.f32.mrf.mxu0
  %v1196 = vadd.f32 %v237, %v1195
  %1197 = vmatmul.bf16.gmra.mxu0 %v334
  %v1198 = vpop.f32.mrf.mxu0
  %v1199 = vadd.f32 %v237, %v1198
  %v1200 = vpop.f32.mrf.mxu0
  %v1201 = vadd.f32 %v237, %v1200
  %1202 = vmatmul.bf16.gmra.mxu0 %v337
  %v1203 = vpop.f32.mrf.mxu0
  %v1204 = vadd.f32 %v237, %v1203
  %v1205 = vpop.f32.mrf.mxu0
  %v1206 = vadd.f32 %v237, %v1205
  %1207 = vmatmul.bf16.gmra.mxu0 %v340
  %v1208 = vpop.f32.mrf.mxu0
  %v1209 = vadd.f32 %v237, %v1208
  %v1210 = vpop.f32.mrf.mxu0
  %v1211 = vadd.f32 %v237, %v1210
  %1212 = vmatmul.bf16.gmra.mxu0 %v343
  %v1213 = vpop.f32.mrf.mxu0
  %v1214 = vadd.f32 %v237, %v1213
  %v1215 = vpop.f32.mrf.mxu0
  %v1216 = vadd.f32 %v237, %v1215
  %1217 = vmatmul.bf16.gmra.mxu0 %v346
  %v1218 = vpop.f32.mrf.mxu0
  %v1219 = vadd.f32 %v237, %v1218
  %v1220 = vpop.f32.mrf.mxu0
  %v1221 = vadd.f32 %v237, %v1220
  %1222 = vmatmul.bf16.gmra.mxu0 %v349
  %v1223 = vpop.f32.mrf.mxu0
  %v1224 = vadd.f32 %v237, %v1223
  %v1225 = vpop.f32.mrf.mxu0
  %v1226 = vadd.f32 %v237, %v1225
  %1227 = vmatmul.bf16.gmra.mxu0 %v352
  %v1228 = vpop.f32.mrf.mxu0
  %v1229 = vadd.f32 %v237, %v1228
  %v1230 = vpop.f32.mrf.mxu0
  %v1231 = vadd.f32 %v237, %v1230
  %1232 = vmatmul.bf16.gmra.mxu0 %v355
  %v1233 = vpop.f32.mrf.mxu0
  %v1234 = vadd.f32 %v237, %v1233
  %v1235 = vpop.f32.mrf.mxu0
  %v1236 = vadd.f32 %v237, %v1235
  %1237 = vmatmul.bf16.gmra.mxu0 %v358
  %v1238 = vpop.f32.mrf.mxu0
  %v1239 = vadd.f32 %v237, %v1238
  %v1240 = vpop.f32.mrf.mxu0
  %v1241 = vadd.f32 %v237, %v1240
  %1242 = vmatmul.bf16.gmra.mxu0 %v361
  %v1243 = vpop.f32.mrf.mxu0
  %v1244 = vadd.f32 %v237, %v1243
  %v1245 = vpop.f32.mrf.mxu0
  %v1246 = vadd.f32 %v237, %v1245
  %1247 = vmatmul.bf16.gmra.mxu0 %v364
  %v1248 = vpop.f32.mrf.mxu0
  %v1249 = vadd.f32 %v237, %v1248
  %v1250 = vpop.f32.mrf.mxu0
  %v1251 = vadd.f32 %v237, %v1250
  %1252 = vmatmul.bf16.gmra.mxu0 %v367
  %v1253 = vpop.f32.mrf.mxu0
  %v1254 = vadd.f32 %v237, %v1253
  %v1255 = vpop.f32.mrf.mxu0
  %v1256 = vadd.f32 %v237, %v1255
  %1257 = vmatmul.bf16.gmra.mxu0 %v370
  %v1258 = vpop.f32.mrf.mxu0
  %v1259 = vadd.f32 %v237, %v1258
  %v1260 = vpop.f32.mrf.mxu0
  %v1261 = vadd.f32 %v237, %v1260
  %1262 = vmatmul.bf16.gmra.mxu0 %v373
  %v1263 = vpop.f32.mrf.mxu0
  %v1264 = vadd.f32 %v237, %v1263
  %v1265 = vpop.f32.mrf.mxu0
  %v1266 = vadd.f32 %v237, %v1265
  %1267 = vmatmul.bf16.gmra.mxu0 %v376
  %v1268 = vpop.f32.mrf.mxu0
  %v1269 = vadd.f32 %v237, %v1268
  %v1270 = vpop.f32.mrf.mxu0
  %v1271 = vadd.f32 %v237, %v1270
  %1272 = vmatmul.bf16.gmra.mxu0 %v379
  %v1273 = vpop.f32.mrf.mxu0
  %v1274 = vadd.f32 %v237, %v1273
  %v1275 = vpop.f32.mrf.mxu0
  %v1276 = vadd.f32 %v237, %v1275
  %1277 = vmatmul.bf16.gmra.mxu0 %v382
  %v1278 = vpop.f32.mrf.mxu0
  %v1279 = vadd.f32 %v237, %v1278
  %v1280 = vpop.f32.mrf.mxu0
  %v1281 = vadd.f32 %v237, %v1280
  %1282 = vmatmul.bf16.gmra.mxu0 %v385
  %v1283 = vpop.f32.mrf.mxu0
  %v1284 = vadd.f32 %v237, %v1283
  %v1285 = vpop.f32.mrf.mxu0
  %v1286 = vadd.f32 %v237, %v1285
  %1287 = vmatmul.bf16.gmra.mxu0 %v388
  %v1288 = vpop.f32.mrf.mxu0
  %v1289 = vadd.f32 %v237, %v1288
  %v1290 = vpop.f32.mrf.mxu0
  %v1291 = vadd.f32 %v237, %v1290
  %1292 = vmatmul.bf16.gmra.mxu0 %v391
  %v1293 = vpop.f32.mrf.mxu0
  %v1294 = vadd.f32 %v237, %v1293
  %v1295 = vpop.f32.mrf.mxu0
  %v1296 = vadd.f32 %v237, %v1295
  %1297 = vmatmul.bf16.gmra.mxu0 %v394
  %v1298 = vpop.f32.mrf.mxu0
  %v1299 = vadd.f32 %v237, %v1298
  %v1300 = vpop.f32.mrf.mxu0
  %v1301 = vadd.f32 %v237, %v1300
  %1302 = vmatmul.bf16.gmra.mxu0 %v397
  %v1303 = vpop.f32.mrf.mxu0
  %v1304 = vadd.f32 %v237, %v1303
  %v1305 = vpop.f32.mrf.mxu0
  %v1306 = vadd.f32 %v237, %v1305
  %1307 = vmatmul.bf16.gmra.mxu0 %v400
  %v1308 = vpop.f32.mrf.mxu0
  %v1309 = vadd.f32 %v237, %v1308
  %v1310 = vpop.f32.mrf.mxu0
  %v1311 = vadd.f32 %v237, %v1310
  %1312 = vmatmul.bf16.gmra.mxu0 %v403
  %v1313 = vpop.f32.mrf.mxu0
  %v1314 = vadd.f32 %v237, %v1313
  %v1315 = vpop.f32.mrf.mxu0
  %v1316 = vadd.f32 %v237, %v1315
  %1317 = vmatmul.bf16.gmra.mxu0 %v406
  %v1318 = vpop.f32.mrf.mxu0
  %v1319 = vadd.f32 %v237, %v1318
  %v1320 = vpop.f32.mrf.mxu0
  %v1321 = vadd.f32 %v237, %v1320
  %1322 = vmatmul.bf16.gmra.mxu0 %v409
  %v1323 = vpop.f32.mrf.mxu0
  %v1324 = vadd.f32 %v237, %v1323
  %v1325 = vpop.f32.mrf.mxu0
  %v1326 = vadd.f32 %v237, %v1325
  %1327 = vmatmul.bf16.gmra.mxu0 %v412
  %v1328 = vpop.f32.mrf.mxu0
  %v1329 = vadd.f32 %v237, %v1328
  %v1330 = vpop.f32.mrf.mxu0
  %v1331 = vadd.f32 %v237, %v1330
  %1332 = vmatmul.bf16.gmra.mxu0 %v415
  %v1333 = vpop.f32.mrf.mxu0
  %v1334 = vadd.f32 %v237, %v1333
  %v1335 = vpop.f32.mrf.mxu0
  %v1336 = vadd.f32 %v237, %v1335
  %1337 = vmatmul.bf16.gmra.mxu0 %v418
  %v1338 = vpop.f32.mrf.mxu0
  %v1339 = vadd.f32 %v237, %v1338
  %v1340 = vpop.f32.mrf.mxu0
  %v1341 = vadd.f32 %v237, %v1340
  %1342 = vmatmul.bf16.gmra.mxu0 %v421
  %v1343 = vpop.f32.mrf.mxu0
  %v1344 = vadd.f32 %v237, %v1343
  %v1345 = vpop.f32.mrf.mxu0
  %v1346 = vadd.f32 %v237, %v1345
  %1347 = vmatmul.bf16.gmra.mxu0 %v424
  %v1348 = vpop.f32.mrf.mxu0
  %v1349 = vadd.f32 %v237, %v1348
  %v1350 = vpop.f32.mrf.mxu0
  %v1351 = vadd.f32 %v237, %v1350
  %1352 = vmatmul.bf16.gmra.mxu0 %v427
  %v1353 = vpop.f32.mrf.mxu0
  %v1354 = vadd.f32 %v237, %v1353
  %v1355 = vpop.f32.mrf.mxu0
  %v1356 = vadd.f32 %v237, %v1355
  %1357 = vmatmul.bf16.gmra.mxu0 %v430
  %v1358 = vpop.f32.mrf.mxu0
  %v1359 = vadd.f32 %v237, %v1358
  %v1360 = vpop.f32.mrf.mxu0
  %v1361 = vadd.f32 %v237, %v1360
  %1362 = vmatmul.bf16.gmra.mxu0 %v433
  %v1363 = vpop.f32.mrf.mxu0
  %v1364 = vadd.f32 %v237, %v1363
  %v1365 = vpop.f32.mrf.mxu0
  %v1366 = vadd.f32 %v237, %v1365
  %1367 = vmatmul.bf16.gmra.mxu0 %v436
  %v1368 = vpop.f32.mrf.mxu0
  %v1369 = vadd.f32 %v237, %v1368
  %v1370 = vpop.f32.mrf.mxu0
  %v1371 = vadd.f32 %v237, %v1370
  %1372 = vmatmul.bf16.gmra.mxu0 %v439
  %v1373 = vpop.f32.mrf.mxu0
  %v1374 = vadd.f32 %v237, %v1373
  %v1375 = vpop.f32.mrf.mxu0
  %v1376 = vadd.f32 %v237, %v1375
  %1377 = vmatmul.bf16.gmra.mxu0 %v442
  %v1378 = vpop.f32.mrf.mxu0
  %v1379 = vadd.f32 %v237, %v1378
  %v1380 = vpop.f32.mrf.mxu0
  %v1381 = vadd.f32 %v237, %v1380
  %1382 = vmatmul.bf16.gmra.mxu0 %v445
  %v1383 = vpop.f32.mrf.mxu0
  %v1384 = vadd.f32 %v237, %v1383
  %v1385 = vpop.f32.mrf.mxu0
  %v1386 = vadd.f32 %v237, %v1385
  %1387 = vmatmul.bf16.gmra.mxu0 %v448
  %v1388 = vpop.f32.mrf.mxu0
  %v1389 = vadd.f32 %v237, %v1388
  %v1390 = vpop.f32.mrf.mxu0
  %v1391 = vadd.f32 %v237, %v1390
  %1392 = vmatmul.bf16.gmra.mxu0 %v451
  %v1393 = vpop.f32.mrf.mxu0
  %v1394 = vadd.f32 %v237, %v1393
  %v1395 = vpop.f32.mrf.mxu0
  %v1396 = vadd.f32 %v237, %v1395
  %1397 = vmatmul.bf16.gmra.mxu0 %v454
  %v1398 = vpop.f32.mrf.mxu0
  %v1399 = vadd.f32 %v237, %v1398
  %v1400 = vpop.f32.mrf.mxu0
  %v1401 = vadd.f32 %v237, %v1400
  %1402 = vmatmul.bf16.gmra.mxu0 %v457
  %v1403 = vpop.f32.mrf.mxu0
  %v1404 = vadd.f32 %v237, %v1403
  %v1405 = vpop.f32.mrf.mxu0
  %v1406 = vadd.f32 %v237, %v1405
  %1407 = vmatmul.bf16.gmra.mxu0 %v460
  %v1408 = vpop.f32.mrf.mxu0
  %v1409 = vadd.f32 %v237, %v1408
  %v1410 = vpop.f32.mrf.mxu0
  %v1411 = vadd.f32 %v237, %v1410
  %1412 = vmatmul.bf16.gmra.mxu0 %v463
  %v1413 = vpop.f32.mrf.mxu0
  %v1414 = vadd.f32 %v237, %v1413
  %v1415 = vpop.f32.mrf.mxu0
  %v1416 = vadd.f32 %v237, %v1415
  %1417 = vmatmul.bf16.gmra.mxu0 %v466
  %v1418 = vpop.f32.mrf.mxu0
  %v1419 = vadd.f32 %v237, %v1418
  %v1420 = vpop.f32.mrf.mxu0
  %v1421 = vadd.f32 %v237, %v1420
  %1422 = vmatmul.bf16.gmra.mxu0 %v469
  %v1423 = vpop.f32.mrf.mxu0
  %v1424 = vadd.f32 %v237, %v1423
  %v1425 = vpop.f32.mrf.mxu0
  %v1426 = vadd.f32 %v237, %v1425
  %1427 = vmatmul.bf16.gmra.mxu0 %v472
  %v1428 = vpop.f32.mrf.mxu0
  %v1429 = vadd.f32 %v237, %v1428
  %v1430 = vpop.f32.mrf.mxu0
  %v1431 = vadd.f32 %v237, %v1430
  %1432 = vmatmul.bf16.gmra.mxu0 %v475
  %v1433 = vpop.f32.mrf.mxu0
  %v1434 = vadd.f32 %v237, %v1433
  %v1435 = vpop.f32.mrf.mxu0
  %v1436 = vadd.f32 %v237, %v1435
  %1437 = vmatmul.bf16.gmra.mxu0 %v478
  %v1438 = vpop.f32.mrf.mxu0
  %v1439 = vadd.f32 %v237, %v1438
  %v1440 = vpop.f32.mrf.mxu0
  %v1441 = vadd.f32 %v237, %v1440
  %1442 = vmatmul.bf16.gmra.mxu0 %v481
  %v1443 = vpop.f32.mrf.mxu0
  %v1444 = vadd.f32 %v237, %v1443
  %v1445 = vpop.f32.mrf.mxu0
  %v1446 = vadd.f32 %v237, %v1445
  %1447 = vmatmul.bf16.gmra.mxu0 %v484
  %v1448 = vpop.f32.mrf.mxu0
  %v1449 = vadd.f32 %v237, %v1448
  %v1450 = vpop.f32.mrf.mxu0
  %v1451 = vadd.f32 %v237, %v1450
  %1452 = vmatmul.bf16.gmra.mxu0 %v487
  %v1453 = vpop.f32.mrf.mxu0
  %v1454 = vadd.f32 %v237, %v1453
  %v1455 = vpop.f32.mrf.mxu0
  %v1456 = vadd.f32 %v237, %v1455
  %1457 = vmatmul.bf16.gmra.mxu0 %v490
  %v1458 = vpop.f32.mrf.mxu0
  %v1459 = vadd.f32 %v237, %v1458
  %v1460 = vpop.f32.mrf.mxu0
  %v1461 = vadd.f32 %v237, %v1460
  %1462 = vmatmul.bf16.gmra.mxu0 %v493
  %v1463 = vpop.f32.mrf.mxu0
  %v1464 = vadd.f32 %v237, %v1463
  %v1465 = vpop.f32.mrf.mxu0
  %v1466 = vadd.f32 %v237, %v1465
  %1467 = vmatmul.bf16.gmra.mxu0 %v496
  %v1468 = vpop.f32.mrf.mxu0
  %v1469 = vadd.f32 %v237, %v1468
  %v1470 = vpop.f32.mrf.mxu0
  %v1471 = vadd.f32 %v237, %v1470
  %1472 = vmatmul.bf16.gmra.mxu0 %v499
  %v1473 = vpop.f32.mrf.mxu0
  %v1474 = vadd.f32 %v237, %v1473
  %v1475 = vpop.f32.mrf.mxu0
  %v1476 = vadd.f32 %v237, %v1475
  %1477 = vmatmul.bf16.gmra.mxu0 %v502
  %v1478 = vpop.f32.mrf.mxu0
  %v1479 = vadd.f32 %v237, %v1478
  %v1480 = vpop.f32.mrf.mxu0
  %v1481 = vadd.f32 %v237, %v1480
  %1482 = vmatmul.bf16.gmra.mxu0 %v505
  %v1483 = vpop.f32.mrf.mxu0
  %v1484 = vadd.f32 %v237, %v1483
  %v1485 = vpop.f32.mrf.mxu0
  %v1486 = vadd.f32 %v237, %v1485
  %1487 = vmatmul.bf16.gmra.mxu0 %v508
  %v1488 = vpop.f32.mrf.mxu0
  %v1489 = vadd.f32 %v237, %v1488
  %v1490 = vpop.f32.mrf.mxu0
  %v1491 = vadd.f32 %v237, %v1490
  %1492 = vmatmul.bf16.gmra.mxu0 %v511
  %v1493 = vpop.f32.mrf.mxu0
  %v1494 = vadd.f32 %v237, %v1493
  %v1495 = vpop.f32.mrf.mxu0
  %v1496 = vadd.f32 %v237, %v1495
  %1497 = vmatmul.bf16.gmra.mxu0 %v514
  %v1498 = vpop.f32.mrf.mxu0
  %v1499 = vadd.f32 %v237, %v1498
  %v1500 = vpop.f32.mrf.mxu0
  %v1501 = vadd.f32 %v237, %v1500
  %1502 = vdwg.mxu0
  %1503 = vmatpush.bf16.msra.mxu0 0
  %1504 = vmatpush.bf16.msra.mxu0 0
  %1505 = vmatpush.bf16.msra.mxu0 0
  %1506 = vmatpush.bf16.msra.mxu0 0
  %1507 = vmatpush.bf16.msra.mxu0 %v306
  %1508 = vmatpush.bf16.msra.mxu0 %v302
  %1509 = vmatpush.bf16.msra.mxu0 %v298
  %1510 = vmatpush.bf16.msra.mxu0 %v294
  %1511 = vmatmul.bf16.gmra.mxu0 %v325
  %v1512 = vpop.f32.mrf.mxu0
  %v1513 = vadd.f32 %v238, %v1512
  %v1514 = vpop.f32.mrf.mxu0
  %v1515 = vadd.f32 %v238, %v1514
  %1516 = vmatmul.bf16.gmra.mxu0 %v328
  %v1517 = vpop.f32.mrf.mxu0
  %v1518 = vadd.f32 %v238, %v1517
  %v1519 = vpop.f32.mrf.mxu0
  %v1520 = vadd.f32 %v238, %v1519
  %1521 = vmatmul.bf16.gmra.mxu0 %v331
  %v1522 = vpop.f32.mrf.mxu0
  %v1523 = vadd.f32 %v238, %v1522
  %v1524 = vpop.f32.mrf.mxu0
  %v1525 = vadd.f32 %v238, %v1524
  %1526 = vmatmul.bf16.gmra.mxu0 %v334
  %v1527 = vpop.f32.mrf.mxu0
  %v1528 = vadd.f32 %v238, %v1527
  %v1529 = vpop.f32.mrf.mxu0
  %v1530 = vadd.f32 %v238, %v1529
  %1531 = vmatmul.bf16.gmra.mxu0 %v337
  %v1532 = vpop.f32.mrf.mxu0
  %v1533 = vadd.f32 %v238, %v1532
  %v1534 = vpop.f32.mrf.mxu0
  %v1535 = vadd.f32 %v238, %v1534
  %1536 = vmatmul.bf16.gmra.mxu0 %v340
  %v1537 = vpop.f32.mrf.mxu0
  %v1538 = vadd.f32 %v238, %v1537
  %v1539 = vpop.f32.mrf.mxu0
  %v1540 = vadd.f32 %v238, %v1539
  %1541 = vmatmul.bf16.gmra.mxu0 %v343
  %v1542 = vpop.f32.mrf.mxu0
  %v1543 = vadd.f32 %v238, %v1542
  %v1544 = vpop.f32.mrf.mxu0
  %v1545 = vadd.f32 %v238, %v1544
  %1546 = vmatmul.bf16.gmra.mxu0 %v346
  %v1547 = vpop.f32.mrf.mxu0
  %v1548 = vadd.f32 %v238, %v1547
  %v1549 = vpop.f32.mrf.mxu0
  %v1550 = vadd.f32 %v238, %v1549
  %1551 = vmatmul.bf16.gmra.mxu0 %v349
  %v1552 = vpop.f32.mrf.mxu0
  %v1553 = vadd.f32 %v238, %v1552
  %v1554 = vpop.f32.mrf.mxu0
  %v1555 = vadd.f32 %v238, %v1554
  %1556 = vmatmul.bf16.gmra.mxu0 %v352
  %v1557 = vpop.f32.mrf.mxu0
  %v1558 = vadd.f32 %v238, %v1557
  %v1559 = vpop.f32.mrf.mxu0
  %v1560 = vadd.f32 %v238, %v1559
  %1561 = vmatmul.bf16.gmra.mxu0 %v355
  %v1562 = vpop.f32.mrf.mxu0
  %v1563 = vadd.f32 %v238, %v1562
  %v1564 = vpop.f32.mrf.mxu0
  %v1565 = vadd.f32 %v238, %v1564
  %1566 = vmatmul.bf16.gmra.mxu0 %v358
  %v1567 = vpop.f32.mrf.mxu0
  %v1568 = vadd.f32 %v238, %v1567
  %v1569 = vpop.f32.mrf.mxu0
  %v1570 = vadd.f32 %v238, %v1569
  %1571 = vmatmul.bf16.gmra.mxu0 %v361
  %v1572 = vpop.f32.mrf.mxu0
  %v1573 = vadd.f32 %v238, %v1572
  %v1574 = vpop.f32.mrf.mxu0
  %v1575 = vadd.f32 %v238, %v1574
  %1576 = vmatmul.bf16.gmra.mxu0 %v364
  %v1577 = vpop.f32.mrf.mxu0
  %v1578 = vadd.f32 %v238, %v1577
  %v1579 = vpop.f32.mrf.mxu0
  %v1580 = vadd.f32 %v238, %v1579
  %1581 = vmatmul.bf16.gmra.mxu0 %v367
  %v1582 = vpop.f32.mrf.mxu0
  %v1583 = vadd.f32 %v238, %v1582
  %v1584 = vpop.f32.mrf.mxu0
  %v1585 = vadd.f32 %v238, %v1584
  %1586 = vmatmul.bf16.gmra.mxu0 %v370
  %v1587 = vpop.f32.mrf.mxu0
  %v1588 = vadd.f32 %v238, %v1587
  %v1589 = vpop.f32.mrf.mxu0
  %v1590 = vadd.f32 %v238, %v1589
  %1591 = vmatmul.bf16.gmra.mxu0 %v373
  %v1592 = vpop.f32.mrf.mxu0
  %v1593 = vadd.f32 %v238, %v1592
  %v1594 = vpop.f32.mrf.mxu0
  %v1595 = vadd.f32 %v238, %v1594
  %1596 = vmatmul.bf16.gmra.mxu0 %v376
  %v1597 = vpop.f32.mrf.mxu0
  %v1598 = vadd.f32 %v238, %v1597
  %v1599 = vpop.f32.mrf.mxu0
  %v1600 = vadd.f32 %v238, %v1599
  %1601 = vmatmul.bf16.gmra.mxu0 %v379
  %v1602 = vpop.f32.mrf.mxu0
  %v1603 = vadd.f32 %v238, %v1602
  %v1604 = vpop.f32.mrf.mxu0
  %v1605 = vadd.f32 %v238, %v1604
  %1606 = vmatmul.bf16.gmra.mxu0 %v382
  %v1607 = vpop.f32.mrf.mxu0
  %v1608 = vadd.f32 %v238, %v1607
  %v1609 = vpop.f32.mrf.mxu0
  %v1610 = vadd.f32 %v238, %v1609
  %1611 = vmatmul.bf16.gmra.mxu0 %v385
  %v1612 = vpop.f32.mrf.mxu0
  %v1613 = vadd.f32 %v238, %v1612
  %v1614 = vpop.f32.mrf.mxu0
  %v1615 = vadd.f32 %v238, %v1614
  %1616 = vmatmul.bf16.gmra.mxu0 %v388
  %v1617 = vpop.f32.mrf.mxu0
  %v1618 = vadd.f32 %v238, %v1617
  %v1619 = vpop.f32.mrf.mxu0
  %v1620 = vadd.f32 %v238, %v1619
  %1621 = vmatmul.bf16.gmra.mxu0 %v391
  %v1622 = vpop.f32.mrf.mxu0
  %v1623 = vadd.f32 %v238, %v1622
  %v1624 = vpop.f32.mrf.mxu0
  %v1625 = vadd.f32 %v238, %v1624
  %1626 = vmatmul.bf16.gmra.mxu0 %v394
  %v1627 = vpop.f32.mrf.mxu0
  %v1628 = vadd.f32 %v238, %v1627
  %v1629 = vpop.f32.mrf.mxu0
  %v1630 = vadd.f32 %v238, %v1629
  %1631 = vmatmul.bf16.gmra.mxu0 %v397
  %v1632 = vpop.f32.mrf.mxu0
  %v1633 = vadd.f32 %v238, %v1632
  %v1634 = vpop.f32.mrf.mxu0
  %v1635 = vadd.f32 %v238, %v1634
  %1636 = vmatmul.bf16.gmra.mxu0 %v400
  %v1637 = vpop.f32.mrf.mxu0
  %v1638 = vadd.f32 %v238, %v1637
  %v1639 = vpop.f32.mrf.mxu0
  %v1640 = vadd.f32 %v238, %v1639
  %1641 = vmatmul.bf16.gmra.mxu0 %v403
  %v1642 = vpop.f32.mrf.mxu0
  %v1643 = vadd.f32 %v238, %v1642
  %v1644 = vpop.f32.mrf.mxu0
  %v1645 = vadd.f32 %v238, %v1644
  %1646 = vmatmul.bf16.gmra.mxu0 %v406
  %v1647 = vpop.f32.mrf.mxu0
  %v1648 = vadd.f32 %v238, %v1647
  %v1649 = vpop.f32.mrf.mxu0
  %v1650 = vadd.f32 %v238, %v1649
  %1651 = vmatmul.bf16.gmra.mxu0 %v409
  %v1652 = vpop.f32.mrf.mxu0
  %v1653 = vadd.f32 %v238, %v1652
  %v1654 = vpop.f32.mrf.mxu0
  %v1655 = vadd.f32 %v238, %v1654
  %1656 = vmatmul.bf16.gmra.mxu0 %v412
  %v1657 = vpop.f32.mrf.mxu0
  %v1658 = vadd.f32 %v238, %v1657
  %v1659 = vpop.f32.mrf.mxu0
  %v1660 = vadd.f32 %v238, %v1659
  %1661 = vmatmul.bf16.gmra.mxu0 %v415
  %v1662 = vpop.f32.mrf.mxu0
  %v1663 = vadd.f32 %v238, %v1662
  %v1664 = vpop.f32.mrf.mxu0
  %v1665 = vadd.f32 %v238, %v1664
  %1666 = vmatmul.bf16.gmra.mxu0 %v418
  %v1667 = vpop.f32.mrf.mxu0
  %v1668 = vadd.f32 %v238, %v1667
  %v1669 = vpop.f32.mrf.mxu0
  %v1670 = vadd.f32 %v238, %v1669
  %1671 = vmatmul.bf16.gmra.mxu0 %v421
  %v1672 = vpop.f32.mrf.mxu0
  %v1673 = vadd.f32 %v238, %v1672
  %v1674 = vpop.f32.mrf.mxu0
  %v1675 = vadd.f32 %v238, %v1674
  %1676 = vmatmul.bf16.gmra.mxu0 %v424
  %v1677 = vpop.f32.mrf.mxu0
  %v1678 = vadd.f32 %v238, %v1677
  %v1679 = vpop.f32.mrf.mxu0
  %v1680 = vadd.f32 %v238, %v1679
  %1681 = vmatmul.bf16.gmra.mxu0 %v427
  %v1682 = vpop.f32.mrf.mxu0
  %v1683 = vadd.f32 %v238, %v1682
  %v1684 = vpop.f32.mrf.mxu0
  %v1685 = vadd.f32 %v238, %v1684
  %1686 = vmatmul.bf16.gmra.mxu0 %v430
  %v1687 = vpop.f32.mrf.mxu0
  %v1688 = vadd.f32 %v238, %v1687
  %v1689 = vpop.f32.mrf.mxu0
  %v1690 = vadd.f32 %v238, %v1689
  %1691 = vmatmul.bf16.gmra.mxu0 %v433
  %v1692 = vpop.f32.mrf.mxu0
  %v1693 = vadd.f32 %v238, %v1692
  %v1694 = vpop.f32.mrf.mxu0
  %v1695 = vadd.f32 %v238, %v1694
  %1696 = vmatmul.bf16.gmra.mxu0 %v436
  %v1697 = vpop.f32.mrf.mxu0
  %v1698 = vadd.f32 %v238, %v1697
  %v1699 = vpop.f32.mrf.mxu0
  %v1700 = vadd.f32 %v238, %v1699
  %1701 = vmatmul.bf16.gmra.mxu0 %v439
  %v1702 = vpop.f32.mrf.mxu0
  %v1703 = vadd.f32 %v238, %v1702
  %v1704 = vpop.f32.mrf.mxu0
  %v1705 = vadd.f32 %v238, %v1704
  %1706 = vmatmul.bf16.gmra.mxu0 %v442
  %v1707 = vpop.f32.mrf.mxu0
  %v1708 = vadd.f32 %v238, %v1707
  %v1709 = vpop.f32.mrf.mxu0
  %v1710 = vadd.f32 %v238, %v1709
  %1711 = vmatmul.bf16.gmra.mxu0 %v445
  %v1712 = vpop.f32.mrf.mxu0
  %v1713 = vadd.f32 %v238, %v1712
  %v1714 = vpop.f32.mrf.mxu0
  %v1715 = vadd.f32 %v238, %v1714
  %1716 = vmatmul.bf16.gmra.mxu0 %v448
  %v1717 = vpop.f32.mrf.mxu0
  %v1718 = vadd.f32 %v238, %v1717
  %v1719 = vpop.f32.mrf.mxu0
  %v1720 = vadd.f32 %v238, %v1719
  %1721 = vmatmul.bf16.gmra.mxu0 %v451
  %v1722 = vpop.f32.mrf.mxu0
  %v1723 = vadd.f32 %v238, %v1722
  %v1724 = vpop.f32.mrf.mxu0
  %v1725 = vadd.f32 %v238, %v1724
  %1726 = vmatmul.bf16.gmra.mxu0 %v454
  %v1727 = vpop.f32.mrf.mxu0
  %v1728 = vadd.f32 %v238, %v1727
  %v1729 = vpop.f32.mrf.mxu0
  %v1730 = vadd.f32 %v238, %v1729
  %1731 = vmatmul.bf16.gmra.mxu0 %v457
  %v1732 = vpop.f32.mrf.mxu0
  %v1733 = vadd.f32 %v238, %v1732
  %v1734 = vpop.f32.mrf.mxu0
  %v1735 = vadd.f32 %v238, %v1734
  %1736 = vmatmul.bf16.gmra.mxu0 %v460
  %v1737 = vpop.f32.mrf.mxu0
  %v1738 = vadd.f32 %v238, %v1737
  %v1739 = vpop.f32.mrf.mxu0
  %v1740 = vadd.f32 %v238, %v1739
  %1741 = vmatmul.bf16.gmra.mxu0 %v463
  %v1742 = vpop.f32.mrf.mxu0
  %v1743 = vadd.f32 %v238, %v1742
  %v1744 = vpop.f32.mrf.mxu0
  %v1745 = vadd.f32 %v238, %v1744
  %1746 = vmatmul.bf16.gmra.mxu0 %v466
  %v1747 = vpop.f32.mrf.mxu0
  %v1748 = vadd.f32 %v238, %v1747
  %v1749 = vpop.f32.mrf.mxu0
  %v1750 = vadd.f32 %v238, %v1749
  %1751 = vmatmul.bf16.gmra.mxu0 %v469
  %v1752 = vpop.f32.mrf.mxu0
  %v1753 = vadd.f32 %v238, %v1752
  %v1754 = vpop.f32.mrf.mxu0
  %v1755 = vadd.f32 %v238, %v1754
  %1756 = vmatmul.bf16.gmra.mxu0 %v472
  %v1757 = vpop.f32.mrf.mxu0
  %v1758 = vadd.f32 %v238, %v1757
  %v1759 = vpop.f32.mrf.mxu0
  %v1760 = vadd.f32 %v238, %v1759
  %1761 = vmatmul.bf16.gmra.mxu0 %v475
  %v1762 = vpop.f32.mrf.mxu0
  %v1763 = vadd.f32 %v238, %v1762
  %v1764 = vpop.f32.mrf.mxu0
  %v1765 = vadd.f32 %v238, %v1764
  %1766 = vmatmul.bf16.gmra.mxu0 %v478
  %v1767 = vpop.f32.mrf.mxu0
  %v1768 = vadd.f32 %v238, %v1767
  %v1769 = vpop.f32.mrf.mxu0
  %v1770 = vadd.f32 %v238, %v1769
  %1771 = vmatmul.bf16.gmra.mxu0 %v481
  %v1772 = vpop.f32.mrf.mxu0
  %v1773 = vadd.f32 %v238, %v1772
  %v1774 = vpop.f32.mrf.mxu0
  %v1775 = vadd.f32 %v238, %v1774
  %1776 = vmatmul.bf16.gmra.mxu0 %v484
  %v1777 = vpop.f32.mrf.mxu0
  %v1778 = vadd.f32 %v238, %v1777
  %v1779 = vpop.f32.mrf.mxu0
  %v1780 = vadd.f32 %v238, %v1779
  %1781 = vmatmul.bf16.gmra.mxu0 %v487
  %v1782 = vpop.f32.mrf.mxu0
  %v1783 = vadd.f32 %v238, %v1782
  %v1784 = vpop.f32.mrf.mxu0
  %v1785 = vadd.f32 %v238, %v1784
  %1786 = vmatmul.bf16.gmra.mxu0 %v490
  %v1787 = vpop.f32.mrf.mxu0
  %v1788 = vadd.f32 %v238, %v1787
  %v1789 = vpop.f32.mrf.mxu0
  %v1790 = vadd.f32 %v238, %v1789
  %1791 = vmatmul.bf16.gmra.mxu0 %v493
  %v1792 = vpop.f32.mrf.mxu0
  %v1793 = vadd.f32 %v238, %v1792
  %v1794 = vpop.f32.mrf.mxu0
  %v1795 = vadd.f32 %v238, %v1794
  %1796 = vmatmul.bf16.gmra.mxu0 %v496
  %v1797 = vpop.f32.mrf.mxu0
  %v1798 = vadd.f32 %v238, %v1797
  %v1799 = vpop.f32.mrf.mxu0
  %v1800 = vadd.f32 %v238, %v1799
  %1801 = vmatmul.bf16.gmra.mxu0 %v499
  %v1802 = vpop.f32.mrf.mxu0
  %v1803 = vadd.f32 %v238, %v1802
  %v1804 = vpop.f32.mrf.mxu0
  %v1805 = vadd.f32 %v238, %v1804
  %1806 = vmatmul.bf16.gmra.mxu0 %v502
  %v1807 = vpop.f32.mrf.mxu0
  %v1808 = vadd.f32 %v238, %v1807
  %v1809 = vpop.f32.mrf.mxu0
  %v1810 = vadd.f32 %v238, %v1809
  %1811 = vmatmul.bf16.gmra.mxu0 %v505
  %v1812 = vpop.f32.mrf.mxu0
  %v1813 = vadd.f32 %v238, %v1812
  %v1814 = vpop.f32.mrf.mxu0
  %v1815 = vadd.f32 %v238, %v1814
  %1816 = vmatmul.bf16.gmra.mxu0 %v508
  %v1817 = vpop.f32.mrf.mxu0
  %v1818 = vadd.f32 %v238, %v1817
  %v1819 = vpop.f32.mrf.mxu0
  %v1820 = vadd.f32 %v238, %v1819
  %1821 = vmatmul.bf16.gmra.mxu0 %v511
  %v1822 = vpop.f32.mrf.mxu0
  %v1823 = vadd.f32 %v238, %v1822
  %v1824 = vpop.f32.mrf.mxu0
  %v1825 = vadd.f32 %v238, %v1824
  %1826 = vmatmul.bf16.gmra.mxu0 %v514
  %v1827 = vpop.f32.mrf.mxu0
  %v1828 = vadd.f32 %v238, %v1827
  %v1829 = vpop.f32.mrf.mxu0
  %v1830 = vadd.f32 %v238, %v1829
  %1831 = vdwg.mxu0
  %v1832 = vmax.f32 %v526, 0.0
  %v1833 = vmax.f32 %v855, 0.0
  %v1834 = vmax.f32 %v1184, 0.0
  %v1835 = vmax.f32 %v1513, 0.0
  %v1836 = vmax.f32 %v528, 0.0
  %v1837 = vmax.f32 %v857, 0.0
  %v1838 = vmax.f32 %v1186, 0.0
  %v1839 = vmax.f32 %v1515, 0.0
  %v1840 = vmax.f32 %v531, 0.0
  %v1841 = vmax.f32 %v860, 0.0
  %v1842 = vmax.f32 %v1189, 0.0
  %v1843 = vmax.f32 %v1518, 0.0
  %v1844 = vmax.f32 %v533, 0.0
  %v1845 = vmax.f32 %v862, 0.0
  %v1846 = vmax.f32 %v1191, 0.0
  %v1847 = vmax.f32 %v1520, 0.0
  %v1848 = vmax.f32 %v536, 0.0
  %v1849 = vmax.f32 %v865, 0.0
  %v1850 = vmax.f32 %v1194, 0.0
  %v1851 = vmax.f32 %v1523, 0.0
  %v1852 = vmax.f32 %v538, 0.0
  %v1853 = vmax.f32 %v867, 0.0
  %v1854 = vmax.f32 %v1196, 0.0
  %v1855 = vmax.f32 %v1525, 0.0
  %v1856 = vmax.f32 %v541, 0.0
  %v1857 = vmax.f32 %v870, 0.0
  %v1858 = vmax.f32 %v1199, 0.0
  %v1859 = vmax.f32 %v1528, 0.0
  %v1860 = vmax.f32 %v543, 0.0
  %v1861 = vmax.f32 %v872, 0.0
  %v1862 = vmax.f32 %v1201, 0.0
  %v1863 = vmax.f32 %v1530, 0.0
  %v1864 = vmax.f32 %v546, 0.0
  %v1865 = vmax.f32 %v875, 0.0
  %v1866 = vmax.f32 %v1204, 0.0
  %v1867 = vmax.f32 %v1533, 0.0
  %v1868 = vmax.f32 %v548, 0.0
  %v1869 = vmax.f32 %v877, 0.0
  %v1870 = vmax.f32 %v1206, 0.0
  %v1871 = vmax.f32 %v1535, 0.0
  %v1872 = vmax.f32 %v551, 0.0
  %v1873 = vmax.f32 %v880, 0.0
  %v1874 = vmax.f32 %v1209, 0.0
  %v1875 = vmax.f32 %v1538, 0.0
  %v1876 = vmax.f32 %v553, 0.0
  %v1877 = vmax.f32 %v882, 0.0
  %v1878 = vmax.f32 %v1211, 0.0
  %v1879 = vmax.f32 %v1540, 0.0
  %v1880 = vmax.f32 %v556, 0.0
  %v1881 = vmax.f32 %v885, 0.0
  %v1882 = vmax.f32 %v1214, 0.0
  %v1883 = vmax.f32 %v1543, 0.0
  %v1884 = vmax.f32 %v558, 0.0
  %v1885 = vmax.f32 %v887, 0.0
  %v1886 = vmax.f32 %v1216, 0.0
  %v1887 = vmax.f32 %v1545, 0.0
  %v1888 = vmax.f32 %v561, 0.0
  %v1889 = vmax.f32 %v890, 0.0
  %v1890 = vmax.f32 %v1219, 0.0
  %v1891 = vmax.f32 %v1548, 0.0
  %v1892 = vmax.f32 %v563, 0.0
  %v1893 = vmax.f32 %v892, 0.0
  %v1894 = vmax.f32 %v1221, 0.0
  %v1895 = vmax.f32 %v1550, 0.0
  %v1896 = vmax.f32 %v566, 0.0
  %v1897 = vmax.f32 %v895, 0.0
  %v1898 = vmax.f32 %v1224, 0.0
  %v1899 = vmax.f32 %v1553, 0.0
  %v1900 = vmax.f32 %v568, 0.0
  %v1901 = vmax.f32 %v897, 0.0
  %v1902 = vmax.f32 %v1226, 0.0
  %v1903 = vmax.f32 %v1555, 0.0
  %v1904 = vmax.f32 %v571, 0.0
  %v1905 = vmax.f32 %v900, 0.0
  %v1906 = vmax.f32 %v1229, 0.0
  %v1907 = vmax.f32 %v1558, 0.0
  %v1908 = vmax.f32 %v573, 0.0
  %v1909 = vmax.f32 %v902, 0.0
  %v1910 = vmax.f32 %v1231, 0.0
  %v1911 = vmax.f32 %v1560, 0.0
  %v1912 = vmax.f32 %v576, 0.0
  %v1913 = vmax.f32 %v905, 0.0
  %v1914 = vmax.f32 %v1234, 0.0
  %v1915 = vmax.f32 %v1563, 0.0
  %v1916 = vmax.f32 %v578, 0.0
  %v1917 = vmax.f32 %v907, 0.0
  %v1918 = vmax.f32 %v1236, 0.0
  %v1919 = vmax.f32 %v1565, 0.0
  %v1920 = vmax.f32 %v581, 0.0
  %v1921 = vmax.f32 %v910, 0.0
  %v1922 = vmax.f32 %v1239, 0.0
  %v1923 = vmax.f32 %v1568, 0.0
  %v1924 = vmax.f32 %v583, 0.0
  %v1925 = vmax.f32 %v912, 0.0
  %v1926 = vmax.f32 %v1241, 0.0
  %v1927 = vmax.f32 %v1570, 0.0
  %v1928 = vmax.f32 %v586, 0.0
  %v1929 = vmax.f32 %v915, 0.0
  %v1930 = vmax.f32 %v1244, 0.0
  %v1931 = vmax.f32 %v1573, 0.0
  %v1932 = vmax.f32 %v588, 0.0
  %v1933 = vmax.f32 %v917, 0.0
  %v1934 = vmax.f32 %v1246, 0.0
  %v1935 = vmax.f32 %v1575, 0.0
  %v1936 = vmax.f32 %v591, 0.0
  %v1937 = vmax.f32 %v920, 0.0
  %v1938 = vmax.f32 %v1249, 0.0
  %v1939 = vmax.f32 %v1578, 0.0
  %v1940 = vmax.f32 %v593, 0.0
  %v1941 = vmax.f32 %v922, 0.0
  %v1942 = vmax.f32 %v1251, 0.0
  %v1943 = vmax.f32 %v1580, 0.0
  %v1944 = vmax.f32 %v596, 0.0
  %v1945 = vmax.f32 %v925, 0.0
  %v1946 = vmax.f32 %v1254, 0.0
  %v1947 = vmax.f32 %v1583, 0.0
  %v1948 = vmax.f32 %v598, 0.0
  %v1949 = vmax.f32 %v927, 0.0
  %v1950 = vmax.f32 %v1256, 0.0
  %v1951 = vmax.f32 %v1585, 0.0
  %v1952 = vmax.f32 %v601, 0.0
  %v1953 = vmax.f32 %v930, 0.0
  %v1954 = vmax.f32 %v1259, 0.0
  %v1955 = vmax.f32 %v1588, 0.0
  %v1956 = vmax.f32 %v603, 0.0
  %v1957 = vmax.f32 %v932, 0.0
  %v1958 = vmax.f32 %v1261, 0.0
  %v1959 = vmax.f32 %v1590, 0.0
  %v1960 = vmax.f32 %v606, 0.0
  %v1961 = vmax.f32 %v935, 0.0
  %v1962 = vmax.f32 %v1264, 0.0
  %v1963 = vmax.f32 %v1593, 0.0
  %v1964 = vmax.f32 %v608, 0.0
  %v1965 = vmax.f32 %v937, 0.0
  %v1966 = vmax.f32 %v1266, 0.0
  %v1967 = vmax.f32 %v1595, 0.0
  %v1968 = vmax.f32 %v611, 0.0
  %v1969 = vmax.f32 %v940, 0.0
  %v1970 = vmax.f32 %v1269, 0.0
  %v1971 = vmax.f32 %v1598, 0.0
  %v1972 = vmax.f32 %v613, 0.0
  %v1973 = vmax.f32 %v942, 0.0
  %v1974 = vmax.f32 %v1271, 0.0
  %v1975 = vmax.f32 %v1600, 0.0
  %v1976 = vmax.f32 %v616, 0.0
  %v1977 = vmax.f32 %v945, 0.0
  %v1978 = vmax.f32 %v1274, 0.0
  %v1979 = vmax.f32 %v1603, 0.0
  %v1980 = vmax.f32 %v618, 0.0
  %v1981 = vmax.f32 %v947, 0.0
  %v1982 = vmax.f32 %v1276, 0.0
  %v1983 = vmax.f32 %v1605, 0.0
  %v1984 = vmax.f32 %v621, 0.0
  %v1985 = vmax.f32 %v950, 0.0
  %v1986 = vmax.f32 %v1279, 0.0
  %v1987 = vmax.f32 %v1608, 0.0
  %v1988 = vmax.f32 %v623, 0.0
  %v1989 = vmax.f32 %v952, 0.0
  %v1990 = vmax.f32 %v1281, 0.0
  %v1991 = vmax.f32 %v1610, 0.0
  %v1992 = vmax.f32 %v626, 0.0
  %v1993 = vmax.f32 %v955, 0.0
  %v1994 = vmax.f32 %v1284, 0.0
  %v1995 = vmax.f32 %v1613, 0.0
  %v1996 = vmax.f32 %v628, 0.0
  %v1997 = vmax.f32 %v957, 0.0
  %v1998 = vmax.f32 %v1286, 0.0
  %v1999 = vmax.f32 %v1615, 0.0
  %v2000 = vmax.f32 %v631, 0.0
  %v2001 = vmax.f32 %v960, 0.0
  %v2002 = vmax.f32 %v1289, 0.0
  %v2003 = vmax.f32 %v1618, 0.0
  %v2004 = vmax.f32 %v633, 0.0
  %v2005 = vmax.f32 %v962, 0.0
  %v2006 = vmax.f32 %v1291, 0.0
  %v2007 = vmax.f32 %v1620, 0.0
  %v2008 = vmax.f32 %v636, 0.0
  %v2009 = vmax.f32 %v965, 0.0
  %v2010 = vmax.f32 %v1294, 0.0
  %v2011 = vmax.f32 %v1623, 0.0
  %v2012 = vmax.f32 %v638, 0.0
  %v2013 = vmax.f32 %v967, 0.0
  %v2014 = vmax.f32 %v1296, 0.0
  %v2015 = vmax.f32 %v1625, 0.0
  %v2016 = vmax.f32 %v641, 0.0
  %v2017 = vmax.f32 %v970, 0.0
  %v2018 = vmax.f32 %v1299, 0.0
  %v2019 = vmax.f32 %v1628, 0.0
  %v2020 = vmax.f32 %v643, 0.0
  %v2021 = vmax.f32 %v972, 0.0
  %v2022 = vmax.f32 %v1301, 0.0
  %v2023 = vmax.f32 %v1630, 0.0
  %v2024 = vmax.f32 %v646, 0.0
  %v2025 = vmax.f32 %v975, 0.0
  %v2026 = vmax.f32 %v1304, 0.0
  %v2027 = vmax.f32 %v1633, 0.0
  %v2028 = vmax.f32 %v648, 0.0
  %v2029 = vmax.f32 %v977, 0.0
  %v2030 = vmax.f32 %v1306, 0.0
  %v2031 = vmax.f32 %v1635, 0.0
  %v2032 = vmax.f32 %v651, 0.0
  %v2033 = vmax.f32 %v980, 0.0
  %v2034 = vmax.f32 %v1309, 0.0
  %v2035 = vmax.f32 %v1638, 0.0
  %v2036 = vmax.f32 %v653, 0.0
  %v2037 = vmax.f32 %v982, 0.0
  %v2038 = vmax.f32 %v1311, 0.0
  %v2039 = vmax.f32 %v1640, 0.0
  %v2040 = vmax.f32 %v656, 0.0
  %v2041 = vmax.f32 %v985, 0.0
  %v2042 = vmax.f32 %v1314, 0.0
  %v2043 = vmax.f32 %v1643, 0.0
  %v2044 = vmax.f32 %v658, 0.0
  %v2045 = vmax.f32 %v987, 0.0
  %v2046 = vmax.f32 %v1316, 0.0
  %v2047 = vmax.f32 %v1645, 0.0
  %v2048 = vmax.f32 %v661, 0.0
  %v2049 = vmax.f32 %v990, 0.0
  %v2050 = vmax.f32 %v1319, 0.0
  %v2051 = vmax.f32 %v1648, 0.0
  %v2052 = vmax.f32 %v663, 0.0
  %v2053 = vmax.f32 %v992, 0.0
  %v2054 = vmax.f32 %v1321, 0.0
  %v2055 = vmax.f32 %v1650, 0.0
  %v2056 = vmax.f32 %v666, 0.0
  %v2057 = vmax.f32 %v995, 0.0
  %v2058 = vmax.f32 %v1324, 0.0
  %v2059 = vmax.f32 %v1653, 0.0
  %v2060 = vmax.f32 %v668, 0.0
  %v2061 = vmax.f32 %v997, 0.0
  %v2062 = vmax.f32 %v1326, 0.0
  %v2063 = vmax.f32 %v1655, 0.0
  %v2064 = vmax.f32 %v671, 0.0
  %v2065 = vmax.f32 %v1000, 0.0
  %v2066 = vmax.f32 %v1329, 0.0
  %v2067 = vmax.f32 %v1658, 0.0
  %v2068 = vmax.f32 %v673, 0.0
  %v2069 = vmax.f32 %v1002, 0.0
  %v2070 = vmax.f32 %v1331, 0.0
  %v2071 = vmax.f32 %v1660, 0.0
  %v2072 = vmax.f32 %v676, 0.0
  %v2073 = vmax.f32 %v1005, 0.0
  %v2074 = vmax.f32 %v1334, 0.0
  %v2075 = vmax.f32 %v1663, 0.0
  %v2076 = vmax.f32 %v678, 0.0
  %v2077 = vmax.f32 %v1007, 0.0
  %v2078 = vmax.f32 %v1336, 0.0
  %v2079 = vmax.f32 %v1665, 0.0
  %v2080 = vmax.f32 %v681, 0.0
  %v2081 = vmax.f32 %v1010, 0.0
  %v2082 = vmax.f32 %v1339, 0.0
  %v2083 = vmax.f32 %v1668, 0.0
  %v2084 = vmax.f32 %v683, 0.0
  %v2085 = vmax.f32 %v1012, 0.0
  %v2086 = vmax.f32 %v1341, 0.0
  %v2087 = vmax.f32 %v1670, 0.0
  %v2088 = vmax.f32 %v686, 0.0
  %v2089 = vmax.f32 %v1015, 0.0
  %v2090 = vmax.f32 %v1344, 0.0
  %v2091 = vmax.f32 %v1673, 0.0
  %v2092 = vmax.f32 %v688, 0.0
  %v2093 = vmax.f32 %v1017, 0.0
  %v2094 = vmax.f32 %v1346, 0.0
  %v2095 = vmax.f32 %v1675, 0.0
  %v2096 = vmax.f32 %v691, 0.0
  %v2097 = vmax.f32 %v1020, 0.0
  %v2098 = vmax.f32 %v1349, 0.0
  %v2099 = vmax.f32 %v1678, 0.0
  %v2100 = vmax.f32 %v693, 0.0
  %v2101 = vmax.f32 %v1022, 0.0
  %v2102 = vmax.f32 %v1351, 0.0
  %v2103 = vmax.f32 %v1680, 0.0
  %v2104 = vmax.f32 %v696, 0.0
  %v2105 = vmax.f32 %v1025, 0.0
  %v2106 = vmax.f32 %v1354, 0.0
  %v2107 = vmax.f32 %v1683, 0.0
  %v2108 = vmax.f32 %v698, 0.0
  %v2109 = vmax.f32 %v1027, 0.0
  %v2110 = vmax.f32 %v1356, 0.0
  %v2111 = vmax.f32 %v1685, 0.0
  %v2112 = vmax.f32 %v701, 0.0
  %v2113 = vmax.f32 %v1030, 0.0
  %v2114 = vmax.f32 %v1359, 0.0
  %v2115 = vmax.f32 %v1688, 0.0
  %v2116 = vmax.f32 %v703, 0.0
  %v2117 = vmax.f32 %v1032, 0.0
  %v2118 = vmax.f32 %v1361, 0.0
  %v2119 = vmax.f32 %v1690, 0.0
  %v2120 = vmax.f32 %v706, 0.0
  %v2121 = vmax.f32 %v1035, 0.0
  %v2122 = vmax.f32 %v1364, 0.0
  %v2123 = vmax.f32 %v1693, 0.0
  %v2124 = vmax.f32 %v708, 0.0
  %v2125 = vmax.f32 %v1037, 0.0
  %v2126 = vmax.f32 %v1366, 0.0
  %v2127 = vmax.f32 %v1695, 0.0
  %v2128 = vmax.f32 %v711, 0.0
  %v2129 = vmax.f32 %v1040, 0.0
  %v2130 = vmax.f32 %v1369, 0.0
  %v2131 = vmax.f32 %v1698, 0.0
  %v2132 = vmax.f32 %v713, 0.0
  %v2133 = vmax.f32 %v1042, 0.0
  %v2134 = vmax.f32 %v1371, 0.0
  %v2135 = vmax.f32 %v1700, 0.0
  %v2136 = vmax.f32 %v716, 0.0
  %v2137 = vmax.f32 %v1045, 0.0
  %v2138 = vmax.f32 %v1374, 0.0
  %v2139 = vmax.f32 %v1703, 0.0
  %v2140 = vmax.f32 %v718, 0.0
  %v2141 = vmax.f32 %v1047, 0.0
  %v2142 = vmax.f32 %v1376, 0.0
  %v2143 = vmax.f32 %v1705, 0.0
  %v2144 = vmax.f32 %v721, 0.0
  %v2145 = vmax.f32 %v1050, 0.0
  %v2146 = vmax.f32 %v1379, 0.0
  %v2147 = vmax.f32 %v1708, 0.0
  %v2148 = vmax.f32 %v723, 0.0
  %v2149 = vmax.f32 %v1052, 0.0
  %v2150 = vmax.f32 %v1381, 0.0
  %v2151 = vmax.f32 %v1710, 0.0
  %v2152 = vmax.f32 %v726, 0.0
  %v2153 = vmax.f32 %v1055, 0.0
  %v2154 = vmax.f32 %v1384, 0.0
  %v2155 = vmax.f32 %v1713, 0.0
  %v2156 = vmax.f32 %v728, 0.0
  %v2157 = vmax.f32 %v1057, 0.0
  %v2158 = vmax.f32 %v1386, 0.0
  %v2159 = vmax.f32 %v1715, 0.0
  %v2160 = vmax.f32 %v731, 0.0
  %v2161 = vmax.f32 %v1060, 0.0
  %v2162 = vmax.f32 %v1389, 0.0
  %v2163 = vmax.f32 %v1718, 0.0
  %v2164 = vmax.f32 %v733, 0.0
  %v2165 = vmax.f32 %v1062, 0.0
  %v2166 = vmax.f32 %v1391, 0.0
  %v2167 = vmax.f32 %v1720, 0.0
  %v2168 = vmax.f32 %v736, 0.0
  %v2169 = vmax.f32 %v1065, 0.0
  %v2170 = vmax.f32 %v1394, 0.0
  %v2171 = vmax.f32 %v1723, 0.0
  %v2172 = vmax.f32 %v738, 0.0
  %v2173 = vmax.f32 %v1067, 0.0
  %v2174 = vmax.f32 %v1396, 0.0
  %v2175 = vmax.f32 %v1725, 0.0
  %v2176 = vmax.f32 %v741, 0.0
  %v2177 = vmax.f32 %v1070, 0.0
  %v2178 = vmax.f32 %v1399, 0.0
  %v2179 = vmax.f32 %v1728, 0.0
  %v2180 = vmax.f32 %v743, 0.0
  %v2181 = vmax.f32 %v1072, 0.0
  %v2182 = vmax.f32 %v1401, 0.0
  %v2183 = vmax.f32 %v1730, 0.0
  %v2184 = vmax.f32 %v746, 0.0
  %v2185 = vmax.f32 %v1075, 0.0
  %v2186 = vmax.f32 %v1404, 0.0
  %v2187 = vmax.f32 %v1733, 0.0
  %v2188 = vmax.f32 %v748, 0.0
  %v2189 = vmax.f32 %v1077, 0.0
  %v2190 = vmax.f32 %v1406, 0.0
  %v2191 = vmax.f32 %v1735, 0.0
  %v2192 = vmax.f32 %v751, 0.0
  %v2193 = vmax.f32 %v1080, 0.0
  %v2194 = vmax.f32 %v1409, 0.0
  %v2195 = vmax.f32 %v1738, 0.0
  %v2196 = vmax.f32 %v753, 0.0
  %v2197 = vmax.f32 %v1082, 0.0
  %v2198 = vmax.f32 %v1411, 0.0
  %v2199 = vmax.f32 %v1740, 0.0
  %v2200 = vmax.f32 %v756, 0.0
  %v2201 = vmax.f32 %v1085, 0.0
  %v2202 = vmax.f32 %v1414, 0.0
  %v2203 = vmax.f32 %v1743, 0.0
  %v2204 = vmax.f32 %v758, 0.0
  %v2205 = vmax.f32 %v1087, 0.0
  %v2206 = vmax.f32 %v1416, 0.0
  %v2207 = vmax.f32 %v1745, 0.0
  %v2208 = vmax.f32 %v761, 0.0
  %v2209 = vmax.f32 %v1090, 0.0
  %v2210 = vmax.f32 %v1419, 0.0
  %v2211 = vmax.f32 %v1748, 0.0
  %v2212 = vmax.f32 %v763, 0.0
  %v2213 = vmax.f32 %v1092, 0.0
  %v2214 = vmax.f32 %v1421, 0.0
  %v2215 = vmax.f32 %v1750, 0.0
  %v2216 = vmax.f32 %v766, 0.0
  %v2217 = vmax.f32 %v1095, 0.0
  %v2218 = vmax.f32 %v1424, 0.0
  %v2219 = vmax.f32 %v1753, 0.0
  %v2220 = vmax.f32 %v768, 0.0
  %v2221 = vmax.f32 %v1097, 0.0
  %v2222 = vmax.f32 %v1426, 0.0
  %v2223 = vmax.f32 %v1755, 0.0
  %v2224 = vmax.f32 %v771, 0.0
  %v2225 = vmax.f32 %v1100, 0.0
  %v2226 = vmax.f32 %v1429, 0.0
  %v2227 = vmax.f32 %v1758, 0.0
  %v2228 = vmax.f32 %v773, 0.0
  %v2229 = vmax.f32 %v1102, 0.0
  %v2230 = vmax.f32 %v1431, 0.0
  %v2231 = vmax.f32 %v1760, 0.0
  %v2232 = vmax.f32 %v776, 0.0
  %v2233 = vmax.f32 %v1105, 0.0
  %v2234 = vmax.f32 %v1434, 0.0
  %v2235 = vmax.f32 %v1763, 0.0
  %v2236 = vmax.f32 %v778, 0.0
  %v2237 = vmax.f32 %v1107, 0.0
  %v2238 = vmax.f32 %v1436, 0.0
  %v2239 = vmax.f32 %v1765, 0.0
  %v2240 = vmax.f32 %v781, 0.0
  %v2241 = vmax.f32 %v1110, 0.0
  %v2242 = vmax.f32 %v1439, 0.0
  %v2243 = vmax.f32 %v1768, 0.0
  %v2244 = vmax.f32 %v783, 0.0
  %v2245 = vmax.f32 %v1112, 0.0
  %v2246 = vmax.f32 %v1441, 0.0
  %v2247 = vmax.f32 %v1770, 0.0
  %v2248 = vmax.f32 %v786, 0.0
  %v2249 = vmax.f32 %v1115, 0.0
  %v2250 = vmax.f32 %v1444, 0.0
  %v2251 = vmax.f32 %v1773, 0.0
  %v2252 = vmax.f32 %v788, 0.0
  %v2253 = vmax.f32 %v1117, 0.0
  %v2254 = vmax.f32 %v1446, 0.0
  %v2255 = vmax.f32 %v1775, 0.0
  %v2256 = vmax.f32 %v791, 0.0
  %v2257 = vmax.f32 %v1120, 0.0
  %v2258 = vmax.f32 %v1449, 0.0
  %v2259 = vmax.f32 %v1778, 0.0
  %v2260 = vmax.f32 %v793, 0.0
  %v2261 = vmax.f32 %v1122, 0.0
  %v2262 = vmax.f32 %v1451, 0.0
  %v2263 = vmax.f32 %v1780, 0.0
  %v2264 = vmax.f32 %v796, 0.0
  %v2265 = vmax.f32 %v1125, 0.0
  %v2266 = vmax.f32 %v1454, 0.0
  %v2267 = vmax.f32 %v1783, 0.0
  %v2268 = vmax.f32 %v798, 0.0
  %v2269 = vmax.f32 %v1127, 0.0
  %v2270 = vmax.f32 %v1456, 0.0
  %v2271 = vmax.f32 %v1785, 0.0
  %v2272 = vmax.f32 %v801, 0.0
  %v2273 = vmax.f32 %v1130, 0.0
  %v2274 = vmax.f32 %v1459, 0.0
  %v2275 = vmax.f32 %v1788, 0.0
  %v2276 = vmax.f32 %v803, 0.0
  %v2277 = vmax.f32 %v1132, 0.0
  %v2278 = vmax.f32 %v1461, 0.0
  %v2279 = vmax.f32 %v1790, 0.0
  %v2280 = vmax.f32 %v806, 0.0
  %v2281 = vmax.f32 %v1135, 0.0
  %v2282 = vmax.f32 %v1464, 0.0
  %v2283 = vmax.f32 %v1793, 0.0
  %v2284 = vmax.f32 %v808, 0.0
  %v2285 = vmax.f32 %v1137, 0.0
  %v2286 = vmax.f32 %v1466, 0.0
  %v2287 = vmax.f32 %v1795, 0.0
  %v2288 = vmax.f32 %v811, 0.0
  %v2289 = vmax.f32 %v1140, 0.0
  %v2290 = vmax.f32 %v1469, 0.0
  %v2291 = vmax.f32 %v1798, 0.0
  %v2292 = vmax.f32 %v813, 0.0
  %v2293 = vmax.f32 %v1142, 0.0
  %v2294 = vmax.f32 %v1471, 0.0
  %v2295 = vmax.f32 %v1800, 0.0
  %v2296 = vmax.f32 %v816, 0.0
  %v2297 = vmax.f32 %v1145, 0.0
  %v2298 = vmax.f32 %v1474, 0.0
  %v2299 = vmax.f32 %v1803, 0.0
  %v2300 = vmax.f32 %v818, 0.0
  %v2301 = vmax.f32 %v1147, 0.0
  %v2302 = vmax.f32 %v1476, 0.0
  %v2303 = vmax.f32 %v1805, 0.0
  %v2304 = vmax.f32 %v821, 0.0
  %v2305 = vmax.f32 %v1150, 0.0
  %v2306 = vmax.f32 %v1479, 0.0
  %v2307 = vmax.f32 %v1808, 0.0
  %v2308 = vmax.f32 %v823, 0.0
  %v2309 = vmax.f32 %v1152, 0.0
  %v2310 = vmax.f32 %v1481, 0.0
  %v2311 = vmax.f32 %v1810, 0.0
  %v2312 = vmax.f32 %v826, 0.0
  %v2313 = vmax.f32 %v1155, 0.0
  %v2314 = vmax.f32 %v1484, 0.0
  %v2315 = vmax.f32 %v1813, 0.0
  %v2316 = vmax.f32 %v828, 0.0
  %v2317 = vmax.f32 %v1157, 0.0
  %v2318 = vmax.f32 %v1486, 0.0
  %v2319 = vmax.f32 %v1815, 0.0
  %v2320 = vmax.f32 %v831, 0.0
  %v2321 = vmax.f32 %v1160, 0.0
  %v2322 = vmax.f32 %v1489, 0.0
  %v2323 = vmax.f32 %v1818, 0.0
  %v2324 = vmax.f32 %v833, 0.0
  %v2325 = vmax.f32 %v1162, 0.0
  %v2326 = vmax.f32 %v1491, 0.0
  %v2327 = vmax.f32 %v1820, 0.0
  %v2328 = vmax.f32 %v836, 0.0
  %v2329 = vmax.f32 %v1165, 0.0
  %v2330 = vmax.f32 %v1494, 0.0
  %v2331 = vmax.f32 %v1823, 0.0
  %v2332 = vmax.f32 %v838, 0.0
  %v2333 = vmax.f32 %v1167, 0.0
  %v2334 = vmax.f32 %v1496, 0.0
  %v2335 = vmax.f32 %v1825, 0.0
  %v2336 = vmax.f32 %v841, 0.0
  %v2337 = vmax.f32 %v1170, 0.0
  %v2338 = vmax.f32 %v1499, 0.0
  %v2339 = vmax.f32 %v1828, 0.0
  %v2340 = vmax.f32 %v843, 0.0
  %v2341 = vmax.f32 %v1172, 0.0
  %v2342 = vmax.f32 %v1501, 0.0
  %v2343 = vmax.f32 %v1830, 0.0
  %v2344 = vld [vmem:[%s3] sm:$0xf]
  %v2346 = vperm.slane %v2344, 0
  %v2347 = vperm.slane %v2344, 1
  %v2348 = vperm.slane %v2344, 2
  %v2349 = vperm.slane %v2344, 3
  %v2354 = vmul.f32 %v1832, %v2346
  %v2355 = vmul.f32 %v1833, %v2347
  %v2356 = vmul.f32 %v1834, %v2348
  %v2357 = vmul.f32 %v1835, %v2349
  %v2358 = vmul.f32 %v1836, %v2346
  %v2359 = vmul.f32 %v1837, %v2347
  %v2360 = vmul.f32 %v1838, %v2348
  %v2361 = vmul.f32 %v1839, %v2349
  %v2362 = vmul.f32 %v1840, %v2346
  %v2363 = vmul.f32 %v1841, %v2347
  %v2364 = vmul.f32 %v1842, %v2348
  %v2365 = vmul.f32 %v1843, %v2349
  %v2366 = vmul.f32 %v1844, %v2346
  %v2367 = vmul.f32 %v1845, %v2347
  %v2368 = vmul.f32 %v1846, %v2348
  %v2369 = vmul.f32 %v1847, %v2349
  %v2370 = vmul.f32 %v1848, %v2346
  %v2371 = vmul.f32 %v1849, %v2347
  %v2372 = vmul.f32 %v1850, %v2348
  %v2373 = vmul.f32 %v1851, %v2349
  %v2374 = vmul.f32 %v1852, %v2346
  %v2375 = vmul.f32 %v1853, %v2347
  %v2376 = vmul.f32 %v1854, %v2348
  %v2377 = vmul.f32 %v1855, %v2349
  %v2378 = vmul.f32 %v1856, %v2346
  %v2379 = vmul.f32 %v1857, %v2347
  %v2380 = vmul.f32 %v1858, %v2348
  %v2381 = vmul.f32 %v1859, %v2349
  %v2382 = vmul.f32 %v1860, %v2346
  %v2383 = vmul.f32 %v1861, %v2347
  %v2384 = vmul.f32 %v1862, %v2348
  %v2385 = vmul.f32 %v1863, %v2349
  %v2386 = vmul.f32 %v1864, %v2346
  %v2387 = vmul.f32 %v1865, %v2347
  %v2388 = vmul.f32 %v1866, %v2348
  %v2389 = vmul.f32 %v1867, %v2349
  %v2390 = vmul.f32 %v1868, %v2346
  %v2391 = vmul.f32 %v1869, %v2347
  %v2392 = vmul.f32 %v1870, %v2348
  %v2393 = vmul.f32 %v1871, %v2349
  %v2394 = vmul.f32 %v1872, %v2346
  %v2395 = vmul.f32 %v1873, %v2347
  %v2396 = vmul.f32 %v1874, %v2348
  %v2397 = vmul.f32 %v1875, %v2349
  %v2398 = vmul.f32 %v1876, %v2346
  %v2399 = vmul.f32 %v1877, %v2347
  %v2400 = vmul.f32 %v1878, %v2348
  %v2401 = vmul.f32 %v1879, %v2349
  %v2402 = vmul.f32 %v1880, %v2346
  %v2403 = vmul.f32 %v1881, %v2347
  %v2404 = vmul.f32 %v1882, %v2348
  %v2405 = vmul.f32 %v1883, %v2349
  %v2406 = vmul.f32 %v1884, %v2346
  %v2407 = vmul.f32 %v1885, %v2347
  %v2408 = vmul.f32 %v1886, %v2348
  %v2409 = vmul.f32 %v1887, %v2349
  %v2410 = vmul.f32 %v1888, %v2346
  %v2411 = vmul.f32 %v1889, %v2347
  %v2412 = vmul.f32 %v1890, %v2348
  %v2413 = vmul.f32 %v1891, %v2349
  %v2414 = vmul.f32 %v1892, %v2346
  %v2415 = vmul.f32 %v1893, %v2347
  %v2416 = vmul.f32 %v1894, %v2348
  %v2417 = vmul.f32 %v1895, %v2349
  %v2418 = vmul.f32 %v1896, %v2346
  %v2419 = vmul.f32 %v1897, %v2347
  %v2420 = vmul.f32 %v1898, %v2348
  %v2421 = vmul.f32 %v1899, %v2349
  %v2422 = vmul.f32 %v1900, %v2346
  %v2423 = vmul.f32 %v1901, %v2347
  %v2424 = vmul.f32 %v1902, %v2348
  %v2425 = vmul.f32 %v1903, %v2349
  %v2426 = vmul.f32 %v1904, %v2346
  %v2427 = vmul.f32 %v1905, %v2347
  %v2428 = vmul.f32 %v1906, %v2348
  %v2429 = vmul.f32 %v1907, %v2349
  %v2430 = vmul.f32 %v1908, %v2346
  %v2431 = vmul.f32 %v1909, %v2347
  %v2432 = vmul.f32 %v1910, %v2348
  %v2433 = vmul.f32 %v1911, %v2349
  %v2434 = vmul.f32 %v1912, %v2346
  %v2435 = vmul.f32 %v1913, %v2347
  %v2436 = vmul.f32 %v1914, %v2348
  %v2437 = vmul.f32 %v1915, %v2349
  %v2438 = vmul.f32 %v1916, %v2346
  %v2439 = vmul.f32 %v1917, %v2347
  %v2440 = vmul.f32 %v1918, %v2348
  %v2441 = vmul.f32 %v1919, %v2349
  %v2442 = vmul.f32 %v1920, %v2346
  %v2443 = vmul.f32 %v1921, %v2347
  %v2444 = vmul.f32 %v1922, %v2348
  %v2445 = vmul.f32 %v1923, %v2349
  %v2446 = vmul.f32 %v1924, %v2346
  %v2447 = vmul.f32 %v1925, %v2347
  %v2448 = vmul.f32 %v1926, %v2348
  %v2449 = vmul.f32 %v1927, %v2349
  %v2450 = vmul.f32 %v1928, %v2346
  %v2451 = vmul.f32 %v1929, %v2347
  %v2452 = vmul.f32 %v1930, %v2348
  %v2453 = vmul.f32 %v1931, %v2349
  %v2454 = vmul.f32 %v1932, %v2346
  %v2455 = vmul.f32 %v1933, %v2347
  %v2456 = vmul.f32 %v1934, %v2348
  %v2457 = vmul.f32 %v1935, %v2349
  %v2458 = vmul.f32 %v1936, %v2346
  %v2459 = vmul.f32 %v1937, %v2347
  %v2460 = vmul.f32 %v1938, %v2348
  %v2461 = vmul.f32 %v1939, %v2349
  %v2462 = vmul.f32 %v1940, %v2346
  %v2463 = vmul.f32 %v1941, %v2347
  %v2464 = vmul.f32 %v1942, %v2348
  %v2465 = vmul.f32 %v1943, %v2349
  %v2466 = vmul.f32 %v1944, %v2346
  %v2467 = vmul.f32 %v1945, %v2347
  %v2468 = vmul.f32 %v1946, %v2348
  %v2469 = vmul.f32 %v1947, %v2349
  %v2470 = vmul.f32 %v1948, %v2346
  %v2471 = vmul.f32 %v1949, %v2347
  %v2472 = vmul.f32 %v1950, %v2348
  %v2473 = vmul.f32 %v1951, %v2349
  %v2474 = vmul.f32 %v1952, %v2346
  %v2475 = vmul.f32 %v1953, %v2347
  %v2476 = vmul.f32 %v1954, %v2348
  %v2477 = vmul.f32 %v1955, %v2349
  %v2478 = vmul.f32 %v1956, %v2346
  %v2479 = vmul.f32 %v1957, %v2347
  %v2480 = vmul.f32 %v1958, %v2348
  %v2481 = vmul.f32 %v1959, %v2349
  %v2482 = vmul.f32 %v1960, %v2346
  %v2483 = vmul.f32 %v1961, %v2347
  %v2484 = vmul.f32 %v1962, %v2348
  %v2485 = vmul.f32 %v1963, %v2349
  %v2486 = vmul.f32 %v1964, %v2346
  %v2487 = vmul.f32 %v1965, %v2347
  %v2488 = vmul.f32 %v1966, %v2348
  %v2489 = vmul.f32 %v1967, %v2349
  %v2490 = vmul.f32 %v1968, %v2346
  %v2491 = vmul.f32 %v1969, %v2347
  %v2492 = vmul.f32 %v1970, %v2348
  %v2493 = vmul.f32 %v1971, %v2349
  %v2494 = vmul.f32 %v1972, %v2346
  %v2495 = vmul.f32 %v1973, %v2347
  %v2496 = vmul.f32 %v1974, %v2348
  %v2497 = vmul.f32 %v1975, %v2349
  %v2498 = vmul.f32 %v1976, %v2346
  %v2499 = vmul.f32 %v1977, %v2347
  %v2500 = vmul.f32 %v1978, %v2348
  %v2501 = vmul.f32 %v1979, %v2349
  %v2502 = vmul.f32 %v1980, %v2346
  %v2503 = vmul.f32 %v1981, %v2347
  %v2504 = vmul.f32 %v1982, %v2348
  %v2505 = vmul.f32 %v1983, %v2349
  %v2506 = vmul.f32 %v1984, %v2346
  %v2507 = vmul.f32 %v1985, %v2347
  %v2508 = vmul.f32 %v1986, %v2348
  %v2509 = vmul.f32 %v1987, %v2349
  %v2510 = vmul.f32 %v1988, %v2346
  %v2511 = vmul.f32 %v1989, %v2347
  %v2512 = vmul.f32 %v1990, %v2348
  %v2513 = vmul.f32 %v1991, %v2349
  %v2514 = vmul.f32 %v1992, %v2346
  %v2515 = vmul.f32 %v1993, %v2347
  %v2516 = vmul.f32 %v1994, %v2348
  %v2517 = vmul.f32 %v1995, %v2349
  %v2518 = vmul.f32 %v1996, %v2346
  %v2519 = vmul.f32 %v1997, %v2347
  %v2520 = vmul.f32 %v1998, %v2348
  %v2521 = vmul.f32 %v1999, %v2349
  %v2522 = vmul.f32 %v2000, %v2346
  %v2523 = vmul.f32 %v2001, %v2347
  %v2524 = vmul.f32 %v2002, %v2348
  %v2525 = vmul.f32 %v2003, %v2349
  %v2526 = vmul.f32 %v2004, %v2346
  %v2527 = vmul.f32 %v2005, %v2347
  %v2528 = vmul.f32 %v2006, %v2348
  %v2529 = vmul.f32 %v2007, %v2349
  %v2530 = vmul.f32 %v2008, %v2346
  %v2531 = vmul.f32 %v2009, %v2347
  %v2532 = vmul.f32 %v2010, %v2348
  %v2533 = vmul.f32 %v2011, %v2349
  %v2534 = vmul.f32 %v2012, %v2346
  %v2535 = vmul.f32 %v2013, %v2347
  %v2536 = vmul.f32 %v2014, %v2348
  %v2537 = vmul.f32 %v2015, %v2349
  %v2538 = vmul.f32 %v2016, %v2346
  %v2539 = vmul.f32 %v2017, %v2347
  %v2540 = vmul.f32 %v2018, %v2348
  %v2541 = vmul.f32 %v2019, %v2349
  %v2542 = vmul.f32 %v2020, %v2346
  %v2543 = vmul.f32 %v2021, %v2347
  %v2544 = vmul.f32 %v2022, %v2348
  %v2545 = vmul.f32 %v2023, %v2349
  %v2546 = vmul.f32 %v2024, %v2346
  %v2547 = vmul.f32 %v2025, %v2347
  %v2548 = vmul.f32 %v2026, %v2348
  %v2549 = vmul.f32 %v2027, %v2349
  %v2550 = vmul.f32 %v2028, %v2346
  %v2551 = vmul.f32 %v2029, %v2347
  %v2552 = vmul.f32 %v2030, %v2348
  %v2553 = vmul.f32 %v2031, %v2349
  %v2554 = vmul.f32 %v2032, %v2346
  %v2555 = vmul.f32 %v2033, %v2347
  %v2556 = vmul.f32 %v2034, %v2348
  %v2557 = vmul.f32 %v2035, %v2349
  %v2558 = vmul.f32 %v2036, %v2346
  %v2559 = vmul.f32 %v2037, %v2347
  %v2560 = vmul.f32 %v2038, %v2348
  %v2561 = vmul.f32 %v2039, %v2349
  %v2562 = vmul.f32 %v2040, %v2346
  %v2563 = vmul.f32 %v2041, %v2347
  %v2564 = vmul.f32 %v2042, %v2348
  %v2565 = vmul.f32 %v2043, %v2349
  %v2566 = vmul.f32 %v2044, %v2346
  %v2567 = vmul.f32 %v2045, %v2347
  %v2568 = vmul.f32 %v2046, %v2348
  %v2569 = vmul.f32 %v2047, %v2349
  %v2570 = vmul.f32 %v2048, %v2346
  %v2571 = vmul.f32 %v2049, %v2347
  %v2572 = vmul.f32 %v2050, %v2348
  %v2573 = vmul.f32 %v2051, %v2349
  %v2574 = vmul.f32 %v2052, %v2346
  %v2575 = vmul.f32 %v2053, %v2347
  %v2576 = vmul.f32 %v2054, %v2348
  %v2577 = vmul.f32 %v2055, %v2349
  %v2578 = vmul.f32 %v2056, %v2346
  %v2579 = vmul.f32 %v2057, %v2347
  %v2580 = vmul.f32 %v2058, %v2348
  %v2581 = vmul.f32 %v2059, %v2349
  %v2582 = vmul.f32 %v2060, %v2346
  %v2583 = vmul.f32 %v2061, %v2347
  %v2584 = vmul.f32 %v2062, %v2348
  %v2585 = vmul.f32 %v2063, %v2349
  %v2586 = vmul.f32 %v2064, %v2346
  %v2587 = vmul.f32 %v2065, %v2347
  %v2588 = vmul.f32 %v2066, %v2348
  %v2589 = vmul.f32 %v2067, %v2349
  %v2590 = vmul.f32 %v2068, %v2346
  %v2591 = vmul.f32 %v2069, %v2347
  %v2592 = vmul.f32 %v2070, %v2348
  %v2593 = vmul.f32 %v2071, %v2349
  %v2594 = vmul.f32 %v2072, %v2346
  %v2595 = vmul.f32 %v2073, %v2347
  %v2596 = vmul.f32 %v2074, %v2348
  %v2597 = vmul.f32 %v2075, %v2349
  %v2598 = vmul.f32 %v2076, %v2346
  %v2599 = vmul.f32 %v2077, %v2347
  %v2600 = vmul.f32 %v2078, %v2348
  %v2601 = vmul.f32 %v2079, %v2349
  %v2602 = vmul.f32 %v2080, %v2346
  %v2603 = vmul.f32 %v2081, %v2347
  %v2604 = vmul.f32 %v2082, %v2348
  %v2605 = vmul.f32 %v2083, %v2349
  %v2606 = vmul.f32 %v2084, %v2346
  %v2607 = vmul.f32 %v2085, %v2347
  %v2608 = vmul.f32 %v2086, %v2348
  %v2609 = vmul.f32 %v2087, %v2349
  %v2610 = vmul.f32 %v2088, %v2346
  %v2611 = vmul.f32 %v2089, %v2347
  %v2612 = vmul.f32 %v2090, %v2348
  %v2613 = vmul.f32 %v2091, %v2349
  %v2614 = vmul.f32 %v2092, %v2346
  %v2615 = vmul.f32 %v2093, %v2347
  %v2616 = vmul.f32 %v2094, %v2348
  %v2617 = vmul.f32 %v2095, %v2349
  %v2618 = vmul.f32 %v2096, %v2346
  %v2619 = vmul.f32 %v2097, %v2347
  %v2620 = vmul.f32 %v2098, %v2348
  %v2621 = vmul.f32 %v2099, %v2349
  %v2622 = vmul.f32 %v2100, %v2346
  %v2623 = vmul.f32 %v2101, %v2347
  %v2624 = vmul.f32 %v2102, %v2348
  %v2625 = vmul.f32 %v2103, %v2349
  %v2626 = vmul.f32 %v2104, %v2346
  %v2627 = vmul.f32 %v2105, %v2347
  %v2628 = vmul.f32 %v2106, %v2348
  %v2629 = vmul.f32 %v2107, %v2349
  %v2630 = vmul.f32 %v2108, %v2346
  %v2631 = vmul.f32 %v2109, %v2347
  %v2632 = vmul.f32 %v2110, %v2348
  %v2633 = vmul.f32 %v2111, %v2349
  %v2634 = vmul.f32 %v2112, %v2346
  %v2635 = vmul.f32 %v2113, %v2347
  %v2636 = vmul.f32 %v2114, %v2348
  %v2637 = vmul.f32 %v2115, %v2349
  %v2638 = vmul.f32 %v2116, %v2346
  %v2639 = vmul.f32 %v2117, %v2347
  %v2640 = vmul.f32 %v2118, %v2348
  %v2641 = vmul.f32 %v2119, %v2349
  %v2642 = vmul.f32 %v2120, %v2346
  %v2643 = vmul.f32 %v2121, %v2347
  %v2644 = vmul.f32 %v2122, %v2348
  %v2645 = vmul.f32 %v2123, %v2349
  %v2646 = vmul.f32 %v2124, %v2346
  %v2647 = vmul.f32 %v2125, %v2347
  %v2648 = vmul.f32 %v2126, %v2348
  %v2649 = vmul.f32 %v2127, %v2349
  %v2650 = vmul.f32 %v2128, %v2346
  %v2651 = vmul.f32 %v2129, %v2347
  %v2652 = vmul.f32 %v2130, %v2348
  %v2653 = vmul.f32 %v2131, %v2349
  %v2654 = vmul.f32 %v2132, %v2346
  %v2655 = vmul.f32 %v2133, %v2347
  %v2656 = vmul.f32 %v2134, %v2348
  %v2657 = vmul.f32 %v2135, %v2349
  %v2658 = vmul.f32 %v2136, %v2346
  %v2659 = vmul.f32 %v2137, %v2347
  %v2660 = vmul.f32 %v2138, %v2348
  %v2661 = vmul.f32 %v2139, %v2349
  %v2662 = vmul.f32 %v2140, %v2346
  %v2663 = vmul.f32 %v2141, %v2347
  %v2664 = vmul.f32 %v2142, %v2348
  %v2665 = vmul.f32 %v2143, %v2349
  %v2666 = vmul.f32 %v2144, %v2346
  %v2667 = vmul.f32 %v2145, %v2347
  %v2668 = vmul.f32 %v2146, %v2348
  %v2669 = vmul.f32 %v2147, %v2349
  %v2670 = vmul.f32 %v2148, %v2346
  %v2671 = vmul.f32 %v2149, %v2347
  %v2672 = vmul.f32 %v2150, %v2348
  %v2673 = vmul.f32 %v2151, %v2349
  %v2674 = vmul.f32 %v2152, %v2346
  %v2675 = vmul.f32 %v2153, %v2347
  %v2676 = vmul.f32 %v2154, %v2348
  %v2677 = vmul.f32 %v2155, %v2349
  %v2678 = vmul.f32 %v2156, %v2346
  %v2679 = vmul.f32 %v2157, %v2347
  %v2680 = vmul.f32 %v2158, %v2348
  %v2681 = vmul.f32 %v2159, %v2349
  %v2682 = vmul.f32 %v2160, %v2346
  %v2683 = vmul.f32 %v2161, %v2347
  %v2684 = vmul.f32 %v2162, %v2348
  %v2685 = vmul.f32 %v2163, %v2349
  %v2686 = vmul.f32 %v2164, %v2346
  %v2687 = vmul.f32 %v2165, %v2347
  %v2688 = vmul.f32 %v2166, %v2348
  %v2689 = vmul.f32 %v2167, %v2349
  %v2690 = vmul.f32 %v2168, %v2346
  %v2691 = vmul.f32 %v2169, %v2347
  %v2692 = vmul.f32 %v2170, %v2348
  %v2693 = vmul.f32 %v2171, %v2349
  %v2694 = vmul.f32 %v2172, %v2346
  %v2695 = vmul.f32 %v2173, %v2347
  %v2696 = vmul.f32 %v2174, %v2348
  %v2697 = vmul.f32 %v2175, %v2349
  %v2698 = vmul.f32 %v2176, %v2346
  %v2699 = vmul.f32 %v2177, %v2347
  %v2700 = vmul.f32 %v2178, %v2348
  %v2701 = vmul.f32 %v2179, %v2349
  %v2702 = vmul.f32 %v2180, %v2346
  %v2703 = vmul.f32 %v2181, %v2347
  %v2704 = vmul.f32 %v2182, %v2348
  %v2705 = vmul.f32 %v2183, %v2349
  %v2706 = vmul.f32 %v2184, %v2346
  %v2707 = vmul.f32 %v2185, %v2347
  %v2708 = vmul.f32 %v2186, %v2348
  %v2709 = vmul.f32 %v2187, %v2349
  %v2710 = vmul.f32 %v2188, %v2346
  %v2711 = vmul.f32 %v2189, %v2347
  %v2712 = vmul.f32 %v2190, %v2348
  %v2713 = vmul.f32 %v2191, %v2349
  %v2714 = vmul.f32 %v2192, %v2346
  %v2715 = vmul.f32 %v2193, %v2347
  %v2716 = vmul.f32 %v2194, %v2348
  %v2717 = vmul.f32 %v2195, %v2349
  %v2718 = vmul.f32 %v2196, %v2346
  %v2719 = vmul.f32 %v2197, %v2347
  %v2720 = vmul.f32 %v2198, %v2348
  %v2721 = vmul.f32 %v2199, %v2349
  %v2722 = vmul.f32 %v2200, %v2346
  %v2723 = vmul.f32 %v2201, %v2347
  %v2724 = vmul.f32 %v2202, %v2348
  %v2725 = vmul.f32 %v2203, %v2349
  %v2726 = vmul.f32 %v2204, %v2346
  %v2727 = vmul.f32 %v2205, %v2347
  %v2728 = vmul.f32 %v2206, %v2348
  %v2729 = vmul.f32 %v2207, %v2349
  %v2730 = vmul.f32 %v2208, %v2346
  %v2731 = vmul.f32 %v2209, %v2347
  %v2732 = vmul.f32 %v2210, %v2348
  %v2733 = vmul.f32 %v2211, %v2349
  %v2734 = vmul.f32 %v2212, %v2346
  %v2735 = vmul.f32 %v2213, %v2347
  %v2736 = vmul.f32 %v2214, %v2348
  %v2737 = vmul.f32 %v2215, %v2349
  %v2738 = vmul.f32 %v2216, %v2346
  %v2739 = vmul.f32 %v2217, %v2347
  %v2740 = vmul.f32 %v2218, %v2348
  %v2741 = vmul.f32 %v2219, %v2349
  %v2742 = vmul.f32 %v2220, %v2346
  %v2743 = vmul.f32 %v2221, %v2347
  %v2744 = vmul.f32 %v2222, %v2348
  %v2745 = vmul.f32 %v2223, %v2349
  %v2746 = vmul.f32 %v2224, %v2346
  %v2747 = vmul.f32 %v2225, %v2347
  %v2748 = vmul.f32 %v2226, %v2348
  %v2749 = vmul.f32 %v2227, %v2349
  %v2750 = vmul.f32 %v2228, %v2346
  %v2751 = vmul.f32 %v2229, %v2347
  %v2752 = vmul.f32 %v2230, %v2348
  %v2753 = vmul.f32 %v2231, %v2349
  %v2754 = vmul.f32 %v2232, %v2346
  %v2755 = vmul.f32 %v2233, %v2347
  %v2756 = vmul.f32 %v2234, %v2348
  %v2757 = vmul.f32 %v2235, %v2349
  %v2758 = vmul.f32 %v2236, %v2346
  %v2759 = vmul.f32 %v2237, %v2347
  %v2760 = vmul.f32 %v2238, %v2348
  %v2761 = vmul.f32 %v2239, %v2349
  %v2762 = vmul.f32 %v2240, %v2346
  %v2763 = vmul.f32 %v2241, %v2347
  %v2764 = vmul.f32 %v2242, %v2348
  %v2765 = vmul.f32 %v2243, %v2349
  %v2766 = vmul.f32 %v2244, %v2346
  %v2767 = vmul.f32 %v2245, %v2347
  %v2768 = vmul.f32 %v2246, %v2348
  %v2769 = vmul.f32 %v2247, %v2349
  %v2770 = vmul.f32 %v2248, %v2346
  %v2771 = vmul.f32 %v2249, %v2347
  %v2772 = vmul.f32 %v2250, %v2348
  %v2773 = vmul.f32 %v2251, %v2349
  %v2774 = vmul.f32 %v2252, %v2346
  %v2775 = vmul.f32 %v2253, %v2347
  %v2776 = vmul.f32 %v2254, %v2348
  %v2777 = vmul.f32 %v2255, %v2349
  %v2778 = vmul.f32 %v2256, %v2346
  %v2779 = vmul.f32 %v2257, %v2347
  %v2780 = vmul.f32 %v2258, %v2348
  %v2781 = vmul.f32 %v2259, %v2349
  %v2782 = vmul.f32 %v2260, %v2346
  %v2783 = vmul.f32 %v2261, %v2347
  %v2784 = vmul.f32 %v2262, %v2348
  %v2785 = vmul.f32 %v2263, %v2349
  %v2786 = vmul.f32 %v2264, %v2346
  %v2787 = vmul.f32 %v2265, %v2347
  %v2788 = vmul.f32 %v2266, %v2348
  %v2789 = vmul.f32 %v2267, %v2349
  %v2790 = vmul.f32 %v2268, %v2346
  %v2791 = vmul.f32 %v2269, %v2347
  %v2792 = vmul.f32 %v2270, %v2348
  %v2793 = vmul.f32 %v2271, %v2349
  %v2794 = vmul.f32 %v2272, %v2346
  %v2795 = vmul.f32 %v2273, %v2347
  %v2796 = vmul.f32 %v2274, %v2348
  %v2797 = vmul.f32 %v2275, %v2349
  %v2798 = vmul.f32 %v2276, %v2346
  %v2799 = vmul.f32 %v2277, %v2347
  %v2800 = vmul.f32 %v2278, %v2348
  %v2801 = vmul.f32 %v2279, %v2349
  %v2802 = vmul.f32 %v2280, %v2346
  %v2803 = vmul.f32 %v2281, %v2347
  %v2804 = vmul.f32 %v2282, %v2348
  %v2805 = vmul.f32 %v2283, %v2349
  %v2806 = vmul.f32 %v2284, %v2346
  %v2807 = vmul.f32 %v2285, %v2347
  %v2808 = vmul.f32 %v2286, %v2348
  %v2809 = vmul.f32 %v2287, %v2349
  %v2810 = vmul.f32 %v2288, %v2346
  %v2811 = vmul.f32 %v2289, %v2347
  %v2812 = vmul.f32 %v2290, %v2348
  %v2813 = vmul.f32 %v2291, %v2349
  %v2814 = vmul.f32 %v2292, %v2346
  %v2815 = vmul.f32 %v2293, %v2347
  %v2816 = vmul.f32 %v2294, %v2348
  %v2817 = vmul.f32 %v2295, %v2349
  %v2818 = vmul.f32 %v2296, %v2346
  %v2819 = vmul.f32 %v2297, %v2347
  %v2820 = vmul.f32 %v2298, %v2348
  %v2821 = vmul.f32 %v2299, %v2349
  %v2822 = vmul.f32 %v2300, %v2346
  %v2823 = vmul.f32 %v2301, %v2347
  %v2824 = vmul.f32 %v2302, %v2348
  %v2825 = vmul.f32 %v2303, %v2349
  %v2826 = vmul.f32 %v2304, %v2346
  %v2827 = vmul.f32 %v2305, %v2347
  %v2828 = vmul.f32 %v2306, %v2348
  %v2829 = vmul.f32 %v2307, %v2349
  %v2830 = vmul.f32 %v2308, %v2346
  %v2831 = vmul.f32 %v2309, %v2347
  %v2832 = vmul.f32 %v2310, %v2348
  %v2833 = vmul.f32 %v2311, %v2349
  %v2834 = vmul.f32 %v2312, %v2346
  %v2835 = vmul.f32 %v2313, %v2347
  %v2836 = vmul.f32 %v2314, %v2348
  %v2837 = vmul.f32 %v2315, %v2349
  %v2838 = vmul.f32 %v2316, %v2346
  %v2839 = vmul.f32 %v2317, %v2347
  %v2840 = vmul.f32 %v2318, %v2348
  %v2841 = vmul.f32 %v2319, %v2349
  %v2842 = vmul.f32 %v2320, %v2346
  %v2843 = vmul.f32 %v2321, %v2347
  %v2844 = vmul.f32 %v2322, %v2348
  %v2845 = vmul.f32 %v2323, %v2349
  %v2846 = vmul.f32 %v2324, %v2346
  %v2847 = vmul.f32 %v2325, %v2347
  %v2848 = vmul.f32 %v2326, %v2348
  %v2849 = vmul.f32 %v2327, %v2349
  %v2850 = vmul.f32 %v2328, %v2346
  %v2851 = vmul.f32 %v2329, %v2347
  %v2852 = vmul.f32 %v2330, %v2348
  %v2853 = vmul.f32 %v2331, %v2349
  %v2854 = vmul.f32 %v2332, %v2346
  %v2855 = vmul.f32 %v2333, %v2347
  %v2856 = vmul.f32 %v2334, %v2348
  %v2857 = vmul.f32 %v2335, %v2349
  %v2858 = vmul.f32 %v2336, %v2346
  %v2859 = vmul.f32 %v2337, %v2347
  %v2860 = vmul.f32 %v2338, %v2348
  %v2861 = vmul.f32 %v2339, %v2349
  %v2862 = vmul.f32 %v2340, %v2346
  %v2863 = vmul.f32 %v2341, %v2347
  %v2864 = vmul.f32 %v2342, %v2348
  %v2865 = vmul.f32 %v2343, %v2349
  %v2866 = vadd.f32 %v2354, %v2355
  %v2867 = vadd.f32 %v2866, %v2356
  %v2868 = vadd.f32 %v2867, %v2357
  %2869 = vadd.xlane.f32.xlu0 %v2868
  %v2870 = vpop.xlane.xlu0 %2869
  %v2871 = vadd.f32 %v2358, %v2359
  %v2872 = vadd.f32 %v2871, %v2360
  %v2873 = vadd.f32 %v2872, %v2361
  %2874 = vadd.xlane.f32.xlu0 %v2873
  %v2875 = vpop.xlane.xlu0 %2874
  %v2876 = vadd.f32 %v2362, %v2363
  %v2877 = vadd.f32 %v2876, %v2364
  %v2878 = vadd.f32 %v2877, %v2365
  %2879 = vadd.xlane.f32.xlu0 %v2878
  %v2880 = vpop.xlane.xlu0 %2879
  %v2881 = vadd.f32 %v2366, %v2367
  %v2882 = vadd.f32 %v2881, %v2368
  %v2883 = vadd.f32 %v2882, %v2369
  %2884 = vadd.xlane.f32.xlu0 %v2883
  %v2885 = vpop.xlane.xlu0 %2884
  %v2886 = vadd.f32 %v2370, %v2371
  %v2887 = vadd.f32 %v2886, %v2372
  %v2888 = vadd.f32 %v2887, %v2373
  %2889 = vadd.xlane.f32.xlu0 %v2888
  %v2890 = vpop.xlane.xlu0 %2889
  %v2891 = vadd.f32 %v2374, %v2375
  %v2892 = vadd.f32 %v2891, %v2376
  %v2893 = vadd.f32 %v2892, %v2377
  %2894 = vadd.xlane.f32.xlu0 %v2893
  %v2895 = vpop.xlane.xlu0 %2894
  %v2896 = vadd.f32 %v2378, %v2379
  %v2897 = vadd.f32 %v2896, %v2380
  %v2898 = vadd.f32 %v2897, %v2381
  %2899 = vadd.xlane.f32.xlu0 %v2898
  %v2900 = vpop.xlane.xlu0 %2899
  %v2901 = vadd.f32 %v2382, %v2383
  %v2902 = vadd.f32 %v2901, %v2384
  %v2903 = vadd.f32 %v2902, %v2385
  %2904 = vadd.xlane.f32.xlu0 %v2903
  %v2905 = vpop.xlane.xlu0 %2904
  %v2906 = vadd.f32 %v2386, %v2387
  %v2907 = vadd.f32 %v2906, %v2388
  %v2908 = vadd.f32 %v2907, %v2389
  %2909 = vadd.xlane.f32.xlu0 %v2908
  %v2910 = vpop.xlane.xlu0 %2909
  %v2911 = vadd.f32 %v2390, %v2391
  %v2912 = vadd.f32 %v2911, %v2392
  %v2913 = vadd.f32 %v2912, %v2393
  %2914 = vadd.xlane.f32.xlu0 %v2913
  %v2915 = vpop.xlane.xlu0 %2914
  %v2916 = vadd.f32 %v2394, %v2395
  %v2917 = vadd.f32 %v2916, %v2396
  %v2918 = vadd.f32 %v2917, %v2397
  %2919 = vadd.xlane.f32.xlu0 %v2918
  %v2920 = vpop.xlane.xlu0 %2919
  %v2921 = vadd.f32 %v2398, %v2399
  %v2922 = vadd.f32 %v2921, %v2400
  %v2923 = vadd.f32 %v2922, %v2401
  %2924 = vadd.xlane.f32.xlu0 %v2923
  %v2925 = vpop.xlane.xlu0 %2924
  %v2926 = vadd.f32 %v2402, %v2403
  %v2927 = vadd.f32 %v2926, %v2404
  %v2928 = vadd.f32 %v2927, %v2405
  %2929 = vadd.xlane.f32.xlu0 %v2928
  %v2930 = vpop.xlane.xlu0 %2929
  %v2931 = vadd.f32 %v2406, %v2407
  %v2932 = vadd.f32 %v2931, %v2408
  %v2933 = vadd.f32 %v2932, %v2409
  %2934 = vadd.xlane.f32.xlu0 %v2933
  %v2935 = vpop.xlane.xlu0 %2934
  %v2936 = vadd.f32 %v2410, %v2411
  %v2937 = vadd.f32 %v2936, %v2412
  %v2938 = vadd.f32 %v2937, %v2413
  %2939 = vadd.xlane.f32.xlu0 %v2938
  %v2940 = vpop.xlane.xlu0 %2939
  %v2941 = vadd.f32 %v2414, %v2415
  %v2942 = vadd.f32 %v2941, %v2416
  %v2943 = vadd.f32 %v2942, %v2417
  %2944 = vadd.xlane.f32.xlu0 %v2943
  %v2945 = vpop.xlane.xlu0 %2944
  %v2946 = vadd.f32 %v2418, %v2419
  %v2947 = vadd.f32 %v2946, %v2420
  %v2948 = vadd.f32 %v2947, %v2421
  %2949 = vadd.xlane.f32.xlu0 %v2948
  %v2950 = vpop.xlane.xlu0 %2949
  %v2951 = vadd.f32 %v2422, %v2423
  %v2952 = vadd.f32 %v2951, %v2424
  %v2953 = vadd.f32 %v2952, %v2425
  %2954 = vadd.xlane.f32.xlu0 %v2953
  %v2955 = vpop.xlane.xlu0 %2954
  %v2956 = vadd.f32 %v2426, %v2427
  %v2957 = vadd.f32 %v2956, %v2428
  %v2958 = vadd.f32 %v2957, %v2429
  %2959 = vadd.xlane.f32.xlu0 %v2958
  %v2960 = vpop.xlane.xlu0 %2959
  %v2961 = vadd.f32 %v2430, %v2431
  %v2962 = vadd.f32 %v2961, %v2432
  %v2963 = vadd.f32 %v2962, %v2433
  %2964 = vadd.xlane.f32.xlu0 %v2963
  %v2965 = vpop.xlane.xlu0 %2964
  %v2966 = vadd.f32 %v2434, %v2435
  %v2967 = vadd.f32 %v2966, %v2436
  %v2968 = vadd.f32 %v2967, %v2437
  %2969 = vadd.xlane.f32.xlu0 %v2968
  %v2970 = vpop.xlane.xlu0 %2969
  %v2971 = vadd.f32 %v2438, %v2439
  %v2972 = vadd.f32 %v2971, %v2440
  %v2973 = vadd.f32 %v2972, %v2441
  %2974 = vadd.xlane.f32.xlu0 %v2973
  %v2975 = vpop.xlane.xlu0 %2974
  %v2976 = vadd.f32 %v2442, %v2443
  %v2977 = vadd.f32 %v2976, %v2444
  %v2978 = vadd.f32 %v2977, %v2445
  %2979 = vadd.xlane.f32.xlu0 %v2978
  %v2980 = vpop.xlane.xlu0 %2979
  %v2981 = vadd.f32 %v2446, %v2447
  %v2982 = vadd.f32 %v2981, %v2448
  %v2983 = vadd.f32 %v2982, %v2449
  %2984 = vadd.xlane.f32.xlu0 %v2983
  %v2985 = vpop.xlane.xlu0 %2984
  %v2986 = vadd.f32 %v2450, %v2451
  %v2987 = vadd.f32 %v2986, %v2452
  %v2988 = vadd.f32 %v2987, %v2453
  %2989 = vadd.xlane.f32.xlu0 %v2988
  %v2990 = vpop.xlane.xlu0 %2989
  %v2991 = vadd.f32 %v2454, %v2455
  %v2992 = vadd.f32 %v2991, %v2456
  %v2993 = vadd.f32 %v2992, %v2457
  %2994 = vadd.xlane.f32.xlu0 %v2993
  %v2995 = vpop.xlane.xlu0 %2994
  %v2996 = vadd.f32 %v2458, %v2459
  %v2997 = vadd.f32 %v2996, %v2460
  %v2998 = vadd.f32 %v2997, %v2461
  %2999 = vadd.xlane.f32.xlu0 %v2998
  %v3000 = vpop.xlane.xlu0 %2999
  %v3001 = vadd.f32 %v2462, %v2463
  %v3002 = vadd.f32 %v3001, %v2464
  %v3003 = vadd.f32 %v3002, %v2465
  %3004 = vadd.xlane.f32.xlu0 %v3003
  %v3005 = vpop.xlane.xlu0 %3004
  %v3006 = vadd.f32 %v2466, %v2467
  %v3007 = vadd.f32 %v3006, %v2468
  %v3008 = vadd.f32 %v3007, %v2469
  %3009 = vadd.xlane.f32.xlu0 %v3008
  %v3010 = vpop.xlane.xlu0 %3009
  %v3011 = vadd.f32 %v2470, %v2471
  %v3012 = vadd.f32 %v3011, %v2472
  %v3013 = vadd.f32 %v3012, %v2473
  %3014 = vadd.xlane.f32.xlu0 %v3013
  %v3015 = vpop.xlane.xlu0 %3014
  %v3016 = vadd.f32 %v2474, %v2475
  %v3017 = vadd.f32 %v3016, %v2476
  %v3018 = vadd.f32 %v3017, %v2477
  %3019 = vadd.xlane.f32.xlu0 %v3018
  %v3020 = vpop.xlane.xlu0 %3019
  %v3021 = vadd.f32 %v2478, %v2479
  %v3022 = vadd.f32 %v3021, %v2480
  %v3023 = vadd.f32 %v3022, %v2481
  %3024 = vadd.xlane.f32.xlu0 %v3023
  %v3025 = vpop.xlane.xlu0 %3024
  %v3026 = vadd.f32 %v2482, %v2483
  %v3027 = vadd.f32 %v3026, %v2484
  %v3028 = vadd.f32 %v3027, %v2485
  %3029 = vadd.xlane.f32.xlu0 %v3028
  %v3030 = vpop.xlane.xlu0 %3029
  %v3031 = vadd.f32 %v2486, %v2487
  %v3032 = vadd.f32 %v3031, %v2488
  %v3033 = vadd.f32 %v3032, %v2489
  %3034 = vadd.xlane.f32.xlu0 %v3033
  %v3035 = vpop.xlane.xlu0 %3034
  %v3036 = vadd.f32 %v2490, %v2491
  %v3037 = vadd.f32 %v3036, %v2492
  %v3038 = vadd.f32 %v3037, %v2493
  %3039 = vadd.xlane.f32.xlu0 %v3038
  %v3040 = vpop.xlane.xlu0 %3039
  %v3041 = vadd.f32 %v2494, %v2495
  %v3042 = vadd.f32 %v3041, %v2496
  %v3043 = vadd.f32 %v3042, %v2497
  %3044 = vadd.xlane.f32.xlu0 %v3043
  %v3045 = vpop.xlane.xlu0 %3044
  %v3046 = vadd.f32 %v2498, %v2499
  %v3047 = vadd.f32 %v3046, %v2500
  %v3048 = vadd.f32 %v3047, %v2501
  %3049 = vadd.xlane.f32.xlu0 %v3048
  %v3050 = vpop.xlane.xlu0 %3049
  %v3051 = vadd.f32 %v2502, %v2503
  %v3052 = vadd.f32 %v3051, %v2504
  %v3053 = vadd.f32 %v3052, %v2505
  %3054 = vadd.xlane.f32.xlu0 %v3053
  %v3055 = vpop.xlane.xlu0 %3054
  %v3056 = vadd.f32 %v2506, %v2507
  %v3057 = vadd.f32 %v3056, %v2508
  %v3058 = vadd.f32 %v3057, %v2509
  %3059 = vadd.xlane.f32.xlu0 %v3058
  %v3060 = vpop.xlane.xlu0 %3059
  %v3061 = vadd.f32 %v2510, %v2511
  %v3062 = vadd.f32 %v3061, %v2512
  %v3063 = vadd.f32 %v3062, %v2513
  %3064 = vadd.xlane.f32.xlu0 %v3063
  %v3065 = vpop.xlane.xlu0 %3064
  %v3066 = vadd.f32 %v2514, %v2515
  %v3067 = vadd.f32 %v3066, %v2516
  %v3068 = vadd.f32 %v3067, %v2517
  %3069 = vadd.xlane.f32.xlu0 %v3068
  %v3070 = vpop.xlane.xlu0 %3069
  %v3071 = vadd.f32 %v2518, %v2519
  %v3072 = vadd.f32 %v3071, %v2520
  %v3073 = vadd.f32 %v3072, %v2521
  %3074 = vadd.xlane.f32.xlu0 %v3073
  %v3075 = vpop.xlane.xlu0 %3074
  %v3076 = vadd.f32 %v2522, %v2523
  %v3077 = vadd.f32 %v3076, %v2524
  %v3078 = vadd.f32 %v3077, %v2525
  %3079 = vadd.xlane.f32.xlu0 %v3078
  %v3080 = vpop.xlane.xlu0 %3079
  %v3081 = vadd.f32 %v2526, %v2527
  %v3082 = vadd.f32 %v3081, %v2528
  %v3083 = vadd.f32 %v3082, %v2529
  %3084 = vadd.xlane.f32.xlu0 %v3083
  %v3085 = vpop.xlane.xlu0 %3084
  %v3086 = vadd.f32 %v2530, %v2531
  %v3087 = vadd.f32 %v3086, %v2532
  %v3088 = vadd.f32 %v3087, %v2533
  %3089 = vadd.xlane.f32.xlu0 %v3088
  %v3090 = vpop.xlane.xlu0 %3089
  %v3091 = vadd.f32 %v2534, %v2535
  %v3092 = vadd.f32 %v3091, %v2536
  %v3093 = vadd.f32 %v3092, %v2537
  %3094 = vadd.xlane.f32.xlu0 %v3093
  %v3095 = vpop.xlane.xlu0 %3094
  %v3096 = vadd.f32 %v2538, %v2539
  %v3097 = vadd.f32 %v3096, %v2540
  %v3098 = vadd.f32 %v3097, %v2541
  %3099 = vadd.xlane.f32.xlu0 %v3098
  %v3100 = vpop.xlane.xlu0 %3099
  %v3101 = vadd.f32 %v2542, %v2543
  %v3102 = vadd.f32 %v3101, %v2544
  %v3103 = vadd.f32 %v3102, %v2545
  %3104 = vadd.xlane.f32.xlu0 %v3103
  %v3105 = vpop.xlane.xlu0 %3104
  %v3106 = vadd.f32 %v2546, %v2547
  %v3107 = vadd.f32 %v3106, %v2548
  %v3108 = vadd.f32 %v3107, %v2549
  %3109 = vadd.xlane.f32.xlu0 %v3108
  %v3110 = vpop.xlane.xlu0 %3109
  %v3111 = vadd.f32 %v2550, %v2551
  %v3112 = vadd.f32 %v3111, %v2552
  %v3113 = vadd.f32 %v3112, %v2553
  %3114 = vadd.xlane.f32.xlu0 %v3113
  %v3115 = vpop.xlane.xlu0 %3114
  %v3116 = vadd.f32 %v2554, %v2555
  %v3117 = vadd.f32 %v3116, %v2556
  %v3118 = vadd.f32 %v3117, %v2557
  %3119 = vadd.xlane.f32.xlu0 %v3118
  %v3120 = vpop.xlane.xlu0 %3119
  %v3121 = vadd.f32 %v2558, %v2559
  %v3122 = vadd.f32 %v3121, %v2560
  %v3123 = vadd.f32 %v3122, %v2561
  %3124 = vadd.xlane.f32.xlu0 %v3123
  %v3125 = vpop.xlane.xlu0 %3124
  %v3126 = vadd.f32 %v2562, %v2563
  %v3127 = vadd.f32 %v3126, %v2564
  %v3128 = vadd.f32 %v3127, %v2565
  %3129 = vadd.xlane.f32.xlu0 %v3128
  %v3130 = vpop.xlane.xlu0 %3129
  %v3131 = vadd.f32 %v2566, %v2567
  %v3132 = vadd.f32 %v3131, %v2568
  %v3133 = vadd.f32 %v3132, %v2569
  %3134 = vadd.xlane.f32.xlu0 %v3133
  %v3135 = vpop.xlane.xlu0 %3134
  %v3136 = vadd.f32 %v2570, %v2571
  %v3137 = vadd.f32 %v3136, %v2572
  %v3138 = vadd.f32 %v3137, %v2573
  %3139 = vadd.xlane.f32.xlu0 %v3138
  %v3140 = vpop.xlane.xlu0 %3139
  %v3141 = vadd.f32 %v2574, %v2575
  %v3142 = vadd.f32 %v3141, %v2576
  %v3143 = vadd.f32 %v3142, %v2577
  %3144 = vadd.xlane.f32.xlu0 %v3143
  %v3145 = vpop.xlane.xlu0 %3144
  %v3146 = vadd.f32 %v2578, %v2579
  %v3147 = vadd.f32 %v3146, %v2580
  %v3148 = vadd.f32 %v3147, %v2581
  %3149 = vadd.xlane.f32.xlu0 %v3148
  %v3150 = vpop.xlane.xlu0 %3149
  %v3151 = vadd.f32 %v2582, %v2583
  %v3152 = vadd.f32 %v3151, %v2584
  %v3153 = vadd.f32 %v3152, %v2585
  %3154 = vadd.xlane.f32.xlu0 %v3153
  %v3155 = vpop.xlane.xlu0 %3154
  %v3156 = vadd.f32 %v2586, %v2587
  %v3157 = vadd.f32 %v3156, %v2588
  %v3158 = vadd.f32 %v3157, %v2589
  %3159 = vadd.xlane.f32.xlu0 %v3158
  %v3160 = vpop.xlane.xlu0 %3159
  %v3161 = vadd.f32 %v2590, %v2591
  %v3162 = vadd.f32 %v3161, %v2592
  %v3163 = vadd.f32 %v3162, %v2593
  %3164 = vadd.xlane.f32.xlu0 %v3163
  %v3165 = vpop.xlane.xlu0 %3164
  %v3166 = vadd.f32 %v2594, %v2595
  %v3167 = vadd.f32 %v3166, %v2596
  %v3168 = vadd.f32 %v3167, %v2597
  %3169 = vadd.xlane.f32.xlu0 %v3168
  %v3170 = vpop.xlane.xlu0 %3169
  %v3171 = vadd.f32 %v2598, %v2599
  %v3172 = vadd.f32 %v3171, %v2600
  %v3173 = vadd.f32 %v3172, %v2601
  %3174 = vadd.xlane.f32.xlu0 %v3173
  %v3175 = vpop.xlane.xlu0 %3174
  %v3176 = vadd.f32 %v2602, %v2603
  %v3177 = vadd.f32 %v3176, %v2604
  %v3178 = vadd.f32 %v3177, %v2605
  %3179 = vadd.xlane.f32.xlu0 %v3178
  %v3180 = vpop.xlane.xlu0 %3179
  %v3181 = vadd.f32 %v2606, %v2607
  %v3182 = vadd.f32 %v3181, %v2608
  %v3183 = vadd.f32 %v3182, %v2609
  %3184 = vadd.xlane.f32.xlu0 %v3183
  %v3185 = vpop.xlane.xlu0 %3184
  %v3186 = vadd.f32 %v2610, %v2611
  %v3187 = vadd.f32 %v3186, %v2612
  %v3188 = vadd.f32 %v3187, %v2613
  %3189 = vadd.xlane.f32.xlu0 %v3188
  %v3190 = vpop.xlane.xlu0 %3189
  %v3191 = vadd.f32 %v2614, %v2615
  %v3192 = vadd.f32 %v3191, %v2616
  %v3193 = vadd.f32 %v3192, %v2617
  %3194 = vadd.xlane.f32.xlu0 %v3193
  %v3195 = vpop.xlane.xlu0 %3194
  %v3196 = vadd.f32 %v2618, %v2619
  %v3197 = vadd.f32 %v3196, %v2620
  %v3198 = vadd.f32 %v3197, %v2621
  %3199 = vadd.xlane.f32.xlu0 %v3198
  %v3200 = vpop.xlane.xlu0 %3199
  %v3201 = vadd.f32 %v2622, %v2623
  %v3202 = vadd.f32 %v3201, %v2624
  %v3203 = vadd.f32 %v3202, %v2625
  %3204 = vadd.xlane.f32.xlu0 %v3203
  %v3205 = vpop.xlane.xlu0 %3204
  %v3206 = vadd.f32 %v2626, %v2627
  %v3207 = vadd.f32 %v3206, %v2628
  %v3208 = vadd.f32 %v3207, %v2629
  %3209 = vadd.xlane.f32.xlu0 %v3208
  %v3210 = vpop.xlane.xlu0 %3209
  %v3211 = vadd.f32 %v2630, %v2631
  %v3212 = vadd.f32 %v3211, %v2632
  %v3213 = vadd.f32 %v3212, %v2633
  %3214 = vadd.xlane.f32.xlu0 %v3213
  %v3215 = vpop.xlane.xlu0 %3214
  %v3216 = vadd.f32 %v2634, %v2635
  %v3217 = vadd.f32 %v3216, %v2636
  %v3218 = vadd.f32 %v3217, %v2637
  %3219 = vadd.xlane.f32.xlu0 %v3218
  %v3220 = vpop.xlane.xlu0 %3219
  %v3221 = vadd.f32 %v2638, %v2639
  %v3222 = vadd.f32 %v3221, %v2640
  %v3223 = vadd.f32 %v3222, %v2641
  %3224 = vadd.xlane.f32.xlu0 %v3223
  %v3225 = vpop.xlane.xlu0 %3224
  %v3226 = vadd.f32 %v2642, %v2643
  %v3227 = vadd.f32 %v3226, %v2644
  %v3228 = vadd.f32 %v3227, %v2645
  %3229 = vadd.xlane.f32.xlu0 %v3228
  %v3230 = vpop.xlane.xlu0 %3229
  %v3231 = vadd.f32 %v2646, %v2647
  %v3232 = vadd.f32 %v3231, %v2648
  %v3233 = vadd.f32 %v3232, %v2649
  %3234 = vadd.xlane.f32.xlu0 %v3233
  %v3235 = vpop.xlane.xlu0 %3234
  %v3236 = vadd.f32 %v2650, %v2651
  %v3237 = vadd.f32 %v3236, %v2652
  %v3238 = vadd.f32 %v3237, %v2653
  %3239 = vadd.xlane.f32.xlu0 %v3238
  %v3240 = vpop.xlane.xlu0 %3239
  %v3241 = vadd.f32 %v2654, %v2655
  %v3242 = vadd.f32 %v3241, %v2656
  %v3243 = vadd.f32 %v3242, %v2657
  %3244 = vadd.xlane.f32.xlu0 %v3243
  %v3245 = vpop.xlane.xlu0 %3244
  %v3246 = vadd.f32 %v2658, %v2659
  %v3247 = vadd.f32 %v3246, %v2660
  %v3248 = vadd.f32 %v3247, %v2661
  %3249 = vadd.xlane.f32.xlu0 %v3248
  %v3250 = vpop.xlane.xlu0 %3249
  %v3251 = vadd.f32 %v2662, %v2663
  %v3252 = vadd.f32 %v3251, %v2664
  %v3253 = vadd.f32 %v3252, %v2665
  %3254 = vadd.xlane.f32.xlu0 %v3253
  %v3255 = vpop.xlane.xlu0 %3254
  %v3256 = vadd.f32 %v2666, %v2667
  %v3257 = vadd.f32 %v3256, %v2668
  %v3258 = vadd.f32 %v3257, %v2669
  %3259 = vadd.xlane.f32.xlu0 %v3258
  %v3260 = vpop.xlane.xlu0 %3259
  %v3261 = vadd.f32 %v2670, %v2671
  %v3262 = vadd.f32 %v3261, %v2672
  %v3263 = vadd.f32 %v3262, %v2673
  %3264 = vadd.xlane.f32.xlu0 %v3263
  %v3265 = vpop.xlane.xlu0 %3264
  %v3266 = vadd.f32 %v2674, %v2675
  %v3267 = vadd.f32 %v3266, %v2676
  %v3268 = vadd.f32 %v3267, %v2677
  %3269 = vadd.xlane.f32.xlu0 %v3268
  %v3270 = vpop.xlane.xlu0 %3269
  %v3271 = vadd.f32 %v2678, %v2679
  %v3272 = vadd.f32 %v3271, %v2680
  %v3273 = vadd.f32 %v3272, %v2681
  %3274 = vadd.xlane.f32.xlu0 %v3273
  %v3275 = vpop.xlane.xlu0 %3274
  %v3276 = vadd.f32 %v2682, %v2683
  %v3277 = vadd.f32 %v3276, %v2684
  %v3278 = vadd.f32 %v3277, %v2685
  %3279 = vadd.xlane.f32.xlu0 %v3278
  %v3280 = vpop.xlane.xlu0 %3279
  %v3281 = vadd.f32 %v2686, %v2687
  %v3282 = vadd.f32 %v3281, %v2688
  %v3283 = vadd.f32 %v3282, %v2689
  %3284 = vadd.xlane.f32.xlu0 %v3283
  %v3285 = vpop.xlane.xlu0 %3284
  %v3286 = vadd.f32 %v2690, %v2691
  %v3287 = vadd.f32 %v3286, %v2692
  %v3288 = vadd.f32 %v3287, %v2693
  %3289 = vadd.xlane.f32.xlu0 %v3288
  %v3290 = vpop.xlane.xlu0 %3289
  %v3291 = vadd.f32 %v2694, %v2695
  %v3292 = vadd.f32 %v3291, %v2696
  %v3293 = vadd.f32 %v3292, %v2697
  %3294 = vadd.xlane.f32.xlu0 %v3293
  %v3295 = vpop.xlane.xlu0 %3294
  %v3296 = vadd.f32 %v2698, %v2699
  %v3297 = vadd.f32 %v3296, %v2700
  %v3298 = vadd.f32 %v3297, %v2701
  %3299 = vadd.xlane.f32.xlu0 %v3298
  %v3300 = vpop.xlane.xlu0 %3299
  %v3301 = vadd.f32 %v2702, %v2703
  %v3302 = vadd.f32 %v3301, %v2704
  %v3303 = vadd.f32 %v3302, %v2705
  %3304 = vadd.xlane.f32.xlu0 %v3303
  %v3305 = vpop.xlane.xlu0 %3304
  %v3306 = vadd.f32 %v2706, %v2707
  %v3307 = vadd.f32 %v3306, %v2708
  %v3308 = vadd.f32 %v3307, %v2709
  %3309 = vadd.xlane.f32.xlu0 %v3308
  %v3310 = vpop.xlane.xlu0 %3309
  %v3311 = vadd.f32 %v2710, %v2711
  %v3312 = vadd.f32 %v3311, %v2712
  %v3313 = vadd.f32 %v3312, %v2713
  %3314 = vadd.xlane.f32.xlu0 %v3313
  %v3315 = vpop.xlane.xlu0 %3314
  %v3316 = vadd.f32 %v2714, %v2715
  %v3317 = vadd.f32 %v3316, %v2716
  %v3318 = vadd.f32 %v3317, %v2717
  %3319 = vadd.xlane.f32.xlu0 %v3318
  %v3320 = vpop.xlane.xlu0 %3319
  %v3321 = vadd.f32 %v2718, %v2719
  %v3322 = vadd.f32 %v3321, %v2720
  %v3323 = vadd.f32 %v3322, %v2721
  %3324 = vadd.xlane.f32.xlu0 %v3323
  %v3325 = vpop.xlane.xlu0 %3324
  %v3326 = vadd.f32 %v2722, %v2723
  %v3327 = vadd.f32 %v3326, %v2724
  %v3328 = vadd.f32 %v3327, %v2725
  %3329 = vadd.xlane.f32.xlu0 %v3328
  %v3330 = vpop.xlane.xlu0 %3329
  %v3331 = vadd.f32 %v2726, %v2727
  %v3332 = vadd.f32 %v3331, %v2728
  %v3333 = vadd.f32 %v3332, %v2729
  %3334 = vadd.xlane.f32.xlu0 %v3333
  %v3335 = vpop.xlane.xlu0 %3334
  %v3336 = vadd.f32 %v2730, %v2731
  %v3337 = vadd.f32 %v3336, %v2732
  %v3338 = vadd.f32 %v3337, %v2733
  %3339 = vadd.xlane.f32.xlu0 %v3338
  %v3340 = vpop.xlane.xlu0 %3339
  %v3341 = vadd.f32 %v2734, %v2735
  %v3342 = vadd.f32 %v3341, %v2736
  %v3343 = vadd.f32 %v3342, %v2737
  %3344 = vadd.xlane.f32.xlu0 %v3343
  %v3345 = vpop.xlane.xlu0 %3344
  %v3346 = vadd.f32 %v2738, %v2739
  %v3347 = vadd.f32 %v3346, %v2740
  %v3348 = vadd.f32 %v3347, %v2741
  %3349 = vadd.xlane.f32.xlu0 %v3348
  %v3350 = vpop.xlane.xlu0 %3349
  %v3351 = vadd.f32 %v2742, %v2743
  %v3352 = vadd.f32 %v3351, %v2744
  %v3353 = vadd.f32 %v3352, %v2745
  %3354 = vadd.xlane.f32.xlu0 %v3353
  %v3355 = vpop.xlane.xlu0 %3354
  %v3356 = vadd.f32 %v2746, %v2747
  %v3357 = vadd.f32 %v3356, %v2748
  %v3358 = vadd.f32 %v3357, %v2749
  %3359 = vadd.xlane.f32.xlu0 %v3358
  %v3360 = vpop.xlane.xlu0 %3359
  %v3361 = vadd.f32 %v2750, %v2751
  %v3362 = vadd.f32 %v3361, %v2752
  %v3363 = vadd.f32 %v3362, %v2753
  %3364 = vadd.xlane.f32.xlu0 %v3363
  %v3365 = vpop.xlane.xlu0 %3364
  %v3366 = vadd.f32 %v2754, %v2755
  %v3367 = vadd.f32 %v3366, %v2756
  %v3368 = vadd.f32 %v3367, %v2757
  %3369 = vadd.xlane.f32.xlu0 %v3368
  %v3370 = vpop.xlane.xlu0 %3369
  %v3371 = vadd.f32 %v2758, %v2759
  %v3372 = vadd.f32 %v3371, %v2760
  %v3373 = vadd.f32 %v3372, %v2761
  %3374 = vadd.xlane.f32.xlu0 %v3373
  %v3375 = vpop.xlane.xlu0 %3374
  %v3376 = vadd.f32 %v2762, %v2763
  %v3377 = vadd.f32 %v3376, %v2764
  %v3378 = vadd.f32 %v3377, %v2765
  %3379 = vadd.xlane.f32.xlu0 %v3378
  %v3380 = vpop.xlane.xlu0 %3379
  %v3381 = vadd.f32 %v2766, %v2767
  %v3382 = vadd.f32 %v3381, %v2768
  %v3383 = vadd.f32 %v3382, %v2769
  %3384 = vadd.xlane.f32.xlu0 %v3383
  %v3385 = vpop.xlane.xlu0 %3384
  %v3386 = vadd.f32 %v2770, %v2771
  %v3387 = vadd.f32 %v3386, %v2772
  %v3388 = vadd.f32 %v3387, %v2773
  %3389 = vadd.xlane.f32.xlu0 %v3388
  %v3390 = vpop.xlane.xlu0 %3389
  %v3391 = vadd.f32 %v2774, %v2775
  %v3392 = vadd.f32 %v3391, %v2776
  %v3393 = vadd.f32 %v3392, %v2777
  %3394 = vadd.xlane.f32.xlu0 %v3393
  %v3395 = vpop.xlane.xlu0 %3394
  %v3396 = vadd.f32 %v2778, %v2779
  %v3397 = vadd.f32 %v3396, %v2780
  %v3398 = vadd.f32 %v3397, %v2781
  %3399 = vadd.xlane.f32.xlu0 %v3398
  %v3400 = vpop.xlane.xlu0 %3399
  %v3401 = vadd.f32 %v2782, %v2783
  %v3402 = vadd.f32 %v3401, %v2784
  %v3403 = vadd.f32 %v3402, %v2785
  %3404 = vadd.xlane.f32.xlu0 %v3403
  %v3405 = vpop.xlane.xlu0 %3404
  %v3406 = vadd.f32 %v2786, %v2787
  %v3407 = vadd.f32 %v3406, %v2788
  %v3408 = vadd.f32 %v3407, %v2789
  %3409 = vadd.xlane.f32.xlu0 %v3408
  %v3410 = vpop.xlane.xlu0 %3409
  %v3411 = vadd.f32 %v2790, %v2791
  %v3412 = vadd.f32 %v3411, %v2792
  %v3413 = vadd.f32 %v3412, %v2793
  %3414 = vadd.xlane.f32.xlu0 %v3413
  %v3415 = vpop.xlane.xlu0 %3414
  %v3416 = vadd.f32 %v2794, %v2795
  %v3417 = vadd.f32 %v3416, %v2796
  %v3418 = vadd.f32 %v3417, %v2797
  %3419 = vadd.xlane.f32.xlu0 %v3418
  %v3420 = vpop.xlane.xlu0 %3419
  %v3421 = vadd.f32 %v2798, %v2799
  %v3422 = vadd.f32 %v3421, %v2800
  %v3423 = vadd.f32 %v3422, %v2801
  %3424 = vadd.xlane.f32.xlu0 %v3423
  %v3425 = vpop.xlane.xlu0 %3424
  %v3426 = vadd.f32 %v2802, %v2803
  %v3427 = vadd.f32 %v3426, %v2804
  %v3428 = vadd.f32 %v3427, %v2805
  %3429 = vadd.xlane.f32.xlu0 %v3428
  %v3430 = vpop.xlane.xlu0 %3429
  %v3431 = vadd.f32 %v2806, %v2807
  %v3432 = vadd.f32 %v3431, %v2808
  %v3433 = vadd.f32 %v3432, %v2809
  %3434 = vadd.xlane.f32.xlu0 %v3433
  %v3435 = vpop.xlane.xlu0 %3434
  %v3436 = vadd.f32 %v2810, %v2811
  %v3437 = vadd.f32 %v3436, %v2812
  %v3438 = vadd.f32 %v3437, %v2813
  %3439 = vadd.xlane.f32.xlu0 %v3438
  %v3440 = vpop.xlane.xlu0 %3439
  %v3441 = vadd.f32 %v2814, %v2815
  %v3442 = vadd.f32 %v3441, %v2816
  %v3443 = vadd.f32 %v3442, %v2817
  %3444 = vadd.xlane.f32.xlu0 %v3443
  %v3445 = vpop.xlane.xlu0 %3444
  %v3446 = vadd.f32 %v2818, %v2819
  %v3447 = vadd.f32 %v3446, %v2820
  %v3448 = vadd.f32 %v3447, %v2821
  %3449 = vadd.xlane.f32.xlu0 %v3448
  %v3450 = vpop.xlane.xlu0 %3449
  %v3451 = vadd.f32 %v2822, %v2823
  %v3452 = vadd.f32 %v3451, %v2824
  %v3453 = vadd.f32 %v3452, %v2825
  %3454 = vadd.xlane.f32.xlu0 %v3453
  %v3455 = vpop.xlane.xlu0 %3454
  %v3456 = vadd.f32 %v2826, %v2827
  %v3457 = vadd.f32 %v3456, %v2828
  %v3458 = vadd.f32 %v3457, %v2829
  %3459 = vadd.xlane.f32.xlu0 %v3458
  %v3460 = vpop.xlane.xlu0 %3459
  %v3461 = vadd.f32 %v2830, %v2831
  %v3462 = vadd.f32 %v3461, %v2832
  %v3463 = vadd.f32 %v3462, %v2833
  %3464 = vadd.xlane.f32.xlu0 %v3463
  %v3465 = vpop.xlane.xlu0 %3464
  %v3466 = vadd.f32 %v2834, %v2835
  %v3467 = vadd.f32 %v3466, %v2836
  %v3468 = vadd.f32 %v3467, %v2837
  %3469 = vadd.xlane.f32.xlu0 %v3468
  %v3470 = vpop.xlane.xlu0 %3469
  %v3471 = vadd.f32 %v2838, %v2839
  %v3472 = vadd.f32 %v3471, %v2840
  %v3473 = vadd.f32 %v3472, %v2841
  %3474 = vadd.xlane.f32.xlu0 %v3473
  %v3475 = vpop.xlane.xlu0 %3474
  %v3476 = vadd.f32 %v2842, %v2843
  %v3477 = vadd.f32 %v3476, %v2844
  %v3478 = vadd.f32 %v3477, %v2845
  %3479 = vadd.xlane.f32.xlu0 %v3478
  %v3480 = vpop.xlane.xlu0 %3479
  %v3481 = vadd.f32 %v2846, %v2847
  %v3482 = vadd.f32 %v3481, %v2848
  %v3483 = vadd.f32 %v3482, %v2849
  %3484 = vadd.xlane.f32.xlu0 %v3483
  %v3485 = vpop.xlane.xlu0 %3484
  %v3486 = vadd.f32 %v2850, %v2851
  %v3487 = vadd.f32 %v3486, %v2852
  %v3488 = vadd.f32 %v3487, %v2853
  %3489 = vadd.xlane.f32.xlu0 %v3488
  %v3490 = vpop.xlane.xlu0 %3489
  %v3491 = vadd.f32 %v2854, %v2855
  %v3492 = vadd.f32 %v3491, %v2856
  %v3493 = vadd.f32 %v3492, %v2857
  %3494 = vadd.xlane.f32.xlu0 %v3493
  %v3495 = vpop.xlane.xlu0 %3494
  %v3496 = vadd.f32 %v2858, %v2859
  %v3497 = vadd.f32 %v3496, %v2860
  %v3498 = vadd.f32 %v3497, %v2861
  %3499 = vadd.xlane.f32.xlu0 %v3498
  %v3500 = vpop.xlane.xlu0 %3499
  %v3501 = vadd.f32 %v2862, %v2863
  %v3502 = vadd.f32 %v3501, %v2864
  %v3503 = vadd.f32 %v3502, %v2865
  %3504 = vadd.xlane.f32.xlu0 %v3503
  %v3505 = vpop.xlane.xlu0 %3504
  %v3506 = vld [vmem:[#allocation2] sm:$0x1]
  %v3508 = vperm.slane %v3506, 0
  %3509 = vset.pattern.permute.xlu0 0
  %3510 = vperm.xlu0 %3509, %v3508
  %v3511 = vpop.permute.xlu0 %3510
  %v3513 = vadd.f32 %v2870, %v3511
  %v3514 = vadd.f32 %v2875, %v3511
  %v3515 = vadd.f32 %v2880, %v3511
  %v3516 = vadd.f32 %v2885, %v3511
  %v3517 = vadd.f32 %v2890, %v3511
  %v3518 = vadd.f32 %v2895, %v3511
  %v3519 = vadd.f32 %v2900, %v3511
  %v3520 = vadd.f32 %v2905, %v3511
  %v3521 = vadd.f32 %v2910, %v3511
  %v3522 = vadd.f32 %v2915, %v3511
  %v3523 = vadd.f32 %v2920, %v3511
  %v3524 = vadd.f32 %v2925, %v3511
  %v3525 = vadd.f32 %v2930, %v3511
  %v3526 = vadd.f32 %v2935, %v3511
  %v3527 = vadd.f32 %v2940, %v3511
  %v3528 = vadd.f32 %v2945, %v3511
  %v3529 = vadd.f32 %v2950, %v3511
  %v3530 = vadd.f32 %v2955, %v3511
  %v3531 = vadd.f32 %v2960, %v3511
  %v3532 = vadd.f32 %v2965, %v3511
  %v3533 = vadd.f32 %v2970, %v3511
  %v3534 = vadd.f32 %v2975, %v3511
  %v3535 = vadd.f32 %v2980, %v3511
  %v3536 = vadd.f32 %v2985, %v3511
  %v3537 = vadd.f32 %v2990, %v3511
  %v3538 = vadd.f32 %v2995, %v3511
  %v3539 = vadd.f32 %v3000, %v3511
  %v3540 = vadd.f32 %v3005, %v3511
  %v3541 = vadd.f32 %v3010, %v3511
  %v3542 = vadd.f32 %v3015, %v3511
  %v3543 = vadd.f32 %v3020, %v3511
  %v3544 = vadd.f32 %v3025, %v3511
  %v3545 = vadd.f32 %v3030, %v3511
  %v3546 = vadd.f32 %v3035, %v3511
  %v3547 = vadd.f32 %v3040, %v3511
  %v3548 = vadd.f32 %v3045, %v3511
  %v3549 = vadd.f32 %v3050, %v3511
  %v3550 = vadd.f32 %v3055, %v3511
  %v3551 = vadd.f32 %v3060, %v3511
  %v3552 = vadd.f32 %v3065, %v3511
  %v3553 = vadd.f32 %v3070, %v3511
  %v3554 = vadd.f32 %v3075, %v3511
  %v3555 = vadd.f32 %v3080, %v3511
  %v3556 = vadd.f32 %v3085, %v3511
  %v3557 = vadd.f32 %v3090, %v3511
  %v3558 = vadd.f32 %v3095, %v3511
  %v3559 = vadd.f32 %v3100, %v3511
  %v3560 = vadd.f32 %v3105, %v3511
  %v3561 = vadd.f32 %v3110, %v3511
  %v3562 = vadd.f32 %v3115, %v3511
  %v3563 = vadd.f32 %v3120, %v3511
  %v3564 = vadd.f32 %v3125, %v3511
  %v3565 = vadd.f32 %v3130, %v3511
  %v3566 = vadd.f32 %v3135, %v3511
  %v3567 = vadd.f32 %v3140, %v3511
  %v3568 = vadd.f32 %v3145, %v3511
  %v3569 = vadd.f32 %v3150, %v3511
  %v3570 = vadd.f32 %v3155, %v3511
  %v3571 = vadd.f32 %v3160, %v3511
  %v3572 = vadd.f32 %v3165, %v3511
  %v3573 = vadd.f32 %v3170, %v3511
  %v3574 = vadd.f32 %v3175, %v3511
  %v3575 = vadd.f32 %v3180, %v3511
  %v3576 = vadd.f32 %v3185, %v3511
  %v3577 = vadd.f32 %v3190, %v3511
  %v3578 = vadd.f32 %v3195, %v3511
  %v3579 = vadd.f32 %v3200, %v3511
  %v3580 = vadd.f32 %v3205, %v3511
  %v3581 = vadd.f32 %v3210, %v3511
  %v3582 = vadd.f32 %v3215, %v3511
  %v3583 = vadd.f32 %v3220, %v3511
  %v3584 = vadd.f32 %v3225, %v3511
  %v3585 = vadd.f32 %v3230, %v3511
  %v3586 = vadd.f32 %v3235, %v3511
  %v3587 = vadd.f32 %v3240, %v3511
  %v3588 = vadd.f32 %v3245, %v3511
  %v3589 = vadd.f32 %v3250, %v3511
  %v3590 = vadd.f32 %v3255, %v3511
  %v3591 = vadd.f32 %v3260, %v3511
  %v3592 = vadd.f32 %v3265, %v3511
  %v3593 = vadd.f32 %v3270, %v3511
  %v3594 = vadd.f32 %v3275, %v3511
  %v3595 = vadd.f32 %v3280, %v3511
  %v3596 = vadd.f32 %v3285, %v3511
  %v3597 = vadd.f32 %v3290, %v3511
  %v3598 = vadd.f32 %v3295, %v3511
  %v3599 = vadd.f32 %v3300, %v3511
  %v3600 = vadd.f32 %v3305, %v3511
  %v3601 = vadd.f32 %v3310, %v3511
  %v3602 = vadd.f32 %v3315, %v3511
  %v3603 = vadd.f32 %v3320, %v3511
  %v3604 = vadd.f32 %v3325, %v3511
  %v3605 = vadd.f32 %v3330, %v3511
  %v3606 = vadd.f32 %v3335, %v3511
  %v3607 = vadd.f32 %v3340, %v3511
  %v3608 = vadd.f32 %v3345, %v3511
  %v3609 = vadd.f32 %v3350, %v3511
  %v3610 = vadd.f32 %v3355, %v3511
  %v3611 = vadd.f32 %v3360, %v3511
  %v3612 = vadd.f32 %v3365, %v3511
  %v3613 = vadd.f32 %v3370, %v3511
  %v3614 = vadd.f32 %v3375, %v3511
  %v3615 = vadd.f32 %v3380, %v3511
  %v3616 = vadd.f32 %v3385, %v3511
  %v3617 = vadd.f32 %v3390, %v3511
  %v3618 = vadd.f32 %v3395, %v3511
  %v3619 = vadd.f32 %v3400, %v3511
  %v3620 = vadd.f32 %v3405, %v3511
  %v3621 = vadd.f32 %v3410, %v3511
  %v3622 = vadd.f32 %v3415, %v3511
  %v3623 = vadd.f32 %v3420, %v3511
  %v3624 = vadd.f32 %v3425, %v3511
  %v3625 = vadd.f32 %v3430, %v3511
  %v3626 = vadd.f32 %v3435, %v3511
  %v3627 = vadd.f32 %v3440, %v3511
  %v3628 = vadd.f32 %v3445, %v3511
  %v3629 = vadd.f32 %v3450, %v3511
  %v3630 = vadd.f32 %v3455, %v3511
  %v3631 = vadd.f32 %v3460, %v3511
  %v3632 = vadd.f32 %v3465, %v3511
  %v3633 = vadd.f32 %v3470, %v3511
  %v3634 = vadd.f32 %v3475, %v3511
  %v3635 = vadd.f32 %v3480, %v3511
  %v3636 = vadd.f32 %v3485, %v3511
  %v3637 = vadd.f32 %v3490, %v3511
  %v3638 = vadd.f32 %v3495, %v3511
  %v3639 = vadd.f32 %v3500, %v3511
  %v3640 = vadd.f32 %v3505, %v3511
  %v3769 = vlaneseq
  %v3770 = vand.u32 %v3769, 127
  %v3771 = vperm.slane %v3513, %v3770
  %v3772 = vadd.s32 %v3770, 4294967288
  %v3773 = vperm.slane %v3514, %v3772
  %vm3774 = vcmask 130112
  %v3775 = vsel %vm3774, %v3773, %v3771
  %v3776 = vadd.s32 %v3770, 4294967280
  %v3777 = vperm.slane %v3515, %v3776
  %vm3778 = vcmask 195712
  %v3779 = vsel %vm3778, %v3777, %v3775
  %v3780 = vadd.s32 %v3770, 4294967272
  %v3781 = vperm.slane %v3516, %v3780
  %vm3782 = vcmask 261312
  %v3783 = vsel %vm3782, %v3781, %v3779
  %v3784 = vadd.s32 %v3770, 4294967264
  %v3785 = vperm.slane %v3517, %v3784
  %vm3786 = vcmask 326912
  %v3787 = vsel %vm3786, %v3785, %v3783
  %v3788 = vadd.s32 %v3770, 4294967256
  %v3789 = vperm.slane %v3518, %v3788
  %vm3790 = vcmask 392512
  %v3791 = vsel %vm3790, %v3789, %v3787
  %v3792 = vadd.s32 %v3770, 4294967248
  %v3793 = vperm.slane %v3519, %v3792
  %vm3794 = vcmask 458112
  %v3795 = vsel %vm3794, %v3793, %v3791
  %v3796 = vadd.s32 %v3770, 4294967240
  %v3797 = vperm.slane %v3520, %v3796
  %vm3798 = vcmask 523712
  %v3799 = vsel %vm3798, %v3797, %v3795
  %v3800 = vadd.s32 %v3770, 4294967232
  %v3801 = vperm.slane %v3521, %v3800
  %vm3802 = vcmask 589312
  %v3803 = vsel %vm3802, %v3801, %v3799
  %v3804 = vadd.s32 %v3770, 4294967224
  %v3805 = vperm.slane %v3522, %v3804
  %vm3806 = vcmask 654912
  %v3807 = vsel %vm3806, %v3805, %v3803
  %v3808 = vadd.s32 %v3770, 4294967216
  %v3809 = vperm.slane %v3523, %v3808
  %vm3810 = vcmask 720512
  %v3811 = vsel %vm3810, %v3809, %v3807
  %v3812 = vadd.s32 %v3770, 4294967208
  %v3813 = vperm.slane %v3524, %v3812
  %vm3814 = vcmask 786112
  %v3815 = vsel %vm3814, %v3813, %v3811
  %v3816 = vadd.s32 %v3770, 4294967200
  %v3817 = vperm.slane %v3525, %v3816
  %vm3818 = vcmask 851712
  %v3819 = vsel %vm3818, %v3817, %v3815
  %v3820 = vadd.s32 %v3770, 4294967192
  %v3821 = vperm.slane %v3526, %v3820
  %vm3822 = vcmask 917312
  %v3823 = vsel %vm3822, %v3821, %v3819
  %v3824 = vadd.s32 %v3770, 4294967184
  %v3825 = vperm.slane %v3527, %v3824
  %vm3826 = vcmask 982912
  %v3827 = vsel %vm3826, %v3825, %v3823
  %v3828 = vadd.s32 %v3770, 4294967176
  %v3829 = vperm.slane %v3528, %v3828
  %vm3830 = vcmask 1048512
  %v3831 = vsel %vm3830, %v3829, %v3827
  %v3832 = vperm.slane %v3529, %v3770
  %v3833 = vperm.slane %v3530, %v3772
  %v3834 = vsel %vm3774, %v3833, %v3832
  %v3835 = vperm.slane %v3531, %v3776
  %v3836 = vsel %vm3778, %v3835, %v3834
  %v3837 = vperm.slane %v3532, %v3780
  %v3838 = vsel %vm3782, %v3837, %v3836
  %v3839 = vperm.slane %v3533, %v3784
  %v3840 = vsel %vm3786, %v3839, %v3838
  %v3841 = vperm.slane %v3534, %v3788
  %v3842 = vsel %vm3790, %v3841, %v3840
  %v3843 = vperm.slane %v3535, %v3792
  %v3844 = vsel %vm3794, %v3843, %v3842
  %v3845 = vperm.slane %v3536, %v3796
  %v3846 = vsel %vm3798, %v3845, %v3844
  %v3847 = vperm.slane %v3537, %v3800
  %v3848 = vsel %vm3802, %v3847, %v3846
  %v3849 = vperm.slane %v3538, %v3804
  %v3850 = vsel %vm3806, %v3849, %v3848
  %v3851 = vperm.slane %v3539, %v3808
  %v3852 = vsel %vm3810, %v3851, %v3850
  %v3853 = vperm.slane %v3540, %v3812
  %v3854 = vsel %vm3814, %v3853, %v3852
  %v3855 = vperm.slane %v3541, %v3816
  %v3856 = vsel %vm3818, %v3855, %v3854
  %v3857 = vperm.slane %v3542, %v3820
  %v3858 = vsel %vm3822, %v3857, %v3856
  %v3859 = vperm.slane %v3543, %v3824
  %v3860 = vsel %vm3826, %v3859, %v3858
  %v3861 = vperm.slane %v3544, %v3828
  %v3862 = vsel %vm3830, %v3861, %v3860
  %v3863 = vperm.slane %v3545, %v3770
  %v3864 = vperm.slane %v3546, %v3772
  %v3865 = vsel %vm3774, %v3864, %v3863
  %v3866 = vperm.slane %v3547, %v3776
  %v3867 = vsel %vm3778, %v3866, %v3865
  %v3868 = vperm.slane %v3548, %v3780
  %v3869 = vsel %vm3782, %v3868, %v3867
  %v3870 = vperm.slane %v3549, %v3784
  %v3871 = vsel %vm3786, %v3870, %v3869
  %v3872 = vperm.slane %v3550, %v3788
  %v3873 = vsel %vm3790, %v3872, %v3871
  %v3874 = vperm.slane %v3551, %v3792
  %v3875 = vsel %vm3794, %v3874, %v3873
  %v3876 = vperm.slane %v3552, %v3796
  %v3877 = vsel %vm3798, %v3876, %v3875
  %v3878 = vperm.slane %v3553, %v3800
  %v3879 = vsel %vm3802, %v3878, %v3877
  %v3880 = vperm.slane %v3554, %v3804
  %v3881 = vsel %vm3806, %v3880, %v3879
  %v3882 = vperm.slane %v3555, %v3808
  %v3883 = vsel %vm3810, %v3882, %v3881
  %v3884 = vperm.slane %v3556, %v3812
  %v3885 = vsel %vm3814, %v3884, %v3883
  %v3886 = vperm.slane %v3557, %v3816
  %v3887 = vsel %vm3818, %v3886, %v3885
  %v3888 = vperm.slane %v3558, %v3820
  %v3889 = vsel %vm3822, %v3888, %v3887
  %v3890 = vperm.slane %v3559, %v3824
  %v3891 = vsel %vm3826, %v3890, %v3889
  %v3892 = vperm.slane %v3560, %v3828
  %v3893 = vsel %vm3830, %v3892, %v3891
  %v3894 = vperm.slane %v3561, %v3770
  %v3895 = vperm.slane %v3562, %v3772
  %v3896 = vsel %vm3774, %v3895, %v3894
  %v3897 = vperm.slane %v3563, %v3776
  %v3898 = vsel %vm3778, %v3897, %v3896
  %v3899 = vperm.slane %v3564, %v3780
  %v3900 = vsel %vm3782, %v3899, %v3898
  %v3901 = vperm.slane %v3565, %v3784
  %v3902 = vsel %vm3786, %v3901, %v3900
  %v3903 = vperm.slane %v3566, %v3788
  %v3904 = vsel %vm3790, %v3903, %v3902
  %v3905 = vperm.slane %v3567, %v3792
  %v3906 = vsel %vm3794, %v3905, %v3904
  %v3907 = vperm.slane %v3568, %v3796
  %v3908 = vsel %vm3798, %v3907, %v3906
  %v3909 = vperm.slane %v3569, %v3800
  %v3910 = vsel %vm3802, %v3909, %v3908
  %v3911 = vperm.slane %v3570, %v3804
  %v3912 = vsel %vm3806, %v3911, %v3910
  %v3913 = vperm.slane %v3571, %v3808
  %v3914 = vsel %vm3810, %v3913, %v3912
  %v3915 = vperm.slane %v3572, %v3812
  %v3916 = vsel %vm3814, %v3915, %v3914
  %v3917 = vperm.slane %v3573, %v3816
  %v3918 = vsel %vm3818, %v3917, %v3916
  %v3919 = vperm.slane %v3574, %v3820
  %v3920 = vsel %vm3822, %v3919, %v3918
  %v3921 = vperm.slane %v3575, %v3824
  %v3922 = vsel %vm3826, %v3921, %v3920
  %v3923 = vperm.slane %v3576, %v3828
  %v3924 = vsel %vm3830, %v3923, %v3922
  %v3925 = vperm.slane %v3577, %v3770
  %v3926 = vperm.slane %v3578, %v3772
  %v3927 = vsel %vm3774, %v3926, %v3925
  %v3928 = vperm.slane %v3579, %v3776
  %v3929 = vsel %vm3778, %v3928, %v3927
  %v3930 = vperm.slane %v3580, %v3780
  %v3931 = vsel %vm3782, %v3930, %v3929
  %v3932 = vperm.slane %v3581, %v3784
  %v3933 = vsel %vm3786, %v3932, %v3931
  %v3934 = vperm.slane %v3582, %v3788
  %v3935 = vsel %vm3790, %v3934, %v3933
  %v3936 = vperm.slane %v3583, %v3792
  %v3937 = vsel %vm3794, %v3936, %v3935
  %v3938 = vperm.slane %v3584, %v3796
  %v3939 = vsel %vm3798, %v3938, %v3937
  %v3940 = vperm.slane %v3585, %v3800
  %v3941 = vsel %vm3802, %v3940, %v3939
  %v3942 = vperm.slane %v3586, %v3804
  %v3943 = vsel %vm3806, %v3942, %v3941
  %v3944 = vperm.slane %v3587, %v3808
  %v3945 = vsel %vm3810, %v3944, %v3943
  %v3946 = vperm.slane %v3588, %v3812
  %v3947 = vsel %vm3814, %v3946, %v3945
  %v3948 = vperm.slane %v3589, %v3816
  %v3949 = vsel %vm3818, %v3948, %v3947
  %v3950 = vperm.slane %v3590, %v3820
  %v3951 = vsel %vm3822, %v3950, %v3949
  %v3952 = vperm.slane %v3591, %v3824
  %v3953 = vsel %vm3826, %v3952, %v3951
  %v3954 = vperm.slane %v3592, %v3828
  %v3955 = vsel %vm3830, %v3954, %v3953
  %v3956 = vperm.slane %v3593, %v3770
  %v3957 = vperm.slane %v3594, %v3772
  %v3958 = vsel %vm3774, %v3957, %v3956
  %v3959 = vperm.slane %v3595, %v3776
  %v3960 = vsel %vm3778, %v3959, %v3958
  %v3961 = vperm.slane %v3596, %v3780
  %v3962 = vsel %vm3782, %v3961, %v3960
  %v3963 = vperm.slane %v3597, %v3784
  %v3964 = vsel %vm3786, %v3963, %v3962
  %v3965 = vperm.slane %v3598, %v3788
  %v3966 = vsel %vm3790, %v3965, %v3964
  %v3967 = vperm.slane %v3599, %v3792
  %v3968 = vsel %vm3794, %v3967, %v3966
  %v3969 = vperm.slane %v3600, %v3796
  %v3970 = vsel %vm3798, %v3969, %v3968
  %v3971 = vperm.slane %v3601, %v3800
  %v3972 = vsel %vm3802, %v3971, %v3970
  %v3973 = vperm.slane %v3602, %v3804
  %v3974 = vsel %vm3806, %v3973, %v3972
  %v3975 = vperm.slane %v3603, %v3808
  %v3976 = vsel %vm3810, %v3975, %v3974
  %v3977 = vperm.slane %v3604, %v3812
  %v3978 = vsel %vm3814, %v3977, %v3976
  %v3979 = vperm.slane %v3605, %v3816
  %v3980 = vsel %vm3818, %v3979, %v3978
  %v3981 = vperm.slane %v3606, %v3820
  %v3982 = vsel %vm3822, %v3981, %v3980
  %v3983 = vperm.slane %v3607, %v3824
  %v3984 = vsel %vm3826, %v3983, %v3982
  %v3985 = vperm.slane %v3608, %v3828
  %v3986 = vsel %vm3830, %v3985, %v3984
  %v3987 = vperm.slane %v3609, %v3770
  %v3988 = vperm.slane %v3610, %v3772
  %v3989 = vsel %vm3774, %v3988, %v3987
  %v3990 = vperm.slane %v3611, %v3776
  %v3991 = vsel %vm3778, %v3990, %v3989
  %v3992 = vperm.slane %v3612, %v3780
  %v3993 = vsel %vm3782, %v3992, %v3991
  %v3994 = vperm.slane %v3613, %v3784
  %v3995 = vsel %vm3786, %v3994, %v3993
  %v3996 = vperm.slane %v3614, %v3788
  %v3997 = vsel %vm3790, %v3996, %v3995
  %v3998 = vperm.slane %v3615, %v3792
  %v3999 = vsel %vm3794, %v3998, %v3997
  %v4000 = vperm.slane %v3616, %v3796
  %v4001 = vsel %vm3798, %v4000, %v3999
  %v4002 = vperm.slane %v3617, %v3800
  %v4003 = vsel %vm3802, %v4002, %v4001
  %v4004 = vperm.slane %v3618, %v3804
  %v4005 = vsel %vm3806, %v4004, %v4003
  %v4006 = vperm.slane %v3619, %v3808
  %v4007 = vsel %vm3810, %v4006, %v4005
  %v4008 = vperm.slane %v3620, %v3812
  %v4009 = vsel %vm3814, %v4008, %v4007
  %v4010 = vperm.slane %v3621, %v3816
  %v4011 = vsel %vm3818, %v4010, %v4009
  %v4012 = vperm.slane %v3622, %v3820
  %v4013 = vsel %vm3822, %v4012, %v4011
  %v4014 = vperm.slane %v3623, %v3824
  %v4015 = vsel %vm3826, %v4014, %v4013
  %v4016 = vperm.slane %v3624, %v3828
  %v4017 = vsel %vm3830, %v4016, %v4015
  %v4018 = vperm.slane %v3625, %v3770
  %v4019 = vperm.slane %v3626, %v3772
  %v4020 = vsel %vm3774, %v4019, %v4018
  %v4021 = vperm.slane %v3627, %v3776
  %v4022 = vsel %vm3778, %v4021, %v4020
  %v4023 = vperm.slane %v3628, %v3780
  %v4024 = vsel %vm3782, %v4023, %v4022
  %v4025 = vperm.slane %v3629, %v3784
  %v4026 = vsel %vm3786, %v4025, %v4024
  %v4027 = vperm.slane %v3630, %v3788
  %v4028 = vsel %vm3790, %v4027, %v4026
  %v4029 = vperm.slane %v3631, %v3792
  %v4030 = vsel %vm3794, %v4029, %v4028
  %v4031 = vperm.slane %v3632, %v3796
  %v4032 = vsel %vm3798, %v4031, %v4030
  %v4033 = vperm.slane %v3633, %v3800
  %v4034 = vsel %vm3802, %v4033, %v4032
  %v4035 = vperm.slane %v3634, %v3804
  %v4036 = vsel %vm3806, %v4035, %v4034
  %v4037 = vperm.slane %v3635, %v3808
  %v4038 = vsel %vm3810, %v4037, %v4036
  %v4039 = vperm.slane %v3636, %v3812
  %v4040 = vsel %vm3814, %v4039, %v4038
  %v4041 = vperm.slane %v3637, %v3816
  %v4042 = vsel %vm3818, %v4041, %v4040
  %v4043 = vperm.slane %v3638, %v3820
  %v4044 = vsel %vm3822, %v4043, %v4042
  %v4045 = vperm.slane %v3639, %v3824
  %v4046 = vsel %vm3826, %v4045, %v4044
  %v4047 = vperm.slane %v3640, %v3828
  %v4048 = vsel %vm3830, %v4047, %v4046
  %vm4049 = vcmask 1041409
  %v4050 = vsel %vm4049, %v3862, %v3831
  %vm4051 = vcmask 1042434
  %v4052 = vsel %vm4051, %v3893, %v4050
  %vm4053 = vcmask 1043459
  %v4054 = vsel %vm4053, %v3924, %v4052
  %vm4055 = vcmask 1044484
  %v4056 = vsel %vm4055, %v3955, %v4054
  %vm4057 = vcmask 1045509
  %v4058 = vsel %vm4057, %v3986, %v4056
  %vm4059 = vcmask 1046534
  %v4060 = vsel %vm4059, %v4017, %v4058
  %vm4061 = vcmask 1047559
  %v4062 = vsel %vm4061, %v4048, %v4060
  %4064 = vst [vmem:[%s5] sm:$0xff] %v4062
  %v4065 = vxor.u32 %v3513, 2147483648
  %v4066 = vxor.u32 %v3514, 2147483648
  %v4067 = vxor.u32 %v3515, 2147483648
  %v4068 = vxor.u32 %v3516, 2147483648
  %v4069 = vxor.u32 %v3517, 2147483648
  %v4070 = vxor.u32 %v3518, 2147483648
  %v4071 = vxor.u32 %v3519, 2147483648
  %v4072 = vxor.u32 %v3520, 2147483648
  %v4073 = vxor.u32 %v3521, 2147483648
  %v4074 = vxor.u32 %v3522, 2147483648
  %v4075 = vxor.u32 %v3523, 2147483648
  %v4076 = vxor.u32 %v3524, 2147483648
  %v4077 = vxor.u32 %v3525, 2147483648
  %v4078 = vxor.u32 %v3526, 2147483648
  %v4079 = vxor.u32 %v3527, 2147483648
  %v4080 = vxor.u32 %v3528, 2147483648
  %v4081 = vxor.u32 %v3529, 2147483648
  %v4082 = vxor.u32 %v3530, 2147483648
  %v4083 = vxor.u32 %v3531, 2147483648
  %v4084 = vxor.u32 %v3532, 2147483648
  %v4085 = vxor.u32 %v3533, 2147483648
  %v4086 = vxor.u32 %v3534, 2147483648
  %v4087 = vxor.u32 %v3535, 2147483648
  %v4088 = vxor.u32 %v3536, 2147483648
  %v4089 = vxor.u32 %v3537, 2147483648
  %v4090 = vxor.u32 %v3538, 2147483648
  %v4091 = vxor.u32 %v3539, 2147483648
  %v4092 = vxor.u32 %v3540, 2147483648
  %v4093 = vxor.u32 %v3541, 2147483648
  %v4094 = vxor.u32 %v3542, 2147483648
  %v4095 = vxor.u32 %v3543, 2147483648
  %v4096 = vxor.u32 %v3544, 2147483648
  %v4097 = vxor.u32 %v3545, 2147483648
  %v4098 = vxor.u32 %v3546, 2147483648
  %v4099 = vxor.u32 %v3547, 2147483648
  %v4100 = vxor.u32 %v3548, 2147483648
  %v4101 = vxor.u32 %v3549, 2147483648
  %v4102 = vxor.u32 %v3550, 2147483648
  %v4103 = vxor.u32 %v3551, 2147483648
  %v4104 = vxor.u32 %v3552, 2147483648
  %v4105 = vxor.u32 %v3553, 2147483648
  %v4106 = vxor.u32 %v3554, 2147483648
  %v4107 = vxor.u32 %v3555, 2147483648
  %v4108 = vxor.u32 %v3556, 2147483648
  %v4109 = vxor.u32 %v3557, 2147483648
  %v4110 = vxor.u32 %v3558, 2147483648
  %v4111 = vxor.u32 %v3559, 2147483648
  %v4112 = vxor.u32 %v3560, 2147483648
  %v4113 = vxor.u32 %v3561, 2147483648
  %v4114 = vxor.u32 %v3562, 2147483648
  %v4115 = vxor.u32 %v3563, 2147483648
  %v4116 = vxor.u32 %v3564, 2147483648
  %v4117 = vxor.u32 %v3565, 2147483648
  %v4118 = vxor.u32 %v3566, 2147483648
  %v4119 = vxor.u32 %v3567, 2147483648
  %v4120 = vxor.u32 %v3568, 2147483648
  %v4121 = vxor.u32 %v3569, 2147483648
  %v4122 = vxor.u32 %v3570, 2147483648
  %v4123 = vxor.u32 %v3571, 2147483648
  %v4124 = vxor.u32 %v3572, 2147483648
  %v4125 = vxor.u32 %v3573, 2147483648
  %v4126 = vxor.u32 %v3574, 2147483648
  %v4127 = vxor.u32 %v3575, 2147483648
  %v4128 = vxor.u32 %v3576, 2147483648
  %v4129 = vxor.u32 %v3577, 2147483648
  %v4130 = vxor.u32 %v3578, 2147483648
  %v4131 = vxor.u32 %v3579, 2147483648
  %v4132 = vxor.u32 %v3580, 2147483648
  %v4133 = vxor.u32 %v3581, 2147483648
  %v4134 = vxor.u32 %v3582, 2147483648
  %v4135 = vxor.u32 %v3583, 2147483648
  %v4136 = vxor.u32 %v3584, 2147483648
  %v4137 = vxor.u32 %v3585, 2147483648
  %v4138 = vxor.u32 %v3586, 2147483648
  %v4139 = vxor.u32 %v3587, 2147483648
  %v4140 = vxor.u32 %v3588, 2147483648
  %v4141 = vxor.u32 %v3589, 2147483648
  %v4142 = vxor.u32 %v3590, 2147483648
  %v4143 = vxor.u32 %v3591, 2147483648
  %v4144 = vxor.u32 %v3592, 2147483648
  %v4145 = vxor.u32 %v3593, 2147483648
  %v4146 = vxor.u32 %v3594, 2147483648
  %v4147 = vxor.u32 %v3595, 2147483648
  %v4148 = vxor.u32 %v3596, 2147483648
  %v4149 = vxor.u32 %v3597, 2147483648
  %v4150 = vxor.u32 %v3598, 2147483648
  %v4151 = vxor.u32 %v3599, 2147483648
  %v4152 = vxor.u32 %v3600, 2147483648
  %v4153 = vxor.u32 %v3601, 2147483648
  %v4154 = vxor.u32 %v3602, 2147483648
  %v4155 = vxor.u32 %v3603, 2147483648
  %v4156 = vxor.u32 %v3604, 2147483648
  %v4157 = vxor.u32 %v3605, 2147483648
  %v4158 = vxor.u32 %v3606, 2147483648
  %v4159 = vxor.u32 %v3607, 2147483648
  %v4160 = vxor.u32 %v3608, 2147483648
  %v4161 = vxor.u32 %v3609, 2147483648
  %v4162 = vxor.u32 %v3610, 2147483648
  %v4163 = vxor.u32 %v3611, 2147483648
  %v4164 = vxor.u32 %v3612, 2147483648
  %v4165 = vxor.u32 %v3613, 2147483648
  %v4166 = vxor.u32 %v3614, 2147483648
  %v4167 = vxor.u32 %v3615, 2147483648
  %v4168 = vxor.u32 %v3616, 2147483648
  %v4169 = vxor.u32 %v3617, 2147483648
  %v4170 = vxor.u32 %v3618, 2147483648
  %v4171 = vxor.u32 %v3619, 2147483648
  %v4172 = vxor.u32 %v3620, 2147483648
  %v4173 = vxor.u32 %v3621, 2147483648
  %v4174 = vxor.u32 %v3622, 2147483648
  %v4175 = vxor.u32 %v3623, 2147483648
  %v4176 = vxor.u32 %v3624, 2147483648
  %v4177 = vxor.u32 %v3625, 2147483648
  %v4178 = vxor.u32 %v3626, 2147483648
  %v4179 = vxor.u32 %v3627, 2147483648
  %v4180 = vxor.u32 %v3628, 2147483648
  %v4181 = vxor.u32 %v3629, 2147483648
  %v4182 = vxor.u32 %v3630, 2147483648
  %v4183 = vxor.u32 %v3631, 2147483648
  %v4184 = vxor.u32 %v3632, 2147483648
  %v4185 = vxor.u32 %v3633, 2147483648
  %v4186 = vxor.u32 %v3634, 2147483648
  %v4187 = vxor.u32 %v3635, 2147483648
  %v4188 = vxor.u32 %v3636, 2147483648
  %v4189 = vxor.u32 %v3637, 2147483648
  %v4190 = vxor.u32 %v3638, 2147483648
  %v4191 = vxor.u32 %v3639, 2147483648
  %v4192 = vxor.u32 %v3640, 2147483648
  %v4193 = vmul.f32 %v4065, 1.442695
  %v4194 = vpow.pop %v4193
  %v4195 = vmul.f32 %v4066, 1.442695
  %v4196 = vpow.pop %v4195
  %v4197 = vmul.f32 %v4067, 1.442695
  %v4198 = vpow.pop %v4197
  %v4199 = vmul.f32 %v4068, 1.442695
  %v4200 = vpow.pop %v4199
  %v4201 = vmul.f32 %v4069, 1.442695
  %v4202 = vpow.pop %v4201
  %v4203 = vmul.f32 %v4070, 1.442695
  %v4204 = vpow.pop %v4203
  %v4205 = vmul.f32 %v4071, 1.442695
  %v4206 = vpow.pop %v4205
  %v4207 = vmul.f32 %v4072, 1.442695
  %v4208 = vpow.pop %v4207
  %v4209 = vmul.f32 %v4073, 1.442695
  %v4210 = vpow.pop %v4209
  %v4211 = vmul.f32 %v4074, 1.442695
  %v4212 = vpow.pop %v4211
  %v4213 = vmul.f32 %v4075, 1.442695
  %v4214 = vpow.pop %v4213
  %v4215 = vmul.f32 %v4076, 1.442695
  %v4216 = vpow.pop %v4215
  %v4217 = vmul.f32 %v4077, 1.442695
  %v4218 = vpow.pop %v4217
  %v4219 = vmul.f32 %v4078, 1.442695
  %v4220 = vpow.pop %v4219
  %v4221 = vmul.f32 %v4079, 1.442695
  %v4222 = vpow.pop %v4221
  %v4223 = vmul.f32 %v4080, 1.442695
  %v4224 = vpow.pop %v4223
  %v4225 = vmul.f32 %v4081, 1.442695
  %v4226 = vpow.pop %v4225
  %v4227 = vmul.f32 %v4082, 1.442695
  %v4228 = vpow.pop %v4227
  %v4229 = vmul.f32 %v4083, 1.442695
  %v4230 = vpow.pop %v4229
  %v4231 = vmul.f32 %v4084, 1.442695
  %v4232 = vpow.pop %v4231
  %v4233 = vmul.f32 %v4085, 1.442695
  %v4234 = vpow.pop %v4233
  %v4235 = vmul.f32 %v4086, 1.442695
  %v4236 = vpow.pop %v4235
  %v4237 = vmul.f32 %v4087, 1.442695
  %v4238 = vpow.pop %v4237
  %v4239 = vmul.f32 %v4088, 1.442695
  %v4240 = vpow.pop %v4239
  %v4241 = vmul.f32 %v4089, 1.442695
  %v4242 = vpow.pop %v4241
  %v4243 = vmul.f32 %v4090, 1.442695
  %v4244 = vpow.pop %v4243
  %v4245 = vmul.f32 %v4091, 1.442695
  %v4246 = vpow.pop %v4245
  %v4247 = vmul.f32 %v4092, 1.442695
  %v4248 = vpow.pop %v4247
  %v4249 = vmul.f32 %v4093, 1.442695
  %v4250 = vpow.pop %v4249
  %v4251 = vmul.f32 %v4094, 1.442695
  %v4252 = vpow.pop %v4251
  %v4253 = vmul.f32 %v4095, 1.442695
  %v4254 = vpow.pop %v4253
  %v4255 = vmul.f32 %v4096, 1.442695
  %v4256 = vpow.pop %v4255
  %v4257 = vmul.f32 %v4097, 1.442695
  %v4258 = vpow.pop %v4257
  %v4259 = vmul.f32 %v4098, 1.442695
  %v4260 = vpow.pop %v4259
  %v4261 = vmul.f32 %v4099, 1.442695
  %v4262 = vpow.pop %v4261
  %v4263 = vmul.f32 %v4100, 1.442695
  %v4264 = vpow.pop %v4263
  %v4265 = vmul.f32 %v4101, 1.442695
  %v4266 = vpow.pop %v4265
  %v4267 = vmul.f32 %v4102, 1.442695
  %v4268 = vpow.pop %v4267
  %v4269 = vmul.f32 %v4103, 1.442695
  %v4270 = vpow.pop %v4269
  %v4271 = vmul.f32 %v4104, 1.442695
  %v4272 = vpow.pop %v4271
  %v4273 = vmul.f32 %v4105, 1.442695
  %v4274 = vpow.pop %v4273
  %v4275 = vmul.f32 %v4106, 1.442695
  %v4276 = vpow.pop %v4275
  %v4277 = vmul.f32 %v4107, 1.442695
  %v4278 = vpow.pop %v4277
  %v4279 = vmul.f32 %v4108, 1.442695
  %v4280 = vpow.pop %v4279
  %v4281 = vmul.f32 %v4109, 1.442695
  %v4282 = vpow.pop %v4281
  %v4283 = vmul.f32 %v4110, 1.442695
  %v4284 = vpow.pop %v4283
  %v4285 = vmul.f32 %v4111, 1.442695
  %v4286 = vpow.pop %v4285
  %v4287 = vmul.f32 %v4112, 1.442695
  %v4288 = vpow.pop %v4287
  %v4289 = vmul.f32 %v4113, 1.442695
  %v4290 = vpow.pop %v4289
  %v4291 = vmul.f32 %v4114, 1.442695
  %v4292 = vpow.pop %v4291
  %v4293 = vmul.f32 %v4115, 1.442695
  %v4294 = vpow.pop %v4293
  %v4295 = vmul.f32 %v4116, 1.442695
  %v4296 = vpow.pop %v4295
  %v4297 = vmul.f32 %v4117, 1.442695
  %v4298 = vpow.pop %v4297
  %v4299 = vmul.f32 %v4118, 1.442695
  %v4300 = vpow.pop %v4299
  %v4301 = vmul.f32 %v4119, 1.442695
  %v4302 = vpow.pop %v4301
  %v4303 = vmul.f32 %v4120, 1.442695
  %v4304 = vpow.pop %v4303
  %v4305 = vmul.f32 %v4121, 1.442695
  %v4306 = vpow.pop %v4305
  %v4307 = vmul.f32 %v4122, 1.442695
  %v4308 = vpow.pop %v4307
  %v4309 = vmul.f32 %v4123, 1.442695
  %v4310 = vpow.pop %v4309
  %v4311 = vmul.f32 %v4124, 1.442695
  %v4312 = vpow.pop %v4311
  %v4313 = vmul.f32 %v4125, 1.442695
  %v4314 = vpow.pop %v4313
  %v4315 = vmul.f32 %v4126, 1.442695
  %v4316 = vpow.pop %v4315
  %v4317 = vmul.f32 %v4127, 1.442695
  %v4318 = vpow.pop %v4317
  %v4319 = vmul.f32 %v4128, 1.442695
  %v4320 = vpow.pop %v4319
  %v4321 = vmul.f32 %v4129, 1.442695
  %v4322 = vpow.pop %v4321
  %v4323 = vmul.f32 %v4130, 1.442695
  %v4324 = vpow.pop %v4323
  %v4325 = vmul.f32 %v4131, 1.442695
  %v4326 = vpow.pop %v4325
  %v4327 = vmul.f32 %v4132, 1.442695
  %v4328 = vpow.pop %v4327
  %v4329 = vmul.f32 %v4133, 1.442695
  %v4330 = vpow.pop %v4329
  %v4331 = vmul.f32 %v4134, 1.442695
  %v4332 = vpow.pop %v4331
  %v4333 = vmul.f32 %v4135, 1.442695
  %v4334 = vpow.pop %v4333
  %v4335 = vmul.f32 %v4136, 1.442695
  %v4336 = vpow.pop %v4335
  %v4337 = vmul.f32 %v4137, 1.442695
  %v4338 = vpow.pop %v4337
  %v4339 = vmul.f32 %v4138, 1.442695
  %v4340 = vpow.pop %v4339
  %v4341 = vmul.f32 %v4139, 1.442695
  %v4342 = vpow.pop %v4341
  %v4343 = vmul.f32 %v4140, 1.442695
  %v4344 = vpow.pop %v4343
  %v4345 = vmul.f32 %v4141, 1.442695
  %v4346 = vpow.pop %v4345
  %v4347 = vmul.f32 %v4142, 1.442695
  %v4348 = vpow.pop %v4347
  %v4349 = vmul.f32 %v4143, 1.442695
  %v4350 = vpow.pop %v4349
  %v4351 = vmul.f32 %v4144, 1.442695
  %v4352 = vpow.pop %v4351
  %v4353 = vmul.f32 %v4145, 1.442695
  %v4354 = vpow.pop %v4353
  %v4355 = vmul.f32 %v4146, 1.442695
  %v4356 = vpow.pop %v4355
  %v4357 = vmul.f32 %v4147, 1.442695
  %v4358 = vpow.pop %v4357
  %v4359 = vmul.f32 %v4148, 1.442695
  %v4360 = vpow.pop %v4359
  %v4361 = vmul.f32 %v4149, 1.442695
  %v4362 = vpow.pop %v4361
  %v4363 = vmul.f32 %v4150, 1.442695
  %v4364 = vpow.pop %v4363
  %v4365 = vmul.f32 %v4151, 1.442695
  %v4366 = vpow.pop %v4365
  %v4367 = vmul.f32 %v4152, 1.442695
  %v4368 = vpow.pop %v4367
  %v4369 = vmul.f32 %v4153, 1.442695
  %v4370 = vpow.pop %v4369
  %v4371 = vmul.f32 %v4154, 1.442695
  %v4372 = vpow.pop %v4371
  %v4373 = vmul.f32 %v4155, 1.442695
  %v4374 = vpow.pop %v4373
  %v4375 = vmul.f32 %v4156, 1.442695
  %v4376 = vpow.pop %v4375
  %v4377 = vmul.f32 %v4157, 1.442695
  %v4378 = vpow.pop %v4377
  %v4379 = vmul.f32 %v4158, 1.442695
  %v4380 = vpow.pop %v4379
  %v4381 = vmul.f32 %v4159, 1.442695
  %v4382 = vpow.pop %v4381
  %v4383 = vmul.f32 %v4160, 1.442695
  %v4384 = vpow.pop %v4383
  %v4385 = vmul.f32 %v4161, 1.442695
  %v4386 = vpow.pop %v4385
  %v4387 = vmul.f32 %v4162, 1.442695
  %v4388 = vpow.pop %v4387
  %v4389 = vmul.f32 %v4163, 1.442695
  %v4390 = vpow.pop %v4389
  %v4391 = vmul.f32 %v4164, 1.442695
  %v4392 = vpow.pop %v4391
  %v4393 = vmul.f32 %v4165, 1.442695
  %v4394 = vpow.pop %v4393
  %v4395 = vmul.f32 %v4166, 1.442695
  %v4396 = vpow.pop %v4395
  %v4397 = vmul.f32 %v4167, 1.442695
  %v4398 = vpow.pop %v4397
  %v4399 = vmul.f32 %v4168, 1.442695
  %v4400 = vpow.pop %v4399
  %v4401 = vmul.f32 %v4169, 1.442695
  %v4402 = vpow.pop %v4401
  %v4403 = vmul.f32 %v4170, 1.442695
  %v4404 = vpow.pop %v4403
  %v4405 = vmul.f32 %v4171, 1.442695
  %v4406 = vpow.pop %v4405
  %v4407 = vmul.f32 %v4172, 1.442695
  %v4408 = vpow.pop %v4407
  %v4409 = vmul.f32 %v4173, 1.442695
  %v4410 = vpow.pop %v4409
  %v4411 = vmul.f32 %v4174, 1.442695
  %v4412 = vpow.pop %v4411
  %v4413 = vmul.f32 %v4175, 1.442695
  %v4414 = vpow.pop %v4413
  %v4415 = vmul.f32 %v4176, 1.442695
  %v4416 = vpow.pop %v4415
  %v4417 = vmul.f32 %v4177, 1.442695
  %v4418 = vpow.pop %v4417
  %v4419 = vmul.f32 %v4178, 1.442695
  %v4420 = vpow.pop %v4419
  %v4421 = vmul.f32 %v4179, 1.442695
  %v4422 = vpow.pop %v4421
  %v4423 = vmul.f32 %v4180, 1.442695
  %v4424 = vpow.pop %v4423
  %v4425 = vmul.f32 %v4181, 1.442695
  %v4426 = vpow.pop %v4425
  %v4427 = vmul.f32 %v4182, 1.442695
  %v4428 = vpow.pop %v4427
  %v4429 = vmul.f32 %v4183, 1.442695
  %v4430 = vpow.pop %v4429
  %v4431 = vmul.f32 %v4184, 1.442695
  %v4432 = vpow.pop %v4431
  %v4433 = vmul.f32 %v4185, 1.442695
  %v4434 = vpow.pop %v4433
  %v4435 = vmul.f32 %v4186, 1.442695
  %v4436 = vpow.pop %v4435
  %v4437 = vmul.f32 %v4187, 1.442695
  %v4438 = vpow.pop %v4437
  %v4439 = vmul.f32 %v4188, 1.442695
  %v4440 = vpow.pop %v4439
  %v4441 = vmul.f32 %v4189, 1.442695
  %v4442 = vpow.pop %v4441
  %v4443 = vmul.f32 %v4190, 1.442695
  %v4444 = vpow.pop %v4443
  %v4445 = vmul.f32 %v4191, 1.442695
  %v4446 = vpow.pop %v4445
  %v4447 = vmul.f32 %v4192, 1.442695
  %v4448 = vpow.pop %v4447
  %v4449 = vadd.f32 %v4194, 1.0
  %v4450 = vadd.f32 %v4196, 1.0
  %v4451 = vadd.f32 %v4198, 1.0
  %v4452 = vadd.f32 %v4200, 1.0
  %v4453 = vadd.f32 %v4202, 1.0
  %v4454 = vadd.f32 %v4204, 1.0
  %v4455 = vadd.f32 %v4206, 1.0
  %v4456 = vadd.f32 %v4208, 1.0
  %v4457 = vadd.f32 %v4210, 1.0
  %v4458 = vadd.f32 %v4212, 1.0
  %v4459 = vadd.f32 %v4214, 1.0
  %v4460 = vadd.f32 %v4216, 1.0
  %v4461 = vadd.f32 %v4218, 1.0
  %v4462 = vadd.f32 %v4220, 1.0
  %v4463 = vadd.f32 %v4222, 1.0
  %v4464 = vadd.f32 %v4224, 1.0
  %v4465 = vadd.f32 %v4226, 1.0
  %v4466 = vadd.f32 %v4228, 1.0
  %v4467 = vadd.f32 %v4230, 1.0
  %v4468 = vadd.f32 %v4232, 1.0
  %v4469 = vadd.f32 %v4234, 1.0
  %v4470 = vadd.f32 %v4236, 1.0
  %v4471 = vadd.f32 %v4238, 1.0
  %v4472 = vadd.f32 %v4240, 1.0
  %v4473 = vadd.f32 %v4242, 1.0
  %v4474 = vadd.f32 %v4244, 1.0
  %v4475 = vadd.f32 %v4246, 1.0
  %v4476 = vadd.f32 %v4248, 1.0
  %v4477 = vadd.f32 %v4250, 1.0
  %v4478 = vadd.f32 %v4252, 1.0
  %v4479 = vadd.f32 %v4254, 1.0
  %v4480 = vadd.f32 %v4256, 1.0
  %v4481 = vadd.f32 %v4258, 1.0
  %v4482 = vadd.f32 %v4260, 1.0
  %v4483 = vadd.f32 %v4262, 1.0
  %v4484 = vadd.f32 %v4264, 1.0
  %v4485 = vadd.f32 %v4266, 1.0
  %v4486 = vadd.f32 %v4268, 1.0
  %v4487 = vadd.f32 %v4270, 1.0
  %v4488 = vadd.f32 %v4272, 1.0
  %v4489 = vadd.f32 %v4274, 1.0
  %v4490 = vadd.f32 %v4276, 1.0
  %v4491 = vadd.f32 %v4278, 1.0
  %v4492 = vadd.f32 %v4280, 1.0
  %v4493 = vadd.f32 %v4282, 1.0
  %v4494 = vadd.f32 %v4284, 1.0
  %v4495 = vadd.f32 %v4286, 1.0
  %v4496 = vadd.f32 %v4288, 1.0
  %v4497 = vadd.f32 %v4290, 1.0
  %v4498 = vadd.f32 %v4292, 1.0
  %v4499 = vadd.f32 %v4294, 1.0
  %v4500 = vadd.f32 %v4296, 1.0
  %v4501 = vadd.f32 %v4298, 1.0
  %v4502 = vadd.f32 %v4300, 1.0
  %v4503 = vadd.f32 %v4302, 1.0
  %v4504 = vadd.f32 %v4304, 1.0
  %v4505 = vadd.f32 %v4306, 1.0
  %v4506 = vadd.f32 %v4308, 1.0
  %v4507 = vadd.f32 %v4310, 1.0
  %v4508 = vadd.f32 %v4312, 1.0
  %v4509 = vadd.f32 %v4314, 1.0
  %v4510 = vadd.f32 %v4316, 1.0
  %v4511 = vadd.f32 %v4318, 1.0
  %v4512 = vadd.f32 %v4320, 1.0
  %v4513 = vadd.f32 %v4322, 1.0
  %v4514 = vadd.f32 %v4324, 1.0
  %v4515 = vadd.f32 %v4326, 1.0
  %v4516 = vadd.f32 %v4328, 1.0
  %v4517 = vadd.f32 %v4330, 1.0
  %v4518 = vadd.f32 %v4332, 1.0
  %v4519 = vadd.f32 %v4334, 1.0
  %v4520 = vadd.f32 %v4336, 1.0
  %v4521 = vadd.f32 %v4338, 1.0
  %v4522 = vadd.f32 %v4340, 1.0
  %v4523 = vadd.f32 %v4342, 1.0
  %v4524 = vadd.f32 %v4344, 1.0
  %v4525 = vadd.f32 %v4346, 1.0
  %v4526 = vadd.f32 %v4348, 1.0
  %v4527 = vadd.f32 %v4350, 1.0
  %v4528 = vadd.f32 %v4352, 1.0
  %v4529 = vadd.f32 %v4354, 1.0
  %v4530 = vadd.f32 %v4356, 1.0
  %v4531 = vadd.f32 %v4358, 1.0
  %v4532 = vadd.f32 %v4360, 1.0
  %v4533 = vadd.f32 %v4362, 1.0
  %v4534 = vadd.f32 %v4364, 1.0
  %v4535 = vadd.f32 %v4366, 1.0
  %v4536 = vadd.f32 %v4368, 1.0
  %v4537 = vadd.f32 %v4370, 1.0
  %v4538 = vadd.f32 %v4372, 1.0
  %v4539 = vadd.f32 %v4374, 1.0
  %v4540 = vadd.f32 %v4376, 1.0
  %v4541 = vadd.f32 %v4378, 1.0
  %v4542 = vadd.f32 %v4380, 1.0
  %v4543 = vadd.f32 %v4382, 1.0
  %v4544 = vadd.f32 %v4384, 1.0
  %v4545 = vadd.f32 %v4386, 1.0
  %v4546 = vadd.f32 %v4388, 1.0
  %v4547 = vadd.f32 %v4390, 1.0
  %v4548 = vadd.f32 %v4392, 1.0
  %v4549 = vadd.f32 %v4394, 1.0
  %v4550 = vadd.f32 %v4396, 1.0
  %v4551 = vadd.f32 %v4398, 1.0
  %v4552 = vadd.f32 %v4400, 1.0
  %v4553 = vadd.f32 %v4402, 1.0
  %v4554 = vadd.f32 %v4404, 1.0
  %v4555 = vadd.f32 %v4406, 1.0
  %v4556 = vadd.f32 %v4408, 1.0
  %v4557 = vadd.f32 %v4410, 1.0
  %v4558 = vadd.f32 %v4412, 1.0
  %v4559 = vadd.f32 %v4414, 1.0
  %v4560 = vadd.f32 %v4416, 1.0
  %v4561 = vadd.f32 %v4418, 1.0
  %v4562 = vadd.f32 %v4420, 1.0
  %v4563 = vadd.f32 %v4422, 1.0
  %v4564 = vadd.f32 %v4424, 1.0
  %v4565 = vadd.f32 %v4426, 1.0
  %v4566 = vadd.f32 %v4428, 1.0
  %v4567 = vadd.f32 %v4430, 1.0
  %v4568 = vadd.f32 %v4432, 1.0
  %v4569 = vadd.f32 %v4434, 1.0
  %v4570 = vadd.f32 %v4436, 1.0
  %v4571 = vadd.f32 %v4438, 1.0
  %v4572 = vadd.f32 %v4440, 1.0
  %v4573 = vadd.f32 %v4442, 1.0
  %v4574 = vadd.f32 %v4444, 1.0
  %v4575 = vadd.f32 %v4446, 1.0
  %v4576 = vadd.f32 %v4448, 1.0
  %v4577 = vrcp.pop %v4449
  %v4578 = vmul.f32 %v4449, %v4577
  %v4579 = vsub.f32 1.0, %v4578
  %v4580 = vmul.f32 %v4577, %v4579
  %v4581 = vadd.f32 %v4577, %v4580
  %vm4582 = vweird.f32 %v4449
  %vm4583 = vweird.f32 %v4577
  %vm4584 = vmor %vm4582, %vm4583
  %v4585 = vsel %vm4584, %v4577, %v4581
  %v4586 = vand.u32 2147483647, %v4449
  %vm4587 = vcmp.eq.f32.partialorder %v4586, 8.507059e+37
  %v4588 = vand.u32 %v4449, 2147483648
  %v4589 = vor.u32 1.1754944e-38, %v4588
  %v4590 = vsel %vm4587, %v4589, %v4585
  %v4591 = vmul.f32 1.0, %v4590
  %v4592 = vrcp.pop %v4450
  %v4593 = vmul.f32 %v4450, %v4592
  %v4594 = vsub.f32 1.0, %v4593
  %v4595 = vmul.f32 %v4592, %v4594
  %v4596 = vadd.f32 %v4592, %v4595
  %vm4597 = vweird.f32 %v4450
  %vm4598 = vweird.f32 %v4592
  %vm4599 = vmor %vm4597, %vm4598
  %v4600 = vsel %vm4599, %v4592, %v4596
  %v4601 = vand.u32 2147483647, %v4450
  %vm4602 = vcmp.eq.f32.partialorder %v4601, 8.507059e+37
  %v4603 = vand.u32 %v4450, 2147483648
  %v4604 = vor.u32 1.1754944e-38, %v4603
  %v4605 = vsel %vm4602, %v4604, %v4600
  %v4606 = vmul.f32 1.0, %v4605
  %v4607 = vrcp.pop %v4451
  %v4608 = vmul.f32 %v4451, %v4607
  %v4609 = vsub.f32 1.0, %v4608
  %v4610 = vmul.f32 %v4607, %v4609
  %v4611 = vadd.f32 %v4607, %v4610
  %vm4612 = vweird.f32 %v4451
  %vm4613 = vweird.f32 %v4607
  %vm4614 = vmor %vm4612, %vm4613
  %v4615 = vsel %vm4614, %v4607, %v4611
  %v4616 = vand.u32 2147483647, %v4451
  %vm4617 = vcmp.eq.f32.partialorder %v4616, 8.507059e+37
  %v4618 = vand.u32 %v4451, 2147483648
  %v4619 = vor.u32 1.1754944e-38, %v4618
  %v4620 = vsel %vm4617, %v4619, %v4615
  %v4621 = vmul.f32 1.0, %v4620
  %v4622 = vrcp.pop %v4452
  %v4623 = vmul.f32 %v4452, %v4622
  %v4624 = vsub.f32 1.0, %v4623
  %v4625 = vmul.f32 %v4622, %v4624
  %v4626 = vadd.f32 %v4622, %v4625
  %vm4627 = vweird.f32 %v4452
  %vm4628 = vweird.f32 %v4622
  %vm4629 = vmor %vm4627, %vm4628
  %v4630 = vsel %vm4629, %v4622, %v4626
  %v4631 = vand.u32 2147483647, %v4452
  %vm4632 = vcmp.eq.f32.partialorder %v4631, 8.507059e+37
  %v4633 = vand.u32 %v4452, 2147483648
  %v4634 = vor.u32 1.1754944e-38, %v4633
  %v4635 = vsel %vm4632, %v4634, %v4630
  %v4636 = vmul.f32 1.0, %v4635
  %v4637 = vrcp.pop %v4453
  %v4638 = vmul.f32 %v4453, %v4637
  %v4639 = vsub.f32 1.0, %v4638
  %v4640 = vmul.f32 %v4637, %v4639
  %v4641 = vadd.f32 %v4637, %v4640
  %vm4642 = vweird.f32 %v4453
  %vm4643 = vweird.f32 %v4637
  %vm4644 = vmor %vm4642, %vm4643
  %v4645 = vsel %vm4644, %v4637, %v4641
  %v4646 = vand.u32 2147483647, %v4453
  %vm4647 = vcmp.eq.f32.partialorder %v4646, 8.507059e+37
  %v4648 = vand.u32 %v4453, 2147483648
  %v4649 = vor.u32 1.1754944e-38, %v4648
  %v4650 = vsel %vm4647, %v4649, %v4645
  %v4651 = vmul.f32 1.0, %v4650
  %v4652 = vrcp.pop %v4454
  %v4653 = vmul.f32 %v4454, %v4652
  %v4654 = vsub.f32 1.0, %v4653
  %v4655 = vmul.f32 %v4652, %v4654
  %v4656 = vadd.f32 %v4652, %v4655
  %vm4657 = vweird.f32 %v4454
  %vm4658 = vweird.f32 %v4652
  %vm4659 = vmor %vm4657, %vm4658
  %v4660 = vsel %vm4659, %v4652, %v4656
  %v4661 = vand.u32 2147483647, %v4454
  %vm4662 = vcmp.eq.f32.partialorder %v4661, 8.507059e+37
  %v4663 = vand.u32 %v4454, 2147483648
  %v4664 = vor.u32 1.1754944e-38, %v4663
  %v4665 = vsel %vm4662, %v4664, %v4660
  %v4666 = vmul.f32 1.0, %v4665
  %v4667 = vrcp.pop %v4455
  %v4668 = vmul.f32 %v4455, %v4667
  %v4669 = vsub.f32 1.0, %v4668
  %v4670 = vmul.f32 %v4667, %v4669
  %v4671 = vadd.f32 %v4667, %v4670
  %vm4672 = vweird.f32 %v4455
  %vm4673 = vweird.f32 %v4667
  %vm4674 = vmor %vm4672, %vm4673
  %v4675 = vsel %vm4674, %v4667, %v4671
  %v4676 = vand.u32 2147483647, %v4455
  %vm4677 = vcmp.eq.f32.partialorder %v4676, 8.507059e+37
  %v4678 = vand.u32 %v4455, 2147483648
  %v4679 = vor.u32 1.1754944e-38, %v4678
  %v4680 = vsel %vm4677, %v4679, %v4675
  %v4681 = vmul.f32 1.0, %v4680
  %v4682 = vrcp.pop %v4456
  %v4683 = vmul.f32 %v4456, %v4682
  %v4684 = vsub.f32 1.0, %v4683
  %v4685 = vmul.f32 %v4682, %v4684
  %v4686 = vadd.f32 %v4682, %v4685
  %vm4687 = vweird.f32 %v4456
  %vm4688 = vweird.f32 %v4682
  %vm4689 = vmor %vm4687, %vm4688
  %v4690 = vsel %vm4689, %v4682, %v4686
  %v4691 = vand.u32 2147483647, %v4456
  %vm4692 = vcmp.eq.f32.partialorder %v4691, 8.507059e+37
  %v4693 = vand.u32 %v4456, 2147483648
  %v4694 = vor.u32 1.1754944e-38, %v4693
  %v4695 = vsel %vm4692, %v4694, %v4690
  %v4696 = vmul.f32 1.0, %v4695
  %v4697 = vrcp.pop %v4457
  %v4698 = vmul.f32 %v4457, %v4697
  %v4699 = vsub.f32 1.0, %v4698
  %v4700 = vmul.f32 %v4697, %v4699
  %v4701 = vadd.f32 %v4697, %v4700
  %vm4702 = vweird.f32 %v4457
  %vm4703 = vweird.f32 %v4697
  %vm4704 = vmor %vm4702, %vm4703
  %v4705 = vsel %vm4704, %v4697, %v4701
  %v4706 = vand.u32 2147483647, %v4457
  %vm4707 = vcmp.eq.f32.partialorder %v4706, 8.507059e+37
  %v4708 = vand.u32 %v4457, 2147483648
  %v4709 = vor.u32 1.1754944e-38, %v4708
  %v4710 = vsel %vm4707, %v4709, %v4705
  %v4711 = vmul.f32 1.0, %v4710
  %v4712 = vrcp.pop %v4458
  %v4713 = vmul.f32 %v4458, %v4712
  %v4714 = vsub.f32 1.0, %v4713
  %v4715 = vmul.f32 %v4712, %v4714
  %v4716 = vadd.f32 %v4712, %v4715
  %vm4717 = vweird.f32 %v4458
  %vm4718 = vweird.f32 %v4712
  %vm4719 = vmor %vm4717, %vm4718
  %v4720 = vsel %vm4719, %v4712, %v4716
  %v4721 = vand.u32 2147483647, %v4458
  %vm4722 = vcmp.eq.f32.partialorder %v4721, 8.507059e+37
  %v4723 = vand.u32 %v4458, 2147483648
  %v4724 = vor.u32 1.1754944e-38, %v4723
  %v4725 = vsel %vm4722, %v4724, %v4720
  %v4726 = vmul.f32 1.0, %v4725
  %v4727 = vrcp.pop %v4459
  %v4728 = vmul.f32 %v4459, %v4727
  %v4729 = vsub.f32 1.0, %v4728
  %v4730 = vmul.f32 %v4727, %v4729
  %v4731 = vadd.f32 %v4727, %v4730
  %vm4732 = vweird.f32 %v4459
  %vm4733 = vweird.f32 %v4727
  %vm4734 = vmor %vm4732, %vm4733
  %v4735 = vsel %vm4734, %v4727, %v4731
  %v4736 = vand.u32 2147483647, %v4459
  %vm4737 = vcmp.eq.f32.partialorder %v4736, 8.507059e+37
  %v4738 = vand.u32 %v4459, 2147483648
  %v4739 = vor.u32 1.1754944e-38, %v4738
  %v4740 = vsel %vm4737, %v4739, %v4735
  %v4741 = vmul.f32 1.0, %v4740
  %v4742 = vrcp.pop %v4460
  %v4743 = vmul.f32 %v4460, %v4742
  %v4744 = vsub.f32 1.0, %v4743
  %v4745 = vmul.f32 %v4742, %v4744
  %v4746 = vadd.f32 %v4742, %v4745
  %vm4747 = vweird.f32 %v4460
  %vm4748 = vweird.f32 %v4742
  %vm4749 = vmor %vm4747, %vm4748
  %v4750 = vsel %vm4749, %v4742, %v4746
  %v4751 = vand.u32 2147483647, %v4460
  %vm4752 = vcmp.eq.f32.partialorder %v4751, 8.507059e+37
  %v4753 = vand.u32 %v4460, 2147483648
  %v4754 = vor.u32 1.1754944e-38, %v4753
  %v4755 = vsel %vm4752, %v4754, %v4750
  %v4756 = vmul.f32 1.0, %v4755
  %v4757 = vrcp.pop %v4461
  %v4758 = vmul.f32 %v4461, %v4757
  %v4759 = vsub.f32 1.0, %v4758
  %v4760 = vmul.f32 %v4757, %v4759
  %v4761 = vadd.f32 %v4757, %v4760
  %vm4762 = vweird.f32 %v4461
  %vm4763 = vweird.f32 %v4757
  %vm4764 = vmor %vm4762, %vm4763
  %v4765 = vsel %vm4764, %v4757, %v4761
  %v4766 = vand.u32 2147483647, %v4461
  %vm4767 = vcmp.eq.f32.partialorder %v4766, 8.507059e+37
  %v4768 = vand.u32 %v4461, 2147483648
  %v4769 = vor.u32 1.1754944e-38, %v4768
  %v4770 = vsel %vm4767, %v4769, %v4765
  %v4771 = vmul.f32 1.0, %v4770
  %v4772 = vrcp.pop %v4462
  %v4773 = vmul.f32 %v4462, %v4772
  %v4774 = vsub.f32 1.0, %v4773
  %v4775 = vmul.f32 %v4772, %v4774
  %v4776 = vadd.f32 %v4772, %v4775
  %vm4777 = vweird.f32 %v4462
  %vm4778 = vweird.f32 %v4772
  %vm4779 = vmor %vm4777, %vm4778
  %v4780 = vsel %vm4779, %v4772, %v4776
  %v4781 = vand.u32 2147483647, %v4462
  %vm4782 = vcmp.eq.f32.partialorder %v4781, 8.507059e+37
  %v4783 = vand.u32 %v4462, 2147483648
  %v4784 = vor.u32 1.1754944e-38, %v4783
  %v4785 = vsel %vm4782, %v4784, %v4780
  %v4786 = vmul.f32 1.0, %v4785
  %v4787 = vrcp.pop %v4463
  %v4788 = vmul.f32 %v4463, %v4787
  %v4789 = vsub.f32 1.0, %v4788
  %v4790 = vmul.f32 %v4787, %v4789
  %v4791 = vadd.f32 %v4787, %v4790
  %vm4792 = vweird.f32 %v4463
  %vm4793 = vweird.f32 %v4787
  %vm4794 = vmor %vm4792, %vm4793
  %v4795 = vsel %vm4794, %v4787, %v4791
  %v4796 = vand.u32 2147483647, %v4463
  %vm4797 = vcmp.eq.f32.partialorder %v4796, 8.507059e+37
  %v4798 = vand.u32 %v4463, 2147483648
  %v4799 = vor.u32 1.1754944e-38, %v4798
  %v4800 = vsel %vm4797, %v4799, %v4795
  %v4801 = vmul.f32 1.0, %v4800
  %v4802 = vrcp.pop %v4464
  %v4803 = vmul.f32 %v4464, %v4802
  %v4804 = vsub.f32 1.0, %v4803
  %v4805 = vmul.f32 %v4802, %v4804
  %v4806 = vadd.f32 %v4802, %v4805
  %vm4807 = vweird.f32 %v4464
  %vm4808 = vweird.f32 %v4802
  %vm4809 = vmor %vm4807, %vm4808
  %v4810 = vsel %vm4809, %v4802, %v4806
  %v4811 = vand.u32 2147483647, %v4464
  %vm4812 = vcmp.eq.f32.partialorder %v4811, 8.507059e+37
  %v4813 = vand.u32 %v4464, 2147483648
  %v4814 = vor.u32 1.1754944e-38, %v4813
  %v4815 = vsel %vm4812, %v4814, %v4810
  %v4816 = vmul.f32 1.0, %v4815
  %v4817 = vrcp.pop %v4465
  %v4818 = vmul.f32 %v4465, %v4817
  %v4819 = vsub.f32 1.0, %v4818
  %v4820 = vmul.f32 %v4817, %v4819
  %v4821 = vadd.f32 %v4817, %v4820
  %vm4822 = vweird.f32 %v4465
  %vm4823 = vweird.f32 %v4817
  %vm4824 = vmor %vm4822, %vm4823
  %v4825 = vsel %vm4824, %v4817, %v4821
  %v4826 = vand.u32 2147483647, %v4465
  %vm4827 = vcmp.eq.f32.partialorder %v4826, 8.507059e+37
  %v4828 = vand.u32 %v4465, 2147483648
  %v4829 = vor.u32 1.1754944e-38, %v4828
  %v4830 = vsel %vm4827, %v4829, %v4825
  %v4831 = vmul.f32 1.0, %v4830
  %v4832 = vrcp.pop %v4466
  %v4833 = vmul.f32 %v4466, %v4832
  %v4834 = vsub.f32 1.0, %v4833
  %v4835 = vmul.f32 %v4832, %v4834
  %v4836 = vadd.f32 %v4832, %v4835
  %vm4837 = vweird.f32 %v4466
  %vm4838 = vweird.f32 %v4832
  %vm4839 = vmor %vm4837, %vm4838
  %v4840 = vsel %vm4839, %v4832, %v4836
  %v4841 = vand.u32 2147483647, %v4466
  %vm4842 = vcmp.eq.f32.partialorder %v4841, 8.507059e+37
  %v4843 = vand.u32 %v4466, 2147483648
  %v4844 = vor.u32 1.1754944e-38, %v4843
  %v4845 = vsel %vm4842, %v4844, %v4840
  %v4846 = vmul.f32 1.0, %v4845
  %v4847 = vrcp.pop %v4467
  %v4848 = vmul.f32 %v4467, %v4847
  %v4849 = vsub.f32 1.0, %v4848
  %v4850 = vmul.f32 %v4847, %v4849
  %v4851 = vadd.f32 %v4847, %v4850
  %vm4852 = vweird.f32 %v4467
  %vm4853 = vweird.f32 %v4847
  %vm4854 = vmor %vm4852, %vm4853
  %v4855 = vsel %vm4854, %v4847, %v4851
  %v4856 = vand.u32 2147483647, %v4467
  %vm4857 = vcmp.eq.f32.partialorder %v4856, 8.507059e+37
  %v4858 = vand.u32 %v4467, 2147483648
  %v4859 = vor.u32 1.1754944e-38, %v4858
  %v4860 = vsel %vm4857, %v4859, %v4855
  %v4861 = vmul.f32 1.0, %v4860
  %v4862 = vrcp.pop %v4468
  %v4863 = vmul.f32 %v4468, %v4862
  %v4864 = vsub.f32 1.0, %v4863
  %v4865 = vmul.f32 %v4862, %v4864
  %v4866 = vadd.f32 %v4862, %v4865
  %vm4867 = vweird.f32 %v4468
  %vm4868 = vweird.f32 %v4862
  %vm4869 = vmor %vm4867, %vm4868
  %v4870 = vsel %vm4869, %v4862, %v4866
  %v4871 = vand.u32 2147483647, %v4468
  %vm4872 = vcmp.eq.f32.partialorder %v4871, 8.507059e+37
  %v4873 = vand.u32 %v4468, 2147483648
  %v4874 = vor.u32 1.1754944e-38, %v4873
  %v4875 = vsel %vm4872, %v4874, %v4870
  %v4876 = vmul.f32 1.0, %v4875
  %v4877 = vrcp.pop %v4469
  %v4878 = vmul.f32 %v4469, %v4877
  %v4879 = vsub.f32 1.0, %v4878
  %v4880 = vmul.f32 %v4877, %v4879
  %v4881 = vadd.f32 %v4877, %v4880
  %vm4882 = vweird.f32 %v4469
  %vm4883 = vweird.f32 %v4877
  %vm4884 = vmor %vm4882, %vm4883
  %v4885 = vsel %vm4884, %v4877, %v4881
  %v4886 = vand.u32 2147483647, %v4469
  %vm4887 = vcmp.eq.f32.partialorder %v4886, 8.507059e+37
  %v4888 = vand.u32 %v4469, 2147483648
  %v4889 = vor.u32 1.1754944e-38, %v4888
  %v4890 = vsel %vm4887, %v4889, %v4885
  %v4891 = vmul.f32 1.0, %v4890
  %v4892 = vrcp.pop %v4470
  %v4893 = vmul.f32 %v4470, %v4892
  %v4894 = vsub.f32 1.0, %v4893
  %v4895 = vmul.f32 %v4892, %v4894
  %v4896 = vadd.f32 %v4892, %v4895
  %vm4897 = vweird.f32 %v4470
  %vm4898 = vweird.f32 %v4892
  %vm4899 = vmor %vm4897, %vm4898
  %v4900 = vsel %vm4899, %v4892, %v4896
  %v4901 = vand.u32 2147483647, %v4470
  %vm4902 = vcmp.eq.f32.partialorder %v4901, 8.507059e+37
  %v4903 = vand.u32 %v4470, 2147483648
  %v4904 = vor.u32 1.1754944e-38, %v4903
  %v4905 = vsel %vm4902, %v4904, %v4900
  %v4906 = vmul.f32 1.0, %v4905
  %v4907 = vrcp.pop %v4471
  %v4908 = vmul.f32 %v4471, %v4907
  %v4909 = vsub.f32 1.0, %v4908
  %v4910 = vmul.f32 %v4907, %v4909
  %v4911 = vadd.f32 %v4907, %v4910
  %vm4912 = vweird.f32 %v4471
  %vm4913 = vweird.f32 %v4907
  %vm4914 = vmor %vm4912, %vm4913
  %v4915 = vsel %vm4914, %v4907, %v4911
  %v4916 = vand.u32 2147483647, %v4471
  %vm4917 = vcmp.eq.f32.partialorder %v4916, 8.507059e+37
  %v4918 = vand.u32 %v4471, 2147483648
  %v4919 = vor.u32 1.1754944e-38, %v4918
  %v4920 = vsel %vm4917, %v4919, %v4915
  %v4921 = vmul.f32 1.0, %v4920
  %v4922 = vrcp.pop %v4472
  %v4923 = vmul.f32 %v4472, %v4922
  %v4924 = vsub.f32 1.0, %v4923
  %v4925 = vmul.f32 %v4922, %v4924
  %v4926 = vadd.f32 %v4922, %v4925
  %vm4927 = vweird.f32 %v4472
  %vm4928 = vweird.f32 %v4922
  %vm4929 = vmor %vm4927, %vm4928
  %v4930 = vsel %vm4929, %v4922, %v4926
  %v4931 = vand.u32 2147483647, %v4472
  %vm4932 = vcmp.eq.f32.partialorder %v4931, 8.507059e+37
  %v4933 = vand.u32 %v4472, 2147483648
  %v4934 = vor.u32 1.1754944e-38, %v4933
  %v4935 = vsel %vm4932, %v4934, %v4930
  %v4936 = vmul.f32 1.0, %v4935
  %v4937 = vrcp.pop %v4473
  %v4938 = vmul.f32 %v4473, %v4937
  %v4939 = vsub.f32 1.0, %v4938
  %v4940 = vmul.f32 %v4937, %v4939
  %v4941 = vadd.f32 %v4937, %v4940
  %vm4942 = vweird.f32 %v4473
  %vm4943 = vweird.f32 %v4937
  %vm4944 = vmor %vm4942, %vm4943
  %v4945 = vsel %vm4944, %v4937, %v4941
  %v4946 = vand.u32 2147483647, %v4473
  %vm4947 = vcmp.eq.f32.partialorder %v4946, 8.507059e+37
  %v4948 = vand.u32 %v4473, 2147483648
  %v4949 = vor.u32 1.1754944e-38, %v4948
  %v4950 = vsel %vm4947, %v4949, %v4945
  %v4951 = vmul.f32 1.0, %v4950
  %v4952 = vrcp.pop %v4474
  %v4953 = vmul.f32 %v4474, %v4952
  %v4954 = vsub.f32 1.0, %v4953
  %v4955 = vmul.f32 %v4952, %v4954
  %v4956 = vadd.f32 %v4952, %v4955
  %vm4957 = vweird.f32 %v4474
  %vm4958 = vweird.f32 %v4952
  %vm4959 = vmor %vm4957, %vm4958
  %v4960 = vsel %vm4959, %v4952, %v4956
  %v4961 = vand.u32 2147483647, %v4474
  %vm4962 = vcmp.eq.f32.partialorder %v4961, 8.507059e+37
  %v4963 = vand.u32 %v4474, 2147483648
  %v4964 = vor.u32 1.1754944e-38, %v4963
  %v4965 = vsel %vm4962, %v4964, %v4960
  %v4966 = vmul.f32 1.0, %v4965
  %v4967 = vrcp.pop %v4475
  %v4968 = vmul.f32 %v4475, %v4967
  %v4969 = vsub.f32 1.0, %v4968
  %v4970 = vmul.f32 %v4967, %v4969
  %v4971 = vadd.f32 %v4967, %v4970
  %vm4972 = vweird.f32 %v4475
  %vm4973 = vweird.f32 %v4967
  %vm4974 = vmor %vm4972, %vm4973
  %v4975 = vsel %vm4974, %v4967, %v4971
  %v4976 = vand.u32 2147483647, %v4475
  %vm4977 = vcmp.eq.f32.partialorder %v4976, 8.507059e+37
  %v4978 = vand.u32 %v4475, 2147483648
  %v4979 = vor.u32 1.1754944e-38, %v4978
  %v4980 = vsel %vm4977, %v4979, %v4975
  %v4981 = vmul.f32 1.0, %v4980
  %v4982 = vrcp.pop %v4476
  %v4983 = vmul.f32 %v4476, %v4982
  %v4984 = vsub.f32 1.0, %v4983
  %v4985 = vmul.f32 %v4982, %v4984
  %v4986 = vadd.f32 %v4982, %v4985
  %vm4987 = vweird.f32 %v4476
  %vm4988 = vweird.f32 %v4982
  %vm4989 = vmor %vm4987, %vm4988
  %v4990 = vsel %vm4989, %v4982, %v4986
  %v4991 = vand.u32 2147483647, %v4476
  %vm4992 = vcmp.eq.f32.partialorder %v4991, 8.507059e+37
  %v4993 = vand.u32 %v4476, 2147483648
  %v4994 = vor.u32 1.1754944e-38, %v4993
  %v4995 = vsel %vm4992, %v4994, %v4990
  %v4996 = vmul.f32 1.0, %v4995
  %v4997 = vrcp.pop %v4477
  %v4998 = vmul.f32 %v4477, %v4997
  %v4999 = vsub.f32 1.0, %v4998
  %v5000 = vmul.f32 %v4997, %v4999
  %v5001 = vadd.f32 %v4997, %v5000
  %vm5002 = vweird.f32 %v4477
  %vm5003 = vweird.f32 %v4997
  %vm5004 = vmor %vm5002, %vm5003
  %v5005 = vsel %vm5004, %v4997, %v5001
  %v5006 = vand.u32 2147483647, %v4477
  %vm5007 = vcmp.eq.f32.partialorder %v5006, 8.507059e+37
  %v5008 = vand.u32 %v4477, 2147483648
  %v5009 = vor.u32 1.1754944e-38, %v5008
  %v5010 = vsel %vm5007, %v5009, %v5005
  %v5011 = vmul.f32 1.0, %v5010
  %v5012 = vrcp.pop %v4478
  %v5013 = vmul.f32 %v4478, %v5012
  %v5014 = vsub.f32 1.0, %v5013
  %v5015 = vmul.f32 %v5012, %v5014
  %v5016 = vadd.f32 %v5012, %v5015
  %vm5017 = vweird.f32 %v4478
  %vm5018 = vweird.f32 %v5012
  %vm5019 = vmor %vm5017, %vm5018
  %v5020 = vsel %vm5019, %v5012, %v5016
  %v5021 = vand.u32 2147483647, %v4478
  %vm5022 = vcmp.eq.f32.partialorder %v5021, 8.507059e+37
  %v5023 = vand.u32 %v4478, 2147483648
  %v5024 = vor.u32 1.1754944e-38, %v5023
  %v5025 = vsel %vm5022, %v5024, %v5020
  %v5026 = vmul.f32 1.0, %v5025
  %v5027 = vrcp.pop %v4479
  %v5028 = vmul.f32 %v4479, %v5027
  %v5029 = vsub.f32 1.0, %v5028
  %v5030 = vmul.f32 %v5027, %v5029
  %v5031 = vadd.f32 %v5027, %v5030
  %vm5032 = vweird.f32 %v4479
  %vm5033 = vweird.f32 %v5027
  %vm5034 = vmor %vm5032, %vm5033
  %v5035 = vsel %vm5034, %v5027, %v5031
  %v5036 = vand.u32 2147483647, %v4479
  %vm5037 = vcmp.eq.f32.partialorder %v5036, 8.507059e+37
  %v5038 = vand.u32 %v4479, 2147483648
  %v5039 = vor.u32 1.1754944e-38, %v5038
  %v5040 = vsel %vm5037, %v5039, %v5035
  %v5041 = vmul.f32 1.0, %v5040
  %v5042 = vrcp.pop %v4480
  %v5043 = vmul.f32 %v4480, %v5042
  %v5044 = vsub.f32 1.0, %v5043
  %v5045 = vmul.f32 %v5042, %v5044
  %v5046 = vadd.f32 %v5042, %v5045
  %vm5047 = vweird.f32 %v4480
  %vm5048 = vweird.f32 %v5042
  %vm5049 = vmor %vm5047, %vm5048
  %v5050 = vsel %vm5049, %v5042, %v5046
  %v5051 = vand.u32 2147483647, %v4480
  %vm5052 = vcmp.eq.f32.partialorder %v5051, 8.507059e+37
  %v5053 = vand.u32 %v4480, 2147483648
  %v5054 = vor.u32 1.1754944e-38, %v5053
  %v5055 = vsel %vm5052, %v5054, %v5050
  %v5056 = vmul.f32 1.0, %v5055
  %v5057 = vrcp.pop %v4481
  %v5058 = vmul.f32 %v4481, %v5057
  %v5059 = vsub.f32 1.0, %v5058
  %v5060 = vmul.f32 %v5057, %v5059
  %v5061 = vadd.f32 %v5057, %v5060
  %vm5062 = vweird.f32 %v4481
  %vm5063 = vweird.f32 %v5057
  %vm5064 = vmor %vm5062, %vm5063
  %v5065 = vsel %vm5064, %v5057, %v5061
  %v5066 = vand.u32 2147483647, %v4481
  %vm5067 = vcmp.eq.f32.partialorder %v5066, 8.507059e+37
  %v5068 = vand.u32 %v4481, 2147483648
  %v5069 = vor.u32 1.1754944e-38, %v5068
  %v5070 = vsel %vm5067, %v5069, %v5065
  %v5071 = vmul.f32 1.0, %v5070
  %v5072 = vrcp.pop %v4482
  %v5073 = vmul.f32 %v4482, %v5072
  %v5074 = vsub.f32 1.0, %v5073
  %v5075 = vmul.f32 %v5072, %v5074
  %v5076 = vadd.f32 %v5072, %v5075
  %vm5077 = vweird.f32 %v4482
  %vm5078 = vweird.f32 %v5072
  %vm5079 = vmor %vm5077, %vm5078
  %v5080 = vsel %vm5079, %v5072, %v5076
  %v5081 = vand.u32 2147483647, %v4482
  %vm5082 = vcmp.eq.f32.partialorder %v5081, 8.507059e+37
  %v5083 = vand.u32 %v4482, 2147483648
  %v5084 = vor.u32 1.1754944e-38, %v5083
  %v5085 = vsel %vm5082, %v5084, %v5080
  %v5086 = vmul.f32 1.0, %v5085
  %v5087 = vrcp.pop %v4483
  %v5088 = vmul.f32 %v4483, %v5087
  %v5089 = vsub.f32 1.0, %v5088
  %v5090 = vmul.f32 %v5087, %v5089
  %v5091 = vadd.f32 %v5087, %v5090
  %vm5092 = vweird.f32 %v4483
  %vm5093 = vweird.f32 %v5087
  %vm5094 = vmor %vm5092, %vm5093
  %v5095 = vsel %vm5094, %v5087, %v5091
  %v5096 = vand.u32 2147483647, %v4483
  %vm5097 = vcmp.eq.f32.partialorder %v5096, 8.507059e+37
  %v5098 = vand.u32 %v4483, 2147483648
  %v5099 = vor.u32 1.1754944e-38, %v5098
  %v5100 = vsel %vm5097, %v5099, %v5095
  %v5101 = vmul.f32 1.0, %v5100
  %v5102 = vrcp.pop %v4484
  %v5103 = vmul.f32 %v4484, %v5102
  %v5104 = vsub.f32 1.0, %v5103
  %v5105 = vmul.f32 %v5102, %v5104
  %v5106 = vadd.f32 %v5102, %v5105
  %vm5107 = vweird.f32 %v4484
  %vm5108 = vweird.f32 %v5102
  %vm5109 = vmor %vm5107, %vm5108
  %v5110 = vsel %vm5109, %v5102, %v5106
  %v5111 = vand.u32 2147483647, %v4484
  %vm5112 = vcmp.eq.f32.partialorder %v5111, 8.507059e+37
  %v5113 = vand.u32 %v4484, 2147483648
  %v5114 = vor.u32 1.1754944e-38, %v5113
  %v5115 = vsel %vm5112, %v5114, %v5110
  %v5116 = vmul.f32 1.0, %v5115
  %v5117 = vrcp.pop %v4485
  %v5118 = vmul.f32 %v4485, %v5117
  %v5119 = vsub.f32 1.0, %v5118
  %v5120 = vmul.f32 %v5117, %v5119
  %v5121 = vadd.f32 %v5117, %v5120
  %vm5122 = vweird.f32 %v4485
  %vm5123 = vweird.f32 %v5117
  %vm5124 = vmor %vm5122, %vm5123
  %v5125 = vsel %vm5124, %v5117, %v5121
  %v5126 = vand.u32 2147483647, %v4485
  %vm5127 = vcmp.eq.f32.partialorder %v5126, 8.507059e+37
  %v5128 = vand.u32 %v4485, 2147483648
  %v5129 = vor.u32 1.1754944e-38, %v5128
  %v5130 = vsel %vm5127, %v5129, %v5125
  %v5131 = vmul.f32 1.0, %v5130
  %v5132 = vrcp.pop %v4486
  %v5133 = vmul.f32 %v4486, %v5132
  %v5134 = vsub.f32 1.0, %v5133
  %v5135 = vmul.f32 %v5132, %v5134
  %v5136 = vadd.f32 %v5132, %v5135
  %vm5137 = vweird.f32 %v4486
  %vm5138 = vweird.f32 %v5132
  %vm5139 = vmor %vm5137, %vm5138
  %v5140 = vsel %vm5139, %v5132, %v5136
  %v5141 = vand.u32 2147483647, %v4486
  %vm5142 = vcmp.eq.f32.partialorder %v5141, 8.507059e+37
  %v5143 = vand.u32 %v4486, 2147483648
  %v5144 = vor.u32 1.1754944e-38, %v5143
  %v5145 = vsel %vm5142, %v5144, %v5140
  %v5146 = vmul.f32 1.0, %v5145
  %v5147 = vrcp.pop %v4487
  %v5148 = vmul.f32 %v4487, %v5147
  %v5149 = vsub.f32 1.0, %v5148
  %v5150 = vmul.f32 %v5147, %v5149
  %v5151 = vadd.f32 %v5147, %v5150
  %vm5152 = vweird.f32 %v4487
  %vm5153 = vweird.f32 %v5147
  %vm5154 = vmor %vm5152, %vm5153
  %v5155 = vsel %vm5154, %v5147, %v5151
  %v5156 = vand.u32 2147483647, %v4487
  %vm5157 = vcmp.eq.f32.partialorder %v5156, 8.507059e+37
  %v5158 = vand.u32 %v4487, 2147483648
  %v5159 = vor.u32 1.1754944e-38, %v5158
  %v5160 = vsel %vm5157, %v5159, %v5155
  %v5161 = vmul.f32 1.0, %v5160
  %v5162 = vrcp.pop %v4488
  %v5163 = vmul.f32 %v4488, %v5162
  %v5164 = vsub.f32 1.0, %v5163
  %v5165 = vmul.f32 %v5162, %v5164
  %v5166 = vadd.f32 %v5162, %v5165
  %vm5167 = vweird.f32 %v4488
  %vm5168 = vweird.f32 %v5162
  %vm5169 = vmor %vm5167, %vm5168
  %v5170 = vsel %vm5169, %v5162, %v5166
  %v5171 = vand.u32 2147483647, %v4488
  %vm5172 = vcmp.eq.f32.partialorder %v5171, 8.507059e+37
  %v5173 = vand.u32 %v4488, 2147483648
  %v5174 = vor.u32 1.1754944e-38, %v5173
  %v5175 = vsel %vm5172, %v5174, %v5170
  %v5176 = vmul.f32 1.0, %v5175
  %v5177 = vrcp.pop %v4489
  %v5178 = vmul.f32 %v4489, %v5177
  %v5179 = vsub.f32 1.0, %v5178
  %v5180 = vmul.f32 %v5177, %v5179
  %v5181 = vadd.f32 %v5177, %v5180
  %vm5182 = vweird.f32 %v4489
  %vm5183 = vweird.f32 %v5177
  %vm5184 = vmor %vm5182, %vm5183
  %v5185 = vsel %vm5184, %v5177, %v5181
  %v5186 = vand.u32 2147483647, %v4489
  %vm5187 = vcmp.eq.f32.partialorder %v5186, 8.507059e+37
  %v5188 = vand.u32 %v4489, 2147483648
  %v5189 = vor.u32 1.1754944e-38, %v5188
  %v5190 = vsel %vm5187, %v5189, %v5185
  %v5191 = vmul.f32 1.0, %v5190
  %v5192 = vrcp.pop %v4490
  %v5193 = vmul.f32 %v4490, %v5192
  %v5194 = vsub.f32 1.0, %v5193
  %v5195 = vmul.f32 %v5192, %v5194
  %v5196 = vadd.f32 %v5192, %v5195
  %vm5197 = vweird.f32 %v4490
  %vm5198 = vweird.f32 %v5192
  %vm5199 = vmor %vm5197, %vm5198
  %v5200 = vsel %vm5199, %v5192, %v5196
  %v5201 = vand.u32 2147483647, %v4490
  %vm5202 = vcmp.eq.f32.partialorder %v5201, 8.507059e+37
  %v5203 = vand.u32 %v4490, 2147483648
  %v5204 = vor.u32 1.1754944e-38, %v5203
  %v5205 = vsel %vm5202, %v5204, %v5200
  %v5206 = vmul.f32 1.0, %v5205
  %v5207 = vrcp.pop %v4491
  %v5208 = vmul.f32 %v4491, %v5207
  %v5209 = vsub.f32 1.0, %v5208
  %v5210 = vmul.f32 %v5207, %v5209
  %v5211 = vadd.f32 %v5207, %v5210
  %vm5212 = vweird.f32 %v4491
  %vm5213 = vweird.f32 %v5207
  %vm5214 = vmor %vm5212, %vm5213
  %v5215 = vsel %vm5214, %v5207, %v5211
  %v5216 = vand.u32 2147483647, %v4491
  %vm5217 = vcmp.eq.f32.partialorder %v5216, 8.507059e+37
  %v5218 = vand.u32 %v4491, 2147483648
  %v5219 = vor.u32 1.1754944e-38, %v5218
  %v5220 = vsel %vm5217, %v5219, %v5215
  %v5221 = vmul.f32 1.0, %v5220
  %v5222 = vrcp.pop %v4492
  %v5223 = vmul.f32 %v4492, %v5222
  %v5224 = vsub.f32 1.0, %v5223
  %v5225 = vmul.f32 %v5222, %v5224
  %v5226 = vadd.f32 %v5222, %v5225
  %vm5227 = vweird.f32 %v4492
  %vm5228 = vweird.f32 %v5222
  %vm5229 = vmor %vm5227, %vm5228
  %v5230 = vsel %vm5229, %v5222, %v5226
  %v5231 = vand.u32 2147483647, %v4492
  %vm5232 = vcmp.eq.f32.partialorder %v5231, 8.507059e+37
  %v5233 = vand.u32 %v4492, 2147483648
  %v5234 = vor.u32 1.1754944e-38, %v5233
  %v5235 = vsel %vm5232, %v5234, %v5230
  %v5236 = vmul.f32 1.0, %v5235
  %v5237 = vrcp.pop %v4493
  %v5238 = vmul.f32 %v4493, %v5237
  %v5239 = vsub.f32 1.0, %v5238
  %v5240 = vmul.f32 %v5237, %v5239
  %v5241 = vadd.f32 %v5237, %v5240
  %vm5242 = vweird.f32 %v4493
  %vm5243 = vweird.f32 %v5237
  %vm5244 = vmor %vm5242, %vm5243
  %v5245 = vsel %vm5244, %v5237, %v5241
  %v5246 = vand.u32 2147483647, %v4493
  %vm5247 = vcmp.eq.f32.partialorder %v5246, 8.507059e+37
  %v5248 = vand.u32 %v4493, 2147483648
  %v5249 = vor.u32 1.1754944e-38, %v5248
  %v5250 = vsel %vm5247, %v5249, %v5245
  %v5251 = vmul.f32 1.0, %v5250
  %v5252 = vrcp.pop %v4494
  %v5253 = vmul.f32 %v4494, %v5252
  %v5254 = vsub.f32 1.0, %v5253
  %v5255 = vmul.f32 %v5252, %v5254
  %v5256 = vadd.f32 %v5252, %v5255
  %vm5257 = vweird.f32 %v4494
  %vm5258 = vweird.f32 %v5252
  %vm5259 = vmor %vm5257, %vm5258
  %v5260 = vsel %vm5259, %v5252, %v5256
  %v5261 = vand.u32 2147483647, %v4494
  %vm5262 = vcmp.eq.f32.partialorder %v5261, 8.507059e+37
  %v5263 = vand.u32 %v4494, 2147483648
  %v5264 = vor.u32 1.1754944e-38, %v5263
  %v5265 = vsel %vm5262, %v5264, %v5260
  %v5266 = vmul.f32 1.0, %v5265
  %v5267 = vrcp.pop %v4495
  %v5268 = vmul.f32 %v4495, %v5267
  %v5269 = vsub.f32 1.0, %v5268
  %v5270 = vmul.f32 %v5267, %v5269
  %v5271 = vadd.f32 %v5267, %v5270
  %vm5272 = vweird.f32 %v4495
  %vm5273 = vweird.f32 %v5267
  %vm5274 = vmor %vm5272, %vm5273
  %v5275 = vsel %vm5274, %v5267, %v5271
  %v5276 = vand.u32 2147483647, %v4495
  %vm5277 = vcmp.eq.f32.partialorder %v5276, 8.507059e+37
  %v5278 = vand.u32 %v4495, 2147483648
  %v5279 = vor.u32 1.1754944e-38, %v5278
  %v5280 = vsel %vm5277, %v5279, %v5275
  %v5281 = vmul.f32 1.0, %v5280
  %v5282 = vrcp.pop %v4496
  %v5283 = vmul.f32 %v4496, %v5282
  %v5284 = vsub.f32 1.0, %v5283
  %v5285 = vmul.f32 %v5282, %v5284
  %v5286 = vadd.f32 %v5282, %v5285
  %vm5287 = vweird.f32 %v4496
  %vm5288 = vweird.f32 %v5282
  %vm5289 = vmor %vm5287, %vm5288
  %v5290 = vsel %vm5289, %v5282, %v5286
  %v5291 = vand.u32 2147483647, %v4496
  %vm5292 = vcmp.eq.f32.partialorder %v5291, 8.507059e+37
  %v5293 = vand.u32 %v4496, 2147483648
  %v5294 = vor.u32 1.1754944e-38, %v5293
  %v5295 = vsel %vm5292, %v5294, %v5290
  %v5296 = vmul.f32 1.0, %v5295
  %v5297 = vrcp.pop %v4497
  %v5298 = vmul.f32 %v4497, %v5297
  %v5299 = vsub.f32 1.0, %v5298
  %v5300 = vmul.f32 %v5297, %v5299
  %v5301 = vadd.f32 %v5297, %v5300
  %vm5302 = vweird.f32 %v4497
  %vm5303 = vweird.f32 %v5297
  %vm5304 = vmor %vm5302, %vm5303
  %v5305 = vsel %vm5304, %v5297, %v5301
  %v5306 = vand.u32 2147483647, %v4497
  %vm5307 = vcmp.eq.f32.partialorder %v5306, 8.507059e+37
  %v5308 = vand.u32 %v4497, 2147483648
  %v5309 = vor.u32 1.1754944e-38, %v5308
  %v5310 = vsel %vm5307, %v5309, %v5305
  %v5311 = vmul.f32 1.0, %v5310
  %v5312 = vrcp.pop %v4498
  %v5313 = vmul.f32 %v4498, %v5312
  %v5314 = vsub.f32 1.0, %v5313
  %v5315 = vmul.f32 %v5312, %v5314
  %v5316 = vadd.f32 %v5312, %v5315
  %vm5317 = vweird.f32 %v4498
  %vm5318 = vweird.f32 %v5312
  %vm5319 = vmor %vm5317, %vm5318
  %v5320 = vsel %vm5319, %v5312, %v5316
  %v5321 = vand.u32 2147483647, %v4498
  %vm5322 = vcmp.eq.f32.partialorder %v5321, 8.507059e+37
  %v5323 = vand.u32 %v4498, 2147483648
  %v5324 = vor.u32 1.1754944e-38, %v5323
  %v5325 = vsel %vm5322, %v5324, %v5320
  %v5326 = vmul.f32 1.0, %v5325
  %v5327 = vrcp.pop %v4499
  %v5328 = vmul.f32 %v4499, %v5327
  %v5329 = vsub.f32 1.0, %v5328
  %v5330 = vmul.f32 %v5327, %v5329
  %v5331 = vadd.f32 %v5327, %v5330
  %vm5332 = vweird.f32 %v4499
  %vm5333 = vweird.f32 %v5327
  %vm5334 = vmor %vm5332, %vm5333
  %v5335 = vsel %vm5334, %v5327, %v5331
  %v5336 = vand.u32 2147483647, %v4499
  %vm5337 = vcmp.eq.f32.partialorder %v5336, 8.507059e+37
  %v5338 = vand.u32 %v4499, 2147483648
  %v5339 = vor.u32 1.1754944e-38, %v5338
  %v5340 = vsel %vm5337, %v5339, %v5335
  %v5341 = vmul.f32 1.0, %v5340
  %v5342 = vrcp.pop %v4500
  %v5343 = vmul.f32 %v4500, %v5342
  %v5344 = vsub.f32 1.0, %v5343
  %v5345 = vmul.f32 %v5342, %v5344
  %v5346 = vadd.f32 %v5342, %v5345
  %vm5347 = vweird.f32 %v4500
  %vm5348 = vweird.f32 %v5342
  %vm5349 = vmor %vm5347, %vm5348
  %v5350 = vsel %vm5349, %v5342, %v5346
  %v5351 = vand.u32 2147483647, %v4500
  %vm5352 = vcmp.eq.f32.partialorder %v5351, 8.507059e+37
  %v5353 = vand.u32 %v4500, 2147483648
  %v5354 = vor.u32 1.1754944e-38, %v5353
  %v5355 = vsel %vm5352, %v5354, %v5350
  %v5356 = vmul.f32 1.0, %v5355
  %v5357 = vrcp.pop %v4501
  %v5358 = vmul.f32 %v4501, %v5357
  %v5359 = vsub.f32 1.0, %v5358
  %v5360 = vmul.f32 %v5357, %v5359
  %v5361 = vadd.f32 %v5357, %v5360
  %vm5362 = vweird.f32 %v4501
  %vm5363 = vweird.f32 %v5357
  %vm5364 = vmor %vm5362, %vm5363
  %v5365 = vsel %vm5364, %v5357, %v5361
  %v5366 = vand.u32 2147483647, %v4501
  %vm5367 = vcmp.eq.f32.partialorder %v5366, 8.507059e+37
  %v5368 = vand.u32 %v4501, 2147483648
  %v5369 = vor.u32 1.1754944e-38, %v5368
  %v5370 = vsel %vm5367, %v5369, %v5365
  %v5371 = vmul.f32 1.0, %v5370
  %v5372 = vrcp.pop %v4502
  %v5373 = vmul.f32 %v4502, %v5372
  %v5374 = vsub.f32 1.0, %v5373
  %v5375 = vmul.f32 %v5372, %v5374
  %v5376 = vadd.f32 %v5372, %v5375
  %vm5377 = vweird.f32 %v4502
  %vm5378 = vweird.f32 %v5372
  %vm5379 = vmor %vm5377, %vm5378
  %v5380 = vsel %vm5379, %v5372, %v5376
  %v5381 = vand.u32 2147483647, %v4502
  %vm5382 = vcmp.eq.f32.partialorder %v5381, 8.507059e+37
  %v5383 = vand.u32 %v4502, 2147483648
  %v5384 = vor.u32 1.1754944e-38, %v5383
  %v5385 = vsel %vm5382, %v5384, %v5380
  %v5386 = vmul.f32 1.0, %v5385
  %v5387 = vrcp.pop %v4503
  %v5388 = vmul.f32 %v4503, %v5387
  %v5389 = vsub.f32 1.0, %v5388
  %v5390 = vmul.f32 %v5387, %v5389
  %v5391 = vadd.f32 %v5387, %v5390
  %vm5392 = vweird.f32 %v4503
  %vm5393 = vweird.f32 %v5387
  %vm5394 = vmor %vm5392, %vm5393
  %v5395 = vsel %vm5394, %v5387, %v5391
  %v5396 = vand.u32 2147483647, %v4503
  %vm5397 = vcmp.eq.f32.partialorder %v5396, 8.507059e+37
  %v5398 = vand.u32 %v4503, 2147483648
  %v5399 = vor.u32 1.1754944e-38, %v5398
  %v5400 = vsel %vm5397, %v5399, %v5395
  %v5401 = vmul.f32 1.0, %v5400
  %v5402 = vrcp.pop %v4504
  %v5403 = vmul.f32 %v4504, %v5402
  %v5404 = vsub.f32 1.0, %v5403
  %v5405 = vmul.f32 %v5402, %v5404
  %v5406 = vadd.f32 %v5402, %v5405
  %vm5407 = vweird.f32 %v4504
  %vm5408 = vweird.f32 %v5402
  %vm5409 = vmor %vm5407, %vm5408
  %v5410 = vsel %vm5409, %v5402, %v5406
  %v5411 = vand.u32 2147483647, %v4504
  %vm5412 = vcmp.eq.f32.partialorder %v5411, 8.507059e+37
  %v5413 = vand.u32 %v4504, 2147483648
  %v5414 = vor.u32 1.1754944e-38, %v5413
  %v5415 = vsel %vm5412, %v5414, %v5410
  %v5416 = vmul.f32 1.0, %v5415
  %v5417 = vrcp.pop %v4505
  %v5418 = vmul.f32 %v4505, %v5417
  %v5419 = vsub.f32 1.0, %v5418
  %v5420 = vmul.f32 %v5417, %v5419
  %v5421 = vadd.f32 %v5417, %v5420
  %vm5422 = vweird.f32 %v4505
  %vm5423 = vweird.f32 %v5417
  %vm5424 = vmor %vm5422, %vm5423
  %v5425 = vsel %vm5424, %v5417, %v5421
  %v5426 = vand.u32 2147483647, %v4505
  %vm5427 = vcmp.eq.f32.partialorder %v5426, 8.507059e+37
  %v5428 = vand.u32 %v4505, 2147483648
  %v5429 = vor.u32 1.1754944e-38, %v5428
  %v5430 = vsel %vm5427, %v5429, %v5425
  %v5431 = vmul.f32 1.0, %v5430
  %v5432 = vrcp.pop %v4506
  %v5433 = vmul.f32 %v4506, %v5432
  %v5434 = vsub.f32 1.0, %v5433
  %v5435 = vmul.f32 %v5432, %v5434
  %v5436 = vadd.f32 %v5432, %v5435
  %vm5437 = vweird.f32 %v4506
  %vm5438 = vweird.f32 %v5432
  %vm5439 = vmor %vm5437, %vm5438
  %v5440 = vsel %vm5439, %v5432, %v5436
  %v5441 = vand.u32 2147483647, %v4506
  %vm5442 = vcmp.eq.f32.partialorder %v5441, 8.507059e+37
  %v5443 = vand.u32 %v4506, 2147483648
  %v5444 = vor.u32 1.1754944e-38, %v5443
  %v5445 = vsel %vm5442, %v5444, %v5440
  %v5446 = vmul.f32 1.0, %v5445
  %v5447 = vrcp.pop %v4507
  %v5448 = vmul.f32 %v4507, %v5447
  %v5449 = vsub.f32 1.0, %v5448
  %v5450 = vmul.f32 %v5447, %v5449
  %v5451 = vadd.f32 %v5447, %v5450
  %vm5452 = vweird.f32 %v4507
  %vm5453 = vweird.f32 %v5447
  %vm5454 = vmor %vm5452, %vm5453
  %v5455 = vsel %vm5454, %v5447, %v5451
  %v5456 = vand.u32 2147483647, %v4507
  %vm5457 = vcmp.eq.f32.partialorder %v5456, 8.507059e+37
  %v5458 = vand.u32 %v4507, 2147483648
  %v5459 = vor.u32 1.1754944e-38, %v5458
  %v5460 = vsel %vm5457, %v5459, %v5455
  %v5461 = vmul.f32 1.0, %v5460
  %v5462 = vrcp.pop %v4508
  %v5463 = vmul.f32 %v4508, %v5462
  %v5464 = vsub.f32 1.0, %v5463
  %v5465 = vmul.f32 %v5462, %v5464
  %v5466 = vadd.f32 %v5462, %v5465
  %vm5467 = vweird.f32 %v4508
  %vm5468 = vweird.f32 %v5462
  %vm5469 = vmor %vm5467, %vm5468
  %v5470 = vsel %vm5469, %v5462, %v5466
  %v5471 = vand.u32 2147483647, %v4508
  %vm5472 = vcmp.eq.f32.partialorder %v5471, 8.507059e+37
  %v5473 = vand.u32 %v4508, 2147483648
  %v5474 = vor.u32 1.1754944e-38, %v5473
  %v5475 = vsel %vm5472, %v5474, %v5470
  %v5476 = vmul.f32 1.0, %v5475
  %v5477 = vrcp.pop %v4509
  %v5478 = vmul.f32 %v4509, %v5477
  %v5479 = vsub.f32 1.0, %v5478
  %v5480 = vmul.f32 %v5477, %v5479
  %v5481 = vadd.f32 %v5477, %v5480
  %vm5482 = vweird.f32 %v4509
  %vm5483 = vweird.f32 %v5477
  %vm5484 = vmor %vm5482, %vm5483
  %v5485 = vsel %vm5484, %v5477, %v5481
  %v5486 = vand.u32 2147483647, %v4509
  %vm5487 = vcmp.eq.f32.partialorder %v5486, 8.507059e+37
  %v5488 = vand.u32 %v4509, 2147483648
  %v5489 = vor.u32 1.1754944e-38, %v5488
  %v5490 = vsel %vm5487, %v5489, %v5485
  %v5491 = vmul.f32 1.0, %v5490
  %v5492 = vrcp.pop %v4510
  %v5493 = vmul.f32 %v4510, %v5492
  %v5494 = vsub.f32 1.0, %v5493
  %v5495 = vmul.f32 %v5492, %v5494
  %v5496 = vadd.f32 %v5492, %v5495
  %vm5497 = vweird.f32 %v4510
  %vm5498 = vweird.f32 %v5492
  %vm5499 = vmor %vm5497, %vm5498
  %v5500 = vsel %vm5499, %v5492, %v5496
  %v5501 = vand.u32 2147483647, %v4510
  %vm5502 = vcmp.eq.f32.partialorder %v5501, 8.507059e+37
  %v5503 = vand.u32 %v4510, 2147483648
  %v5504 = vor.u32 1.1754944e-38, %v5503
  %v5505 = vsel %vm5502, %v5504, %v5500
  %v5506 = vmul.f32 1.0, %v5505
  %v5507 = vrcp.pop %v4511
  %v5508 = vmul.f32 %v4511, %v5507
  %v5509 = vsub.f32 1.0, %v5508
  %v5510 = vmul.f32 %v5507, %v5509
  %v5511 = vadd.f32 %v5507, %v5510
  %vm5512 = vweird.f32 %v4511
  %vm5513 = vweird.f32 %v5507
  %vm5514 = vmor %vm5512, %vm5513
  %v5515 = vsel %vm5514, %v5507, %v5511
  %v5516 = vand.u32 2147483647, %v4511
  %vm5517 = vcmp.eq.f32.partialorder %v5516, 8.507059e+37
  %v5518 = vand.u32 %v4511, 2147483648
  %v5519 = vor.u32 1.1754944e-38, %v5518
  %v5520 = vsel %vm5517, %v5519, %v5515
  %v5521 = vmul.f32 1.0, %v5520
  %v5522 = vrcp.pop %v4512
  %v5523 = vmul.f32 %v4512, %v5522
  %v5524 = vsub.f32 1.0, %v5523
  %v5525 = vmul.f32 %v5522, %v5524
  %v5526 = vadd.f32 %v5522, %v5525
  %vm5527 = vweird.f32 %v4512
  %vm5528 = vweird.f32 %v5522
  %vm5529 = vmor %vm5527, %vm5528
  %v5530 = vsel %vm5529, %v5522, %v5526
  %v5531 = vand.u32 2147483647, %v4512
  %vm5532 = vcmp.eq.f32.partialorder %v5531, 8.507059e+37
  %v5533 = vand.u32 %v4512, 2147483648
  %v5534 = vor.u32 1.1754944e-38, %v5533
  %v5535 = vsel %vm5532, %v5534, %v5530
  %v5536 = vmul.f32 1.0, %v5535
  %v5537 = vrcp.pop %v4513
  %v5538 = vmul.f32 %v4513, %v5537
  %v5539 = vsub.f32 1.0, %v5538
  %v5540 = vmul.f32 %v5537, %v5539
  %v5541 = vadd.f32 %v5537, %v5540
  %vm5542 = vweird.f32 %v4513
  %vm5543 = vweird.f32 %v5537
  %vm5544 = vmor %vm5542, %vm5543
  %v5545 = vsel %vm5544, %v5537, %v5541
  %v5546 = vand.u32 2147483647, %v4513
  %vm5547 = vcmp.eq.f32.partialorder %v5546, 8.507059e+37
  %v5548 = vand.u32 %v4513, 2147483648
  %v5549 = vor.u32 1.1754944e-38, %v5548
  %v5550 = vsel %vm5547, %v5549, %v5545
  %v5551 = vmul.f32 1.0, %v5550
  %v5552 = vrcp.pop %v4514
  %v5553 = vmul.f32 %v4514, %v5552
  %v5554 = vsub.f32 1.0, %v5553
  %v5555 = vmul.f32 %v5552, %v5554
  %v5556 = vadd.f32 %v5552, %v5555
  %vm5557 = vweird.f32 %v4514
  %vm5558 = vweird.f32 %v5552
  %vm5559 = vmor %vm5557, %vm5558
  %v5560 = vsel %vm5559, %v5552, %v5556
  %v5561 = vand.u32 2147483647, %v4514
  %vm5562 = vcmp.eq.f32.partialorder %v5561, 8.507059e+37
  %v5563 = vand.u32 %v4514, 2147483648
  %v5564 = vor.u32 1.1754944e-38, %v5563
  %v5565 = vsel %vm5562, %v5564, %v5560
  %v5566 = vmul.f32 1.0, %v5565
  %v5567 = vrcp.pop %v4515
  %v5568 = vmul.f32 %v4515, %v5567
  %v5569 = vsub.f32 1.0, %v5568
  %v5570 = vmul.f32 %v5567, %v5569
  %v5571 = vadd.f32 %v5567, %v5570
  %vm5572 = vweird.f32 %v4515
  %vm5573 = vweird.f32 %v5567
  %vm5574 = vmor %vm5572, %vm5573
  %v5575 = vsel %vm5574, %v5567, %v5571
  %v5576 = vand.u32 2147483647, %v4515
  %vm5577 = vcmp.eq.f32.partialorder %v5576, 8.507059e+37
  %v5578 = vand.u32 %v4515, 2147483648
  %v5579 = vor.u32 1.1754944e-38, %v5578
  %v5580 = vsel %vm5577, %v5579, %v5575
  %v5581 = vmul.f32 1.0, %v5580
  %v5582 = vrcp.pop %v4516
  %v5583 = vmul.f32 %v4516, %v5582
  %v5584 = vsub.f32 1.0, %v5583
  %v5585 = vmul.f32 %v5582, %v5584
  %v5586 = vadd.f32 %v5582, %v5585
  %vm5587 = vweird.f32 %v4516
  %vm5588 = vweird.f32 %v5582
  %vm5589 = vmor %vm5587, %vm5588
  %v5590 = vsel %vm5589, %v5582, %v5586
  %v5591 = vand.u32 2147483647, %v4516
  %vm5592 = vcmp.eq.f32.partialorder %v5591, 8.507059e+37
  %v5593 = vand.u32 %v4516, 2147483648
  %v5594 = vor.u32 1.1754944e-38, %v5593
  %v5595 = vsel %vm5592, %v5594, %v5590
  %v5596 = vmul.f32 1.0, %v5595
  %v5597 = vrcp.pop %v4517
  %v5598 = vmul.f32 %v4517, %v5597
  %v5599 = vsub.f32 1.0, %v5598
  %v5600 = vmul.f32 %v5597, %v5599
  %v5601 = vadd.f32 %v5597, %v5600
  %vm5602 = vweird.f32 %v4517
  %vm5603 = vweird.f32 %v5597
  %vm5604 = vmor %vm5602, %vm5603
  %v5605 = vsel %vm5604, %v5597, %v5601
  %v5606 = vand.u32 2147483647, %v4517
  %vm5607 = vcmp.eq.f32.partialorder %v5606, 8.507059e+37
  %v5608 = vand.u32 %v4517, 2147483648
  %v5609 = vor.u32 1.1754944e-38, %v5608
  %v5610 = vsel %vm5607, %v5609, %v5605
  %v5611 = vmul.f32 1.0, %v5610
  %v5612 = vrcp.pop %v4518
  %v5613 = vmul.f32 %v4518, %v5612
  %v5614 = vsub.f32 1.0, %v5613
  %v5615 = vmul.f32 %v5612, %v5614
  %v5616 = vadd.f32 %v5612, %v5615
  %vm5617 = vweird.f32 %v4518
  %vm5618 = vweird.f32 %v5612
  %vm5619 = vmor %vm5617, %vm5618
  %v5620 = vsel %vm5619, %v5612, %v5616
  %v5621 = vand.u32 2147483647, %v4518
  %vm5622 = vcmp.eq.f32.partialorder %v5621, 8.507059e+37
  %v5623 = vand.u32 %v4518, 2147483648
  %v5624 = vor.u32 1.1754944e-38, %v5623
  %v5625 = vsel %vm5622, %v5624, %v5620
  %v5626 = vmul.f32 1.0, %v5625
  %v5627 = vrcp.pop %v4519
  %v5628 = vmul.f32 %v4519, %v5627
  %v5629 = vsub.f32 1.0, %v5628
  %v5630 = vmul.f32 %v5627, %v5629
  %v5631 = vadd.f32 %v5627, %v5630
  %vm5632 = vweird.f32 %v4519
  %vm5633 = vweird.f32 %v5627
  %vm5634 = vmor %vm5632, %vm5633
  %v5635 = vsel %vm5634, %v5627, %v5631
  %v5636 = vand.u32 2147483647, %v4519
  %vm5637 = vcmp.eq.f32.partialorder %v5636, 8.507059e+37
  %v5638 = vand.u32 %v4519, 2147483648
  %v5639 = vor.u32 1.1754944e-38, %v5638
  %v5640 = vsel %vm5637, %v5639, %v5635
  %v5641 = vmul.f32 1.0, %v5640
  %v5642 = vrcp.pop %v4520
  %v5643 = vmul.f32 %v4520, %v5642
  %v5644 = vsub.f32 1.0, %v5643
  %v5645 = vmul.f32 %v5642, %v5644
  %v5646 = vadd.f32 %v5642, %v5645
  %vm5647 = vweird.f32 %v4520
  %vm5648 = vweird.f32 %v5642
  %vm5649 = vmor %vm5647, %vm5648
  %v5650 = vsel %vm5649, %v5642, %v5646
  %v5651 = vand.u32 2147483647, %v4520
  %vm5652 = vcmp.eq.f32.partialorder %v5651, 8.507059e+37
  %v5653 = vand.u32 %v4520, 2147483648
  %v5654 = vor.u32 1.1754944e-38, %v5653
  %v5655 = vsel %vm5652, %v5654, %v5650
  %v5656 = vmul.f32 1.0, %v5655
  %v5657 = vrcp.pop %v4521
  %v5658 = vmul.f32 %v4521, %v5657
  %v5659 = vsub.f32 1.0, %v5658
  %v5660 = vmul.f32 %v5657, %v5659
  %v5661 = vadd.f32 %v5657, %v5660
  %vm5662 = vweird.f32 %v4521
  %vm5663 = vweird.f32 %v5657
  %vm5664 = vmor %vm5662, %vm5663
  %v5665 = vsel %vm5664, %v5657, %v5661
  %v5666 = vand.u32 2147483647, %v4521
  %vm5667 = vcmp.eq.f32.partialorder %v5666, 8.507059e+37
  %v5668 = vand.u32 %v4521, 2147483648
  %v5669 = vor.u32 1.1754944e-38, %v5668
  %v5670 = vsel %vm5667, %v5669, %v5665
  %v5671 = vmul.f32 1.0, %v5670
  %v5672 = vrcp.pop %v4522
  %v5673 = vmul.f32 %v4522, %v5672
  %v5674 = vsub.f32 1.0, %v5673
  %v5675 = vmul.f32 %v5672, %v5674
  %v5676 = vadd.f32 %v5672, %v5675
  %vm5677 = vweird.f32 %v4522
  %vm5678 = vweird.f32 %v5672
  %vm5679 = vmor %vm5677, %vm5678
  %v5680 = vsel %vm5679, %v5672, %v5676
  %v5681 = vand.u32 2147483647, %v4522
  %vm5682 = vcmp.eq.f32.partialorder %v5681, 8.507059e+37
  %v5683 = vand.u32 %v4522, 2147483648
  %v5684 = vor.u32 1.1754944e-38, %v5683
  %v5685 = vsel %vm5682, %v5684, %v5680
  %v5686 = vmul.f32 1.0, %v5685
  %v5687 = vrcp.pop %v4523
  %v5688 = vmul.f32 %v4523, %v5687
  %v5689 = vsub.f32 1.0, %v5688
  %v5690 = vmul.f32 %v5687, %v5689
  %v5691 = vadd.f32 %v5687, %v5690
  %vm5692 = vweird.f32 %v4523
  %vm5693 = vweird.f32 %v5687
  %vm5694 = vmor %vm5692, %vm5693
  %v5695 = vsel %vm5694, %v5687, %v5691
  %v5696 = vand.u32 2147483647, %v4523
  %vm5697 = vcmp.eq.f32.partialorder %v5696, 8.507059e+37
  %v5698 = vand.u32 %v4523, 2147483648
  %v5699 = vor.u32 1.1754944e-38, %v5698
  %v5700 = vsel %vm5697, %v5699, %v5695
  %v5701 = vmul.f32 1.0, %v5700
  %v5702 = vrcp.pop %v4524
  %v5703 = vmul.f32 %v4524, %v5702
  %v5704 = vsub.f32 1.0, %v5703
  %v5705 = vmul.f32 %v5702, %v5704
  %v5706 = vadd.f32 %v5702, %v5705
  %vm5707 = vweird.f32 %v4524
  %vm5708 = vweird.f32 %v5702
  %vm5709 = vmor %vm5707, %vm5708
  %v5710 = vsel %vm5709, %v5702, %v5706
  %v5711 = vand.u32 2147483647, %v4524
  %vm5712 = vcmp.eq.f32.partialorder %v5711, 8.507059e+37
  %v5713 = vand.u32 %v4524, 2147483648
  %v5714 = vor.u32 1.1754944e-38, %v5713
  %v5715 = vsel %vm5712, %v5714, %v5710
  %v5716 = vmul.f32 1.0, %v5715
  %v5717 = vrcp.pop %v4525
  %v5718 = vmul.f32 %v4525, %v5717
  %v5719 = vsub.f32 1.0, %v5718
  %v5720 = vmul.f32 %v5717, %v5719
  %v5721 = vadd.f32 %v5717, %v5720
  %vm5722 = vweird.f32 %v4525
  %vm5723 = vweird.f32 %v5717
  %vm5724 = vmor %vm5722, %vm5723
  %v5725 = vsel %vm5724, %v5717, %v5721
  %v5726 = vand.u32 2147483647, %v4525
  %vm5727 = vcmp.eq.f32.partialorder %v5726, 8.507059e+37
  %v5728 = vand.u32 %v4525, 2147483648
  %v5729 = vor.u32 1.1754944e-38, %v5728
  %v5730 = vsel %vm5727, %v5729, %v5725
  %v5731 = vmul.f32 1.0, %v5730
  %v5732 = vrcp.pop %v4526
  %v5733 = vmul.f32 %v4526, %v5732
  %v5734 = vsub.f32 1.0, %v5733
  %v5735 = vmul.f32 %v5732, %v5734
  %v5736 = vadd.f32 %v5732, %v5735
  %vm5737 = vweird.f32 %v4526
  %vm5738 = vweird.f32 %v5732
  %vm5739 = vmor %vm5737, %vm5738
  %v5740 = vsel %vm5739, %v5732, %v5736
  %v5741 = vand.u32 2147483647, %v4526
  %vm5742 = vcmp.eq.f32.partialorder %v5741, 8.507059e+37
  %v5743 = vand.u32 %v4526, 2147483648
  %v5744 = vor.u32 1.1754944e-38, %v5743
  %v5745 = vsel %vm5742, %v5744, %v5740
  %v5746 = vmul.f32 1.0, %v5745
  %v5747 = vrcp.pop %v4527
  %v5748 = vmul.f32 %v4527, %v5747
  %v5749 = vsub.f32 1.0, %v5748
  %v5750 = vmul.f32 %v5747, %v5749
  %v5751 = vadd.f32 %v5747, %v5750
  %vm5752 = vweird.f32 %v4527
  %vm5753 = vweird.f32 %v5747
  %vm5754 = vmor %vm5752, %vm5753
  %v5755 = vsel %vm5754, %v5747, %v5751
  %v5756 = vand.u32 2147483647, %v4527
  %vm5757 = vcmp.eq.f32.partialorder %v5756, 8.507059e+37
  %v5758 = vand.u32 %v4527, 2147483648
  %v5759 = vor.u32 1.1754944e-38, %v5758
  %v5760 = vsel %vm5757, %v5759, %v5755
  %v5761 = vmul.f32 1.0, %v5760
  %v5762 = vrcp.pop %v4528
  %v5763 = vmul.f32 %v4528, %v5762
  %v5764 = vsub.f32 1.0, %v5763
  %v5765 = vmul.f32 %v5762, %v5764
  %v5766 = vadd.f32 %v5762, %v5765
  %vm5767 = vweird.f32 %v4528
  %vm5768 = vweird.f32 %v5762
  %vm5769 = vmor %vm5767, %vm5768
  %v5770 = vsel %vm5769, %v5762, %v5766
  %v5771 = vand.u32 2147483647, %v4528
  %vm5772 = vcmp.eq.f32.partialorder %v5771, 8.507059e+37
  %v5773 = vand.u32 %v4528, 2147483648
  %v5774 = vor.u32 1.1754944e-38, %v5773
  %v5775 = vsel %vm5772, %v5774, %v5770
  %v5776 = vmul.f32 1.0, %v5775
  %v5777 = vrcp.pop %v4529
  %v5778 = vmul.f32 %v4529, %v5777
  %v5779 = vsub.f32 1.0, %v5778
  %v5780 = vmul.f32 %v5777, %v5779
  %v5781 = vadd.f32 %v5777, %v5780
  %vm5782 = vweird.f32 %v4529
  %vm5783 = vweird.f32 %v5777
  %vm5784 = vmor %vm5782, %vm5783
  %v5785 = vsel %vm5784, %v5777, %v5781
  %v5786 = vand.u32 2147483647, %v4529
  %vm5787 = vcmp.eq.f32.partialorder %v5786, 8.507059e+37
  %v5788 = vand.u32 %v4529, 2147483648
  %v5789 = vor.u32 1.1754944e-38, %v5788
  %v5790 = vsel %vm5787, %v5789, %v5785
  %v5791 = vmul.f32 1.0, %v5790
  %v5792 = vrcp.pop %v4530
  %v5793 = vmul.f32 %v4530, %v5792
  %v5794 = vsub.f32 1.0, %v5793
  %v5795 = vmul.f32 %v5792, %v5794
  %v5796 = vadd.f32 %v5792, %v5795
  %vm5797 = vweird.f32 %v4530
  %vm5798 = vweird.f32 %v5792
  %vm5799 = vmor %vm5797, %vm5798
  %v5800 = vsel %vm5799, %v5792, %v5796
  %v5801 = vand.u32 2147483647, %v4530
  %vm5802 = vcmp.eq.f32.partialorder %v5801, 8.507059e+37
  %v5803 = vand.u32 %v4530, 2147483648
  %v5804 = vor.u32 1.1754944e-38, %v5803
  %v5805 = vsel %vm5802, %v5804, %v5800
  %v5806 = vmul.f32 1.0, %v5805
  %v5807 = vrcp.pop %v4531
  %v5808 = vmul.f32 %v4531, %v5807
  %v5809 = vsub.f32 1.0, %v5808
  %v5810 = vmul.f32 %v5807, %v5809
  %v5811 = vadd.f32 %v5807, %v5810
  %vm5812 = vweird.f32 %v4531
  %vm5813 = vweird.f32 %v5807
  %vm5814 = vmor %vm5812, %vm5813
  %v5815 = vsel %vm5814, %v5807, %v5811
  %v5816 = vand.u32 2147483647, %v4531
  %vm5817 = vcmp.eq.f32.partialorder %v5816, 8.507059e+37
  %v5818 = vand.u32 %v4531, 2147483648
  %v5819 = vor.u32 1.1754944e-38, %v5818
  %v5820 = vsel %vm5817, %v5819, %v5815
  %v5821 = vmul.f32 1.0, %v5820
  %v5822 = vrcp.pop %v4532
  %v5823 = vmul.f32 %v4532, %v5822
  %v5824 = vsub.f32 1.0, %v5823
  %v5825 = vmul.f32 %v5822, %v5824
  %v5826 = vadd.f32 %v5822, %v5825
  %vm5827 = vweird.f32 %v4532
  %vm5828 = vweird.f32 %v5822
  %vm5829 = vmor %vm5827, %vm5828
  %v5830 = vsel %vm5829, %v5822, %v5826
  %v5831 = vand.u32 2147483647, %v4532
  %vm5832 = vcmp.eq.f32.partialorder %v5831, 8.507059e+37
  %v5833 = vand.u32 %v4532, 2147483648
  %v5834 = vor.u32 1.1754944e-38, %v5833
  %v5835 = vsel %vm5832, %v5834, %v5830
  %v5836 = vmul.f32 1.0, %v5835
  %v5837 = vrcp.pop %v4533
  %v5838 = vmul.f32 %v4533, %v5837
  %v5839 = vsub.f32 1.0, %v5838
  %v5840 = vmul.f32 %v5837, %v5839
  %v5841 = vadd.f32 %v5837, %v5840
  %vm5842 = vweird.f32 %v4533
  %vm5843 = vweird.f32 %v5837
  %vm5844 = vmor %vm5842, %vm5843
  %v5845 = vsel %vm5844, %v5837, %v5841
  %v5846 = vand.u32 2147483647, %v4533
  %vm5847 = vcmp.eq.f32.partialorder %v5846, 8.507059e+37
  %v5848 = vand.u32 %v4533, 2147483648
  %v5849 = vor.u32 1.1754944e-38, %v5848
  %v5850 = vsel %vm5847, %v5849, %v5845
  %v5851 = vmul.f32 1.0, %v5850
  %v5852 = vrcp.pop %v4534
  %v5853 = vmul.f32 %v4534, %v5852
  %v5854 = vsub.f32 1.0, %v5853
  %v5855 = vmul.f32 %v5852, %v5854
  %v5856 = vadd.f32 %v5852, %v5855
  %vm5857 = vweird.f32 %v4534
  %vm5858 = vweird.f32 %v5852
  %vm5859 = vmor %vm5857, %vm5858
  %v5860 = vsel %vm5859, %v5852, %v5856
  %v5861 = vand.u32 2147483647, %v4534
  %vm5862 = vcmp.eq.f32.partialorder %v5861, 8.507059e+37
  %v5863 = vand.u32 %v4534, 2147483648
  %v5864 = vor.u32 1.1754944e-38, %v5863
  %v5865 = vsel %vm5862, %v5864, %v5860
  %v5866 = vmul.f32 1.0, %v5865
  %v5867 = vrcp.pop %v4535
  %v5868 = vmul.f32 %v4535, %v5867
  %v5869 = vsub.f32 1.0, %v5868
  %v5870 = vmul.f32 %v5867, %v5869
  %v5871 = vadd.f32 %v5867, %v5870
  %vm5872 = vweird.f32 %v4535
  %vm5873 = vweird.f32 %v5867
  %vm5874 = vmor %vm5872, %vm5873
  %v5875 = vsel %vm5874, %v5867, %v5871
  %v5876 = vand.u32 2147483647, %v4535
  %vm5877 = vcmp.eq.f32.partialorder %v5876, 8.507059e+37
  %v5878 = vand.u32 %v4535, 2147483648
  %v5879 = vor.u32 1.1754944e-38, %v5878
  %v5880 = vsel %vm5877, %v5879, %v5875
  %v5881 = vmul.f32 1.0, %v5880
  %v5882 = vrcp.pop %v4536
  %v5883 = vmul.f32 %v4536, %v5882
  %v5884 = vsub.f32 1.0, %v5883
  %v5885 = vmul.f32 %v5882, %v5884
  %v5886 = vadd.f32 %v5882, %v5885
  %vm5887 = vweird.f32 %v4536
  %vm5888 = vweird.f32 %v5882
  %vm5889 = vmor %vm5887, %vm5888
  %v5890 = vsel %vm5889, %v5882, %v5886
  %v5891 = vand.u32 2147483647, %v4536
  %vm5892 = vcmp.eq.f32.partialorder %v5891, 8.507059e+37
  %v5893 = vand.u32 %v4536, 2147483648
  %v5894 = vor.u32 1.1754944e-38, %v5893
  %v5895 = vsel %vm5892, %v5894, %v5890
  %v5896 = vmul.f32 1.0, %v5895
  %v5897 = vrcp.pop %v4537
  %v5898 = vmul.f32 %v4537, %v5897
  %v5899 = vsub.f32 1.0, %v5898
  %v5900 = vmul.f32 %v5897, %v5899
  %v5901 = vadd.f32 %v5897, %v5900
  %vm5902 = vweird.f32 %v4537
  %vm5903 = vweird.f32 %v5897
  %vm5904 = vmor %vm5902, %vm5903
  %v5905 = vsel %vm5904, %v5897, %v5901
  %v5906 = vand.u32 2147483647, %v4537
  %vm5907 = vcmp.eq.f32.partialorder %v5906, 8.507059e+37
  %v5908 = vand.u32 %v4537, 2147483648
  %v5909 = vor.u32 1.1754944e-38, %v5908
  %v5910 = vsel %vm5907, %v5909, %v5905
  %v5911 = vmul.f32 1.0, %v5910
  %v5912 = vrcp.pop %v4538
  %v5913 = vmul.f32 %v4538, %v5912
  %v5914 = vsub.f32 1.0, %v5913
  %v5915 = vmul.f32 %v5912, %v5914
  %v5916 = vadd.f32 %v5912, %v5915
  %vm5917 = vweird.f32 %v4538
  %vm5918 = vweird.f32 %v5912
  %vm5919 = vmor %vm5917, %vm5918
  %v5920 = vsel %vm5919, %v5912, %v5916
  %v5921 = vand.u32 2147483647, %v4538
  %vm5922 = vcmp.eq.f32.partialorder %v5921, 8.507059e+37
  %v5923 = vand.u32 %v4538, 2147483648
  %v5924 = vor.u32 1.1754944e-38, %v5923
  %v5925 = vsel %vm5922, %v5924, %v5920
  %v5926 = vmul.f32 1.0, %v5925
  %v5927 = vrcp.pop %v4539
  %v5928 = vmul.f32 %v4539, %v5927
  %v5929 = vsub.f32 1.0, %v5928
  %v5930 = vmul.f32 %v5927, %v5929
  %v5931 = vadd.f32 %v5927, %v5930
  %vm5932 = vweird.f32 %v4539
  %vm5933 = vweird.f32 %v5927
  %vm5934 = vmor %vm5932, %vm5933
  %v5935 = vsel %vm5934, %v5927, %v5931
  %v5936 = vand.u32 2147483647, %v4539
  %vm5937 = vcmp.eq.f32.partialorder %v5936, 8.507059e+37
  %v5938 = vand.u32 %v4539, 2147483648
  %v5939 = vor.u32 1.1754944e-38, %v5938
  %v5940 = vsel %vm5937, %v5939, %v5935
  %v5941 = vmul.f32 1.0, %v5940
  %v5942 = vrcp.pop %v4540
  %v5943 = vmul.f32 %v4540, %v5942
  %v5944 = vsub.f32 1.0, %v5943
  %v5945 = vmul.f32 %v5942, %v5944
  %v5946 = vadd.f32 %v5942, %v5945
  %vm5947 = vweird.f32 %v4540
  %vm5948 = vweird.f32 %v5942
  %vm5949 = vmor %vm5947, %vm5948
  %v5950 = vsel %vm5949, %v5942, %v5946
  %v5951 = vand.u32 2147483647, %v4540
  %vm5952 = vcmp.eq.f32.partialorder %v5951, 8.507059e+37
  %v5953 = vand.u32 %v4540, 2147483648
  %v5954 = vor.u32 1.1754944e-38, %v5953
  %v5955 = vsel %vm5952, %v5954, %v5950
  %v5956 = vmul.f32 1.0, %v5955
  %v5957 = vrcp.pop %v4541
  %v5958 = vmul.f32 %v4541, %v5957
  %v5959 = vsub.f32 1.0, %v5958
  %v5960 = vmul.f32 %v5957, %v5959
  %v5961 = vadd.f32 %v5957, %v5960
  %vm5962 = vweird.f32 %v4541
  %vm5963 = vweird.f32 %v5957
  %vm5964 = vmor %vm5962, %vm5963
  %v5965 = vsel %vm5964, %v5957, %v5961
  %v5966 = vand.u32 2147483647, %v4541
  %vm5967 = vcmp.eq.f32.partialorder %v5966, 8.507059e+37
  %v5968 = vand.u32 %v4541, 2147483648
  %v5969 = vor.u32 1.1754944e-38, %v5968
  %v5970 = vsel %vm5967, %v5969, %v5965
  %v5971 = vmul.f32 1.0, %v5970
  %v5972 = vrcp.pop %v4542
  %v5973 = vmul.f32 %v4542, %v5972
  %v5974 = vsub.f32 1.0, %v5973
  %v5975 = vmul.f32 %v5972, %v5974
  %v5976 = vadd.f32 %v5972, %v5975
  %vm5977 = vweird.f32 %v4542
  %vm5978 = vweird.f32 %v5972
  %vm5979 = vmor %vm5977, %vm5978
  %v5980 = vsel %vm5979, %v5972, %v5976
  %v5981 = vand.u32 2147483647, %v4542
  %vm5982 = vcmp.eq.f32.partialorder %v5981, 8.507059e+37
  %v5983 = vand.u32 %v4542, 2147483648
  %v5984 = vor.u32 1.1754944e-38, %v5983
  %v5985 = vsel %vm5982, %v5984, %v5980
  %v5986 = vmul.f32 1.0, %v5985
  %v5987 = vrcp.pop %v4543
  %v5988 = vmul.f32 %v4543, %v5987
  %v5989 = vsub.f32 1.0, %v5988
  %v5990 = vmul.f32 %v5987, %v5989
  %v5991 = vadd.f32 %v5987, %v5990
  %vm5992 = vweird.f32 %v4543
  %vm5993 = vweird.f32 %v5987
  %vm5994 = vmor %vm5992, %vm5993
  %v5995 = vsel %vm5994, %v5987, %v5991
  %v5996 = vand.u32 2147483647, %v4543
  %vm5997 = vcmp.eq.f32.partialorder %v5996, 8.507059e+37
  %v5998 = vand.u32 %v4543, 2147483648
  %v5999 = vor.u32 1.1754944e-38, %v5998
  %v6000 = vsel %vm5997, %v5999, %v5995
  %v6001 = vmul.f32 1.0, %v6000
  %v6002 = vrcp.pop %v4544
  %v6003 = vmul.f32 %v4544, %v6002
  %v6004 = vsub.f32 1.0, %v6003
  %v6005 = vmul.f32 %v6002, %v6004
  %v6006 = vadd.f32 %v6002, %v6005
  %vm6007 = vweird.f32 %v4544
  %vm6008 = vweird.f32 %v6002
  %vm6009 = vmor %vm6007, %vm6008
  %v6010 = vsel %vm6009, %v6002, %v6006
  %v6011 = vand.u32 2147483647, %v4544
  %vm6012 = vcmp.eq.f32.partialorder %v6011, 8.507059e+37
  %v6013 = vand.u32 %v4544, 2147483648
  %v6014 = vor.u32 1.1754944e-38, %v6013
  %v6015 = vsel %vm6012, %v6014, %v6010
  %v6016 = vmul.f32 1.0, %v6015
  %v6017 = vrcp.pop %v4545
  %v6018 = vmul.f32 %v4545, %v6017
  %v6019 = vsub.f32 1.0, %v6018
  %v6020 = vmul.f32 %v6017, %v6019
  %v6021 = vadd.f32 %v6017, %v6020
  %vm6022 = vweird.f32 %v4545
  %vm6023 = vweird.f32 %v6017
  %vm6024 = vmor %vm6022, %vm6023
  %v6025 = vsel %vm6024, %v6017, %v6021
  %v6026 = vand.u32 2147483647, %v4545
  %vm6027 = vcmp.eq.f32.partialorder %v6026, 8.507059e+37
  %v6028 = vand.u32 %v4545, 2147483648
  %v6029 = vor.u32 1.1754944e-38, %v6028
  %v6030 = vsel %vm6027, %v6029, %v6025
  %v6031 = vmul.f32 1.0, %v6030
  %v6032 = vrcp.pop %v4546
  %v6033 = vmul.f32 %v4546, %v6032
  %v6034 = vsub.f32 1.0, %v6033
  %v6035 = vmul.f32 %v6032, %v6034
  %v6036 = vadd.f32 %v6032, %v6035
  %vm6037 = vweird.f32 %v4546
  %vm6038 = vweird.f32 %v6032
  %vm6039 = vmor %vm6037, %vm6038
  %v6040 = vsel %vm6039, %v6032, %v6036
  %v6041 = vand.u32 2147483647, %v4546
  %vm6042 = vcmp.eq.f32.partialorder %v6041, 8.507059e+37
  %v6043 = vand.u32 %v4546, 2147483648
  %v6044 = vor.u32 1.1754944e-38, %v6043
  %v6045 = vsel %vm6042, %v6044, %v6040
  %v6046 = vmul.f32 1.0, %v6045
  %v6047 = vrcp.pop %v4547
  %v6048 = vmul.f32 %v4547, %v6047
  %v6049 = vsub.f32 1.0, %v6048
  %v6050 = vmul.f32 %v6047, %v6049
  %v6051 = vadd.f32 %v6047, %v6050
  %vm6052 = vweird.f32 %v4547
  %vm6053 = vweird.f32 %v6047
  %vm6054 = vmor %vm6052, %vm6053
  %v6055 = vsel %vm6054, %v6047, %v6051
  %v6056 = vand.u32 2147483647, %v4547
  %vm6057 = vcmp.eq.f32.partialorder %v6056, 8.507059e+37
  %v6058 = vand.u32 %v4547, 2147483648
  %v6059 = vor.u32 1.1754944e-38, %v6058
  %v6060 = vsel %vm6057, %v6059, %v6055
  %v6061 = vmul.f32 1.0, %v6060
  %v6062 = vrcp.pop %v4548
  %v6063 = vmul.f32 %v4548, %v6062
  %v6064 = vsub.f32 1.0, %v6063
  %v6065 = vmul.f32 %v6062, %v6064
  %v6066 = vadd.f32 %v6062, %v6065
  %vm6067 = vweird.f32 %v4548
  %vm6068 = vweird.f32 %v6062
  %vm6069 = vmor %vm6067, %vm6068
  %v6070 = vsel %vm6069, %v6062, %v6066
  %v6071 = vand.u32 2147483647, %v4548
  %vm6072 = vcmp.eq.f32.partialorder %v6071, 8.507059e+37
  %v6073 = vand.u32 %v4548, 2147483648
  %v6074 = vor.u32 1.1754944e-38, %v6073
  %v6075 = vsel %vm6072, %v6074, %v6070
  %v6076 = vmul.f32 1.0, %v6075
  %v6077 = vrcp.pop %v4549
  %v6078 = vmul.f32 %v4549, %v6077
  %v6079 = vsub.f32 1.0, %v6078
  %v6080 = vmul.f32 %v6077, %v6079
  %v6081 = vadd.f32 %v6077, %v6080
  %vm6082 = vweird.f32 %v4549
  %vm6083 = vweird.f32 %v6077
  %vm6084 = vmor %vm6082, %vm6083
  %v6085 = vsel %vm6084, %v6077, %v6081
  %v6086 = vand.u32 2147483647, %v4549
  %vm6087 = vcmp.eq.f32.partialorder %v6086, 8.507059e+37
  %v6088 = vand.u32 %v4549, 2147483648
  %v6089 = vor.u32 1.1754944e-38, %v6088
  %v6090 = vsel %vm6087, %v6089, %v6085
  %v6091 = vmul.f32 1.0, %v6090
  %v6092 = vrcp.pop %v4550
  %v6093 = vmul.f32 %v4550, %v6092
  %v6094 = vsub.f32 1.0, %v6093
  %v6095 = vmul.f32 %v6092, %v6094
  %v6096 = vadd.f32 %v6092, %v6095
  %vm6097 = vweird.f32 %v4550
  %vm6098 = vweird.f32 %v6092
  %vm6099 = vmor %vm6097, %vm6098
  %v6100 = vsel %vm6099, %v6092, %v6096
  %v6101 = vand.u32 2147483647, %v4550
  %vm6102 = vcmp.eq.f32.partialorder %v6101, 8.507059e+37
  %v6103 = vand.u32 %v4550, 2147483648
  %v6104 = vor.u32 1.1754944e-38, %v6103
  %v6105 = vsel %vm6102, %v6104, %v6100
  %v6106 = vmul.f32 1.0, %v6105
  %v6107 = vrcp.pop %v4551
  %v6108 = vmul.f32 %v4551, %v6107
  %v6109 = vsub.f32 1.0, %v6108
  %v6110 = vmul.f32 %v6107, %v6109
  %v6111 = vadd.f32 %v6107, %v6110
  %vm6112 = vweird.f32 %v4551
  %vm6113 = vweird.f32 %v6107
  %vm6114 = vmor %vm6112, %vm6113
  %v6115 = vsel %vm6114, %v6107, %v6111
  %v6116 = vand.u32 2147483647, %v4551
  %vm6117 = vcmp.eq.f32.partialorder %v6116, 8.507059e+37
  %v6118 = vand.u32 %v4551, 2147483648
  %v6119 = vor.u32 1.1754944e-38, %v6118
  %v6120 = vsel %vm6117, %v6119, %v6115
  %v6121 = vmul.f32 1.0, %v6120
  %v6122 = vrcp.pop %v4552
  %v6123 = vmul.f32 %v4552, %v6122
  %v6124 = vsub.f32 1.0, %v6123
  %v6125 = vmul.f32 %v6122, %v6124
  %v6126 = vadd.f32 %v6122, %v6125
  %vm6127 = vweird.f32 %v4552
  %vm6128 = vweird.f32 %v6122
  %vm6129 = vmor %vm6127, %vm6128
  %v6130 = vsel %vm6129, %v6122, %v6126
  %v6131 = vand.u32 2147483647, %v4552
  %vm6132 = vcmp.eq.f32.partialorder %v6131, 8.507059e+37
  %v6133 = vand.u32 %v4552, 2147483648
  %v6134 = vor.u32 1.1754944e-38, %v6133
  %v6135 = vsel %vm6132, %v6134, %v6130
  %v6136 = vmul.f32 1.0, %v6135
  %v6137 = vrcp.pop %v4553
  %v6138 = vmul.f32 %v4553, %v6137
  %v6139 = vsub.f32 1.0, %v6138
  %v6140 = vmul.f32 %v6137, %v6139
  %v6141 = vadd.f32 %v6137, %v6140
  %vm6142 = vweird.f32 %v4553
  %vm6143 = vweird.f32 %v6137
  %vm6144 = vmor %vm6142, %vm6143
  %v6145 = vsel %vm6144, %v6137, %v6141
  %v6146 = vand.u32 2147483647, %v4553
  %vm6147 = vcmp.eq.f32.partialorder %v6146, 8.507059e+37
  %v6148 = vand.u32 %v4553, 2147483648
  %v6149 = vor.u32 1.1754944e-38, %v6148
  %v6150 = vsel %vm6147, %v6149, %v6145
  %v6151 = vmul.f32 1.0, %v6150
  %v6152 = vrcp.pop %v4554
  %v6153 = vmul.f32 %v4554, %v6152
  %v6154 = vsub.f32 1.0, %v6153
  %v6155 = vmul.f32 %v6152, %v6154
  %v6156 = vadd.f32 %v6152, %v6155
  %vm6157 = vweird.f32 %v4554
  %vm6158 = vweird.f32 %v6152
  %vm6159 = vmor %vm6157, %vm6158
  %v6160 = vsel %vm6159, %v6152, %v6156
  %v6161 = vand.u32 2147483647, %v4554
  %vm6162 = vcmp.eq.f32.partialorder %v6161, 8.507059e+37
  %v6163 = vand.u32 %v4554, 2147483648
  %v6164 = vor.u32 1.1754944e-38, %v6163
  %v6165 = vsel %vm6162, %v6164, %v6160
  %v6166 = vmul.f32 1.0, %v6165
  %v6167 = vrcp.pop %v4555
  %v6168 = vmul.f32 %v4555, %v6167
  %v6169 = vsub.f32 1.0, %v6168
  %v6170 = vmul.f32 %v6167, %v6169
  %v6171 = vadd.f32 %v6167, %v6170
  %vm6172 = vweird.f32 %v4555
  %vm6173 = vweird.f32 %v6167
  %vm6174 = vmor %vm6172, %vm6173
  %v6175 = vsel %vm6174, %v6167, %v6171
  %v6176 = vand.u32 2147483647, %v4555
  %vm6177 = vcmp.eq.f32.partialorder %v6176, 8.507059e+37
  %v6178 = vand.u32 %v4555, 2147483648
  %v6179 = vor.u32 1.1754944e-38, %v6178
  %v6180 = vsel %vm6177, %v6179, %v6175
  %v6181 = vmul.f32 1.0, %v6180
  %v6182 = vrcp.pop %v4556
  %v6183 = vmul.f32 %v4556, %v6182
  %v6184 = vsub.f32 1.0, %v6183
  %v6185 = vmul.f32 %v6182, %v6184
  %v6186 = vadd.f32 %v6182, %v6185
  %vm6187 = vweird.f32 %v4556
  %vm6188 = vweird.f32 %v6182
  %vm6189 = vmor %vm6187, %vm6188
  %v6190 = vsel %vm6189, %v6182, %v6186
  %v6191 = vand.u32 2147483647, %v4556
  %vm6192 = vcmp.eq.f32.partialorder %v6191, 8.507059e+37
  %v6193 = vand.u32 %v4556, 2147483648
  %v6194 = vor.u32 1.1754944e-38, %v6193
  %v6195 = vsel %vm6192, %v6194, %v6190
  %v6196 = vmul.f32 1.0, %v6195
  %v6197 = vrcp.pop %v4557
  %v6198 = vmul.f32 %v4557, %v6197
  %v6199 = vsub.f32 1.0, %v6198
  %v6200 = vmul.f32 %v6197, %v6199
  %v6201 = vadd.f32 %v6197, %v6200
  %vm6202 = vweird.f32 %v4557
  %vm6203 = vweird.f32 %v6197
  %vm6204 = vmor %vm6202, %vm6203
  %v6205 = vsel %vm6204, %v6197, %v6201
  %v6206 = vand.u32 2147483647, %v4557
  %vm6207 = vcmp.eq.f32.partialorder %v6206, 8.507059e+37
  %v6208 = vand.u32 %v4557, 2147483648
  %v6209 = vor.u32 1.1754944e-38, %v6208
  %v6210 = vsel %vm6207, %v6209, %v6205
  %v6211 = vmul.f32 1.0, %v6210
  %v6212 = vrcp.pop %v4558
  %v6213 = vmul.f32 %v4558, %v6212
  %v6214 = vsub.f32 1.0, %v6213
  %v6215 = vmul.f32 %v6212, %v6214
  %v6216 = vadd.f32 %v6212, %v6215
  %vm6217 = vweird.f32 %v4558
  %vm6218 = vweird.f32 %v6212
  %vm6219 = vmor %vm6217, %vm6218
  %v6220 = vsel %vm6219, %v6212, %v6216
  %v6221 = vand.u32 2147483647, %v4558
  %vm6222 = vcmp.eq.f32.partialorder %v6221, 8.507059e+37
  %v6223 = vand.u32 %v4558, 2147483648
  %v6224 = vor.u32 1.1754944e-38, %v6223
  %v6225 = vsel %vm6222, %v6224, %v6220
  %v6226 = vmul.f32 1.0, %v6225
  %v6227 = vrcp.pop %v4559
  %v6228 = vmul.f32 %v4559, %v6227
  %v6229 = vsub.f32 1.0, %v6228
  %v6230 = vmul.f32 %v6227, %v6229
  %v6231 = vadd.f32 %v6227, %v6230
  %vm6232 = vweird.f32 %v4559
  %vm6233 = vweird.f32 %v6227
  %vm6234 = vmor %vm6232, %vm6233
  %v6235 = vsel %vm6234, %v6227, %v6231
  %v6236 = vand.u32 2147483647, %v4559
  %vm6237 = vcmp.eq.f32.partialorder %v6236, 8.507059e+37
  %v6238 = vand.u32 %v4559, 2147483648
  %v6239 = vor.u32 1.1754944e-38, %v6238
  %v6240 = vsel %vm6237, %v6239, %v6235
  %v6241 = vmul.f32 1.0, %v6240
  %v6242 = vrcp.pop %v4560
  %v6243 = vmul.f32 %v4560, %v6242
  %v6244 = vsub.f32 1.0, %v6243
  %v6245 = vmul.f32 %v6242, %v6244
  %v6246 = vadd.f32 %v6242, %v6245
  %vm6247 = vweird.f32 %v4560
  %vm6248 = vweird.f32 %v6242
  %vm6249 = vmor %vm6247, %vm6248
  %v6250 = vsel %vm6249, %v6242, %v6246
  %v6251 = vand.u32 2147483647, %v4560
  %vm6252 = vcmp.eq.f32.partialorder %v6251, 8.507059e+37
  %v6253 = vand.u32 %v4560, 2147483648
  %v6254 = vor.u32 1.1754944e-38, %v6253
  %v6255 = vsel %vm6252, %v6254, %v6250
  %v6256 = vmul.f32 1.0, %v6255
  %v6257 = vrcp.pop %v4561
  %v6258 = vmul.f32 %v4561, %v6257
  %v6259 = vsub.f32 1.0, %v6258
  %v6260 = vmul.f32 %v6257, %v6259
  %v6261 = vadd.f32 %v6257, %v6260
  %vm6262 = vweird.f32 %v4561
  %vm6263 = vweird.f32 %v6257
  %vm6264 = vmor %vm6262, %vm6263
  %v6265 = vsel %vm6264, %v6257, %v6261
  %v6266 = vand.u32 2147483647, %v4561
  %vm6267 = vcmp.eq.f32.partialorder %v6266, 8.507059e+37
  %v6268 = vand.u32 %v4561, 2147483648
  %v6269 = vor.u32 1.1754944e-38, %v6268
  %v6270 = vsel %vm6267, %v6269, %v6265
  %v6271 = vmul.f32 1.0, %v6270
  %v6272 = vrcp.pop %v4562
  %v6273 = vmul.f32 %v4562, %v6272
  %v6274 = vsub.f32 1.0, %v6273
  %v6275 = vmul.f32 %v6272, %v6274
  %v6276 = vadd.f32 %v6272, %v6275
  %vm6277 = vweird.f32 %v4562
  %vm6278 = vweird.f32 %v6272
  %vm6279 = vmor %vm6277, %vm6278
  %v6280 = vsel %vm6279, %v6272, %v6276
  %v6281 = vand.u32 2147483647, %v4562
  %vm6282 = vcmp.eq.f32.partialorder %v6281, 8.507059e+37
  %v6283 = vand.u32 %v4562, 2147483648
  %v6284 = vor.u32 1.1754944e-38, %v6283
  %v6285 = vsel %vm6282, %v6284, %v6280
  %v6286 = vmul.f32 1.0, %v6285
  %v6287 = vrcp.pop %v4563
  %v6288 = vmul.f32 %v4563, %v6287
  %v6289 = vsub.f32 1.0, %v6288
  %v6290 = vmul.f32 %v6287, %v6289
  %v6291 = vadd.f32 %v6287, %v6290
  %vm6292 = vweird.f32 %v4563
  %vm6293 = vweird.f32 %v6287
  %vm6294 = vmor %vm6292, %vm6293
  %v6295 = vsel %vm6294, %v6287, %v6291
  %v6296 = vand.u32 2147483647, %v4563
  %vm6297 = vcmp.eq.f32.partialorder %v6296, 8.507059e+37
  %v6298 = vand.u32 %v4563, 2147483648
  %v6299 = vor.u32 1.1754944e-38, %v6298
  %v6300 = vsel %vm6297, %v6299, %v6295
  %v6301 = vmul.f32 1.0, %v6300
  %v6302 = vrcp.pop %v4564
  %v6303 = vmul.f32 %v4564, %v6302
  %v6304 = vsub.f32 1.0, %v6303
  %v6305 = vmul.f32 %v6302, %v6304
  %v6306 = vadd.f32 %v6302, %v6305
  %vm6307 = vweird.f32 %v4564
  %vm6308 = vweird.f32 %v6302
  %vm6309 = vmor %vm6307, %vm6308
  %v6310 = vsel %vm6309, %v6302, %v6306
  %v6311 = vand.u32 2147483647, %v4564
  %vm6312 = vcmp.eq.f32.partialorder %v6311, 8.507059e+37
  %v6313 = vand.u32 %v4564, 2147483648
  %v6314 = vor.u32 1.1754944e-38, %v6313
  %v6315 = vsel %vm6312, %v6314, %v6310
  %v6316 = vmul.f32 1.0, %v6315
  %v6317 = vrcp.pop %v4565
  %v6318 = vmul.f32 %v4565, %v6317
  %v6319 = vsub.f32 1.0, %v6318
  %v6320 = vmul.f32 %v6317, %v6319
  %v6321 = vadd.f32 %v6317, %v6320
  %vm6322 = vweird.f32 %v4565
  %vm6323 = vweird.f32 %v6317
  %vm6324 = vmor %vm6322, %vm6323
  %v6325 = vsel %vm6324, %v6317, %v6321
  %v6326 = vand.u32 2147483647, %v4565
  %vm6327 = vcmp.eq.f32.partialorder %v6326, 8.507059e+37
  %v6328 = vand.u32 %v4565, 2147483648
  %v6329 = vor.u32 1.1754944e-38, %v6328
  %v6330 = vsel %vm6327, %v6329, %v6325
  %v6331 = vmul.f32 1.0, %v6330
  %v6332 = vrcp.pop %v4566
  %v6333 = vmul.f32 %v4566, %v6332
  %v6334 = vsub.f32 1.0, %v6333
  %v6335 = vmul.f32 %v6332, %v6334
  %v6336 = vadd.f32 %v6332, %v6335
  %vm6337 = vweird.f32 %v4566
  %vm6338 = vweird.f32 %v6332
  %vm6339 = vmor %vm6337, %vm6338
  %v6340 = vsel %vm6339, %v6332, %v6336
  %v6341 = vand.u32 2147483647, %v4566
  %vm6342 = vcmp.eq.f32.partialorder %v6341, 8.507059e+37
  %v6343 = vand.u32 %v4566, 2147483648
  %v6344 = vor.u32 1.1754944e-38, %v6343
  %v6345 = vsel %vm6342, %v6344, %v6340
  %v6346 = vmul.f32 1.0, %v6345
  %v6347 = vrcp.pop %v4567
  %v6348 = vmul.f32 %v4567, %v6347
  %v6349 = vsub.f32 1.0, %v6348
  %v6350 = vmul.f32 %v6347, %v6349
  %v6351 = vadd.f32 %v6347, %v6350
  %vm6352 = vweird.f32 %v4567
  %vm6353 = vweird.f32 %v6347
  %vm6354 = vmor %vm6352, %vm6353
  %v6355 = vsel %vm6354, %v6347, %v6351
  %v6356 = vand.u32 2147483647, %v4567
  %vm6357 = vcmp.eq.f32.partialorder %v6356, 8.507059e+37
  %v6358 = vand.u32 %v4567, 2147483648
  %v6359 = vor.u32 1.1754944e-38, %v6358
  %v6360 = vsel %vm6357, %v6359, %v6355
  %v6361 = vmul.f32 1.0, %v6360
  %v6362 = vrcp.pop %v4568
  %v6363 = vmul.f32 %v4568, %v6362
  %v6364 = vsub.f32 1.0, %v6363
  %v6365 = vmul.f32 %v6362, %v6364
  %v6366 = vadd.f32 %v6362, %v6365
  %vm6367 = vweird.f32 %v4568
  %vm6368 = vweird.f32 %v6362
  %vm6369 = vmor %vm6367, %vm6368
  %v6370 = vsel %vm6369, %v6362, %v6366
  %v6371 = vand.u32 2147483647, %v4568
  %vm6372 = vcmp.eq.f32.partialorder %v6371, 8.507059e+37
  %v6373 = vand.u32 %v4568, 2147483648
  %v6374 = vor.u32 1.1754944e-38, %v6373
  %v6375 = vsel %vm6372, %v6374, %v6370
  %v6376 = vmul.f32 1.0, %v6375
  %v6377 = vrcp.pop %v4569
  %v6378 = vmul.f32 %v4569, %v6377
  %v6379 = vsub.f32 1.0, %v6378
  %v6380 = vmul.f32 %v6377, %v6379
  %v6381 = vadd.f32 %v6377, %v6380
  %vm6382 = vweird.f32 %v4569
  %vm6383 = vweird.f32 %v6377
  %vm6384 = vmor %vm6382, %vm6383
  %v6385 = vsel %vm6384, %v6377, %v6381
  %v6386 = vand.u32 2147483647, %v4569
  %vm6387 = vcmp.eq.f32.partialorder %v6386, 8.507059e+37
  %v6388 = vand.u32 %v4569, 2147483648
  %v6389 = vor.u32 1.1754944e-38, %v6388
  %v6390 = vsel %vm6387, %v6389, %v6385
  %v6391 = vmul.f32 1.0, %v6390
  %v6392 = vrcp.pop %v4570
  %v6393 = vmul.f32 %v4570, %v6392
  %v6394 = vsub.f32 1.0, %v6393
  %v6395 = vmul.f32 %v6392, %v6394
  %v6396 = vadd.f32 %v6392, %v6395
  %vm6397 = vweird.f32 %v4570
  %vm6398 = vweird.f32 %v6392
  %vm6399 = vmor %vm6397, %vm6398
  %v6400 = vsel %vm6399, %v6392, %v6396
  %v6401 = vand.u32 2147483647, %v4570
  %vm6402 = vcmp.eq.f32.partialorder %v6401, 8.507059e+37
  %v6403 = vand.u32 %v4570, 2147483648
  %v6404 = vor.u32 1.1754944e-38, %v6403
  %v6405 = vsel %vm6402, %v6404, %v6400
  %v6406 = vmul.f32 1.0, %v6405
  %v6407 = vrcp.pop %v4571
  %v6408 = vmul.f32 %v4571, %v6407
  %v6409 = vsub.f32 1.0, %v6408
  %v6410 = vmul.f32 %v6407, %v6409
  %v6411 = vadd.f32 %v6407, %v6410
  %vm6412 = vweird.f32 %v4571
  %vm6413 = vweird.f32 %v6407
  %vm6414 = vmor %vm6412, %vm6413
  %v6415 = vsel %vm6414, %v6407, %v6411
  %v6416 = vand.u32 2147483647, %v4571
  %vm6417 = vcmp.eq.f32.partialorder %v6416, 8.507059e+37
  %v6418 = vand.u32 %v4571, 2147483648
  %v6419 = vor.u32 1.1754944e-38, %v6418
  %v6420 = vsel %vm6417, %v6419, %v6415
  %v6421 = vmul.f32 1.0, %v6420
  %v6422 = vrcp.pop %v4572
  %v6423 = vmul.f32 %v4572, %v6422
  %v6424 = vsub.f32 1.0, %v6423
  %v6425 = vmul.f32 %v6422, %v6424
  %v6426 = vadd.f32 %v6422, %v6425
  %vm6427 = vweird.f32 %v4572
  %vm6428 = vweird.f32 %v6422
  %vm6429 = vmor %vm6427, %vm6428
  %v6430 = vsel %vm6429, %v6422, %v6426
  %v6431 = vand.u32 2147483647, %v4572
  %vm6432 = vcmp.eq.f32.partialorder %v6431, 8.507059e+37
  %v6433 = vand.u32 %v4572, 2147483648
  %v6434 = vor.u32 1.1754944e-38, %v6433
  %v6435 = vsel %vm6432, %v6434, %v6430
  %v6436 = vmul.f32 1.0, %v6435
  %v6437 = vrcp.pop %v4573
  %v6438 = vmul.f32 %v4573, %v6437
  %v6439 = vsub.f32 1.0, %v6438
  %v6440 = vmul.f32 %v6437, %v6439
  %v6441 = vadd.f32 %v6437, %v6440
  %vm6442 = vweird.f32 %v4573
  %vm6443 = vweird.f32 %v6437
  %vm6444 = vmor %vm6442, %vm6443
  %v6445 = vsel %vm6444, %v6437, %v6441
  %v6446 = vand.u32 2147483647, %v4573
  %vm6447 = vcmp.eq.f32.partialorder %v6446, 8.507059e+37
  %v6448 = vand.u32 %v4573, 2147483648
  %v6449 = vor.u32 1.1754944e-38, %v6448
  %v6450 = vsel %vm6447, %v6449, %v6445
  %v6451 = vmul.f32 1.0, %v6450
  %v6452 = vrcp.pop %v4574
  %v6453 = vmul.f32 %v4574, %v6452
  %v6454 = vsub.f32 1.0, %v6453
  %v6455 = vmul.f32 %v6452, %v6454
  %v6456 = vadd.f32 %v6452, %v6455
  %vm6457 = vweird.f32 %v4574
  %vm6458 = vweird.f32 %v6452
  %vm6459 = vmor %vm6457, %vm6458
  %v6460 = vsel %vm6459, %v6452, %v6456
  %v6461 = vand.u32 2147483647, %v4574
  %vm6462 = vcmp.eq.f32.partialorder %v6461, 8.507059e+37
  %v6463 = vand.u32 %v4574, 2147483648
  %v6464 = vor.u32 1.1754944e-38, %v6463
  %v6465 = vsel %vm6462, %v6464, %v6460
  %v6466 = vmul.f32 1.0, %v6465
  %v6467 = vrcp.pop %v4575
  %v6468 = vmul.f32 %v4575, %v6467
  %v6469 = vsub.f32 1.0, %v6468
  %v6470 = vmul.f32 %v6467, %v6469
  %v6471 = vadd.f32 %v6467, %v6470
  %vm6472 = vweird.f32 %v4575
  %vm6473 = vweird.f32 %v6467
  %vm6474 = vmor %vm6472, %vm6473
  %v6475 = vsel %vm6474, %v6467, %v6471
  %v6476 = vand.u32 2147483647, %v4575
  %vm6477 = vcmp.eq.f32.partialorder %v6476, 8.507059e+37
  %v6478 = vand.u32 %v4575, 2147483648
  %v6479 = vor.u32 1.1754944e-38, %v6478
  %v6480 = vsel %vm6477, %v6479, %v6475
  %v6481 = vmul.f32 1.0, %v6480
  %v6482 = vrcp.pop %v4576
  %v6483 = vmul.f32 %v4576, %v6482
  %v6484 = vsub.f32 1.0, %v6483
  %v6485 = vmul.f32 %v6482, %v6484
  %v6486 = vadd.f32 %v6482, %v6485
  %vm6487 = vweird.f32 %v4576
  %vm6488 = vweird.f32 %v6482
  %vm6489 = vmor %vm6487, %vm6488
  %v6490 = vsel %vm6489, %v6482, %v6486
  %v6491 = vand.u32 2147483647, %v4576
  %vm6492 = vcmp.eq.f32.partialorder %v6491, 8.507059e+37
  %v6493 = vand.u32 %v4576, 2147483648
  %v6494 = vor.u32 1.1754944e-38, %v6493
  %v6495 = vsel %vm6492, %v6494, %v6490
  %v6496 = vmul.f32 1.0, %v6495
  %v6625 = vperm.slane %v4591, %v3770
  %v6626 = vperm.slane %v4606, %v3772
  %v6627 = vsel %vm3774, %v6626, %v6625
  %v6628 = vperm.slane %v4621, %v3776
  %v6629 = vsel %vm3778, %v6628, %v6627
  %v6630 = vperm.slane %v4636, %v3780
  %v6631 = vsel %vm3782, %v6630, %v6629
  %v6632 = vperm.slane %v4651, %v3784
  %v6633 = vsel %vm3786, %v6632, %v6631
  %v6634 = vperm.slane %v4666, %v3788
  %v6635 = vsel %vm3790, %v6634, %v6633
  %v6636 = vperm.slane %v4681, %v3792
  %v6637 = vsel %vm3794, %v6636, %v6635
  %v6638 = vperm.slane %v4696, %v3796
  %v6639 = vsel %vm3798, %v6638, %v6637
  %v6640 = vperm.slane %v4711, %v3800
  %v6641 = vsel %vm3802, %v6640, %v6639
  %v6642 = vperm.slane %v4726, %v3804
  %v6643 = vsel %vm3806, %v6642, %v6641
  %v6644 = vperm.slane %v4741, %v3808
  %v6645 = vsel %vm3810, %v6644, %v6643
  %v6646 = vperm.slane %v4756, %v3812
  %v6647 = vsel %vm3814, %v6646, %v6645
  %v6648 = vperm.slane %v4771, %v3816
  %v6649 = vsel %vm3818, %v6648, %v6647
  %v6650 = vperm.slane %v4786, %v3820
  %v6651 = vsel %vm3822, %v6650, %v6649
  %v6652 = vperm.slane %v4801, %v3824
  %v6653 = vsel %vm3826, %v6652, %v6651
  %v6654 = vperm.slane %v4816, %v3828
  %v6655 = vsel %vm3830, %v6654, %v6653
  %v6656 = vperm.slane %v4831, %v3770
  %v6657 = vperm.slane %v4846, %v3772
  %v6658 = vsel %vm3774, %v6657, %v6656
  %v6659 = vperm.slane %v4861, %v3776
  %v6660 = vsel %vm3778, %v6659, %v6658
  %v6661 = vperm.slane %v4876, %v3780
  %v6662 = vsel %vm3782, %v6661, %v6660
  %v6663 = vperm.slane %v4891, %v3784
  %v6664 = vsel %vm3786, %v6663, %v6662
  %v6665 = vperm.slane %v4906, %v3788
  %v6666 = vsel %vm3790, %v6665, %v6664
  %v6667 = vperm.slane %v4921, %v3792
  %v6668 = vsel %vm3794, %v6667, %v6666
  %v6669 = vperm.slane %v4936, %v3796
  %v6670 = vsel %vm3798, %v6669, %v6668
  %v6671 = vperm.slane %v4951, %v3800
  %v6672 = vsel %vm3802, %v6671, %v6670
  %v6673 = vperm.slane %v4966, %v3804
  %v6674 = vsel %vm3806, %v6673, %v6672
  %v6675 = vperm.slane %v4981, %v3808
  %v6676 = vsel %vm3810, %v6675, %v6674
  %v6677 = vperm.slane %v4996, %v3812
  %v6678 = vsel %vm3814, %v6677, %v6676
  %v6679 = vperm.slane %v5011, %v3816
  %v6680 = vsel %vm3818, %v6679, %v6678
  %v6681 = vperm.slane %v5026, %v3820
  %v6682 = vsel %vm3822, %v6681, %v6680
  %v6683 = vperm.slane %v5041, %v3824
  %v6684 = vsel %vm3826, %v6683, %v6682
  %v6685 = vperm.slane %v5056, %v3828
  %v6686 = vsel %vm3830, %v6685, %v6684
  %v6687 = vperm.slane %v5071, %v3770
  %v6688 = vperm.slane %v5086, %v3772
  %v6689 = vsel %vm3774, %v6688, %v6687
  %v6690 = vperm.slane %v5101, %v3776
  %v6691 = vsel %vm3778, %v6690, %v6689
  %v6692 = vperm.slane %v5116, %v3780
  %v6693 = vsel %vm3782, %v6692, %v6691
  %v6694 = vperm.slane %v5131, %v3784
  %v6695 = vsel %vm3786, %v6694, %v6693
  %v6696 = vperm.slane %v5146, %v3788
  %v6697 = vsel %vm3790, %v6696, %v6695
  %v6698 = vperm.slane %v5161, %v3792
  %v6699 = vsel %vm3794, %v6698, %v6697
  %v6700 = vperm.slane %v5176, %v3796
  %v6701 = vsel %vm3798, %v6700, %v6699
  %v6702 = vperm.slane %v5191, %v3800
  %v6703 = vsel %vm3802, %v6702, %v6701
  %v6704 = vperm.slane %v5206, %v3804
  %v6705 = vsel %vm3806, %v6704, %v6703
  %v6706 = vperm.slane %v5221, %v3808
  %v6707 = vsel %vm3810, %v6706, %v6705
  %v6708 = vperm.slane %v5236, %v3812
  %v6709 = vsel %vm3814, %v6708, %v6707
  %v6710 = vperm.slane %v5251, %v3816
  %v6711 = vsel %vm3818, %v6710, %v6709
  %v6712 = vperm.slane %v5266, %v3820
  %v6713 = vsel %vm3822, %v6712, %v6711
  %v6714 = vperm.slane %v5281, %v3824
  %v6715 = vsel %vm3826, %v6714, %v6713
  %v6716 = vperm.slane %v5296, %v3828
  %v6717 = vsel %vm3830, %v6716, %v6715
  %v6718 = vperm.slane %v5311, %v3770
  %v6719 = vperm.slane %v5326, %v3772
  %v6720 = vsel %vm3774, %v6719, %v6718
  %v6721 = vperm.slane %v5341, %v3776
  %v6722 = vsel %vm3778, %v6721, %v6720
  %v6723 = vperm.slane %v5356, %v3780
  %v6724 = vsel %vm3782, %v6723, %v6722
  %v6725 = vperm.slane %v5371, %v3784
  %v6726 = vsel %vm3786, %v6725, %v6724
  %v6727 = vperm.slane %v5386, %v3788
  %v6728 = vsel %vm3790, %v6727, %v6726
  %v6729 = vperm.slane %v5401, %v3792
  %v6730 = vsel %vm3794, %v6729, %v6728
  %v6731 = vperm.slane %v5416, %v3796
  %v6732 = vsel %vm3798, %v6731, %v6730
  %v6733 = vperm.slane %v5431, %v3800
  %v6734 = vsel %vm3802, %v6733, %v6732
  %v6735 = vperm.slane %v5446, %v3804
  %v6736 = vsel %vm3806, %v6735, %v6734
  %v6737 = vperm.slane %v5461, %v3808
  %v6738 = vsel %vm3810, %v6737, %v6736
  %v6739 = vperm.slane %v5476, %v3812
  %v6740 = vsel %vm3814, %v6739, %v6738
  %v6741 = vperm.slane %v5491, %v3816
  %v6742 = vsel %vm3818, %v6741, %v6740
  %v6743 = vperm.slane %v5506, %v3820
  %v6744 = vsel %vm3822, %v6743, %v6742
  %v6745 = vperm.slane %v5521, %v3824
  %v6746 = vsel %vm3826, %v6745, %v6744
  %v6747 = vperm.slane %v5536, %v3828
  %v6748 = vsel %vm3830, %v6747, %v6746
  %v6749 = vperm.slane %v5551, %v3770
  %v6750 = vperm.slane %v5566, %v3772
  %v6751 = vsel %vm3774, %v6750, %v6749
  %v6752 = vperm.slane %v5581, %v3776
  %v6753 = vsel %vm3778, %v6752, %v6751
  %v6754 = vperm.slane %v5596, %v3780
  %v6755 = vsel %vm3782, %v6754, %v6753
  %v6756 = vperm.slane %v5611, %v3784
  %v6757 = vsel %vm3786, %v6756, %v6755
  %v6758 = vperm.slane %v5626, %v3788
  %v6759 = vsel %vm3790, %v6758, %v6757
  %v6760 = vperm.slane %v5641, %v3792
  %v6761 = vsel %vm3794, %v6760, %v6759
  %v6762 = vperm.slane %v5656, %v3796
  %v6763 = vsel %vm3798, %v6762, %v6761
  %v6764 = vperm.slane %v5671, %v3800
  %v6765 = vsel %vm3802, %v6764, %v6763
  %v6766 = vperm.slane %v5686, %v3804
  %v6767 = vsel %vm3806, %v6766, %v6765
  %v6768 = vperm.slane %v5701, %v3808
  %v6769 = vsel %vm3810, %v6768, %v6767
  %v6770 = vperm.slane %v5716, %v3812
  %v6771 = vsel %vm3814, %v6770, %v6769
  %v6772 = vperm.slane %v5731, %v3816
  %v6773 = vsel %vm3818, %v6772, %v6771
  %v6774 = vperm.slane %v5746, %v3820
  %v6775 = vsel %vm3822, %v6774, %v6773
  %v6776 = vperm.slane %v5761, %v3824
  %v6777 = vsel %vm3826, %v6776, %v6775
  %v6778 = vperm.slane %v5776, %v3828
  %v6779 = vsel %vm3830, %v6778, %v6777
  %v6780 = vperm.slane %v5791, %v3770
  %v6781 = vperm.slane %v5806, %v3772
  %v6782 = vsel %vm3774, %v6781, %v6780
  %v6783 = vperm.slane %v5821, %v3776
  %v6784 = vsel %vm3778, %v6783, %v6782
  %v6785 = vperm.slane %v5836, %v3780
  %v6786 = vsel %vm3782, %v6785, %v6784
  %v6787 = vperm.slane %v5851, %v3784
  %v6788 = vsel %vm3786, %v6787, %v6786
  %v6789 = vperm.slane %v5866, %v3788
  %v6790 = vsel %vm3790, %v6789, %v6788
  %v6791 = vperm.slane %v5881, %v3792
  %v6792 = vsel %vm3794, %v6791, %v6790
  %v6793 = vperm.slane %v5896, %v3796
  %v6794 = vsel %vm3798, %v6793, %v6792
  %v6795 = vperm.slane %v5911, %v3800
  %v6796 = vsel %vm3802, %v6795, %v6794
  %v6797 = vperm.slane %v5926, %v3804
  %v6798 = vsel %vm3806, %v6797, %v6796
  %v6799 = vperm.slane %v5941, %v3808
  %v6800 = vsel %vm3810, %v6799, %v6798
  %v6801 = vperm.slane %v5956, %v3812
  %v6802 = vsel %vm3814, %v6801, %v6800
  %v6803 = vperm.slane %v5971, %v3816
  %v6804 = vsel %vm3818, %v6803, %v6802
  %v6805 = vperm.slane %v5986, %v3820
  %v6806 = vsel %vm3822, %v6805, %v6804
  %v6807 = vperm.slane %v6001, %v3824
  %v6808 = vsel %vm3826, %v6807, %v6806
  %v6809 = vperm.slane %v6016, %v3828
  %v6810 = vsel %vm3830, %v6809, %v6808
  %v6811 = vperm.slane %v6031, %v3770
  %v6812 = vperm.slane %v6046, %v3772
  %v6813 = vsel %vm3774, %v6812, %v6811
  %v6814 = vperm.slane %v6061, %v3776
  %v6815 = vsel %vm3778, %v6814, %v6813
  %v6816 = vperm.slane %v6076, %v3780
  %v6817 = vsel %vm3782, %v6816, %v6815
  %v6818 = vperm.slane %v6091, %v3784
  %v6819 = vsel %vm3786, %v6818, %v6817
  %v6820 = vperm.slane %v6106, %v3788
  %v6821 = vsel %vm3790, %v6820, %v6819
  %v6822 = vperm.slane %v6121, %v3792
  %v6823 = vsel %vm3794, %v6822, %v6821
  %v6824 = vperm.slane %v6136, %v3796
  %v6825 = vsel %vm3798, %v6824, %v6823
  %v6826 = vperm.slane %v6151, %v3800
  %v6827 = vsel %vm3802, %v6826, %v6825
  %v6828 = vperm.slane %v6166, %v3804
  %v6829 = vsel %vm3806, %v6828, %v6827
  %v6830 = vperm.slane %v6181, %v3808
  %v6831 = vsel %vm3810, %v6830, %v6829
  %v6832 = vperm.slane %v6196, %v3812
  %v6833 = vsel %vm3814, %v6832, %v6831
  %v6834 = vperm.slane %v6211, %v3816
  %v6835 = vsel %vm3818, %v6834, %v6833
  %v6836 = vperm.slane %v6226, %v3820
  %v6837 = vsel %vm3822, %v6836, %v6835
  %v6838 = vperm.slane %v6241, %v3824
  %v6839 = vsel %vm3826, %v6838, %v6837
  %v6840 = vperm.slane %v6256, %v3828
  %v6841 = vsel %vm3830, %v6840, %v6839
  %v6842 = vperm.slane %v6271, %v3770
  %v6843 = vperm.slane %v6286, %v3772
  %v6844 = vsel %vm3774, %v6843, %v6842
  %v6845 = vperm.slane %v6301, %v3776
  %v6846 = vsel %vm3778, %v6845, %v6844
  %v6847 = vperm.slane %v6316, %v3780
  %v6848 = vsel %vm3782, %v6847, %v6846
  %v6849 = vperm.slane %v6331, %v3784
  %v6850 = vsel %vm3786, %v6849, %v6848
  %v6851 = vperm.slane %v6346, %v3788
  %v6852 = vsel %vm3790, %v6851, %v6850
  %v6853 = vperm.slane %v6361, %v3792
  %v6854 = vsel %vm3794, %v6853, %v6852
  %v6855 = vperm.slane %v6376, %v3796
  %v6856 = vsel %vm3798, %v6855, %v6854
  %v6857 = vperm.slane %v6391, %v3800
  %v6858 = vsel %vm3802, %v6857, %v6856
  %v6859 = vperm.slane %v6406, %v3804
  %v6860 = vsel %vm3806, %v6859, %v6858
  %v6861 = vperm.slane %v6421, %v3808
  %v6862 = vsel %vm3810, %v6861, %v6860
  %v6863 = vperm.slane %v6436, %v3812
  %v6864 = vsel %vm3814, %v6863, %v6862
  %v6865 = vperm.slane %v6451, %v3816
  %v6866 = vsel %vm3818, %v6865, %v6864
  %v6867 = vperm.slane %v6466, %v3820
  %v6868 = vsel %vm3822, %v6867, %v6866
  %v6869 = vperm.slane %v6481, %v3824
  %v6870 = vsel %vm3826, %v6869, %v6868
  %v6871 = vperm.slane %v6496, %v3828
  %v6872 = vsel %vm3830, %v6871, %v6870
  %v6873 = vsel %vm4049, %v6686, %v6655
  %v6874 = vsel %vm4051, %v6717, %v6873
  %v6875 = vsel %vm4053, %v6748, %v6874
  %v6876 = vsel %vm4055, %v6779, %v6875
  %v6877 = vsel %vm4057, %v6810, %v6876
  %v6878 = vsel %vm4059, %v6841, %v6877
  %v6879 = vsel %vm4061, %v6872, %v6878
  %6881 = vst [vmem:[%s6] sm:$0xff] %v6879
  // Predicated region
  $region22: #{domain_adaptation_forward.2} parent=0 // pred_check
    _
  $region23: #{domain_adaptation_forward.2} parent=0 // pred_check_branch
    %6883 = sbr.rel (0) target = $region25
  $region24: #{domain_adaptation_forward.2} parent=0 // pred_region
    _
  $region25: #{domain_adaptation_forward.2} parent=0 // pred_fallthru
    _
  // Predicated region
  $region26: #{domain_adaptation_forward.2} parent=0 // pred_check
    _
  $region27: #{domain_adaptation_forward.2} parent=0 // pred_check_branch
    %6885 = sbr.rel (0) target = $region29
  $region28: #{domain_adaptation_forward.2} parent=0 // pred_region
    _
  $region29: #{domain_adaptation_forward.2} parent=0 // pred_fallthru
    _
  // Predicated region
  $region30: #{domain_adaptation_forward.2} parent=0 // pred_check
    _
  $region31: #{domain_adaptation_forward.2} parent=0 // pred_check_branch
    %6887 = sbr.rel (0) target = $region33
  $region32: #{domain_adaptation_forward.2} parent=0 // pred_region
    _
  $region33: #{domain_adaptation_forward.2} parent=0 // pred_fallthru
    _
  // Predicated region
  $region34: #{domain_adaptation_forward.2} parent=0 // pred_check
    _
  $region35: #{domain_adaptation_forward.2} parent=0 // pred_check_branch
    %6889 = sbr.rel (0) target = $region37
  $region36: #{domain_adaptation_forward.2} parent=0 // pred_region
    _
  $region37: #{domain_adaptation_forward.2} parent=0 // pred_fallthru
    _

// kernel: domain_adaptation_forward.3
$region0: #{domain_adaptation_forward.3}
  #allocation0 [shape = 'u32[]', space=smem, size = 0x4, offset = 0x4, fixed_abs, tag = 'smem constant byte address 0x4 - core index']
  #allocation1 [shape = 'u32[72,128]{1,0:T(1,128)}', space=vmem, size = 0x9000, scoped, tag = 'internal scratch']
  #allocation2 [shape = 'f32[1,1]{1,0:T(1,128)S(1)}', space=vmem, size = 0x200, scoped, tag = 'scoped memory for domain_adaptation_forward.3']
  %s0 = inlined_call_operand.vmem [shape: f32[8,256], index: 0, kind: input, shape index: {}]
  %s1 = inlined_call_operand.vmem [shape: bf16[256,1024], index: 1, kind: input, shape index: {}]
  %s2 = inlined_call_operand.vmem [shape: f32[1,1024], index: 2, kind: input, shape index: {}]
  %s3 = inlined_call_operand.vmem [shape: bf16[1024,1024], index: 3, kind: input, shape index: {}]
  %s4 = inlined_call_operand.vmem [shape: f32[1,1024], index: 4, kind: input, shape index: {}]
  %s5 = inlined_call_operand.vmem [shape: f32[1,1024], index: 5, kind: input, shape index: {}]
  %s6 = inlined_call_operand.<no memory space> [shape: f32[1,1], index: 6, kind: input, shape index: {}]
  %s7 = inlined_call_operand.vmem [shape: f32[8,1], index: 7, kind: output, shape index: {0}]
  %s8 = inlined_call_operand.vmem [shape: f32[8,1], index: 8, kind: output, shape index: {1}]
  %9 = xla_tuple %s7, %s8
  %s10 = sld [smem:[#allocation0]]
  $region46: #{domain_adaptation_forward.3} parent=0
    _
  %s12 = ssub.s32 1, %s10
  %s13 = scalar_select 0, %s12, %s10
  %v14 = vstv %s6
  %15 = vst [vmem:[#allocation2] sm:$0x1] %v14
  // Predicated region
  $region2: #{domain_adaptation_forward.3} parent=0 // pred_check
    _
  $region3: #{domain_adaptation_forward.3} parent=0 // pred_check_branch
    %17 = sbr.rel (0) target = $region5
  $region4: #{domain_adaptation_forward.3} parent=0 // pred_region
    _
  $region5: #{domain_adaptation_forward.3} parent=0 // pred_fallthru
    _
  // Predicated region
  $region6: #{domain_adaptation_forward.3} parent=0 // pred_check
    _
  $region7: #{domain_adaptation_forward.3} parent=0 // pred_check_branch
    %19 = sbr.rel (0) target = $region9
  $region8: #{domain_adaptation_forward.3} parent=0 // pred_region
    _
  $region9: #{domain_adaptation_forward.3} parent=0 // pred_fallthru
    _
  // Predicated region
  $region10: #{domain_adaptation_forward.3} parent=0 // pred_check
    _
  $region11: #{domain_adaptation_forward.3} parent=0 // pred_check_branch
    %21 = sbr.rel (0) target = $region13
  $region12: #{domain_adaptation_forward.3} parent=0 // pred_region
    _
  $region13: #{domain_adaptation_forward.3} parent=0 // pred_fallthru
    _
  // Predicated region
  $region14: #{domain_adaptation_forward.3} parent=0 // pred_check
    _
  $region15: #{domain_adaptation_forward.3} parent=0 // pred_check_branch
    %23 = sbr.rel (0) target = $region17
  $region16: #{domain_adaptation_forward.3} parent=0 // pred_region
    _
  $region17: #{domain_adaptation_forward.3} parent=0 // pred_fallthru
    _
  // Predicated region
  $region18: #{domain_adaptation_forward.3} parent=0 // pred_check
    _
  $region19: #{domain_adaptation_forward.3} parent=0 // pred_check_branch
    %25 = sbr.rel (0) target = $region21
  $region20: #{domain_adaptation_forward.3} parent=0 // pred_region
    _
  $region21: #{domain_adaptation_forward.3} parent=0 // pred_fallthru
    _
  // Predicated region
  $region22: #{domain_adaptation_forward.3} parent=0 // pred_check
    _
  $region23: #{domain_adaptation_forward.3} parent=0 // pred_check_branch
    %27 = sbr.rel (0) target = $region25
  $region24: #{domain_adaptation_forward.3} parent=0 // pred_region
    _
  $region25: #{domain_adaptation_forward.3} parent=0 // pred_fallthru
    _
  // Predicated region
  $region26: #{domain_adaptation_forward.3} parent=0 // pred_check
    _
  $region27: #{domain_adaptation_forward.3} parent=0 // pred_check_branch
    %29 = sbr.rel (0) target = $region29
  $region28: #{domain_adaptation_forward.3} parent=0 // pred_region
    _
  $region29: #{domain_adaptation_forward.3} parent=0 // pred_fallthru
    _
  %v30 = vld [vmem:[%s0] sm:$0xff]
  %v31 = vld [vmem:[%s0 + $0x8] sm:$0xff]
  %v32 = vpack.c.bf16 %v30, %v30
  %v33 = vpack.c.bf16 %v31, %v31
  %v34 = vld [vmem:[%s1] sm:$0xff]
  %v35 = vld [vmem:[%s1 + $0x8] sm:$0xff]
  %v36 = vld [vmem:[%s1 + $0x10] sm:$0xff]
  %v37 = vld [vmem:[%s1 + $0x18] sm:$0xff]
  %v38 = vld [vmem:[%s1 + $0x20] sm:$0xff]
  %v39 = vld [vmem:[%s1 + $0x28] sm:$0xff]
  %v40 = vld [vmem:[%s1 + $0x30] sm:$0xff]
  %v41 = vld [vmem:[%s1 + $0x38] sm:$0xff]
  %v42 = vld [vmem:[%s1 + $0x40] sm:$0xff]
  %v43 = vld [vmem:[%s1 + $0x48] sm:$0xff]
  %v44 = vld [vmem:[%s1 + $0x50] sm:$0xff]
  %v45 = vld [vmem:[%s1 + $0x58] sm:$0xff]
  %v46 = vld [vmem:[%s1 + $0x60] sm:$0xff]
  %v47 = vld [vmem:[%s1 + $0x68] sm:$0xff]
  %v48 = vld [vmem:[%s1 + $0x70] sm:$0xff]
  %v49 = vld [vmem:[%s1 + $0x78] sm:$0xff]
  %v50 = vld [vmem:[%s1 + $0x80] sm:$0xff]
  %v51 = vld [vmem:[%s1 + $0x88] sm:$0xff]
  %v52 = vld [vmem:[%s1 + $0x90] sm:$0xff]
  %v53 = vld [vmem:[%s1 + $0x98] sm:$0xff]
  %v54 = vld [vmem:[%s1 + $0xa0] sm:$0xff]
  %v55 = vld [vmem:[%s1 + $0xa8] sm:$0xff]
  %v56 = vld [vmem:[%s1 + $0xb0] sm:$0xff]
  %v57 = vld [vmem:[%s1 + $0xb8] sm:$0xff]
  %v58 = vld [vmem:[%s1 + $0xc0] sm:$0xff]
  %v59 = vld [vmem:[%s1 + $0xc8] sm:$0xff]
  %v60 = vld [vmem:[%s1 + $0xd0] sm:$0xff]
  %v61 = vld [vmem:[%s1 + $0xd8] sm:$0xff]
  %v62 = vld [vmem:[%s1 + $0xe0] sm:$0xff]
  %v63 = vld [vmem:[%s1 + $0xe8] sm:$0xff]
  %v64 = vld [vmem:[%s1 + $0xf0] sm:$0xff]
  %v65 = vld [vmem:[%s1 + $0xf8] sm:$0xff]
  %v66 = vld [vmem:[%s1 + $0x100] sm:$0xff]
  %v67 = vld [vmem:[%s1 + $0x108] sm:$0xff]
  %v68 = vld [vmem:[%s1 + $0x110] sm:$0xff]
  %v69 = vld [vmem:[%s1 + $0x118] sm:$0xff]
  %v70 = vld [vmem:[%s1 + $0x120] sm:$0xff]
  %v71 = vld [vmem:[%s1 + $0x128] sm:$0xff]
  %v72 = vld [vmem:[%s1 + $0x130] sm:$0xff]
  %v73 = vld [vmem:[%s1 + $0x138] sm:$0xff]
  %v74 = vld [vmem:[%s1 + $0x140] sm:$0xff]
  %v75 = vld [vmem:[%s1 + $0x148] sm:$0xff]
  %v76 = vld [vmem:[%s1 + $0x150] sm:$0xff]
  %v77 = vld [vmem:[%s1 + $0x158] sm:$0xff]
  %v78 = vld [vmem:[%s1 + $0x160] sm:$0xff]
  %v79 = vld [vmem:[%s1 + $0x168] sm:$0xff]
  %v80 = vld [vmem:[%s1 + $0x170] sm:$0xff]
  %v81 = vld [vmem:[%s1 + $0x178] sm:$0xff]
  %v82 = vld [vmem:[%s1 + $0x180] sm:$0xff]
  %v83 = vld [vmem:[%s1 + $0x188] sm:$0xff]
  %v84 = vld [vmem:[%s1 + $0x190] sm:$0xff]
  %v85 = vld [vmem:[%s1 + $0x198] sm:$0xff]
  %v86 = vld [vmem:[%s1 + $0x1a0] sm:$0xff]
  %v87 = vld [vmem:[%s1 + $0x1a8] sm:$0xff]
  %v88 = vld [vmem:[%s1 + $0x1b0] sm:$0xff]
  %v89 = vld [vmem:[%s1 + $0x1b8] sm:$0xff]
  %v90 = vld [vmem:[%s1 + $0x1c0] sm:$0xff]
  %v91 = vld [vmem:[%s1 + $0x1c8] sm:$0xff]
  %v92 = vld [vmem:[%s1 + $0x1d0] sm:$0xff]
  %v93 = vld [vmem:[%s1 + $0x1d8] sm:$0xff]
  %v94 = vld [vmem:[%s1 + $0x1e0] sm:$0xff]
  %v95 = vld [vmem:[%s1 + $0x1e8] sm:$0xff]
  %v96 = vld [vmem:[%s1 + $0x1f0] sm:$0xff]
  %v97 = vld [vmem:[%s1 + $0x1f8] sm:$0xff]
  %v98 = vld [vmem:[%s1 + $0x200] sm:$0xff]
  %v99 = vld [vmem:[%s1 + $0x208] sm:$0xff]
  %v100 = vld [vmem:[%s1 + $0x210] sm:$0xff]
  %v101 = vld [vmem:[%s1 + $0x218] sm:$0xff]
  %v102 = vld [vmem:[%s1 + $0x220] sm:$0xff]
  %v103 = vld [vmem:[%s1 + $0x228] sm:$0xff]
  %v104 = vld [vmem:[%s1 + $0x230] sm:$0xff]
  %v105 = vld [vmem:[%s1 + $0x238] sm:$0xff]
  %v106 = vld [vmem:[%s1 + $0x240] sm:$0xff]
  %v107 = vld [vmem:[%s1 + $0x248] sm:$0xff]
  %v108 = vld [vmem:[%s1 + $0x250] sm:$0xff]
  %v109 = vld [vmem:[%s1 + $0x258] sm:$0xff]
  %v110 = vld [vmem:[%s1 + $0x260] sm:$0xff]
  %v111 = vld [vmem:[%s1 + $0x268] sm:$0xff]
  %v112 = vld [vmem:[%s1 + $0x270] sm:$0xff]
  %v113 = vld [vmem:[%s1 + $0x278] sm:$0xff]
  %v114 = vld [vmem:[%s1 + $0x280] sm:$0xff]
  %v115 = vld [vmem:[%s1 + $0x288] sm:$0xff]
  %v116 = vld [vmem:[%s1 + $0x290] sm:$0xff]
  %v117 = vld [vmem:[%s1 + $0x298] sm:$0xff]
  %v118 = vld [vmem:[%s1 + $0x2a0] sm:$0xff]
  %v119 = vld [vmem:[%s1 + $0x2a8] sm:$0xff]
  %v120 = vld [vmem:[%s1 + $0x2b0] sm:$0xff]
  %v121 = vld [vmem:[%s1 + $0x2b8] sm:$0xff]
  %v122 = vld [vmem:[%s1 + $0x2c0] sm:$0xff]
  %v123 = vld [vmem:[%s1 + $0x2c8] sm:$0xff]
  %v124 = vld [vmem:[%s1 + $0x2d0] sm:$0xff]
  %v125 = vld [vmem:[%s1 + $0x2d8] sm:$0xff]
  %v126 = vld [vmem:[%s1 + $0x2e0] sm:$0xff]
  %v127 = vld [vmem:[%s1 + $0x2e8] sm:$0xff]
  %v128 = vld [vmem:[%s1 + $0x2f0] sm:$0xff]
  %v129 = vld [vmem:[%s1 + $0x2f8] sm:$0xff]
  %v130 = vld [vmem:[%s1 + $0x300] sm:$0xff]
  %v131 = vld [vmem:[%s1 + $0x308] sm:$0xff]
  %v132 = vld [vmem:[%s1 + $0x310] sm:$0xff]
  %v133 = vld [vmem:[%s1 + $0x318] sm:$0xff]
  %v134 = vld [vmem:[%s1 + $0x320] sm:$0xff]
  %v135 = vld [vmem:[%s1 + $0x328] sm:$0xff]
  %v136 = vld [vmem:[%s1 + $0x330] sm:$0xff]
  %v137 = vld [vmem:[%s1 + $0x338] sm:$0xff]
  %v138 = vld [vmem:[%s1 + $0x340] sm:$0xff]
  %v139 = vld [vmem:[%s1 + $0x348] sm:$0xff]
  %v140 = vld [vmem:[%s1 + $0x350] sm:$0xff]
  %v141 = vld [vmem:[%s1 + $0x358] sm:$0xff]
  %v142 = vld [vmem:[%s1 + $0x360] sm:$0xff]
  %v143 = vld [vmem:[%s1 + $0x368] sm:$0xff]
  %v144 = vld [vmem:[%s1 + $0x370] sm:$0xff]
  %v145 = vld [vmem:[%s1 + $0x378] sm:$0xff]
  %v146 = vld [vmem:[%s1 + $0x380] sm:$0xff]
  %v147 = vld [vmem:[%s1 + $0x388] sm:$0xff]
  %v148 = vld [vmem:[%s1 + $0x390] sm:$0xff]
  %v149 = vld [vmem:[%s1 + $0x398] sm:$0xff]
  %v150 = vld [vmem:[%s1 + $0x3a0] sm:$0xff]
  %v151 = vld [vmem:[%s1 + $0x3a8] sm:$0xff]
  %v152 = vld [vmem:[%s1 + $0x3b0] sm:$0xff]
  %v153 = vld [vmem:[%s1 + $0x3b8] sm:$0xff]
  %v154 = vld [vmem:[%s1 + $0x3c0] sm:$0xff]
  %v155 = vld [vmem:[%s1 + $0x3c8] sm:$0xff]
  %v156 = vld [vmem:[%s1 + $0x3d0] sm:$0xff]
  %v157 = vld [vmem:[%s1 + $0x3d8] sm:$0xff]
  %v158 = vld [vmem:[%s1 + $0x3e0] sm:$0xff]
  %v159 = vld [vmem:[%s1 + $0x3e8] sm:$0xff]
  %v160 = vld [vmem:[%s1 + $0x3f0] sm:$0xff]
  %v161 = vld [vmem:[%s1 + $0x3f8] sm:$0xff]
  %v162 = vld [vmem:[%s2] sm:$0xff]
  %v164 = vperm.slane %v162, 0
  %v165 = vperm.slane %v162, 1
  %v166 = vperm.slane %v162, 2
  %v167 = vperm.slane %v162, 3
  %v168 = vperm.slane %v162, 4
  %v169 = vperm.slane %v162, 5
  %v170 = vperm.slane %v162, 6
  %v171 = vperm.slane %v162, 7
  %v308 = vunpack.c.l.b16 %v34
  %v309 = vunpack.c.h.b16 %v34
  %v310 = vunpack.c.l.b16 %v35
  %v311 = vunpack.c.h.b16 %v35
  %v312 = vunpack.c.l.b16 %v36
  %v313 = vunpack.c.h.b16 %v36
  %v314 = vunpack.c.l.b16 %v37
  %v315 = vunpack.c.h.b16 %v37
  %v316 = vunpack.c.l.b16 %v38
  %v317 = vunpack.c.h.b16 %v38
  %v318 = vunpack.c.l.b16 %v39
  %v319 = vunpack.c.h.b16 %v39
  %v320 = vunpack.c.l.b16 %v40
  %v321 = vunpack.c.h.b16 %v40
  %v322 = vunpack.c.l.b16 %v41
  %v323 = vunpack.c.h.b16 %v41
  %v324 = vunpack.c.l.b16 %v42
  %v325 = vunpack.c.h.b16 %v42
  %v326 = vunpack.c.l.b16 %v43
  %v327 = vunpack.c.h.b16 %v43
  %v328 = vunpack.c.l.b16 %v44
  %v329 = vunpack.c.h.b16 %v44
  %v330 = vunpack.c.l.b16 %v45
  %v331 = vunpack.c.h.b16 %v45
  %v332 = vunpack.c.l.b16 %v46
  %v333 = vunpack.c.h.b16 %v46
  %v334 = vunpack.c.l.b16 %v47
  %v335 = vunpack.c.h.b16 %v47
  %v336 = vunpack.c.l.b16 %v48
  %v337 = vunpack.c.h.b16 %v48
  %v338 = vunpack.c.l.b16 %v49
  %v339 = vunpack.c.h.b16 %v49
  %v340 = vunpack.c.l.b16 %v50
  %v341 = vunpack.c.h.b16 %v50
  %v342 = vunpack.c.l.b16 %v51
  %v343 = vunpack.c.h.b16 %v51
  %v344 = vunpack.c.l.b16 %v52
  %v345 = vunpack.c.h.b16 %v52
  %v346 = vunpack.c.l.b16 %v53
  %v347 = vunpack.c.h.b16 %v53
  %v348 = vunpack.c.l.b16 %v54
  %v349 = vunpack.c.h.b16 %v54
  %v350 = vunpack.c.l.b16 %v55
  %v351 = vunpack.c.h.b16 %v55
  %v352 = vunpack.c.l.b16 %v56
  %v353 = vunpack.c.h.b16 %v56
  %v354 = vunpack.c.l.b16 %v57
  %v355 = vunpack.c.h.b16 %v57
  %v356 = vunpack.c.l.b16 %v58
  %v357 = vunpack.c.h.b16 %v58
  %v358 = vunpack.c.l.b16 %v59
  %v359 = vunpack.c.h.b16 %v59
  %v360 = vunpack.c.l.b16 %v60
  %v361 = vunpack.c.h.b16 %v60
  %v362 = vunpack.c.l.b16 %v61
  %v363 = vunpack.c.h.b16 %v61
  %v364 = vunpack.c.l.b16 %v62
  %v365 = vunpack.c.h.b16 %v62
  %v366 = vunpack.c.l.b16 %v63
  %v367 = vunpack.c.h.b16 %v63
  %v368 = vunpack.c.l.b16 %v64
  %v369 = vunpack.c.h.b16 %v64
  %v370 = vunpack.c.l.b16 %v65
  %v371 = vunpack.c.h.b16 %v65
  %v372 = vunpack.c.l.b16 %v66
  %v373 = vunpack.c.h.b16 %v66
  %v374 = vunpack.c.l.b16 %v67
  %v375 = vunpack.c.h.b16 %v67
  %v376 = vunpack.c.l.b16 %v68
  %v377 = vunpack.c.h.b16 %v68
  %v378 = vunpack.c.l.b16 %v69
  %v379 = vunpack.c.h.b16 %v69
  %v380 = vunpack.c.l.b16 %v70
  %v381 = vunpack.c.h.b16 %v70
  %v382 = vunpack.c.l.b16 %v71
  %v383 = vunpack.c.h.b16 %v71
  %v384 = vunpack.c.l.b16 %v72
  %v385 = vunpack.c.h.b16 %v72
  %v386 = vunpack.c.l.b16 %v73
  %v387 = vunpack.c.h.b16 %v73
  %v388 = vunpack.c.l.b16 %v74
  %v389 = vunpack.c.h.b16 %v74
  %v390 = vunpack.c.l.b16 %v75
  %v391 = vunpack.c.h.b16 %v75
  %v392 = vunpack.c.l.b16 %v76
  %v393 = vunpack.c.h.b16 %v76
  %v394 = vunpack.c.l.b16 %v77
  %v395 = vunpack.c.h.b16 %v77
  %v396 = vunpack.c.l.b16 %v78
  %v397 = vunpack.c.h.b16 %v78
  %v398 = vunpack.c.l.b16 %v79
  %v399 = vunpack.c.h.b16 %v79
  %v400 = vunpack.c.l.b16 %v80
  %v401 = vunpack.c.h.b16 %v80
  %v402 = vunpack.c.l.b16 %v81
  %v403 = vunpack.c.h.b16 %v81
  %v404 = vunpack.c.l.b16 %v82
  %v405 = vunpack.c.h.b16 %v82
  %v406 = vunpack.c.l.b16 %v83
  %v407 = vunpack.c.h.b16 %v83
  %v408 = vunpack.c.l.b16 %v84
  %v409 = vunpack.c.h.b16 %v84
  %v410 = vunpack.c.l.b16 %v85
  %v411 = vunpack.c.h.b16 %v85
  %v412 = vunpack.c.l.b16 %v86
  %v413 = vunpack.c.h.b16 %v86
  %v414 = vunpack.c.l.b16 %v87
  %v415 = vunpack.c.h.b16 %v87
  %v416 = vunpack.c.l.b16 %v88
  %v417 = vunpack.c.h.b16 %v88
  %v418 = vunpack.c.l.b16 %v89
  %v419 = vunpack.c.h.b16 %v89
  %v420 = vunpack.c.l.b16 %v90
  %v421 = vunpack.c.h.b16 %v90
  %v422 = vunpack.c.l.b16 %v91
  %v423 = vunpack.c.h.b16 %v91
  %v424 = vunpack.c.l.b16 %v92
  %v425 = vunpack.c.h.b16 %v92
  %v426 = vunpack.c.l.b16 %v93
  %v427 = vunpack.c.h.b16 %v93
  %v428 = vunpack.c.l.b16 %v94
  %v429 = vunpack.c.h.b16 %v94
  %v430 = vunpack.c.l.b16 %v95
  %v431 = vunpack.c.h.b16 %v95
  %v432 = vunpack.c.l.b16 %v96
  %v433 = vunpack.c.h.b16 %v96
  %v434 = vunpack.c.l.b16 %v97
  %v435 = vunpack.c.h.b16 %v97
  %v436 = vunpack.c.l.b16 %v98
  %v437 = vunpack.c.h.b16 %v98
  %v438 = vunpack.c.l.b16 %v99
  %v439 = vunpack.c.h.b16 %v99
  %v440 = vunpack.c.l.b16 %v100
  %v441 = vunpack.c.h.b16 %v100
  %v442 = vunpack.c.l.b16 %v101
  %v443 = vunpack.c.h.b16 %v101
  %v444 = vunpack.c.l.b16 %v102
  %v445 = vunpack.c.h.b16 %v102
  %v446 = vunpack.c.l.b16 %v103
  %v447 = vunpack.c.h.b16 %v103
  %v448 = vunpack.c.l.b16 %v104
  %v449 = vunpack.c.h.b16 %v104
  %v450 = vunpack.c.l.b16 %v105
  %v451 = vunpack.c.h.b16 %v105
  %v452 = vunpack.c.l.b16 %v106
  %v453 = vunpack.c.h.b16 %v106
  %v454 = vunpack.c.l.b16 %v107
  %v455 = vunpack.c.h.b16 %v107
  %v456 = vunpack.c.l.b16 %v108
  %v457 = vunpack.c.h.b16 %v108
  %v458 = vunpack.c.l.b16 %v109
  %v459 = vunpack.c.h.b16 %v109
  %v460 = vunpack.c.l.b16 %v110
  %v461 = vunpack.c.h.b16 %v110
  %v462 = vunpack.c.l.b16 %v111
  %v463 = vunpack.c.h.b16 %v111
  %v464 = vunpack.c.l.b16 %v112
  %v465 = vunpack.c.h.b16 %v112
  %v466 = vunpack.c.l.b16 %v113
  %v467 = vunpack.c.h.b16 %v113
  %v468 = vunpack.c.l.b16 %v114
  %v469 = vunpack.c.h.b16 %v114
  %v470 = vunpack.c.l.b16 %v115
  %v471 = vunpack.c.h.b16 %v115
  %v472 = vunpack.c.l.b16 %v116
  %v473 = vunpack.c.h.b16 %v116
  %v474 = vunpack.c.l.b16 %v117
  %v475 = vunpack.c.h.b16 %v117
  %v476 = vunpack.c.l.b16 %v118
  %v477 = vunpack.c.h.b16 %v118
  %v478 = vunpack.c.l.b16 %v119
  %v479 = vunpack.c.h.b16 %v119
  %v480 = vunpack.c.l.b16 %v120
  %v481 = vunpack.c.h.b16 %v120
  %v482 = vunpack.c.l.b16 %v121
  %v483 = vunpack.c.h.b16 %v121
  %v484 = vunpack.c.l.b16 %v122
  %v485 = vunpack.c.h.b16 %v122
  %v486 = vunpack.c.l.b16 %v123
  %v487 = vunpack.c.h.b16 %v123
  %v488 = vunpack.c.l.b16 %v124
  %v489 = vunpack.c.h.b16 %v124
  %v490 = vunpack.c.l.b16 %v125
  %v491 = vunpack.c.h.b16 %v125
  %v492 = vunpack.c.l.b16 %v126
  %v493 = vunpack.c.h.b16 %v126
  %v494 = vunpack.c.l.b16 %v127
  %v495 = vunpack.c.h.b16 %v127
  %v496 = vunpack.c.l.b16 %v128
  %v497 = vunpack.c.h.b16 %v128
  %v498 = vunpack.c.l.b16 %v129
  %v499 = vunpack.c.h.b16 %v129
  %v500 = vunpack.c.l.b16 %v130
  %v501 = vunpack.c.h.b16 %v130
  %v502 = vunpack.c.l.b16 %v131
  %v503 = vunpack.c.h.b16 %v131
  %v504 = vunpack.c.l.b16 %v132
  %v505 = vunpack.c.h.b16 %v132
  %v506 = vunpack.c.l.b16 %v133
  %v507 = vunpack.c.h.b16 %v133
  %v508 = vunpack.c.l.b16 %v134
  %v509 = vunpack.c.h.b16 %v134
  %v510 = vunpack.c.l.b16 %v135
  %v511 = vunpack.c.h.b16 %v135
  %v512 = vunpack.c.l.b16 %v136
  %v513 = vunpack.c.h.b16 %v136
  %v514 = vunpack.c.l.b16 %v137
  %v515 = vunpack.c.h.b16 %v137
  %v516 = vunpack.c.l.b16 %v138
  %v517 = vunpack.c.h.b16 %v138
  %v518 = vunpack.c.l.b16 %v139
  %v519 = vunpack.c.h.b16 %v139
  %v520 = vunpack.c.l.b16 %v140
  %v521 = vunpack.c.h.b16 %v140
  %v522 = vunpack.c.l.b16 %v141
  %v523 = vunpack.c.h.b16 %v141
  %v524 = vunpack.c.l.b16 %v142
  %v525 = vunpack.c.h.b16 %v142
  %v526 = vunpack.c.l.b16 %v143
  %v527 = vunpack.c.h.b16 %v143
  %v528 = vunpack.c.l.b16 %v144
  %v529 = vunpack.c.h.b16 %v144
  %v530 = vunpack.c.l.b16 %v145
  %v531 = vunpack.c.h.b16 %v145
  %v532 = vunpack.c.l.b16 %v146
  %v533 = vunpack.c.h.b16 %v146
  %v534 = vunpack.c.l.b16 %v147
  %v535 = vunpack.c.h.b16 %v147
  %v536 = vunpack.c.l.b16 %v148
  %v537 = vunpack.c.h.b16 %v148
  %v538 = vunpack.c.l.b16 %v149
  %v539 = vunpack.c.h.b16 %v149
  %v540 = vunpack.c.l.b16 %v150
  %v541 = vunpack.c.h.b16 %v150
  %v542 = vunpack.c.l.b16 %v151
  %v543 = vunpack.c.h.b16 %v151
  %v544 = vunpack.c.l.b16 %v152
  %v545 = vunpack.c.h.b16 %v152
  %v546 = vunpack.c.l.b16 %v153
  %v547 = vunpack.c.h.b16 %v153
  %v548 = vunpack.c.l.b16 %v154
  %v549 = vunpack.c.h.b16 %v154
  %v550 = vunpack.c.l.b16 %v155
  %v551 = vunpack.c.h.b16 %v155
  %v552 = vunpack.c.l.b16 %v156
  %v553 = vunpack.c.h.b16 %v156
  %v554 = vunpack.c.l.b16 %v157
  %v555 = vunpack.c.h.b16 %v157
  %v556 = vunpack.c.l.b16 %v158
  %v557 = vunpack.c.h.b16 %v158
  %v558 = vunpack.c.l.b16 %v159
  %v559 = vunpack.c.h.b16 %v159
  %v560 = vunpack.c.l.b16 %v160
  %v561 = vunpack.c.h.b16 %v160
  %v562 = vunpack.c.l.b16 %v161
  %v563 = vunpack.c.h.b16 %v161
  %v564 = vpack.c.b16 %v316, %v308
  %v565 = vpack.c.b16 %v317, %v309
  %v566 = vpack.c.b16 %v318, %v310
  %v567 = vpack.c.b16 %v319, %v311
  %v568 = vpack.c.b16 %v320, %v312
  %v569 = vpack.c.b16 %v321, %v313
  %v570 = vpack.c.b16 %v322, %v314
  %v571 = vpack.c.b16 %v323, %v315
  %v572 = vpack.c.b16 %v332, %v324
  %v573 = vpack.c.b16 %v333, %v325
  %v574 = vpack.c.b16 %v334, %v326
  %v575 = vpack.c.b16 %v335, %v327
  %v576 = vpack.c.b16 %v336, %v328
  %v577 = vpack.c.b16 %v337, %v329
  %v578 = vpack.c.b16 %v338, %v330
  %v579 = vpack.c.b16 %v339, %v331
  %v580 = vpack.c.b16 %v348, %v340
  %v581 = vpack.c.b16 %v349, %v341
  %v582 = vpack.c.b16 %v350, %v342
  %v583 = vpack.c.b16 %v351, %v343
  %v584 = vpack.c.b16 %v352, %v344
  %v585 = vpack.c.b16 %v353, %v345
  %v586 = vpack.c.b16 %v354, %v346
  %v587 = vpack.c.b16 %v355, %v347
  %v588 = vpack.c.b16 %v364, %v356
  %v589 = vpack.c.b16 %v365, %v357
  %v590 = vpack.c.b16 %v366, %v358
  %v591 = vpack.c.b16 %v367, %v359
  %v592 = vpack.c.b16 %v368, %v360
  %v593 = vpack.c.b16 %v369, %v361
  %v594 = vpack.c.b16 %v370, %v362
  %v595 = vpack.c.b16 %v371, %v363
  %v596 = vpack.c.b16 %v380, %v372
  %v597 = vpack.c.b16 %v381, %v373
  %v598 = vpack.c.b16 %v382, %v374
  %v599 = vpack.c.b16 %v383, %v375
  %v600 = vpack.c.b16 %v384, %v376
  %v601 = vpack.c.b16 %v385, %v377
  %v602 = vpack.c.b16 %v386, %v378
  %v603 = vpack.c.b16 %v387, %v379
  %v604 = vpack.c.b16 %v396, %v388
  %v605 = vpack.c.b16 %v397, %v389
  %v606 = vpack.c.b16 %v398, %v390
  %v607 = vpack.c.b16 %v399, %v391
  %v608 = vpack.c.b16 %v400, %v392
  %v609 = vpack.c.b16 %v401, %v393
  %v610 = vpack.c.b16 %v402, %v394
  %v611 = vpack.c.b16 %v403, %v395
  %v612 = vpack.c.b16 %v412, %v404
  %v613 = vpack.c.b16 %v413, %v405
  %v614 = vpack.c.b16 %v414, %v406
  %v615 = vpack.c.b16 %v415, %v407
  %v616 = vpack.c.b16 %v416, %v408
  %v617 = vpack.c.b16 %v417, %v409
  %v618 = vpack.c.b16 %v418, %v410
  %v619 = vpack.c.b16 %v419, %v411
  %v620 = vpack.c.b16 %v428, %v420
  %v621 = vpack.c.b16 %v429, %v421
  %v622 = vpack.c.b16 %v430, %v422
  %v623 = vpack.c.b16 %v431, %v423
  %v624 = vpack.c.b16 %v432, %v424
  %v625 = vpack.c.b16 %v433, %v425
  %v626 = vpack.c.b16 %v434, %v426
  %v627 = vpack.c.b16 %v435, %v427
  %v628 = vpack.c.b16 %v444, %v436
  %v629 = vpack.c.b16 %v445, %v437
  %v630 = vpack.c.b16 %v446, %v438
  %v631 = vpack.c.b16 %v447, %v439
  %v632 = vpack.c.b16 %v448, %v440
  %v633 = vpack.c.b16 %v449, %v441
  %v634 = vpack.c.b16 %v450, %v442
  %v635 = vpack.c.b16 %v451, %v443
  %v636 = vpack.c.b16 %v460, %v452
  %v637 = vpack.c.b16 %v461, %v453
  %v638 = vpack.c.b16 %v462, %v454
  %v639 = vpack.c.b16 %v463, %v455
  %v640 = vpack.c.b16 %v464, %v456
  %v641 = vpack.c.b16 %v465, %v457
  %v642 = vpack.c.b16 %v466, %v458
  %v643 = vpack.c.b16 %v467, %v459
  %v644 = vpack.c.b16 %v476, %v468
  %v645 = vpack.c.b16 %v477, %v469
  %v646 = vpack.c.b16 %v478, %v470
  %v647 = vpack.c.b16 %v479, %v471
  %v648 = vpack.c.b16 %v480, %v472
  %v649 = vpack.c.b16 %v481, %v473
  %v650 = vpack.c.b16 %v482, %v474
  %v651 = vpack.c.b16 %v483, %v475
  %v652 = vpack.c.b16 %v492, %v484
  %v653 = vpack.c.b16 %v493, %v485
  %v654 = vpack.c.b16 %v494, %v486
  %v655 = vpack.c.b16 %v495, %v487
  %v656 = vpack.c.b16 %v496, %v488
  %v657 = vpack.c.b16 %v497, %v489
  %v658 = vpack.c.b16 %v498, %v490
  %v659 = vpack.c.b16 %v499, %v491
  %v660 = vpack.c.b16 %v508, %v500
  %v661 = vpack.c.b16 %v509, %v501
  %v662 = vpack.c.b16 %v510, %v502
  %v663 = vpack.c.b16 %v511, %v503
  %v664 = vpack.c.b16 %v512, %v504
  %v665 = vpack.c.b16 %v513, %v505
  %v666 = vpack.c.b16 %v514, %v506
  %v667 = vpack.c.b16 %v515, %v507
  %v668 = vpack.c.b16 %v524, %v516
  %v669 = vpack.c.b16 %v525, %v517
  %v670 = vpack.c.b16 %v526, %v518
  %v671 = vpack.c.b16 %v527, %v519
  %v672 = vpack.c.b16 %v528, %v520
  %v673 = vpack.c.b16 %v529, %v521
  %v674 = vpack.c.b16 %v530, %v522
  %v675 = vpack.c.b16 %v531, %v523
  %v676 = vpack.c.b16 %v540, %v532
  %v677 = vpack.c.b16 %v541, %v533
  %v678 = vpack.c.b16 %v542, %v534
  %v679 = vpack.c.b16 %v543, %v535
  %v680 = vpack.c.b16 %v544, %v536
  %v681 = vpack.c.b16 %v545, %v537
  %v682 = vpack.c.b16 %v546, %v538
  %v683 = vpack.c.b16 %v547, %v539
  %v684 = vpack.c.b16 %v556, %v548
  %v685 = vpack.c.b16 %v557, %v549
  %v686 = vpack.c.b16 %v558, %v550
  %v687 = vpack.c.b16 %v559, %v551
  %v688 = vpack.c.b16 %v560, %v552
  %v689 = vpack.c.b16 %v561, %v553
  %v690 = vpack.c.b16 %v562, %v554
  %v691 = vpack.c.b16 %v563, %v555
  %820 = vmatpush.bf16.msra.mxu0 %v620
  %821 = vmatpush.bf16.msra.mxu0 %v612
  %822 = vmatpush.bf16.msra.mxu0 %v604
  %823 = vmatpush.bf16.msra.mxu0 %v596
  %824 = vmatpush.bf16.msra.mxu0 %v588
  %825 = vmatpush.bf16.msra.mxu0 %v580
  %826 = vmatpush.bf16.msra.mxu0 %v572
  %827 = vmatpush.bf16.msra.mxu0 %v564
  %828 = vmatmul.bf16.gmra.mxu0 %v32
  %v829 = vpop.f32.mrf.mxu0
  %v830 = vadd.f32 %v164, %v829
  %v831 = vpop.f32.mrf.mxu0
  %832 = vdwg.mxu0
  %833 = vmatpush.bf16.msra.mxu0 %v684
  %834 = vmatpush.bf16.msra.mxu0 %v676
  %835 = vmatpush.bf16.msra.mxu0 %v668
  %836 = vmatpush.bf16.msra.mxu0 %v660
  %837 = vmatpush.bf16.msra.mxu0 %v652
  %838 = vmatpush.bf16.msra.mxu0 %v644
  %839 = vmatpush.bf16.msra.mxu0 %v636
  %840 = vmatpush.bf16.msra.mxu0 %v628
  %841 = vmatmul.bf16.gmra.mxu0 %v33
  %v842 = vpop.f32.mrf.mxu0
  %v843 = vadd.f32 %v830, %v842
  %v844 = vpop.f32.mrf.mxu0
  %845 = vdwg.mxu0
  %846 = vmatpush.bf16.msra.mxu0 %v621
  %847 = vmatpush.bf16.msra.mxu0 %v613
  %848 = vmatpush.bf16.msra.mxu0 %v605
  %849 = vmatpush.bf16.msra.mxu0 %v597
  %850 = vmatpush.bf16.msra.mxu0 %v589
  %851 = vmatpush.bf16.msra.mxu0 %v581
  %852 = vmatpush.bf16.msra.mxu0 %v573
  %853 = vmatpush.bf16.msra.mxu0 %v565
  %854 = vmatmul.bf16.gmra.mxu0 %v32
  %v855 = vpop.f32.mrf.mxu0
  %v856 = vadd.f32 %v165, %v855
  %v857 = vpop.f32.mrf.mxu0
  %858 = vdwg.mxu0
  %859 = vmatpush.bf16.msra.mxu0 %v685
  %860 = vmatpush.bf16.msra.mxu0 %v677
  %861 = vmatpush.bf16.msra.mxu0 %v669
  %862 = vmatpush.bf16.msra.mxu0 %v661
  %863 = vmatpush.bf16.msra.mxu0 %v653
  %864 = vmatpush.bf16.msra.mxu0 %v645
  %865 = vmatpush.bf16.msra.mxu0 %v637
  %866 = vmatpush.bf16.msra.mxu0 %v629
  %867 = vmatmul.bf16.gmra.mxu0 %v33
  %v868 = vpop.f32.mrf.mxu0
  %v869 = vadd.f32 %v856, %v868
  %v870 = vpop.f32.mrf.mxu0
  %871 = vdwg.mxu0
  %872 = vmatpush.bf16.msra.mxu0 %v622
  %873 = vmatpush.bf16.msra.mxu0 %v614
  %874 = vmatpush.bf16.msra.mxu0 %v606
  %875 = vmatpush.bf16.msra.mxu0 %v598
  %876 = vmatpush.bf16.msra.mxu0 %v590
  %877 = vmatpush.bf16.msra.mxu0 %v582
  %878 = vmatpush.bf16.msra.mxu0 %v574
  %879 = vmatpush.bf16.msra.mxu0 %v566
  %880 = vmatmul.bf16.gmra.mxu0 %v32
  %v881 = vpop.f32.mrf.mxu0
  %v882 = vadd.f32 %v166, %v881
  %v883 = vpop.f32.mrf.mxu0
  %884 = vdwg.mxu0
  %885 = vmatpush.bf16.msra.mxu0 %v686
  %886 = vmatpush.bf16.msra.mxu0 %v678
  %887 = vmatpush.bf16.msra.mxu0 %v670
  %888 = vmatpush.bf16.msra.mxu0 %v662
  %889 = vmatpush.bf16.msra.mxu0 %v654
  %890 = vmatpush.bf16.msra.mxu0 %v646
  %891 = vmatpush.bf16.msra.mxu0 %v638
  %892 = vmatpush.bf16.msra.mxu0 %v630
  %893 = vmatmul.bf16.gmra.mxu0 %v33
  %v894 = vpop.f32.mrf.mxu0
  %v895 = vadd.f32 %v882, %v894
  %v896 = vpop.f32.mrf.mxu0
  %897 = vdwg.mxu0
  %898 = vmatpush.bf16.msra.mxu0 %v623
  %899 = vmatpush.bf16.msra.mxu0 %v615
  %900 = vmatpush.bf16.msra.mxu0 %v607
  %901 = vmatpush.bf16.msra.mxu0 %v599
  %902 = vmatpush.bf16.msra.mxu0 %v591
  %903 = vmatpush.bf16.msra.mxu0 %v583
  %904 = vmatpush.bf16.msra.mxu0 %v575
  %905 = vmatpush.bf16.msra.mxu0 %v567
  %906 = vmatmul.bf16.gmra.mxu0 %v32
  %v907 = vpop.f32.mrf.mxu0
  %v908 = vadd.f32 %v167, %v907
  %v909 = vpop.f32.mrf.mxu0
  %910 = vdwg.mxu0
  %911 = vmatpush.bf16.msra.mxu0 %v687
  %912 = vmatpush.bf16.msra.mxu0 %v679
  %913 = vmatpush.bf16.msra.mxu0 %v671
  %914 = vmatpush.bf16.msra.mxu0 %v663
  %915 = vmatpush.bf16.msra.mxu0 %v655
  %916 = vmatpush.bf16.msra.mxu0 %v647
  %917 = vmatpush.bf16.msra.mxu0 %v639
  %918 = vmatpush.bf16.msra.mxu0 %v631
  %919 = vmatmul.bf16.gmra.mxu0 %v33
  %v920 = vpop.f32.mrf.mxu0
  %v921 = vadd.f32 %v908, %v920
  %v922 = vpop.f32.mrf.mxu0
  %923 = vdwg.mxu0
  %924 = vmatpush.bf16.msra.mxu0 %v624
  %925 = vmatpush.bf16.msra.mxu0 %v616
  %926 = vmatpush.bf16.msra.mxu0 %v608
  %927 = vmatpush.bf16.msra.mxu0 %v600
  %928 = vmatpush.bf16.msra.mxu0 %v592
  %929 = vmatpush.bf16.msra.mxu0 %v584
  %930 = vmatpush.bf16.msra.mxu0 %v576
  %931 = vmatpush.bf16.msra.mxu0 %v568
  %932 = vmatmul.bf16.gmra.mxu0 %v32
  %v933 = vpop.f32.mrf.mxu0
  %v934 = vadd.f32 %v168, %v933
  %v935 = vpop.f32.mrf.mxu0
  %936 = vdwg.mxu0
  %937 = vmatpush.bf16.msra.mxu0 %v688
  %938 = vmatpush.bf16.msra.mxu0 %v680
  %939 = vmatpush.bf16.msra.mxu0 %v672
  %940 = vmatpush.bf16.msra.mxu0 %v664
  %941 = vmatpush.bf16.msra.mxu0 %v656
  %942 = vmatpush.bf16.msra.mxu0 %v648
  %943 = vmatpush.bf16.msra.mxu0 %v640
  %944 = vmatpush.bf16.msra.mxu0 %v632
  %945 = vmatmul.bf16.gmra.mxu0 %v33
  %v946 = vpop.f32.mrf.mxu0
  %v947 = vadd.f32 %v934, %v946
  %v948 = vpop.f32.mrf.mxu0
  %949 = vdwg.mxu0
  %950 = vmatpush.bf16.msra.mxu0 %v625
  %951 = vmatpush.bf16.msra.mxu0 %v617
  %952 = vmatpush.bf16.msra.mxu0 %v609
  %953 = vmatpush.bf16.msra.mxu0 %v601
  %954 = vmatpush.bf16.msra.mxu0 %v593
  %955 = vmatpush.bf16.msra.mxu0 %v585
  %956 = vmatpush.bf16.msra.mxu0 %v577
  %957 = vmatpush.bf16.msra.mxu0 %v569
  %958 = vmatmul.bf16.gmra.mxu0 %v32
  %v959 = vpop.f32.mrf.mxu0
  %v960 = vadd.f32 %v169, %v959
  %v961 = vpop.f32.mrf.mxu0
  %962 = vdwg.mxu0
  %963 = vmatpush.bf16.msra.mxu0 %v689
  %964 = vmatpush.bf16.msra.mxu0 %v681
  %965 = vmatpush.bf16.msra.mxu0 %v673
  %966 = vmatpush.bf16.msra.mxu0 %v665
  %967 = vmatpush.bf16.msra.mxu0 %v657
  %968 = vmatpush.bf16.msra.mxu0 %v649
  %969 = vmatpush.bf16.msra.mxu0 %v641
  %970 = vmatpush.bf16.msra.mxu0 %v633
  %971 = vmatmul.bf16.gmra.mxu0 %v33
  %v972 = vpop.f32.mrf.mxu0
  %v973 = vadd.f32 %v960, %v972
  %v974 = vpop.f32.mrf.mxu0
  %975 = vdwg.mxu0
  %976 = vmatpush.bf16.msra.mxu0 %v626
  %977 = vmatpush.bf16.msra.mxu0 %v618
  %978 = vmatpush.bf16.msra.mxu0 %v610
  %979 = vmatpush.bf16.msra.mxu0 %v602
  %980 = vmatpush.bf16.msra.mxu0 %v594
  %981 = vmatpush.bf16.msra.mxu0 %v586
  %982 = vmatpush.bf16.msra.mxu0 %v578
  %983 = vmatpush.bf16.msra.mxu0 %v570
  %984 = vmatmul.bf16.gmra.mxu0 %v32
  %v985 = vpop.f32.mrf.mxu0
  %v986 = vadd.f32 %v170, %v985
  %v987 = vpop.f32.mrf.mxu0
  %988 = vdwg.mxu0
  %989 = vmatpush.bf16.msra.mxu0 %v690
  %990 = vmatpush.bf16.msra.mxu0 %v682
  %991 = vmatpush.bf16.msra.mxu0 %v674
  %992 = vmatpush.bf16.msra.mxu0 %v666
  %993 = vmatpush.bf16.msra.mxu0 %v658
  %994 = vmatpush.bf16.msra.mxu0 %v650
  %995 = vmatpush.bf16.msra.mxu0 %v642
  %996 = vmatpush.bf16.msra.mxu0 %v634
  %997 = vmatmul.bf16.gmra.mxu0 %v33
  %v998 = vpop.f32.mrf.mxu0
  %v999 = vadd.f32 %v986, %v998
  %v1000 = vpop.f32.mrf.mxu0
  %1001 = vdwg.mxu0
  %1002 = vmatpush.bf16.msra.mxu0 %v627
  %1003 = vmatpush.bf16.msra.mxu0 %v619
  %1004 = vmatpush.bf16.msra.mxu0 %v611
  %1005 = vmatpush.bf16.msra.mxu0 %v603
  %1006 = vmatpush.bf16.msra.mxu0 %v595
  %1007 = vmatpush.bf16.msra.mxu0 %v587
  %1008 = vmatpush.bf16.msra.mxu0 %v579
  %1009 = vmatpush.bf16.msra.mxu0 %v571
  %1010 = vmatmul.bf16.gmra.mxu0 %v32
  %v1011 = vpop.f32.mrf.mxu0
  %v1012 = vadd.f32 %v171, %v1011
  %v1013 = vpop.f32.mrf.mxu0
  %1014 = vdwg.mxu0
  %1015 = vmatpush.bf16.msra.mxu0 %v691
  %1016 = vmatpush.bf16.msra.mxu0 %v683
  %1017 = vmatpush.bf16.msra.mxu0 %v675
  %1018 = vmatpush.bf16.msra.mxu0 %v667
  %1019 = vmatpush.bf16.msra.mxu0 %v659
  %1020 = vmatpush.bf16.msra.mxu0 %v651
  %1021 = vmatpush.bf16.msra.mxu0 %v643
  %1022 = vmatpush.bf16.msra.mxu0 %v635
  %1023 = vmatmul.bf16.gmra.mxu0 %v33
  %v1024 = vpop.f32.mrf.mxu0
  %v1025 = vadd.f32 %v1012, %v1024
  %v1026 = vpop.f32.mrf.mxu0
  %1027 = vdwg.mxu0
  %v1028 = vmax.f32 %v843, 0.0
  %v1029 = vmax.f32 %v869, 0.0
  %v1030 = vmax.f32 %v895, 0.0
  %v1031 = vmax.f32 %v921, 0.0
  %v1032 = vmax.f32 %v947, 0.0
  %v1033 = vmax.f32 %v973, 0.0
  %v1034 = vmax.f32 %v999, 0.0
  %v1035 = vmax.f32 %v1025, 0.0
  %v1036 = vpack.c.bf16 %v1028, %v1028
  %v1037 = vpack.c.bf16 %v1029, %v1029
  %v1038 = vpack.c.bf16 %v1030, %v1030
  %v1039 = vpack.c.bf16 %v1031, %v1031
  %v1040 = vpack.c.bf16 %v1032, %v1032
  %v1041 = vpack.c.bf16 %v1033, %v1033
  %v1042 = vpack.c.bf16 %v1034, %v1034
  %v1043 = vpack.c.bf16 %v1035, %v1035
  %v1044 = vld [vmem:[%s3] sm:$0xff]
  %v1045 = vld [vmem:[%s3 + $0x8] sm:$0xff]
  %v1046 = vld [vmem:[%s3 + $0x10] sm:$0xff]
  %v1047 = vld [vmem:[%s3 + $0x18] sm:$0xff]
  %v1048 = vld [vmem:[%s3 + $0x20] sm:$0xff]
  %v1049 = vld [vmem:[%s3 + $0x28] sm:$0xff]
  %v1050 = vld [vmem:[%s3 + $0x30] sm:$0xff]
  %v1051 = vld [vmem:[%s3 + $0x38] sm:$0xff]
  %v1052 = vld [vmem:[%s3 + $0x40] sm:$0xff]
  %v1053 = vld [vmem:[%s3 + $0x48] sm:$0xff]
  %v1054 = vld [vmem:[%s3 + $0x50] sm:$0xff]
  %v1055 = vld [vmem:[%s3 + $0x58] sm:$0xff]
  %v1056 = vld [vmem:[%s3 + $0x60] sm:$0xff]
  %v1057 = vld [vmem:[%s3 + $0x68] sm:$0xff]
  %v1058 = vld [vmem:[%s3 + $0x70] sm:$0xff]
  %v1059 = vld [vmem:[%s3 + $0x78] sm:$0xff]
  %v1060 = vld [vmem:[%s3 + $0x80] sm:$0xff]
  %v1061 = vld [vmem:[%s3 + $0x88] sm:$0xff]
  %v1062 = vld [vmem:[%s3 + $0x90] sm:$0xff]
  %v1063 = vld [vmem:[%s3 + $0x98] sm:$0xff]
  %v1064 = vld [vmem:[%s3 + $0xa0] sm:$0xff]
  %v1065 = vld [vmem:[%s3 + $0xa8] sm:$0xff]
  %v1066 = vld [vmem:[%s3 + $0xb0] sm:$0xff]
  %v1067 = vld [vmem:[%s3 + $0xb8] sm:$0xff]
  %v1068 = vld [vmem:[%s3 + $0xc0] sm:$0xff]
  %v1069 = vld [vmem:[%s3 + $0xc8] sm:$0xff]
  %v1070 = vld [vmem:[%s3 + $0xd0] sm:$0xff]
  %v1071 = vld [vmem:[%s3 + $0xd8] sm:$0xff]
  %v1072 = vld [vmem:[%s3 + $0xe0] sm:$0xff]
  %v1073 = vld [vmem:[%s3 + $0xe8] sm:$0xff]
  %v1074 = vld [vmem:[%s3 + $0xf0] sm:$0xff]
  %v1075 = vld [vmem:[%s3 + $0xf8] sm:$0xff]
  %v1076 = vld [vmem:[%s3 + $0x100] sm:$0xff]
  %v1077 = vld [vmem:[%s3 + $0x108] sm:$0xff]
  %v1078 = vld [vmem:[%s3 + $0x110] sm:$0xff]
  %v1079 = vld [vmem:[%s3 + $0x118] sm:$0xff]
  %v1080 = vld [vmem:[%s3 + $0x120] sm:$0xff]
  %v1081 = vld [vmem:[%s3 + $0x128] sm:$0xff]
  %v1082 = vld [vmem:[%s3 + $0x130] sm:$0xff]
  %v1083 = vld [vmem:[%s3 + $0x138] sm:$0xff]
  %v1084 = vld [vmem:[%s3 + $0x140] sm:$0xff]
  %v1085 = vld [vmem:[%s3 + $0x148] sm:$0xff]
  %v1086 = vld [vmem:[%s3 + $0x150] sm:$0xff]
  %v1087 = vld [vmem:[%s3 + $0x158] sm:$0xff]
  %v1088 = vld [vmem:[%s3 + $0x160] sm:$0xff]
  %v1089 = vld [vmem:[%s3 + $0x168] sm:$0xff]
  %v1090 = vld [vmem:[%s3 + $0x170] sm:$0xff]
  %v1091 = vld [vmem:[%s3 + $0x178] sm:$0xff]
  %v1092 = vld [vmem:[%s3 + $0x180] sm:$0xff]
  %v1093 = vld [vmem:[%s3 + $0x188] sm:$0xff]
  %v1094 = vld [vmem:[%s3 + $0x190] sm:$0xff]
  %v1095 = vld [vmem:[%s3 + $0x198] sm:$0xff]
  %v1096 = vld [vmem:[%s3 + $0x1a0] sm:$0xff]
  %v1097 = vld [vmem:[%s3 + $0x1a8] sm:$0xff]
  %v1098 = vld [vmem:[%s3 + $0x1b0] sm:$0xff]
  %v1099 = vld [vmem:[%s3 + $0x1b8] sm:$0xff]
  %v1100 = vld [vmem:[%s3 + $0x1c0] sm:$0xff]
  %v1101 = vld [vmem:[%s3 + $0x1c8] sm:$0xff]
  %v1102 = vld [vmem:[%s3 + $0x1d0] sm:$0xff]
  %v1103 = vld [vmem:[%s3 + $0x1d8] sm:$0xff]
  %v1104 = vld [vmem:[%s3 + $0x1e0] sm:$0xff]
  %v1105 = vld [vmem:[%s3 + $0x1e8] sm:$0xff]
  %v1106 = vld [vmem:[%s3 + $0x1f0] sm:$0xff]
  %v1107 = vld [vmem:[%s3 + $0x1f8] sm:$0xff]
  %v1108 = vld [vmem:[%s3 + $0x200] sm:$0xff]
  %v1109 = vld [vmem:[%s3 + $0x208] sm:$0xff]
  %v1110 = vld [vmem:[%s3 + $0x210] sm:$0xff]
  %v1111 = vld [vmem:[%s3 + $0x218] sm:$0xff]
  %v1112 = vld [vmem:[%s3 + $0x220] sm:$0xff]
  %v1113 = vld [vmem:[%s3 + $0x228] sm:$0xff]
  %v1114 = vld [vmem:[%s3 + $0x230] sm:$0xff]
  %v1115 = vld [vmem:[%s3 + $0x238] sm:$0xff]
  %v1116 = vld [vmem:[%s3 + $0x240] sm:$0xff]
  %v1117 = vld [vmem:[%s3 + $0x248] sm:$0xff]
  %v1118 = vld [vmem:[%s3 + $0x250] sm:$0xff]
  %v1119 = vld [vmem:[%s3 + $0x258] sm:$0xff]
  %v1120 = vld [vmem:[%s3 + $0x260] sm:$0xff]
  %v1121 = vld [vmem:[%s3 + $0x268] sm:$0xff]
  %v1122 = vld [vmem:[%s3 + $0x270] sm:$0xff]
  %v1123 = vld [vmem:[%s3 + $0x278] sm:$0xff]
  %v1124 = vld [vmem:[%s3 + $0x280] sm:$0xff]
  %v1125 = vld [vmem:[%s3 + $0x288] sm:$0xff]
  %v1126 = vld [vmem:[%s3 + $0x290] sm:$0xff]
  %v1127 = vld [vmem:[%s3 + $0x298] sm:$0xff]
  %v1128 = vld [vmem:[%s3 + $0x2a0] sm:$0xff]
  %v1129 = vld [vmem:[%s3 + $0x2a8] sm:$0xff]
  %v1130 = vld [vmem:[%s3 + $0x2b0] sm:$0xff]
  %v1131 = vld [vmem:[%s3 + $0x2b8] sm:$0xff]
  %v1132 = vld [vmem:[%s3 + $0x2c0] sm:$0xff]
  %v1133 = vld [vmem:[%s3 + $0x2c8] sm:$0xff]
  %v1134 = vld [vmem:[%s3 + $0x2d0] sm:$0xff]
  %v1135 = vld [vmem:[%s3 + $0x2d8] sm:$0xff]
  %v1136 = vld [vmem:[%s3 + $0x2e0] sm:$0xff]
  %v1137 = vld [vmem:[%s3 + $0x2e8] sm:$0xff]
  %v1138 = vld [vmem:[%s3 + $0x2f0] sm:$0xff]
  %v1139 = vld [vmem:[%s3 + $0x2f8] sm:$0xff]
  %v1140 = vld [vmem:[%s3 + $0x300] sm:$0xff]
  %v1141 = vld [vmem:[%s3 + $0x308] sm:$0xff]
  %v1142 = vld [vmem:[%s3 + $0x310] sm:$0xff]
  %v1143 = vld [vmem:[%s3 + $0x318] sm:$0xff]
  %v1144 = vld [vmem:[%s3 + $0x320] sm:$0xff]
  %v1145 = vld [vmem:[%s3 + $0x328] sm:$0xff]
  %v1146 = vld [vmem:[%s3 + $0x330] sm:$0xff]
  %v1147 = vld [vmem:[%s3 + $0x338] sm:$0xff]
  %v1148 = vld [vmem:[%s3 + $0x340] sm:$0xff]
  %v1149 = vld [vmem:[%s3 + $0x348] sm:$0xff]
  %v1150 = vld [vmem:[%s3 + $0x350] sm:$0xff]
  %v1151 = vld [vmem:[%s3 + $0x358] sm:$0xff]
  %v1152 = vld [vmem:[%s3 + $0x360] sm:$0xff]
  %v1153 = vld [vmem:[%s3 + $0x368] sm:$0xff]
  %v1154 = vld [vmem:[%s3 + $0x370] sm:$0xff]
  %v1155 = vld [vmem:[%s3 + $0x378] sm:$0xff]
  %v1156 = vld [vmem:[%s3 + $0x380] sm:$0xff]
  %v1157 = vld [vmem:[%s3 + $0x388] sm:$0xff]
  %v1158 = vld [vmem:[%s3 + $0x390] sm:$0xff]
  %v1159 = vld [vmem:[%s3 + $0x398] sm:$0xff]
  %v1160 = vld [vmem:[%s3 + $0x3a0] sm:$0xff]
  %v1161 = vld [vmem:[%s3 + $0x3a8] sm:$0xff]
  %v1162 = vld [vmem:[%s3 + $0x3b0] sm:$0xff]
  %v1163 = vld [vmem:[%s3 + $0x3b8] sm:$0xff]
  %v1164 = vld [vmem:[%s3 + $0x3c0] sm:$0xff]
  %v1165 = vld [vmem:[%s3 + $0x3c8] sm:$0xff]
  %v1166 = vld [vmem:[%s3 + $0x3d0] sm:$0xff]
  %v1167 = vld [vmem:[%s3 + $0x3d8] sm:$0xff]
  %v1168 = vld [vmem:[%s3 + $0x3e0] sm:$0xff]
  %v1169 = vld [vmem:[%s3 + $0x3e8] sm:$0xff]
  %v1170 = vld [vmem:[%s3 + $0x3f0] sm:$0xff]
  %v1171 = vld [vmem:[%s3 + $0x3f8] sm:$0xff]
  %v1172 = vld [vmem:[%s3 + $0x400] sm:$0xff]
  %v1173 = vld [vmem:[%s3 + $0x408] sm:$0xff]
  %v1174 = vld [vmem:[%s3 + $0x410] sm:$0xff]
  %v1175 = vld [vmem:[%s3 + $0x418] sm:$0xff]
  %v1176 = vld [vmem:[%s3 + $0x420] sm:$0xff]
  %v1177 = vld [vmem:[%s3 + $0x428] sm:$0xff]
  %v1178 = vld [vmem:[%s3 + $0x430] sm:$0xff]
  %v1179 = vld [vmem:[%s3 + $0x438] sm:$0xff]
  %v1180 = vld [vmem:[%s3 + $0x440] sm:$0xff]
  %v1181 = vld [vmem:[%s3 + $0x448] sm:$0xff]
  %v1182 = vld [vmem:[%s3 + $0x450] sm:$0xff]
  %v1183 = vld [vmem:[%s3 + $0x458] sm:$0xff]
  %v1184 = vld [vmem:[%s3 + $0x460] sm:$0xff]
  %v1185 = vld [vmem:[%s3 + $0x468] sm:$0xff]
  %v1186 = vld [vmem:[%s3 + $0x470] sm:$0xff]
  %v1187 = vld [vmem:[%s3 + $0x478] sm:$0xff]
  %v1188 = vld [vmem:[%s3 + $0x480] sm:$0xff]
  %v1189 = vld [vmem:[%s3 + $0x488] sm:$0xff]
  %v1190 = vld [vmem:[%s3 + $0x490] sm:$0xff]
  %v1191 = vld [vmem:[%s3 + $0x498] sm:$0xff]
  %v1192 = vld [vmem:[%s3 + $0x4a0] sm:$0xff]
  %v1193 = vld [vmem:[%s3 + $0x4a8] sm:$0xff]
  %v1194 = vld [vmem:[%s3 + $0x4b0] sm:$0xff]
  %v1195 = vld [vmem:[%s3 + $0x4b8] sm:$0xff]
  %v1196 = vld [vmem:[%s3 + $0x4c0] sm:$0xff]
  %v1197 = vld [vmem:[%s3 + $0x4c8] sm:$0xff]
  %v1198 = vld [vmem:[%s3 + $0x4d0] sm:$0xff]
  %v1199 = vld [vmem:[%s3 + $0x4d8] sm:$0xff]
  %v1200 = vld [vmem:[%s3 + $0x4e0] sm:$0xff]
  %v1201 = vld [vmem:[%s3 + $0x4e8] sm:$0xff]
  %v1202 = vld [vmem:[%s3 + $0x4f0] sm:$0xff]
  %v1203 = vld [vmem:[%s3 + $0x4f8] sm:$0xff]
  %v1204 = vld [vmem:[%s3 + $0x500] sm:$0xff]
  %v1205 = vld [vmem:[%s3 + $0x508] sm:$0xff]
  %v1206 = vld [vmem:[%s3 + $0x510] sm:$0xff]
  %v1207 = vld [vmem:[%s3 + $0x518] sm:$0xff]
  %v1208 = vld [vmem:[%s3 + $0x520] sm:$0xff]
  %v1209 = vld [vmem:[%s3 + $0x528] sm:$0xff]
  %v1210 = vld [vmem:[%s3 + $0x530] sm:$0xff]
  %v1211 = vld [vmem:[%s3 + $0x538] sm:$0xff]
  %v1212 = vld [vmem:[%s3 + $0x540] sm:$0xff]
  %v1213 = vld [vmem:[%s3 + $0x548] sm:$0xff]
  %v1214 = vld [vmem:[%s3 + $0x550] sm:$0xff]
  %v1215 = vld [vmem:[%s3 + $0x558] sm:$0xff]
  %v1216 = vld [vmem:[%s3 + $0x560] sm:$0xff]
  %v1217 = vld [vmem:[%s3 + $0x568] sm:$0xff]
  %v1218 = vld [vmem:[%s3 + $0x570] sm:$0xff]
  %v1219 = vld [vmem:[%s3 + $0x578] sm:$0xff]
  %v1220 = vld [vmem:[%s3 + $0x580] sm:$0xff]
  %v1221 = vld [vmem:[%s3 + $0x588] sm:$0xff]
  %v1222 = vld [vmem:[%s3 + $0x590] sm:$0xff]
  %v1223 = vld [vmem:[%s3 + $0x598] sm:$0xff]
  %v1224 = vld [vmem:[%s3 + $0x5a0] sm:$0xff]
  %v1225 = vld [vmem:[%s3 + $0x5a8] sm:$0xff]
  %v1226 = vld [vmem:[%s3 + $0x5b0] sm:$0xff]
  %v1227 = vld [vmem:[%s3 + $0x5b8] sm:$0xff]
  %v1228 = vld [vmem:[%s3 + $0x5c0] sm:$0xff]
  %v1229 = vld [vmem:[%s3 + $0x5c8] sm:$0xff]
  %v1230 = vld [vmem:[%s3 + $0x5d0] sm:$0xff]
  %v1231 = vld [vmem:[%s3 + $0x5d8] sm:$0xff]
  %v1232 = vld [vmem:[%s3 + $0x5e0] sm:$0xff]
  %v1233 = vld [vmem:[%s3 + $0x5e8] sm:$0xff]
  %v1234 = vld [vmem:[%s3 + $0x5f0] sm:$0xff]
  %v1235 = vld [vmem:[%s3 + $0x5f8] sm:$0xff]
  %v1236 = vld [vmem:[%s3 + $0x600] sm:$0xff]
  %v1237 = vld [vmem:[%s3 + $0x608] sm:$0xff]
  %v1238 = vld [vmem:[%s3 + $0x610] sm:$0xff]
  %v1239 = vld [vmem:[%s3 + $0x618] sm:$0xff]
  %v1240 = vld [vmem:[%s3 + $0x620] sm:$0xff]
  %v1241 = vld [vmem:[%s3 + $0x628] sm:$0xff]
  %v1242 = vld [vmem:[%s3 + $0x630] sm:$0xff]
  %v1243 = vld [vmem:[%s3 + $0x638] sm:$0xff]
  %v1244 = vld [vmem:[%s3 + $0x640] sm:$0xff]
  %v1245 = vld [vmem:[%s3 + $0x648] sm:$0xff]
  %v1246 = vld [vmem:[%s3 + $0x650] sm:$0xff]
  %v1247 = vld [vmem:[%s3 + $0x658] sm:$0xff]
  %v1248 = vld [vmem:[%s3 + $0x660] sm:$0xff]
  %v1249 = vld [vmem:[%s3 + $0x668] sm:$0xff]
  %v1250 = vld [vmem:[%s3 + $0x670] sm:$0xff]
  %v1251 = vld [vmem:[%s3 + $0x678] sm:$0xff]
  %v1252 = vld [vmem:[%s3 + $0x680] sm:$0xff]
  %v1253 = vld [vmem:[%s3 + $0x688] sm:$0xff]
  %v1254 = vld [vmem:[%s3 + $0x690] sm:$0xff]
  %v1255 = vld [vmem:[%s3 + $0x698] sm:$0xff]
  %v1256 = vld [vmem:[%s3 + $0x6a0] sm:$0xff]
  %v1257 = vld [vmem:[%s3 + $0x6a8] sm:$0xff]
  %v1258 = vld [vmem:[%s3 + $0x6b0] sm:$0xff]
  %v1259 = vld [vmem:[%s3 + $0x6b8] sm:$0xff]
  %v1260 = vld [vmem:[%s3 + $0x6c0] sm:$0xff]
  %v1261 = vld [vmem:[%s3 + $0x6c8] sm:$0xff]
  %v1262 = vld [vmem:[%s3 + $0x6d0] sm:$0xff]
  %v1263 = vld [vmem:[%s3 + $0x6d8] sm:$0xff]
  %v1264 = vld [vmem:[%s3 + $0x6e0] sm:$0xff]
  %v1265 = vld [vmem:[%s3 + $0x6e8] sm:$0xff]
  %v1266 = vld [vmem:[%s3 + $0x6f0] sm:$0xff]
  %v1267 = vld [vmem:[%s3 + $0x6f8] sm:$0xff]
  %v1268 = vld [vmem:[%s3 + $0x700] sm:$0xff]
  %v1269 = vld [vmem:[%s3 + $0x708] sm:$0xff]
  %v1270 = vld [vmem:[%s3 + $0x710] sm:$0xff]
  %v1271 = vld [vmem:[%s3 + $0x718] sm:$0xff]
  %v1272 = vld [vmem:[%s3 + $0x720] sm:$0xff]
  %v1273 = vld [vmem:[%s3 + $0x728] sm:$0xff]
  %v1274 = vld [vmem:[%s3 + $0x730] sm:$0xff]
  %v1275 = vld [vmem:[%s3 + $0x738] sm:$0xff]
  %v1276 = vld [vmem:[%s3 + $0x740] sm:$0xff]
  %v1277 = vld [vmem:[%s3 + $0x748] sm:$0xff]
  %v1278 = vld [vmem:[%s3 + $0x750] sm:$0xff]
  %v1279 = vld [vmem:[%s3 + $0x758] sm:$0xff]
  %v1280 = vld [vmem:[%s3 + $0x760] sm:$0xff]
  %v1281 = vld [vmem:[%s3 + $0x768] sm:$0xff]
  %v1282 = vld [vmem:[%s3 + $0x770] sm:$0xff]
  %v1283 = vld [vmem:[%s3 + $0x778] sm:$0xff]
  %v1284 = vld [vmem:[%s3 + $0x780] sm:$0xff]
  %v1285 = vld [vmem:[%s3 + $0x788] sm:$0xff]
  %v1286 = vld [vmem:[%s3 + $0x790] sm:$0xff]
  %v1287 = vld [vmem:[%s3 + $0x798] sm:$0xff]
  %v1288 = vld [vmem:[%s3 + $0x7a0] sm:$0xff]
  %v1289 = vld [vmem:[%s3 + $0x7a8] sm:$0xff]
  %v1290 = vld [vmem:[%s3 + $0x7b0] sm:$0xff]
  %v1291 = vld [vmem:[%s3 + $0x7b8] sm:$0xff]
  %v1292 = vld [vmem:[%s3 + $0x7c0] sm:$0xff]
  %v1293 = vld [vmem:[%s3 + $0x7c8] sm:$0xff]
  %v1294 = vld [vmem:[%s3 + $0x7d0] sm:$0xff]
  %v1295 = vld [vmem:[%s3 + $0x7d8] sm:$0xff]
  %v1296 = vld [vmem:[%s3 + $0x7e0] sm:$0xff]
  %v1297 = vld [vmem:[%s3 + $0x7e8] sm:$0xff]
  %v1298 = vld [vmem:[%s3 + $0x7f0] sm:$0xff]
  %v1299 = vld [vmem:[%s3 + $0x7f8] sm:$0xff]
  %v1300 = vld [vmem:[%s3 + $0x800] sm:$0xff]
  %v1301 = vld [vmem:[%s3 + $0x808] sm:$0xff]
  %v1302 = vld [vmem:[%s3 + $0x810] sm:$0xff]
  %v1303 = vld [vmem:[%s3 + $0x818] sm:$0xff]
  %v1304 = vld [vmem:[%s3 + $0x820] sm:$0xff]
  %v1305 = vld [vmem:[%s3 + $0x828] sm:$0xff]
  %v1306 = vld [vmem:[%s3 + $0x830] sm:$0xff]
  %v1307 = vld [vmem:[%s3 + $0x838] sm:$0xff]
  %v1308 = vld [vmem:[%s3 + $0x840] sm:$0xff]
  %v1309 = vld [vmem:[%s3 + $0x848] sm:$0xff]
  %v1310 = vld [vmem:[%s3 + $0x850] sm:$0xff]
  %v1311 = vld [vmem:[%s3 + $0x858] sm:$0xff]
  %v1312 = vld [vmem:[%s3 + $0x860] sm:$0xff]
  %v1313 = vld [vmem:[%s3 + $0x868] sm:$0xff]
  %v1314 = vld [vmem:[%s3 + $0x870] sm:$0xff]
  %v1315 = vld [vmem:[%s3 + $0x878] sm:$0xff]
  %v1316 = vld [vmem:[%s3 + $0x880] sm:$0xff]
  %v1317 = vld [vmem:[%s3 + $0x888] sm:$0xff]
  %v1318 = vld [vmem:[%s3 + $0x890] sm:$0xff]
  %v1319 = vld [vmem:[%s3 + $0x898] sm:$0xff]
  %v1320 = vld [vmem:[%s3 + $0x8a0] sm:$0xff]
  %v1321 = vld [vmem:[%s3 + $0x8a8] sm:$0xff]
  %v1322 = vld [vmem:[%s3 + $0x8b0] sm:$0xff]
  %v1323 = vld [vmem:[%s3 + $0x8b8] sm:$0xff]
  %v1324 = vld [vmem:[%s3 + $0x8c0] sm:$0xff]
  %v1325 = vld [vmem:[%s3 + $0x8c8] sm:$0xff]
  %v1326 = vld [vmem:[%s3 + $0x8d0] sm:$0xff]
  %v1327 = vld [vmem:[%s3 + $0x8d8] sm:$0xff]
  %v1328 = vld [vmem:[%s3 + $0x8e0] sm:$0xff]
  %v1329 = vld [vmem:[%s3 + $0x8e8] sm:$0xff]
  %v1330 = vld [vmem:[%s3 + $0x8f0] sm:$0xff]
  %v1331 = vld [vmem:[%s3 + $0x8f8] sm:$0xff]
  %v1332 = vld [vmem:[%s3 + $0x900] sm:$0xff]
  %v1333 = vld [vmem:[%s3 + $0x908] sm:$0xff]
  %v1334 = vld [vmem:[%s3 + $0x910] sm:$0xff]
  %v1335 = vld [vmem:[%s3 + $0x918] sm:$0xff]
  %v1336 = vld [vmem:[%s3 + $0x920] sm:$0xff]
  %v1337 = vld [vmem:[%s3 + $0x928] sm:$0xff]
  %v1338 = vld [vmem:[%s3 + $0x930] sm:$0xff]
  %v1339 = vld [vmem:[%s3 + $0x938] sm:$0xff]
  %v1340 = vld [vmem:[%s3 + $0x940] sm:$0xff]
  %v1341 = vld [vmem:[%s3 + $0x948] sm:$0xff]
  %v1342 = vld [vmem:[%s3 + $0x950] sm:$0xff]
  %v1343 = vld [vmem:[%s3 + $0x958] sm:$0xff]
  %v1344 = vld [vmem:[%s3 + $0x960] sm:$0xff]
  %v1345 = vld [vmem:[%s3 + $0x968] sm:$0xff]
  %v1346 = vld [vmem:[%s3 + $0x970] sm:$0xff]
  %v1347 = vld [vmem:[%s3 + $0x978] sm:$0xff]
  %v1348 = vld [vmem:[%s3 + $0x980] sm:$0xff]
  %v1349 = vld [vmem:[%s3 + $0x988] sm:$0xff]
  %v1350 = vld [vmem:[%s3 + $0x990] sm:$0xff]
  %v1351 = vld [vmem:[%s3 + $0x998] sm:$0xff]
  %v1352 = vld [vmem:[%s3 + $0x9a0] sm:$0xff]
  %v1353 = vld [vmem:[%s3 + $0x9a8] sm:$0xff]
  %v1354 = vld [vmem:[%s3 + $0x9b0] sm:$0xff]
  %v1355 = vld [vmem:[%s3 + $0x9b8] sm:$0xff]
  %v1356 = vld [vmem:[%s3 + $0x9c0] sm:$0xff]
  %v1357 = vld [vmem:[%s3 + $0x9c8] sm:$0xff]
  %v1358 = vld [vmem:[%s3 + $0x9d0] sm:$0xff]
  %v1359 = vld [vmem:[%s3 + $0x9d8] sm:$0xff]
  %v1360 = vld [vmem:[%s3 + $0x9e0] sm:$0xff]
  %v1361 = vld [vmem:[%s3 + $0x9e8] sm:$0xff]
  %v1362 = vld [vmem:[%s3 + $0x9f0] sm:$0xff]
  %v1363 = vld [vmem:[%s3 + $0x9f8] sm:$0xff]
  %v1364 = vld [vmem:[%s3 + $0xa00] sm:$0xff]
  %v1365 = vld [vmem:[%s3 + $0xa08] sm:$0xff]
  %v1366 = vld [vmem:[%s3 + $0xa10] sm:$0xff]
  %v1367 = vld [vmem:[%s3 + $0xa18] sm:$0xff]
  %v1368 = vld [vmem:[%s3 + $0xa20] sm:$0xff]
  %v1369 = vld [vmem:[%s3 + $0xa28] sm:$0xff]
  %v1370 = vld [vmem:[%s3 + $0xa30] sm:$0xff]
  %v1371 = vld [vmem:[%s3 + $0xa38] sm:$0xff]
  %v1372 = vld [vmem:[%s3 + $0xa40] sm:$0xff]
  %v1373 = vld [vmem:[%s3 + $0xa48] sm:$0xff]
  %v1374 = vld [vmem:[%s3 + $0xa50] sm:$0xff]
  %v1375 = vld [vmem:[%s3 + $0xa58] sm:$0xff]
  %v1376 = vld [vmem:[%s3 + $0xa60] sm:$0xff]
  %v1377 = vld [vmem:[%s3 + $0xa68] sm:$0xff]
  %v1378 = vld [vmem:[%s3 + $0xa70] sm:$0xff]
  %v1379 = vld [vmem:[%s3 + $0xa78] sm:$0xff]
  %v1380 = vld [vmem:[%s3 + $0xa80] sm:$0xff]
  %v1381 = vld [vmem:[%s3 + $0xa88] sm:$0xff]
  %v1382 = vld [vmem:[%s3 + $0xa90] sm:$0xff]
  %v1383 = vld [vmem:[%s3 + $0xa98] sm:$0xff]
  %v1384 = vld [vmem:[%s3 + $0xaa0] sm:$0xff]
  %v1385 = vld [vmem:[%s3 + $0xaa8] sm:$0xff]
  %v1386 = vld [vmem:[%s3 + $0xab0] sm:$0xff]
  %v1387 = vld [vmem:[%s3 + $0xab8] sm:$0xff]
  %v1388 = vld [vmem:[%s3 + $0xac0] sm:$0xff]
  %v1389 = vld [vmem:[%s3 + $0xac8] sm:$0xff]
  %v1390 = vld [vmem:[%s3 + $0xad0] sm:$0xff]
  %v1391 = vld [vmem:[%s3 + $0xad8] sm:$0xff]
  %v1392 = vld [vmem:[%s3 + $0xae0] sm:$0xff]
  %v1393 = vld [vmem:[%s3 + $0xae8] sm:$0xff]
  %v1394 = vld [vmem:[%s3 + $0xaf0] sm:$0xff]
  %v1395 = vld [vmem:[%s3 + $0xaf8] sm:$0xff]
  %v1396 = vld [vmem:[%s3 + $0xb00] sm:$0xff]
  %v1397 = vld [vmem:[%s3 + $0xb08] sm:$0xff]
  %v1398 = vld [vmem:[%s3 + $0xb10] sm:$0xff]
  %v1399 = vld [vmem:[%s3 + $0xb18] sm:$0xff]
  %v1400 = vld [vmem:[%s3 + $0xb20] sm:$0xff]
  %v1401 = vld [vmem:[%s3 + $0xb28] sm:$0xff]
  %v1402 = vld [vmem:[%s3 + $0xb30] sm:$0xff]
  %v1403 = vld [vmem:[%s3 + $0xb38] sm:$0xff]
  %v1404 = vld [vmem:[%s3 + $0xb40] sm:$0xff]
  %v1405 = vld [vmem:[%s3 + $0xb48] sm:$0xff]
  %v1406 = vld [vmem:[%s3 + $0xb50] sm:$0xff]
  %v1407 = vld [vmem:[%s3 + $0xb58] sm:$0xff]
  %v1408 = vld [vmem:[%s3 + $0xb60] sm:$0xff]
  %v1409 = vld [vmem:[%s3 + $0xb68] sm:$0xff]
  %v1410 = vld [vmem:[%s3 + $0xb70] sm:$0xff]
  %v1411 = vld [vmem:[%s3 + $0xb78] sm:$0xff]
  %v1412 = vld [vmem:[%s3 + $0xb80] sm:$0xff]
  %v1413 = vld [vmem:[%s3 + $0xb88] sm:$0xff]
  %v1414 = vld [vmem:[%s3 + $0xb90] sm:$0xff]
  %v1415 = vld [vmem:[%s3 + $0xb98] sm:$0xff]
  %v1416 = vld [vmem:[%s3 + $0xba0] sm:$0xff]
  %v1417 = vld [vmem:[%s3 + $0xba8] sm:$0xff]
  %v1418 = vld [vmem:[%s3 + $0xbb0] sm:$0xff]
  %v1419 = vld [vmem:[%s3 + $0xbb8] sm:$0xff]
  %v1420 = vld [vmem:[%s3 + $0xbc0] sm:$0xff]
  %v1421 = vld [vmem:[%s3 + $0xbc8] sm:$0xff]
  %v1422 = vld [vmem:[%s3 + $0xbd0] sm:$0xff]
  %v1423 = vld [vmem:[%s3 + $0xbd8] sm:$0xff]
  %v1424 = vld [vmem:[%s3 + $0xbe0] sm:$0xff]
  %v1425 = vld [vmem:[%s3 + $0xbe8] sm:$0xff]
  %v1426 = vld [vmem:[%s3 + $0xbf0] sm:$0xff]
  %v1427 = vld [vmem:[%s3 + $0xbf8] sm:$0xff]
  %v1428 = vld [vmem:[%s3 + $0xc00] sm:$0xff]
  %v1429 = vld [vmem:[%s3 + $0xc08] sm:$0xff]
  %v1430 = vld [vmem:[%s3 + $0xc10] sm:$0xff]
  %v1431 = vld [vmem:[%s3 + $0xc18] sm:$0xff]
  %v1432 = vld [vmem:[%s3 + $0xc20] sm:$0xff]
  %v1433 = vld [vmem:[%s3 + $0xc28] sm:$0xff]
  %v1434 = vld [vmem:[%s3 + $0xc30] sm:$0xff]
  %v1435 = vld [vmem:[%s3 + $0xc38] sm:$0xff]
  %v1436 = vld [vmem:[%s3 + $0xc40] sm:$0xff]
  %v1437 = vld [vmem:[%s3 + $0xc48] sm:$0xff]
  %v1438 = vld [vmem:[%s3 + $0xc50] sm:$0xff]
  %v1439 = vld [vmem:[%s3 + $0xc58] sm:$0xff]
  %v1440 = vld [vmem:[%s3 + $0xc60] sm:$0xff]
  %v1441 = vld [vmem:[%s3 + $0xc68] sm:$0xff]
  %v1442 = vld [vmem:[%s3 + $0xc70] sm:$0xff]
  %v1443 = vld [vmem:[%s3 + $0xc78] sm:$0xff]
  %v1444 = vld [vmem:[%s3 + $0xc80] sm:$0xff]
  %v1445 = vld [vmem:[%s3 + $0xc88] sm:$0xff]
  %v1446 = vld [vmem:[%s3 + $0xc90] sm:$0xff]
  %v1447 = vld [vmem:[%s3 + $0xc98] sm:$0xff]
  %v1448 = vld [vmem:[%s3 + $0xca0] sm:$0xff]
  %v1449 = vld [vmem:[%s3 + $0xca8] sm:$0xff]
  %v1450 = vld [vmem:[%s3 + $0xcb0] sm:$0xff]
  %v1451 = vld [vmem:[%s3 + $0xcb8] sm:$0xff]
  %v1452 = vld [vmem:[%s3 + $0xcc0] sm:$0xff]
  %v1453 = vld [vmem:[%s3 + $0xcc8] sm:$0xff]
  %v1454 = vld [vmem:[%s3 + $0xcd0] sm:$0xff]
  %v1455 = vld [vmem:[%s3 + $0xcd8] sm:$0xff]
  %v1456 = vld [vmem:[%s3 + $0xce0] sm:$0xff]
  %v1457 = vld [vmem:[%s3 + $0xce8] sm:$0xff]
  %v1458 = vld [vmem:[%s3 + $0xcf0] sm:$0xff]
  %v1459 = vld [vmem:[%s3 + $0xcf8] sm:$0xff]
  %v1460 = vld [vmem:[%s3 + $0xd00] sm:$0xff]
  %v1461 = vld [vmem:[%s3 + $0xd08] sm:$0xff]
  %v1462 = vld [vmem:[%s3 + $0xd10] sm:$0xff]
  %v1463 = vld [vmem:[%s3 + $0xd18] sm:$0xff]
  %v1464 = vld [vmem:[%s3 + $0xd20] sm:$0xff]
  %v1465 = vld [vmem:[%s3 + $0xd28] sm:$0xff]
  %v1466 = vld [vmem:[%s3 + $0xd30] sm:$0xff]
  %v1467 = vld [vmem:[%s3 + $0xd38] sm:$0xff]
  %v1468 = vld [vmem:[%s3 + $0xd40] sm:$0xff]
  %v1469 = vld [vmem:[%s3 + $0xd48] sm:$0xff]
  %v1470 = vld [vmem:[%s3 + $0xd50] sm:$0xff]
  %v1471 = vld [vmem:[%s3 + $0xd58] sm:$0xff]
  %v1472 = vld [vmem:[%s3 + $0xd60] sm:$0xff]
  %v1473 = vld [vmem:[%s3 + $0xd68] sm:$0xff]
  %v1474 = vld [vmem:[%s3 + $0xd70] sm:$0xff]
  %v1475 = vld [vmem:[%s3 + $0xd78] sm:$0xff]
  %v1476 = vld [vmem:[%s3 + $0xd80] sm:$0xff]
  %v1477 = vld [vmem:[%s3 + $0xd88] sm:$0xff]
  %v1478 = vld [vmem:[%s3 + $0xd90] sm:$0xff]
  %v1479 = vld [vmem:[%s3 + $0xd98] sm:$0xff]
  %v1480 = vld [vmem:[%s3 + $0xda0] sm:$0xff]
  %v1481 = vld [vmem:[%s3 + $0xda8] sm:$0xff]
  %v1482 = vld [vmem:[%s3 + $0xdb0] sm:$0xff]
  %v1483 = vld [vmem:[%s3 + $0xdb8] sm:$0xff]
  %v1484 = vld [vmem:[%s3 + $0xdc0] sm:$0xff]
  %v1485 = vld [vmem:[%s3 + $0xdc8] sm:$0xff]
  %v1486 = vld [vmem:[%s3 + $0xdd0] sm:$0xff]
  %v1487 = vld [vmem:[%s3 + $0xdd8] sm:$0xff]
  %v1488 = vld [vmem:[%s3 + $0xde0] sm:$0xff]
  %v1489 = vld [vmem:[%s3 + $0xde8] sm:$0xff]
  %v1490 = vld [vmem:[%s3 + $0xdf0] sm:$0xff]
  %v1491 = vld [vmem:[%s3 + $0xdf8] sm:$0xff]
  %v1492 = vld [vmem:[%s3 + $0xe00] sm:$0xff]
  %v1493 = vld [vmem:[%s3 + $0xe08] sm:$0xff]
  %v1494 = vld [vmem:[%s3 + $0xe10] sm:$0xff]
  %v1495 = vld [vmem:[%s3 + $0xe18] sm:$0xff]
  %v1496 = vld [vmem:[%s3 + $0xe20] sm:$0xff]
  %v1497 = vld [vmem:[%s3 + $0xe28] sm:$0xff]
  %v1498 = vld [vmem:[%s3 + $0xe30] sm:$0xff]
  %v1499 = vld [vmem:[%s3 + $0xe38] sm:$0xff]
  %v1500 = vld [vmem:[%s3 + $0xe40] sm:$0xff]
  %v1501 = vld [vmem:[%s3 + $0xe48] sm:$0xff]
  %v1502 = vld [vmem:[%s3 + $0xe50] sm:$0xff]
  %v1503 = vld [vmem:[%s3 + $0xe58] sm:$0xff]
  %v1504 = vld [vmem:[%s3 + $0xe60] sm:$0xff]
  %v1505 = vld [vmem:[%s3 + $0xe68] sm:$0xff]
  %v1506 = vld [vmem:[%s3 + $0xe70] sm:$0xff]
  %v1507 = vld [vmem:[%s3 + $0xe78] sm:$0xff]
  %v1508 = vld [vmem:[%s3 + $0xe80] sm:$0xff]
  %v1509 = vld [vmem:[%s3 + $0xe88] sm:$0xff]
  %v1510 = vld [vmem:[%s3 + $0xe90] sm:$0xff]
  %v1511 = vld [vmem:[%s3 + $0xe98] sm:$0xff]
  %v1512 = vld [vmem:[%s3 + $0xea0] sm:$0xff]
  %v1513 = vld [vmem:[%s3 + $0xea8] sm:$0xff]
  %v1514 = vld [vmem:[%s3 + $0xeb0] sm:$0xff]
  %v1515 = vld [vmem:[%s3 + $0xeb8] sm:$0xff]
  %v1516 = vld [vmem:[%s3 + $0xec0] sm:$0xff]
  %v1517 = vld [vmem:[%s3 + $0xec8] sm:$0xff]
  %v1518 = vld [vmem:[%s3 + $0xed0] sm:$0xff]
  %v1519 = vld [vmem:[%s3 + $0xed8] sm:$0xff]
  %v1520 = vld [vmem:[%s3 + $0xee0] sm:$0xff]
  %v1521 = vld [vmem:[%s3 + $0xee8] sm:$0xff]
  %v1522 = vld [vmem:[%s3 + $0xef0] sm:$0xff]
  %v1523 = vld [vmem:[%s3 + $0xef8] sm:$0xff]
  %v1524 = vld [vmem:[%s3 + $0xf00] sm:$0xff]
  %v1525 = vld [vmem:[%s3 + $0xf08] sm:$0xff]
  %v1526 = vld [vmem:[%s3 + $0xf10] sm:$0xff]
  %v1527 = vld [vmem:[%s3 + $0xf18] sm:$0xff]
  %v1528 = vld [vmem:[%s3 + $0xf20] sm:$0xff]
  %v1529 = vld [vmem:[%s3 + $0xf28] sm:$0xff]
  %v1530 = vld [vmem:[%s3 + $0xf30] sm:$0xff]
  %v1531 = vld [vmem:[%s3 + $0xf38] sm:$0xff]
  %v1532 = vld [vmem:[%s3 + $0xf40] sm:$0xff]
  %v1533 = vld [vmem:[%s3 + $0xf48] sm:$0xff]
  %v1534 = vld [vmem:[%s3 + $0xf50] sm:$0xff]
  %v1535 = vld [vmem:[%s3 + $0xf58] sm:$0xff]
  %v1536 = vld [vmem:[%s3 + $0xf60] sm:$0xff]
  %v1537 = vld [vmem:[%s3 + $0xf68] sm:$0xff]
  %v1538 = vld [vmem:[%s3 + $0xf70] sm:$0xff]
  %v1539 = vld [vmem:[%s3 + $0xf78] sm:$0xff]
  %v1540 = vld [vmem:[%s3 + $0xf80] sm:$0xff]
  %v1541 = vld [vmem:[%s3 + $0xf88] sm:$0xff]
  %v1542 = vld [vmem:[%s3 + $0xf90] sm:$0xff]
  %v1543 = vld [vmem:[%s3 + $0xf98] sm:$0xff]
  %v1544 = vld [vmem:[%s3 + $0xfa0] sm:$0xff]
  %v1545 = vld [vmem:[%s3 + $0xfa8] sm:$0xff]
  %v1546 = vld [vmem:[%s3 + $0xfb0] sm:$0xff]
  %v1547 = vld [vmem:[%s3 + $0xfb8] sm:$0xff]
  %v1548 = vld [vmem:[%s3 + $0xfc0] sm:$0xff]
  %v1549 = vld [vmem:[%s3 + $0xfc8] sm:$0xff]
  %v1550 = vld [vmem:[%s3 + $0xfd0] sm:$0xff]
  %v1551 = vld [vmem:[%s3 + $0xfd8] sm:$0xff]
  %v1552 = vld [vmem:[%s3 + $0xfe0] sm:$0xff]
  %v1553 = vld [vmem:[%s3 + $0xfe8] sm:$0xff]
  %v1554 = vld [vmem:[%s3 + $0xff0] sm:$0xff]
  %v1555 = vld [vmem:[%s3 + $0xff8] sm:$0xff]
  %v1556 = vld [vmem:[%s4] sm:$0xff]
  %v1558 = vperm.slane %v1556, 0
  %v1559 = vperm.slane %v1556, 1
  %v1560 = vperm.slane %v1556, 2
  %v1561 = vperm.slane %v1556, 3
  %v1562 = vperm.slane %v1556, 4
  %v1563 = vperm.slane %v1556, 5
  %v1564 = vperm.slane %v1556, 6
  %v1565 = vperm.slane %v1556, 7
  %v2086 = vunpack.c.l.b16 %v1044
  %v2087 = vunpack.c.h.b16 %v1044
  %v2088 = vunpack.c.l.b16 %v1045
  %v2089 = vunpack.c.h.b16 %v1045
  %v2090 = vunpack.c.l.b16 %v1046
  %v2091 = vunpack.c.h.b16 %v1046
  %v2092 = vunpack.c.l.b16 %v1047
  %v2093 = vunpack.c.h.b16 %v1047
  %v2094 = vunpack.c.l.b16 %v1048
  %v2095 = vunpack.c.h.b16 %v1048
  %v2096 = vunpack.c.l.b16 %v1049
  %v2097 = vunpack.c.h.b16 %v1049
  %v2098 = vunpack.c.l.b16 %v1050
  %v2099 = vunpack.c.h.b16 %v1050
  %v2100 = vunpack.c.l.b16 %v1051
  %v2101 = vunpack.c.h.b16 %v1051
  %v2102 = vunpack.c.l.b16 %v1052
  %v2103 = vunpack.c.h.b16 %v1052
  %v2104 = vunpack.c.l.b16 %v1053
  %v2105 = vunpack.c.h.b16 %v1053
  %v2106 = vunpack.c.l.b16 %v1054
  %v2107 = vunpack.c.h.b16 %v1054
  %v2108 = vunpack.c.l.b16 %v1055
  %v2109 = vunpack.c.h.b16 %v1055
  %v2110 = vunpack.c.l.b16 %v1056
  %v2111 = vunpack.c.h.b16 %v1056
  %v2112 = vunpack.c.l.b16 %v1057
  %v2113 = vunpack.c.h.b16 %v1057
  %v2114 = vunpack.c.l.b16 %v1058
  %v2115 = vunpack.c.h.b16 %v1058
  %v2116 = vunpack.c.l.b16 %v1059
  %v2117 = vunpack.c.h.b16 %v1059
  %v2118 = vunpack.c.l.b16 %v1060
  %v2119 = vunpack.c.h.b16 %v1060
  %v2120 = vunpack.c.l.b16 %v1061
  %v2121 = vunpack.c.h.b16 %v1061
  %v2122 = vunpack.c.l.b16 %v1062
  %v2123 = vunpack.c.h.b16 %v1062
  %v2124 = vunpack.c.l.b16 %v1063
  %v2125 = vunpack.c.h.b16 %v1063
  %v2126 = vunpack.c.l.b16 %v1064
  %v2127 = vunpack.c.h.b16 %v1064
  %v2128 = vunpack.c.l.b16 %v1065
  %v2129 = vunpack.c.h.b16 %v1065
  %v2130 = vunpack.c.l.b16 %v1066
  %v2131 = vunpack.c.h.b16 %v1066
  %v2132 = vunpack.c.l.b16 %v1067
  %v2133 = vunpack.c.h.b16 %v1067
  %v2134 = vunpack.c.l.b16 %v1068
  %v2135 = vunpack.c.h.b16 %v1068
  %v2136 = vunpack.c.l.b16 %v1069
  %v2137 = vunpack.c.h.b16 %v1069
  %v2138 = vunpack.c.l.b16 %v1070
  %v2139 = vunpack.c.h.b16 %v1070
  %v2140 = vunpack.c.l.b16 %v1071
  %v2141 = vunpack.c.h.b16 %v1071
  %v2142 = vunpack.c.l.b16 %v1072
  %v2143 = vunpack.c.h.b16 %v1072
  %v2144 = vunpack.c.l.b16 %v1073
  %v2145 = vunpack.c.h.b16 %v1073
  %v2146 = vunpack.c.l.b16 %v1074
  %v2147 = vunpack.c.h.b16 %v1074
  %v2148 = vunpack.c.l.b16 %v1075
  %v2149 = vunpack.c.h.b16 %v1075
  %v2150 = vunpack.c.l.b16 %v1076
  %v2151 = vunpack.c.h.b16 %v1076
  %v2152 = vunpack.c.l.b16 %v1077
  %v2153 = vunpack.c.h.b16 %v1077
  %v2154 = vunpack.c.l.b16 %v1078
  %v2155 = vunpack.c.h.b16 %v1078
  %v2156 = vunpack.c.l.b16 %v1079
  %v2157 = vunpack.c.h.b16 %v1079
  %v2158 = vunpack.c.l.b16 %v1080
  %v2159 = vunpack.c.h.b16 %v1080
  %v2160 = vunpack.c.l.b16 %v1081
  %v2161 = vunpack.c.h.b16 %v1081
  %v2162 = vunpack.c.l.b16 %v1082
  %v2163 = vunpack.c.h.b16 %v1082
  %v2164 = vunpack.c.l.b16 %v1083
  %v2165 = vunpack.c.h.b16 %v1083
  %v2166 = vunpack.c.l.b16 %v1084
  %v2167 = vunpack.c.h.b16 %v1084
  %v2168 = vunpack.c.l.b16 %v1085
  %v2169 = vunpack.c.h.b16 %v1085
  %v2170 = vunpack.c.l.b16 %v1086
  %v2171 = vunpack.c.h.b16 %v1086
  %v2172 = vunpack.c.l.b16 %v1087
  %v2173 = vunpack.c.h.b16 %v1087
  %v2174 = vunpack.c.l.b16 %v1088
  %v2175 = vunpack.c.h.b16 %v1088
  %v2176 = vunpack.c.l.b16 %v1089
  %v2177 = vunpack.c.h.b16 %v1089
  %v2178 = vunpack.c.l.b16 %v1090
  %v2179 = vunpack.c.h.b16 %v1090
  %v2180 = vunpack.c.l.b16 %v1091
  %v2181 = vunpack.c.h.b16 %v1091
  %v2182 = vunpack.c.l.b16 %v1092
  %v2183 = vunpack.c.h.b16 %v1092
  %v2184 = vunpack.c.l.b16 %v1093
  %v2185 = vunpack.c.h.b16 %v1093
  %v2186 = vunpack.c.l.b16 %v1094
  %v2187 = vunpack.c.h.b16 %v1094
  %v2188 = vunpack.c.l.b16 %v1095
  %v2189 = vunpack.c.h.b16 %v1095
  %v2190 = vunpack.c.l.b16 %v1096
  %v2191 = vunpack.c.h.b16 %v1096
  %v2192 = vunpack.c.l.b16 %v1097
  %v2193 = vunpack.c.h.b16 %v1097
  %v2194 = vunpack.c.l.b16 %v1098
  %v2195 = vunpack.c.h.b16 %v1098
  %v2196 = vunpack.c.l.b16 %v1099
  %v2197 = vunpack.c.h.b16 %v1099
  %v2198 = vunpack.c.l.b16 %v1100
  %v2199 = vunpack.c.h.b16 %v1100
  %v2200 = vunpack.c.l.b16 %v1101
  %v2201 = vunpack.c.h.b16 %v1101
  %v2202 = vunpack.c.l.b16 %v1102
  %v2203 = vunpack.c.h.b16 %v1102
  %v2204 = vunpack.c.l.b16 %v1103
  %v2205 = vunpack.c.h.b16 %v1103
  %v2206 = vunpack.c.l.b16 %v1104
  %v2207 = vunpack.c.h.b16 %v1104
  %v2208 = vunpack.c.l.b16 %v1105
  %v2209 = vunpack.c.h.b16 %v1105
  %v2210 = vunpack.c.l.b16 %v1106
  %v2211 = vunpack.c.h.b16 %v1106
  %v2212 = vunpack.c.l.b16 %v1107
  %v2213 = vunpack.c.h.b16 %v1107
  %v2214 = vunpack.c.l.b16 %v1108
  %v2215 = vunpack.c.h.b16 %v1108
  %v2216 = vunpack.c.l.b16 %v1109
  %v2217 = vunpack.c.h.b16 %v1109
  %v2218 = vunpack.c.l.b16 %v1110
  %v2219 = vunpack.c.h.b16 %v1110
  %v2220 = vunpack.c.l.b16 %v1111
  %v2221 = vunpack.c.h.b16 %v1111
  %v2222 = vunpack.c.l.b16 %v1112
  %v2223 = vunpack.c.h.b16 %v1112
  %v2224 = vunpack.c.l.b16 %v1113
  %v2225 = vunpack.c.h.b16 %v1113
  %v2226 = vunpack.c.l.b16 %v1114
  %v2227 = vunpack.c.h.b16 %v1114
  %v2228 = vunpack.c.l.b16 %v1115
  %v2229 = vunpack.c.h.b16 %v1115
  %v2230 = vunpack.c.l.b16 %v1116
  %v2231 = vunpack.c.h.b16 %v1116
  %v2232 = vunpack.c.l.b16 %v1117
  %v2233 = vunpack.c.h.b16 %v1117
  %v2234 = vunpack.c.l.b16 %v1118
  %v2235 = vunpack.c.h.b16 %v1118
  %v2236 = vunpack.c.l.b16 %v1119
  %v2237 = vunpack.c.h.b16 %v1119
  %v2238 = vunpack.c.l.b16 %v1120
  %v2239 = vunpack.c.h.b16 %v1120
  %v2240 = vunpack.c.l.b16 %v1121
  %v2241 = vunpack.c.h.b16 %v1121
  %v2242 = vunpack.c.l.b16 %v1122
  %v2243 = vunpack.c.h.b16 %v1122
  %v2244 = vunpack.c.l.b16 %v1123
  %v2245 = vunpack.c.h.b16 %v1123
  %v2246 = vunpack.c.l.b16 %v1124
  %v2247 = vunpack.c.h.b16 %v1124
  %v2248 = vunpack.c.l.b16 %v1125
  %v2249 = vunpack.c.h.b16 %v1125
  %v2250 = vunpack.c.l.b16 %v1126
  %v2251 = vunpack.c.h.b16 %v1126
  %v2252 = vunpack.c.l.b16 %v1127
  %v2253 = vunpack.c.h.b16 %v1127
  %v2254 = vunpack.c.l.b16 %v1128
  %v2255 = vunpack.c.h.b16 %v1128
  %v2256 = vunpack.c.l.b16 %v1129
  %v2257 = vunpack.c.h.b16 %v1129
  %v2258 = vunpack.c.l.b16 %v1130
  %v2259 = vunpack.c.h.b16 %v1130
  %v2260 = vunpack.c.l.b16 %v1131
  %v2261 = vunpack.c.h.b16 %v1131
  %v2262 = vunpack.c.l.b16 %v1132
  %v2263 = vunpack.c.h.b16 %v1132
  %v2264 = vunpack.c.l.b16 %v1133
  %v2265 = vunpack.c.h.b16 %v1133
  %v2266 = vunpack.c.l.b16 %v1134
  %v2267 = vunpack.c.h.b16 %v1134
  %v2268 = vunpack.c.l.b16 %v1135
  %v2269 = vunpack.c.h.b16 %v1135
  %v2270 = vunpack.c.l.b16 %v1136
  %v2271 = vunpack.c.h.b16 %v1136
  %v2272 = vunpack.c.l.b16 %v1137
  %v2273 = vunpack.c.h.b16 %v1137
  %v2274 = vunpack.c.l.b16 %v1138
  %v2275 = vunpack.c.h.b16 %v1138
  %v2276 = vunpack.c.l.b16 %v1139
  %v2277 = vunpack.c.h.b16 %v1139
  %v2278 = vunpack.c.l.b16 %v1140
  %v2279 = vunpack.c.h.b16 %v1140
  %v2280 = vunpack.c.l.b16 %v1141
  %v2281 = vunpack.c.h.b16 %v1141
  %v2282 = vunpack.c.l.b16 %v1142
  %v2283 = vunpack.c.h.b16 %v1142
  %v2284 = vunpack.c.l.b16 %v1143
  %v2285 = vunpack.c.h.b16 %v1143
  %v2286 = vunpack.c.l.b16 %v1144
  %v2287 = vunpack.c.h.b16 %v1144
  %v2288 = vunpack.c.l.b16 %v1145
  %v2289 = vunpack.c.h.b16 %v1145
  %v2290 = vunpack.c.l.b16 %v1146
  %v2291 = vunpack.c.h.b16 %v1146
  %v2292 = vunpack.c.l.b16 %v1147
  %v2293 = vunpack.c.h.b16 %v1147
  %v2294 = vunpack.c.l.b16 %v1148
  %v2295 = vunpack.c.h.b16 %v1148
  %v2296 = vunpack.c.l.b16 %v1149
  %v2297 = vunpack.c.h.b16 %v1149
  %v2298 = vunpack.c.l.b16 %v1150
  %v2299 = vunpack.c.h.b16 %v1150
  %v2300 = vunpack.c.l.b16 %v1151
  %v2301 = vunpack.c.h.b16 %v1151
  %v2302 = vunpack.c.l.b16 %v1152
  %v2303 = vunpack.c.h.b16 %v1152
  %v2304 = vunpack.c.l.b16 %v1153
  %v2305 = vunpack.c.h.b16 %v1153
  %v2306 = vunpack.c.l.b16 %v1154
  %v2307 = vunpack.c.h.b16 %v1154
  %v2308 = vunpack.c.l.b16 %v1155
  %v2309 = vunpack.c.h.b16 %v1155
  %v2310 = vunpack.c.l.b16 %v1156
  %v2311 = vunpack.c.h.b16 %v1156
  %v2312 = vunpack.c.l.b16 %v1157
  %v2313 = vunpack.c.h.b16 %v1157
  %v2314 = vunpack.c.l.b16 %v1158
  %v2315 = vunpack.c.h.b16 %v1158
  %v2316 = vunpack.c.l.b16 %v1159
  %v2317 = vunpack.c.h.b16 %v1159
  %v2318 = vunpack.c.l.b16 %v1160
  %v2319 = vunpack.c.h.b16 %v1160
  %v2320 = vunpack.c.l.b16 %v1161
  %v2321 = vunpack.c.h.b16 %v1161
  %v2322 = vunpack.c.l.b16 %v1162
  %v2323 = vunpack.c.h.b16 %v1162
  %v2324 = vunpack.c.l.b16 %v1163
  %v2325 = vunpack.c.h.b16 %v1163
  %v2326 = vunpack.c.l.b16 %v1164
  %v2327 = vunpack.c.h.b16 %v1164
  %v2328 = vunpack.c.l.b16 %v1165
  %v2329 = vunpack.c.h.b16 %v1165
  %v2330 = vunpack.c.l.b16 %v1166
  %v2331 = vunpack.c.h.b16 %v1166
  %v2332 = vunpack.c.l.b16 %v1167
  %v2333 = vunpack.c.h.b16 %v1167
  %v2334 = vunpack.c.l.b16 %v1168
  %v2335 = vunpack.c.h.b16 %v1168
  %v2336 = vunpack.c.l.b16 %v1169
  %v2337 = vunpack.c.h.b16 %v1169
  %v2338 = vunpack.c.l.b16 %v1170
  %v2339 = vunpack.c.h.b16 %v1170
  %v2340 = vunpack.c.l.b16 %v1171
  %v2341 = vunpack.c.h.b16 %v1171
  %v2342 = vunpack.c.l.b16 %v1172
  %v2343 = vunpack.c.h.b16 %v1172
  %v2344 = vunpack.c.l.b16 %v1173
  %v2345 = vunpack.c.h.b16 %v1173
  %v2346 = vunpack.c.l.b16 %v1174
  %v2347 = vunpack.c.h.b16 %v1174
  %v2348 = vunpack.c.l.b16 %v1175
  %v2349 = vunpack.c.h.b16 %v1175
  %v2350 = vunpack.c.l.b16 %v1176
  %v2351 = vunpack.c.h.b16 %v1176
  %v2352 = vunpack.c.l.b16 %v1177
  %v2353 = vunpack.c.h.b16 %v1177
  %v2354 = vunpack.c.l.b16 %v1178
  %v2355 = vunpack.c.h.b16 %v1178
  %v2356 = vunpack.c.l.b16 %v1179
  %v2357 = vunpack.c.h.b16 %v1179
  %v2358 = vunpack.c.l.b16 %v1180
  %v2359 = vunpack.c.h.b16 %v1180
  %v2360 = vunpack.c.l.b16 %v1181
  %v2361 = vunpack.c.h.b16 %v1181
  %v2362 = vunpack.c.l.b16 %v1182
  %v2363 = vunpack.c.h.b16 %v1182
  %v2364 = vunpack.c.l.b16 %v1183
  %v2365 = vunpack.c.h.b16 %v1183
  %v2366 = vunpack.c.l.b16 %v1184
  %v2367 = vunpack.c.h.b16 %v1184
  %v2368 = vunpack.c.l.b16 %v1185
  %v2369 = vunpack.c.h.b16 %v1185
  %v2370 = vunpack.c.l.b16 %v1186
  %v2371 = vunpack.c.h.b16 %v1186
  %v2372 = vunpack.c.l.b16 %v1187
  %v2373 = vunpack.c.h.b16 %v1187
  %v2374 = vunpack.c.l.b16 %v1188
  %v2375 = vunpack.c.h.b16 %v1188
  %v2376 = vunpack.c.l.b16 %v1189
  %v2377 = vunpack.c.h.b16 %v1189
  %v2378 = vunpack.c.l.b16 %v1190
  %v2379 = vunpack.c.h.b16 %v1190
  %v2380 = vunpack.c.l.b16 %v1191
  %v2381 = vunpack.c.h.b16 %v1191
  %v2382 = vunpack.c.l.b16 %v1192
  %v2383 = vunpack.c.h.b16 %v1192
  %v2384 = vunpack.c.l.b16 %v1193
  %v2385 = vunpack.c.h.b16 %v1193
  %v2386 = vunpack.c.l.b16 %v1194
  %v2387 = vunpack.c.h.b16 %v1194
  %v2388 = vunpack.c.l.b16 %v1195
  %v2389 = vunpack.c.h.b16 %v1195
  %v2390 = vunpack.c.l.b16 %v1196
  %v2391 = vunpack.c.h.b16 %v1196
  %v2392 = vunpack.c.l.b16 %v1197
  %v2393 = vunpack.c.h.b16 %v1197
  %v2394 = vunpack.c.l.b16 %v1198
  %v2395 = vunpack.c.h.b16 %v1198
  %v2396 = vunpack.c.l.b16 %v1199
  %v2397 = vunpack.c.h.b16 %v1199
  %v2398 = vunpack.c.l.b16 %v1200
  %v2399 = vunpack.c.h.b16 %v1200
  %v2400 = vunpack.c.l.b16 %v1201
  %v2401 = vunpack.c.h.b16 %v1201
  %v2402 = vunpack.c.l.b16 %v1202
  %v2403 = vunpack.c.h.b16 %v1202
  %v2404 = vunpack.c.l.b16 %v1203
  %v2405 = vunpack.c.h.b16 %v1203
  %v2406 = vunpack.c.l.b16 %v1204
  %v2407 = vunpack.c.h.b16 %v1204
  %v2408 = vunpack.c.l.b16 %v1205
  %v2409 = vunpack.c.h.b16 %v1205
  %v2410 = vunpack.c.l.b16 %v1206
  %v2411 = vunpack.c.h.b16 %v1206
  %v2412 = vunpack.c.l.b16 %v1207
  %v2413 = vunpack.c.h.b16 %v1207
  %v2414 = vunpack.c.l.b16 %v1208
  %v2415 = vunpack.c.h.b16 %v1208
  %v2416 = vunpack.c.l.b16 %v1209
  %v2417 = vunpack.c.h.b16 %v1209
  %v2418 = vunpack.c.l.b16 %v1210
  %v2419 = vunpack.c.h.b16 %v1210
  %v2420 = vunpack.c.l.b16 %v1211
  %v2421 = vunpack.c.h.b16 %v1211
  %v2422 = vunpack.c.l.b16 %v1212
  %v2423 = vunpack.c.h.b16 %v1212
  %v2424 = vunpack.c.l.b16 %v1213
  %v2425 = vunpack.c.h.b16 %v1213
  %v2426 = vunpack.c.l.b16 %v1214
  %v2427 = vunpack.c.h.b16 %v1214
  %v2428 = vunpack.c.l.b16 %v1215
  %v2429 = vunpack.c.h.b16 %v1215
  %v2430 = vunpack.c.l.b16 %v1216
  %v2431 = vunpack.c.h.b16 %v1216
  %v2432 = vunpack.c.l.b16 %v1217
  %v2433 = vunpack.c.h.b16 %v1217
  %v2434 = vunpack.c.l.b16 %v1218
  %v2435 = vunpack.c.h.b16 %v1218
  %v2436 = vunpack.c.l.b16 %v1219
  %v2437 = vunpack.c.h.b16 %v1219
  %v2438 = vunpack.c.l.b16 %v1220
  %v2439 = vunpack.c.h.b16 %v1220
  %v2440 = vunpack.c.l.b16 %v1221
  %v2441 = vunpack.c.h.b16 %v1221
  %v2442 = vunpack.c.l.b16 %v1222
  %v2443 = vunpack.c.h.b16 %v1222
  %v2444 = vunpack.c.l.b16 %v1223
  %v2445 = vunpack.c.h.b16 %v1223
  %v2446 = vunpack.c.l.b16 %v1224
  %v2447 = vunpack.c.h.b16 %v1224
  %v2448 = vunpack.c.l.b16 %v1225
  %v2449 = vunpack.c.h.b16 %v1225
  %v2450 = vunpack.c.l.b16 %v1226
  %v2451 = vunpack.c.h.b16 %v1226
  %v2452 = vunpack.c.l.b16 %v1227
  %v2453 = vunpack.c.h.b16 %v1227
  %v2454 = vunpack.c.l.b16 %v1228
  %v2455 = vunpack.c.h.b16 %v1228
  %v2456 = vunpack.c.l.b16 %v1229
  %v2457 = vunpack.c.h.b16 %v1229
  %v2458 = vunpack.c.l.b16 %v1230
  %v2459 = vunpack.c.h.b16 %v1230
  %v2460 = vunpack.c.l.b16 %v1231
  %v2461 = vunpack.c.h.b16 %v1231
  %v2462 = vunpack.c.l.b16 %v1232
  %v2463 = vunpack.c.h.b16 %v1232
  %v2464 = vunpack.c.l.b16 %v1233
  %v2465 = vunpack.c.h.b16 %v1233
  %v2466 = vunpack.c.l.b16 %v1234
  %v2467 = vunpack.c.h.b16 %v1234
  %v2468 = vunpack.c.l.b16 %v1235
  %v2469 = vunpack.c.h.b16 %v1235
  %v2470 = vunpack.c.l.b16 %v1236
  %v2471 = vunpack.c.h.b16 %v1236
  %v2472 = vunpack.c.l.b16 %v1237
  %v2473 = vunpack.c.h.b16 %v1237
  %v2474 = vunpack.c.l.b16 %v1238
  %v2475 = vunpack.c.h.b16 %v1238
  %v2476 = vunpack.c.l.b16 %v1239
  %v2477 = vunpack.c.h.b16 %v1239
  %v2478 = vunpack.c.l.b16 %v1240
  %v2479 = vunpack.c.h.b16 %v1240
  %v2480 = vunpack.c.l.b16 %v1241
  %v2481 = vunpack.c.h.b16 %v1241
  %v2482 = vunpack.c.l.b16 %v1242
  %v2483 = vunpack.c.h.b16 %v1242
  %v2484 = vunpack.c.l.b16 %v1243
  %v2485 = vunpack.c.h.b16 %v1243
  %v2486 = vunpack.c.l.b16 %v1244
  %v2487 = vunpack.c.h.b16 %v1244
  %v2488 = vunpack.c.l.b16 %v1245
  %v2489 = vunpack.c.h.b16 %v1245
  %v2490 = vunpack.c.l.b16 %v1246
  %v2491 = vunpack.c.h.b16 %v1246
  %v2492 = vunpack.c.l.b16 %v1247
  %v2493 = vunpack.c.h.b16 %v1247
  %v2494 = vunpack.c.l.b16 %v1248
  %v2495 = vunpack.c.h.b16 %v1248
  %v2496 = vunpack.c.l.b16 %v1249
  %v2497 = vunpack.c.h.b16 %v1249
  %v2498 = vunpack.c.l.b16 %v1250
  %v2499 = vunpack.c.h.b16 %v1250
  %v2500 = vunpack.c.l.b16 %v1251
  %v2501 = vunpack.c.h.b16 %v1251
  %v2502 = vunpack.c.l.b16 %v1252
  %v2503 = vunpack.c.h.b16 %v1252
  %v2504 = vunpack.c.l.b16 %v1253
  %v2505 = vunpack.c.h.b16 %v1253
  %v2506 = vunpack.c.l.b16 %v1254
  %v2507 = vunpack.c.h.b16 %v1254
  %v2508 = vunpack.c.l.b16 %v1255
  %v2509 = vunpack.c.h.b16 %v1255
  %v2510 = vunpack.c.l.b16 %v1256
  %v2511 = vunpack.c.h.b16 %v1256
  %v2512 = vunpack.c.l.b16 %v1257
  %v2513 = vunpack.c.h.b16 %v1257
  %v2514 = vunpack.c.l.b16 %v1258
  %v2515 = vunpack.c.h.b16 %v1258
  %v2516 = vunpack.c.l.b16 %v1259
  %v2517 = vunpack.c.h.b16 %v1259
  %v2518 = vunpack.c.l.b16 %v1260
  %v2519 = vunpack.c.h.b16 %v1260
  %v2520 = vunpack.c.l.b16 %v1261
  %v2521 = vunpack.c.h.b16 %v1261
  %v2522 = vunpack.c.l.b16 %v1262
  %v2523 = vunpack.c.h.b16 %v1262
  %v2524 = vunpack.c.l.b16 %v1263
  %v2525 = vunpack.c.h.b16 %v1263
  %v2526 = vunpack.c.l.b16 %v1264
  %v2527 = vunpack.c.h.b16 %v1264
  %v2528 = vunpack.c.l.b16 %v1265
  %v2529 = vunpack.c.h.b16 %v1265
  %v2530 = vunpack.c.l.b16 %v1266
  %v2531 = vunpack.c.h.b16 %v1266
  %v2532 = vunpack.c.l.b16 %v1267
  %v2533 = vunpack.c.h.b16 %v1267
  %v2534 = vunpack.c.l.b16 %v1268
  %v2535 = vunpack.c.h.b16 %v1268
  %v2536 = vunpack.c.l.b16 %v1269
  %v2537 = vunpack.c.h.b16 %v1269
  %v2538 = vunpack.c.l.b16 %v1270
  %v2539 = vunpack.c.h.b16 %v1270
  %v2540 = vunpack.c.l.b16 %v1271
  %v2541 = vunpack.c.h.b16 %v1271
  %v2542 = vunpack.c.l.b16 %v1272
  %v2543 = vunpack.c.h.b16 %v1272
  %v2544 = vunpack.c.l.b16 %v1273
  %v2545 = vunpack.c.h.b16 %v1273
  %v2546 = vunpack.c.l.b16 %v1274
  %v2547 = vunpack.c.h.b16 %v1274
  %v2548 = vunpack.c.l.b16 %v1275
  %v2549 = vunpack.c.h.b16 %v1275
  %v2550 = vunpack.c.l.b16 %v1276
  %v2551 = vunpack.c.h.b16 %v1276
  %v2552 = vunpack.c.l.b16 %v1277
  %v2553 = vunpack.c.h.b16 %v1277
  %v2554 = vunpack.c.l.b16 %v1278
  %v2555 = vunpack.c.h.b16 %v1278
  %v2556 = vunpack.c.l.b16 %v1279
  %v2557 = vunpack.c.h.b16 %v1279
  %v2558 = vunpack.c.l.b16 %v1280
  %v2559 = vunpack.c.h.b16 %v1280
  %v2560 = vunpack.c.l.b16 %v1281
  %v2561 = vunpack.c.h.b16 %v1281
  %v2562 = vunpack.c.l.b16 %v1282
  %v2563 = vunpack.c.h.b16 %v1282
  %v2564 = vunpack.c.l.b16 %v1283
  %v2565 = vunpack.c.h.b16 %v1283
  %v2566 = vunpack.c.l.b16 %v1284
  %v2567 = vunpack.c.h.b16 %v1284
  %v2568 = vunpack.c.l.b16 %v1285
  %v2569 = vunpack.c.h.b16 %v1285
  %v2570 = vunpack.c.l.b16 %v1286
  %v2571 = vunpack.c.h.b16 %v1286
  %v2572 = vunpack.c.l.b16 %v1287
  %v2573 = vunpack.c.h.b16 %v1287
  %v2574 = vunpack.c.l.b16 %v1288
  %v2575 = vunpack.c.h.b16 %v1288
  %v2576 = vunpack.c.l.b16 %v1289
  %v2577 = vunpack.c.h.b16 %v1289
  %v2578 = vunpack.c.l.b16 %v1290
  %v2579 = vunpack.c.h.b16 %v1290
  %v2580 = vunpack.c.l.b16 %v1291
  %v2581 = vunpack.c.h.b16 %v1291
  %v2582 = vunpack.c.l.b16 %v1292
  %v2583 = vunpack.c.h.b16 %v1292
  %v2584 = vunpack.c.l.b16 %v1293
  %v2585 = vunpack.c.h.b16 %v1293
  %v2586 = vunpack.c.l.b16 %v1294
  %v2587 = vunpack.c.h.b16 %v1294
  %v2588 = vunpack.c.l.b16 %v1295
  %v2589 = vunpack.c.h.b16 %v1295
  %v2590 = vunpack.c.l.b16 %v1296
  %v2591 = vunpack.c.h.b16 %v1296
  %v2592 = vunpack.c.l.b16 %v1297
  %v2593 = vunpack.c.h.b16 %v1297
  %v2594 = vunpack.c.l.b16 %v1298
  %v2595 = vunpack.c.h.b16 %v1298
  %v2596 = vunpack.c.l.b16 %v1299
  %v2597 = vunpack.c.h.b16 %v1299
  %v2598 = vunpack.c.l.b16 %v1300
  %v2599 = vunpack.c.h.b16 %v1300
  %v2600 = vunpack.c.l.b16 %v1301
  %v2601 = vunpack.c.h.b16 %v1301
  %v2602 = vunpack.c.l.b16 %v1302
  %v2603 = vunpack.c.h.b16 %v1302
  %v2604 = vunpack.c.l.b16 %v1303
  %v2605 = vunpack.c.h.b16 %v1303
  %v2606 = vunpack.c.l.b16 %v1304
  %v2607 = vunpack.c.h.b16 %v1304
  %v2608 = vunpack.c.l.b16 %v1305
  %v2609 = vunpack.c.h.b16 %v1305
  %v2610 = vunpack.c.l.b16 %v1306
  %v2611 = vunpack.c.h.b16 %v1306
  %v2612 = vunpack.c.l.b16 %v1307
  %v2613 = vunpack.c.h.b16 %v1307
  %v2614 = vunpack.c.l.b16 %v1308
  %v2615 = vunpack.c.h.b16 %v1308
  %v2616 = vunpack.c.l.b16 %v1309
  %v2617 = vunpack.c.h.b16 %v1309
  %v2618 = vunpack.c.l.b16 %v1310
  %v2619 = vunpack.c.h.b16 %v1310
  %v2620 = vunpack.c.l.b16 %v1311
  %v2621 = vunpack.c.h.b16 %v1311
  %v2622 = vunpack.c.l.b16 %v1312
  %v2623 = vunpack.c.h.b16 %v1312
  %v2624 = vunpack.c.l.b16 %v1313
  %v2625 = vunpack.c.h.b16 %v1313
  %v2626 = vunpack.c.l.b16 %v1314
  %v2627 = vunpack.c.h.b16 %v1314
  %v2628 = vunpack.c.l.b16 %v1315
  %v2629 = vunpack.c.h.b16 %v1315
  %v2630 = vunpack.c.l.b16 %v1316
  %v2631 = vunpack.c.h.b16 %v1316
  %v2632 = vunpack.c.l.b16 %v1317
  %v2633 = vunpack.c.h.b16 %v1317
  %v2634 = vunpack.c.l.b16 %v1318
  %v2635 = vunpack.c.h.b16 %v1318
  %v2636 = vunpack.c.l.b16 %v1319
  %v2637 = vunpack.c.h.b16 %v1319
  %v2638 = vunpack.c.l.b16 %v1320
  %v2639 = vunpack.c.h.b16 %v1320
  %v2640 = vunpack.c.l.b16 %v1321
  %v2641 = vunpack.c.h.b16 %v1321
  %v2642 = vunpack.c.l.b16 %v1322
  %v2643 = vunpack.c.h.b16 %v1322
  %v2644 = vunpack.c.l.b16 %v1323
  %v2645 = vunpack.c.h.b16 %v1323
  %v2646 = vunpack.c.l.b16 %v1324
  %v2647 = vunpack.c.h.b16 %v1324
  %v2648 = vunpack.c.l.b16 %v1325
  %v2649 = vunpack.c.h.b16 %v1325
  %v2650 = vunpack.c.l.b16 %v1326
  %v2651 = vunpack.c.h.b16 %v1326
  %v2652 = vunpack.c.l.b16 %v1327
  %v2653 = vunpack.c.h.b16 %v1327
  %v2654 = vunpack.c.l.b16 %v1328
  %v2655 = vunpack.c.h.b16 %v1328
  %v2656 = vunpack.c.l.b16 %v1329
  %v2657 = vunpack.c.h.b16 %v1329
  %v2658 = vunpack.c.l.b16 %v1330
  %v2659 = vunpack.c.h.b16 %v1330
  %v2660 = vunpack.c.l.b16 %v1331
  %v2661 = vunpack.c.h.b16 %v1331
  %v2662 = vunpack.c.l.b16 %v1332
  %v2663 = vunpack.c.h.b16 %v1332
  %v2664 = vunpack.c.l.b16 %v1333
  %v2665 = vunpack.c.h.b16 %v1333
  %v2666 = vunpack.c.l.b16 %v1334
  %v2667 = vunpack.c.h.b16 %v1334
  %v2668 = vunpack.c.l.b16 %v1335
  %v2669 = vunpack.c.h.b16 %v1335
  %v2670 = vunpack.c.l.b16 %v1336
  %v2671 = vunpack.c.h.b16 %v1336
  %v2672 = vunpack.c.l.b16 %v1337
  %v2673 = vunpack.c.h.b16 %v1337
  %v2674 = vunpack.c.l.b16 %v1338
  %v2675 = vunpack.c.h.b16 %v1338
  %v2676 = vunpack.c.l.b16 %v1339
  %v2677 = vunpack.c.h.b16 %v1339
  %v2678 = vunpack.c.l.b16 %v1340
  %v2679 = vunpack.c.h.b16 %v1340
  %v2680 = vunpack.c.l.b16 %v1341
  %v2681 = vunpack.c.h.b16 %v1341
  %v2682 = vunpack.c.l.b16 %v1342
  %v2683 = vunpack.c.h.b16 %v1342
  %v2684 = vunpack.c.l.b16 %v1343
  %v2685 = vunpack.c.h.b16 %v1343
  %v2686 = vunpack.c.l.b16 %v1344
  %v2687 = vunpack.c.h.b16 %v1344
  %v2688 = vunpack.c.l.b16 %v1345
  %v2689 = vunpack.c.h.b16 %v1345
  %v2690 = vunpack.c.l.b16 %v1346
  %v2691 = vunpack.c.h.b16 %v1346
  %v2692 = vunpack.c.l.b16 %v1347
  %v2693 = vunpack.c.h.b16 %v1347
  %v2694 = vunpack.c.l.b16 %v1348
  %v2695 = vunpack.c.h.b16 %v1348
  %v2696 = vunpack.c.l.b16 %v1349
  %v2697 = vunpack.c.h.b16 %v1349
  %v2698 = vunpack.c.l.b16 %v1350
  %v2699 = vunpack.c.h.b16 %v1350
  %v2700 = vunpack.c.l.b16 %v1351
  %v2701 = vunpack.c.h.b16 %v1351
  %v2702 = vunpack.c.l.b16 %v1352
  %v2703 = vunpack.c.h.b16 %v1352
  %v2704 = vunpack.c.l.b16 %v1353
  %v2705 = vunpack.c.h.b16 %v1353
  %v2706 = vunpack.c.l.b16 %v1354
  %v2707 = vunpack.c.h.b16 %v1354
  %v2708 = vunpack.c.l.b16 %v1355
  %v2709 = vunpack.c.h.b16 %v1355
  %v2710 = vunpack.c.l.b16 %v1356
  %v2711 = vunpack.c.h.b16 %v1356
  %v2712 = vunpack.c.l.b16 %v1357
  %v2713 = vunpack.c.h.b16 %v1357
  %v2714 = vunpack.c.l.b16 %v1358
  %v2715 = vunpack.c.h.b16 %v1358
  %v2716 = vunpack.c.l.b16 %v1359
  %v2717 = vunpack.c.h.b16 %v1359
  %v2718 = vunpack.c.l.b16 %v1360
  %v2719 = vunpack.c.h.b16 %v1360
  %v2720 = vunpack.c.l.b16 %v1361
  %v2721 = vunpack.c.h.b16 %v1361
  %v2722 = vunpack.c.l.b16 %v1362
  %v2723 = vunpack.c.h.b16 %v1362
  %v2724 = vunpack.c.l.b16 %v1363
  %v2725 = vunpack.c.h.b16 %v1363
  %v2726 = vunpack.c.l.b16 %v1364
  %v2727 = vunpack.c.h.b16 %v1364
  %v2728 = vunpack.c.l.b16 %v1365
  %v2729 = vunpack.c.h.b16 %v1365
  %v2730 = vunpack.c.l.b16 %v1366
  %v2731 = vunpack.c.h.b16 %v1366
  %v2732 = vunpack.c.l.b16 %v1367
  %v2733 = vunpack.c.h.b16 %v1367
  %v2734 = vunpack.c.l.b16 %v1368
  %v2735 = vunpack.c.h.b16 %v1368
  %v2736 = vunpack.c.l.b16 %v1369
  %v2737 = vunpack.c.h.b16 %v1369
  %v2738 = vunpack.c.l.b16 %v1370
  %v2739 = vunpack.c.h.b16 %v1370
  %v2740 = vunpack.c.l.b16 %v1371
  %v2741 = vunpack.c.h.b16 %v1371
  %v2742 = vunpack.c.l.b16 %v1372
  %v2743 = vunpack.c.h.b16 %v1372
  %v2744 = vunpack.c.l.b16 %v1373
  %v2745 = vunpack.c.h.b16 %v1373
  %v2746 = vunpack.c.l.b16 %v1374
  %v2747 = vunpack.c.h.b16 %v1374
  %v2748 = vunpack.c.l.b16 %v1375
  %v2749 = vunpack.c.h.b16 %v1375
  %v2750 = vunpack.c.l.b16 %v1376
  %v2751 = vunpack.c.h.b16 %v1376
  %v2752 = vunpack.c.l.b16 %v1377
  %v2753 = vunpack.c.h.b16 %v1377
  %v2754 = vunpack.c.l.b16 %v1378
  %v2755 = vunpack.c.h.b16 %v1378
  %v2756 = vunpack.c.l.b16 %v1379
  %v2757 = vunpack.c.h.b16 %v1379
  %v2758 = vunpack.c.l.b16 %v1380
  %v2759 = vunpack.c.h.b16 %v1380
  %v2760 = vunpack.c.l.b16 %v1381
  %v2761 = vunpack.c.h.b16 %v1381
  %v2762 = vunpack.c.l.b16 %v1382
  %v2763 = vunpack.c.h.b16 %v1382
  %v2764 = vunpack.c.l.b16 %v1383
  %v2765 = vunpack.c.h.b16 %v1383
  %v2766 = vunpack.c.l.b16 %v1384
  %v2767 = vunpack.c.h.b16 %v1384
  %v2768 = vunpack.c.l.b16 %v1385
  %v2769 = vunpack.c.h.b16 %v1385
  %v2770 = vunpack.c.l.b16 %v1386
  %v2771 = vunpack.c.h.b16 %v1386
  %v2772 = vunpack.c.l.b16 %v1387
  %v2773 = vunpack.c.h.b16 %v1387
  %v2774 = vunpack.c.l.b16 %v1388
  %v2775 = vunpack.c.h.b16 %v1388
  %v2776 = vunpack.c.l.b16 %v1389
  %v2777 = vunpack.c.h.b16 %v1389
  %v2778 = vunpack.c.l.b16 %v1390
  %v2779 = vunpack.c.h.b16 %v1390
  %v2780 = vunpack.c.l.b16 %v1391
  %v2781 = vunpack.c.h.b16 %v1391
  %v2782 = vunpack.c.l.b16 %v1392
  %v2783 = vunpack.c.h.b16 %v1392
  %v2784 = vunpack.c.l.b16 %v1393
  %v2785 = vunpack.c.h.b16 %v1393
  %v2786 = vunpack.c.l.b16 %v1394
  %v2787 = vunpack.c.h.b16 %v1394
  %v2788 = vunpack.c.l.b16 %v1395
  %v2789 = vunpack.c.h.b16 %v1395
  %v2790 = vunpack.c.l.b16 %v1396
  %v2791 = vunpack.c.h.b16 %v1396
  %v2792 = vunpack.c.l.b16 %v1397
  %v2793 = vunpack.c.h.b16 %v1397
  %v2794 = vunpack.c.l.b16 %v1398
  %v2795 = vunpack.c.h.b16 %v1398
  %v2796 = vunpack.c.l.b16 %v1399
  %v2797 = vunpack.c.h.b16 %v1399
  %v2798 = vunpack.c.l.b16 %v1400
  %v2799 = vunpack.c.h.b16 %v1400
  %v2800 = vunpack.c.l.b16 %v1401
  %v2801 = vunpack.c.h.b16 %v1401
  %v2802 = vunpack.c.l.b16 %v1402
  %v2803 = vunpack.c.h.b16 %v1402
  %v2804 = vunpack.c.l.b16 %v1403
  %v2805 = vunpack.c.h.b16 %v1403
  %v2806 = vunpack.c.l.b16 %v1404
  %v2807 = vunpack.c.h.b16 %v1404
  %v2808 = vunpack.c.l.b16 %v1405
  %v2809 = vunpack.c.h.b16 %v1405
  %v2810 = vunpack.c.l.b16 %v1406
  %v2811 = vunpack.c.h.b16 %v1406
  %v2812 = vunpack.c.l.b16 %v1407
  %v2813 = vunpack.c.h.b16 %v1407
  %v2814 = vunpack.c.l.b16 %v1408
  %v2815 = vunpack.c.h.b16 %v1408
  %v2816 = vunpack.c.l.b16 %v1409
  %v2817 = vunpack.c.h.b16 %v1409
  %v2818 = vunpack.c.l.b16 %v1410
  %v2819 = vunpack.c.h.b16 %v1410
  %v2820 = vunpack.c.l.b16 %v1411
  %v2821 = vunpack.c.h.b16 %v1411
  %v2822 = vunpack.c.l.b16 %v1412
  %v2823 = vunpack.c.h.b16 %v1412
  %v2824 = vunpack.c.l.b16 %v1413
  %v2825 = vunpack.c.h.b16 %v1413
  %v2826 = vunpack.c.l.b16 %v1414
  %v2827 = vunpack.c.h.b16 %v1414
  %v2828 = vunpack.c.l.b16 %v1415
  %v2829 = vunpack.c.h.b16 %v1415
  %v2830 = vunpack.c.l.b16 %v1416
  %v2831 = vunpack.c.h.b16 %v1416
  %v2832 = vunpack.c.l.b16 %v1417
  %v2833 = vunpack.c.h.b16 %v1417
  %v2834 = vunpack.c.l.b16 %v1418
  %v2835 = vunpack.c.h.b16 %v1418
  %v2836 = vunpack.c.l.b16 %v1419
  %v2837 = vunpack.c.h.b16 %v1419
  %v2838 = vunpack.c.l.b16 %v1420
  %v2839 = vunpack.c.h.b16 %v1420
  %v2840 = vunpack.c.l.b16 %v1421
  %v2841 = vunpack.c.h.b16 %v1421
  %v2842 = vunpack.c.l.b16 %v1422
  %v2843 = vunpack.c.h.b16 %v1422
  %v2844 = vunpack.c.l.b16 %v1423
  %v2845 = vunpack.c.h.b16 %v1423
  %v2846 = vunpack.c.l.b16 %v1424
  %v2847 = vunpack.c.h.b16 %v1424
  %v2848 = vunpack.c.l.b16 %v1425
  %v2849 = vunpack.c.h.b16 %v1425
  %v2850 = vunpack.c.l.b16 %v1426
  %v2851 = vunpack.c.h.b16 %v1426
  %v2852 = vunpack.c.l.b16 %v1427
  %v2853 = vunpack.c.h.b16 %v1427
  %v2854 = vunpack.c.l.b16 %v1428
  %v2855 = vunpack.c.h.b16 %v1428
  %v2856 = vunpack.c.l.b16 %v1429
  %v2857 = vunpack.c.h.b16 %v1429
  %v2858 = vunpack.c.l.b16 %v1430
  %v2859 = vunpack.c.h.b16 %v1430
  %v2860 = vunpack.c.l.b16 %v1431
  %v2861 = vunpack.c.h.b16 %v1431
  %v2862 = vunpack.c.l.b16 %v1432
  %v2863 = vunpack.c.h.b16 %v1432
  %v2864 = vunpack.c.l.b16 %v1433
  %v2865 = vunpack.c.h.b16 %v1433
  %v2866 = vunpack.c.l.b16 %v1434
  %v2867 = vunpack.c.h.b16 %v1434
  %v2868 = vunpack.c.l.b16 %v1435
  %v2869 = vunpack.c.h.b16 %v1435
  %v2870 = vunpack.c.l.b16 %v1436
  %v2871 = vunpack.c.h.b16 %v1436
  %v2872 = vunpack.c.l.b16 %v1437
  %v2873 = vunpack.c.h.b16 %v1437
  %v2874 = vunpack.c.l.b16 %v1438
  %v2875 = vunpack.c.h.b16 %v1438
  %v2876 = vunpack.c.l.b16 %v1439
  %v2877 = vunpack.c.h.b16 %v1439
  %v2878 = vunpack.c.l.b16 %v1440
  %v2879 = vunpack.c.h.b16 %v1440
  %v2880 = vunpack.c.l.b16 %v1441
  %v2881 = vunpack.c.h.b16 %v1441
  %v2882 = vunpack.c.l.b16 %v1442
  %v2883 = vunpack.c.h.b16 %v1442
  %v2884 = vunpack.c.l.b16 %v1443
  %v2885 = vunpack.c.h.b16 %v1443
  %v2886 = vunpack.c.l.b16 %v1444
  %v2887 = vunpack.c.h.b16 %v1444
  %v2888 = vunpack.c.l.b16 %v1445
  %v2889 = vunpack.c.h.b16 %v1445
  %v2890 = vunpack.c.l.b16 %v1446
  %v2891 = vunpack.c.h.b16 %v1446
  %v2892 = vunpack.c.l.b16 %v1447
  %v2893 = vunpack.c.h.b16 %v1447
  %v2894 = vunpack.c.l.b16 %v1448
  %v2895 = vunpack.c.h.b16 %v1448
  %v2896 = vunpack.c.l.b16 %v1449
  %v2897 = vunpack.c.h.b16 %v1449
  %v2898 = vunpack.c.l.b16 %v1450
  %v2899 = vunpack.c.h.b16 %v1450
  %v2900 = vunpack.c.l.b16 %v1451
  %v2901 = vunpack.c.h.b16 %v1451
  %v2902 = vunpack.c.l.b16 %v1452
  %v2903 = vunpack.c.h.b16 %v1452
  %v2904 = vunpack.c.l.b16 %v1453
  %v2905 = vunpack.c.h.b16 %v1453
  %v2906 = vunpack.c.l.b16 %v1454
  %v2907 = vunpack.c.h.b16 %v1454
  %v2908 = vunpack.c.l.b16 %v1455
  %v2909 = vunpack.c.h.b16 %v1455
  %v2910 = vunpack.c.l.b16 %v1456
  %v2911 = vunpack.c.h.b16 %v1456
  %v2912 = vunpack.c.l.b16 %v1457
  %v2913 = vunpack.c.h.b16 %v1457
  %v2914 = vunpack.c.l.b16 %v1458
  %v2915 = vunpack.c.h.b16 %v1458
  %v2916 = vunpack.c.l.b16 %v1459
  %v2917 = vunpack.c.h.b16 %v1459
  %v2918 = vunpack.c.l.b16 %v1460
  %v2919 = vunpack.c.h.b16 %v1460
  %v2920 = vunpack.c.l.b16 %v1461
  %v2921 = vunpack.c.h.b16 %v1461
  %v2922 = vunpack.c.l.b16 %v1462
  %v2923 = vunpack.c.h.b16 %v1462
  %v2924 = vunpack.c.l.b16 %v1463
  %v2925 = vunpack.c.h.b16 %v1463
  %v2926 = vunpack.c.l.b16 %v1464
  %v2927 = vunpack.c.h.b16 %v1464
  %v2928 = vunpack.c.l.b16 %v1465
  %v2929 = vunpack.c.h.b16 %v1465
  %v2930 = vunpack.c.l.b16 %v1466
  %v2931 = vunpack.c.h.b16 %v1466
  %v2932 = vunpack.c.l.b16 %v1467
  %v2933 = vunpack.c.h.b16 %v1467
  %v2934 = vunpack.c.l.b16 %v1468
  %v2935 = vunpack.c.h.b16 %v1468
  %v2936 = vunpack.c.l.b16 %v1469
  %v2937 = vunpack.c.h.b16 %v1469
  %v2938 = vunpack.c.l.b16 %v1470
  %v2939 = vunpack.c.h.b16 %v1470
  %v2940 = vunpack.c.l.b16 %v1471
  %v2941 = vunpack.c.h.b16 %v1471
  %v2942 = vunpack.c.l.b16 %v1472
  %v2943 = vunpack.c.h.b16 %v1472
  %v2944 = vunpack.c.l.b16 %v1473
  %v2945 = vunpack.c.h.b16 %v1473
  %v2946 = vunpack.c.l.b16 %v1474
  %v2947 = vunpack.c.h.b16 %v1474
  %v2948 = vunpack.c.l.b16 %v1475
  %v2949 = vunpack.c.h.b16 %v1475
  %v2950 = vunpack.c.l.b16 %v1476
  %v2951 = vunpack.c.h.b16 %v1476
  %v2952 = vunpack.c.l.b16 %v1477
  %v2953 = vunpack.c.h.b16 %v1477
  %v2954 = vunpack.c.l.b16 %v1478
  %v2955 = vunpack.c.h.b16 %v1478
  %v2956 = vunpack.c.l.b16 %v1479
  %v2957 = vunpack.c.h.b16 %v1479
  %v2958 = vunpack.c.l.b16 %v1480
  %v2959 = vunpack.c.h.b16 %v1480
  %v2960 = vunpack.c.l.b16 %v1481
  %v2961 = vunpack.c.h.b16 %v1481
  %v2962 = vunpack.c.l.b16 %v1482
  %v2963 = vunpack.c.h.b16 %v1482
  %v2964 = vunpack.c.l.b16 %v1483
  %v2965 = vunpack.c.h.b16 %v1483
  %v2966 = vunpack.c.l.b16 %v1484
  %v2967 = vunpack.c.h.b16 %v1484
  %v2968 = vunpack.c.l.b16 %v1485
  %v2969 = vunpack.c.h.b16 %v1485
  %v2970 = vunpack.c.l.b16 %v1486
  %v2971 = vunpack.c.h.b16 %v1486
  %v2972 = vunpack.c.l.b16 %v1487
  %v2973 = vunpack.c.h.b16 %v1487
  %v2974 = vunpack.c.l.b16 %v1488
  %v2975 = vunpack.c.h.b16 %v1488
  %v2976 = vunpack.c.l.b16 %v1489
  %v2977 = vunpack.c.h.b16 %v1489
  %v2978 = vunpack.c.l.b16 %v1490
  %v2979 = vunpack.c.h.b16 %v1490
  %v2980 = vunpack.c.l.b16 %v1491
  %v2981 = vunpack.c.h.b16 %v1491
  %v2982 = vunpack.c.l.b16 %v1492
  %v2983 = vunpack.c.h.b16 %v1492
  %v2984 = vunpack.c.l.b16 %v1493
  %v2985 = vunpack.c.h.b16 %v1493
  %v2986 = vunpack.c.l.b16 %v1494
  %v2987 = vunpack.c.h.b16 %v1494
  %v2988 = vunpack.c.l.b16 %v1495
  %v2989 = vunpack.c.h.b16 %v1495
  %v2990 = vunpack.c.l.b16 %v1496
  %v2991 = vunpack.c.h.b16 %v1496
  %v2992 = vunpack.c.l.b16 %v1497
  %v2993 = vunpack.c.h.b16 %v1497
  %v2994 = vunpack.c.l.b16 %v1498
  %v2995 = vunpack.c.h.b16 %v1498
  %v2996 = vunpack.c.l.b16 %v1499
  %v2997 = vunpack.c.h.b16 %v1499
  %v2998 = vunpack.c.l.b16 %v1500
  %v2999 = vunpack.c.h.b16 %v1500
  %v3000 = vunpack.c.l.b16 %v1501
  %v3001 = vunpack.c.h.b16 %v1501
  %v3002 = vunpack.c.l.b16 %v1502
  %v3003 = vunpack.c.h.b16 %v1502
  %v3004 = vunpack.c.l.b16 %v1503
  %v3005 = vunpack.c.h.b16 %v1503
  %v3006 = vunpack.c.l.b16 %v1504
  %v3007 = vunpack.c.h.b16 %v1504
  %v3008 = vunpack.c.l.b16 %v1505
  %v3009 = vunpack.c.h.b16 %v1505
  %v3010 = vunpack.c.l.b16 %v1506
  %v3011 = vunpack.c.h.b16 %v1506
  %v3012 = vunpack.c.l.b16 %v1507
  %v3013 = vunpack.c.h.b16 %v1507
  %v3014 = vunpack.c.l.b16 %v1508
  %v3015 = vunpack.c.h.b16 %v1508
  %v3016 = vunpack.c.l.b16 %v1509
  %v3017 = vunpack.c.h.b16 %v1509
  %v3018 = vunpack.c.l.b16 %v1510
  %v3019 = vunpack.c.h.b16 %v1510
  %v3020 = vunpack.c.l.b16 %v1511
  %v3021 = vunpack.c.h.b16 %v1511
  %v3022 = vunpack.c.l.b16 %v1512
  %v3023 = vunpack.c.h.b16 %v1512
  %v3024 = vunpack.c.l.b16 %v1513
  %v3025 = vunpack.c.h.b16 %v1513
  %v3026 = vunpack.c.l.b16 %v1514
  %v3027 = vunpack.c.h.b16 %v1514
  %v3028 = vunpack.c.l.b16 %v1515
  %v3029 = vunpack.c.h.b16 %v1515
  %v3030 = vunpack.c.l.b16 %v1516
  %v3031 = vunpack.c.h.b16 %v1516
  %v3032 = vunpack.c.l.b16 %v1517
  %v3033 = vunpack.c.h.b16 %v1517
  %v3034 = vunpack.c.l.b16 %v1518
  %v3035 = vunpack.c.h.b16 %v1518
  %v3036 = vunpack.c.l.b16 %v1519
  %v3037 = vunpack.c.h.b16 %v1519
  %v3038 = vunpack.c.l.b16 %v1520
  %v3039 = vunpack.c.h.b16 %v1520
  %v3040 = vunpack.c.l.b16 %v1521
  %v3041 = vunpack.c.h.b16 %v1521
  %v3042 = vunpack.c.l.b16 %v1522
  %v3043 = vunpack.c.h.b16 %v1522
  %v3044 = vunpack.c.l.b16 %v1523
  %v3045 = vunpack.c.h.b16 %v1523
  %v3046 = vunpack.c.l.b16 %v1524
  %v3047 = vunpack.c.h.b16 %v1524
  %v3048 = vunpack.c.l.b16 %v1525
  %v3049 = vunpack.c.h.b16 %v1525
  %v3050 = vunpack.c.l.b16 %v1526
  %v3051 = vunpack.c.h.b16 %v1526
  %v3052 = vunpack.c.l.b16 %v1527
  %v3053 = vunpack.c.h.b16 %v1527
  %v3054 = vunpack.c.l.b16 %v1528
  %v3055 = vunpack.c.h.b16 %v1528
  %v3056 = vunpack.c.l.b16 %v1529
  %v3057 = vunpack.c.h.b16 %v1529
  %v3058 = vunpack.c.l.b16 %v1530
  %v3059 = vunpack.c.h.b16 %v1530
  %v3060 = vunpack.c.l.b16 %v1531
  %v3061 = vunpack.c.h.b16 %v1531
  %v3062 = vunpack.c.l.b16 %v1532
  %v3063 = vunpack.c.h.b16 %v1532
  %v3064 = vunpack.c.l.b16 %v1533
  %v3065 = vunpack.c.h.b16 %v1533
  %v3066 = vunpack.c.l.b16 %v1534
  %v3067 = vunpack.c.h.b16 %v1534
  %v3068 = vunpack.c.l.b16 %v1535
  %v3069 = vunpack.c.h.b16 %v1535
  %v3070 = vunpack.c.l.b16 %v1536
  %v3071 = vunpack.c.h.b16 %v1536
  %v3072 = vunpack.c.l.b16 %v1537
  %v3073 = vunpack.c.h.b16 %v1537
  %v3074 = vunpack.c.l.b16 %v1538
  %v3075 = vunpack.c.h.b16 %v1538
  %v3076 = vunpack.c.l.b16 %v1539
  %v3077 = vunpack.c.h.b16 %v1539
  %v3078 = vunpack.c.l.b16 %v1540
  %v3079 = vunpack.c.h.b16 %v1540
  %v3080 = vunpack.c.l.b16 %v1541
  %v3081 = vunpack.c.h.b16 %v1541
  %v3082 = vunpack.c.l.b16 %v1542
  %v3083 = vunpack.c.h.b16 %v1542
  %v3084 = vunpack.c.l.b16 %v1543
  %v3085 = vunpack.c.h.b16 %v1543
  %v3086 = vunpack.c.l.b16 %v1544
  %v3087 = vunpack.c.h.b16 %v1544
  %v3088 = vunpack.c.l.b16 %v1545
  %v3089 = vunpack.c.h.b16 %v1545
  %v3090 = vunpack.c.l.b16 %v1546
  %v3091 = vunpack.c.h.b16 %v1546
  %v3092 = vunpack.c.l.b16 %v1547
  %v3093 = vunpack.c.h.b16 %v1547
  %v3094 = vunpack.c.l.b16 %v1548
  %v3095 = vunpack.c.h.b16 %v1548
  %v3096 = vunpack.c.l.b16 %v1549
  %v3097 = vunpack.c.h.b16 %v1549
  %v3098 = vunpack.c.l.b16 %v1550
  %v3099 = vunpack.c.h.b16 %v1550
  %v3100 = vunpack.c.l.b16 %v1551
  %v3101 = vunpack.c.h.b16 %v1551
  %v3102 = vunpack.c.l.b16 %v1552
  %v3103 = vunpack.c.h.b16 %v1552
  %v3104 = vunpack.c.l.b16 %v1553
  %v3105 = vunpack.c.h.b16 %v1553
  %v3106 = vunpack.c.l.b16 %v1554
  %v3107 = vunpack.c.h.b16 %v1554
  %v3108 = vunpack.c.l.b16 %v1555
  %v3109 = vunpack.c.h.b16 %v1555
  %v3110 = vpack.c.b16 %v2094, %v2086
  %v3111 = vpack.c.b16 %v2095, %v2087
  %v3112 = vpack.c.b16 %v2096, %v2088
  %v3113 = vpack.c.b16 %v2097, %v2089
  %v3114 = vpack.c.b16 %v2098, %v2090
  %v3115 = vpack.c.b16 %v2099, %v2091
  %v3116 = vpack.c.b16 %v2100, %v2092
  %v3117 = vpack.c.b16 %v2101, %v2093
  %v3118 = vpack.c.b16 %v2110, %v2102
  %v3119 = vpack.c.b16 %v2111, %v2103
  %v3120 = vpack.c.b16 %v2112, %v2104
  %v3121 = vpack.c.b16 %v2113, %v2105
  %v3122 = vpack.c.b16 %v2114, %v2106
  %v3123 = vpack.c.b16 %v2115, %v2107
  %v3124 = vpack.c.b16 %v2116, %v2108
  %v3125 = vpack.c.b16 %v2117, %v2109
  %v3126 = vpack.c.b16 %v2126, %v2118
  %v3127 = vpack.c.b16 %v2127, %v2119
  %v3128 = vpack.c.b16 %v2128, %v2120
  %v3129 = vpack.c.b16 %v2129, %v2121
  %v3130 = vpack.c.b16 %v2130, %v2122
  %v3131 = vpack.c.b16 %v2131, %v2123
  %v3132 = vpack.c.b16 %v2132, %v2124
  %v3133 = vpack.c.b16 %v2133, %v2125
  %v3134 = vpack.c.b16 %v2142, %v2134
  %v3135 = vpack.c.b16 %v2143, %v2135
  %v3136 = vpack.c.b16 %v2144, %v2136
  %v3137 = vpack.c.b16 %v2145, %v2137
  %v3138 = vpack.c.b16 %v2146, %v2138
  %v3139 = vpack.c.b16 %v2147, %v2139
  %v3140 = vpack.c.b16 %v2148, %v2140
  %v3141 = vpack.c.b16 %v2149, %v2141
  %v3142 = vpack.c.b16 %v2158, %v2150
  %v3143 = vpack.c.b16 %v2159, %v2151
  %v3144 = vpack.c.b16 %v2160, %v2152
  %v3145 = vpack.c.b16 %v2161, %v2153
  %v3146 = vpack.c.b16 %v2162, %v2154
  %v3147 = vpack.c.b16 %v2163, %v2155
  %v3148 = vpack.c.b16 %v2164, %v2156
  %v3149 = vpack.c.b16 %v2165, %v2157
  %v3150 = vpack.c.b16 %v2174, %v2166
  %v3151 = vpack.c.b16 %v2175, %v2167
  %v3152 = vpack.c.b16 %v2176, %v2168
  %v3153 = vpack.c.b16 %v2177, %v2169
  %v3154 = vpack.c.b16 %v2178, %v2170
  %v3155 = vpack.c.b16 %v2179, %v2171
  %v3156 = vpack.c.b16 %v2180, %v2172
  %v3157 = vpack.c.b16 %v2181, %v2173
  %v3158 = vpack.c.b16 %v2190, %v2182
  %v3159 = vpack.c.b16 %v2191, %v2183
  %v3160 = vpack.c.b16 %v2192, %v2184
  %v3161 = vpack.c.b16 %v2193, %v2185
  %v3162 = vpack.c.b16 %v2194, %v2186
  %v3163 = vpack.c.b16 %v2195, %v2187
  %v3164 = vpack.c.b16 %v2196, %v2188
  %v3165 = vpack.c.b16 %v2197, %v2189
  %v3166 = vpack.c.b16 %v2206, %v2198
  %v3167 = vpack.c.b16 %v2207, %v2199
  %v3168 = vpack.c.b16 %v2208, %v2200
  %v3169 = vpack.c.b16 %v2209, %v2201
  %v3170 = vpack.c.b16 %v2210, %v2202
  %v3171 = vpack.c.b16 %v2211, %v2203
  %v3172 = vpack.c.b16 %v2212, %v2204
  %v3173 = vpack.c.b16 %v2213, %v2205
  %v3174 = vpack.c.b16 %v2222, %v2214
  %v3175 = vpack.c.b16 %v2223, %v2215
  %v3176 = vpack.c.b16 %v2224, %v2216
  %v3177 = vpack.c.b16 %v2225, %v2217
  %v3178 = vpack.c.b16 %v2226, %v2218
  %v3179 = vpack.c.b16 %v2227, %v2219
  %v3180 = vpack.c.b16 %v2228, %v2220
  %v3181 = vpack.c.b16 %v2229, %v2221
  %v3182 = vpack.c.b16 %v2238, %v2230
  %v3183 = vpack.c.b16 %v2239, %v2231
  %v3184 = vpack.c.b16 %v2240, %v2232
  %v3185 = vpack.c.b16 %v2241, %v2233
  %v3186 = vpack.c.b16 %v2242, %v2234
  %v3187 = vpack.c.b16 %v2243, %v2235
  %v3188 = vpack.c.b16 %v2244, %v2236
  %v3189 = vpack.c.b16 %v2245, %v2237
  %v3190 = vpack.c.b16 %v2254, %v2246
  %v3191 = vpack.c.b16 %v2255, %v2247
  %v3192 = vpack.c.b16 %v2256, %v2248
  %v3193 = vpack.c.b16 %v2257, %v2249
  %v3194 = vpack.c.b16 %v2258, %v2250
  %v3195 = vpack.c.b16 %v2259, %v2251
  %v3196 = vpack.c.b16 %v2260, %v2252
  %v3197 = vpack.c.b16 %v2261, %v2253
  %v3198 = vpack.c.b16 %v2270, %v2262
  %v3199 = vpack.c.b16 %v2271, %v2263
  %v3200 = vpack.c.b16 %v2272, %v2264
  %v3201 = vpack.c.b16 %v2273, %v2265
  %v3202 = vpack.c.b16 %v2274, %v2266
  %v3203 = vpack.c.b16 %v2275, %v2267
  %v3204 = vpack.c.b16 %v2276, %v2268
  %v3205 = vpack.c.b16 %v2277, %v2269
  %v3206 = vpack.c.b16 %v2286, %v2278
  %v3207 = vpack.c.b16 %v2287, %v2279
  %v3208 = vpack.c.b16 %v2288, %v2280
  %v3209 = vpack.c.b16 %v2289, %v2281
  %v3210 = vpack.c.b16 %v2290, %v2282
  %v3211 = vpack.c.b16 %v2291, %v2283
  %v3212 = vpack.c.b16 %v2292, %v2284
  %v3213 = vpack.c.b16 %v2293, %v2285
  %v3214 = vpack.c.b16 %v2302, %v2294
  %v3215 = vpack.c.b16 %v2303, %v2295
  %v3216 = vpack.c.b16 %v2304, %v2296
  %v3217 = vpack.c.b16 %v2305, %v2297
  %v3218 = vpack.c.b16 %v2306, %v2298
  %v3219 = vpack.c.b16 %v2307, %v2299
  %v3220 = vpack.c.b16 %v2308, %v2300
  %v3221 = vpack.c.b16 %v2309, %v2301
  %v3222 = vpack.c.b16 %v2318, %v2310
  %v3223 = vpack.c.b16 %v2319, %v2311
  %v3224 = vpack.c.b16 %v2320, %v2312
  %v3225 = vpack.c.b16 %v2321, %v2313
  %v3226 = vpack.c.b16 %v2322, %v2314
  %v3227 = vpack.c.b16 %v2323, %v2315
  %v3228 = vpack.c.b16 %v2324, %v2316
  %v3229 = vpack.c.b16 %v2325, %v2317
  %v3230 = vpack.c.b16 %v2334, %v2326
  %v3231 = vpack.c.b16 %v2335, %v2327
  %v3232 = vpack.c.b16 %v2336, %v2328
  %v3233 = vpack.c.b16 %v2337, %v2329
  %v3234 = vpack.c.b16 %v2338, %v2330
  %v3235 = vpack.c.b16 %v2339, %v2331
  %v3236 = vpack.c.b16 %v2340, %v2332
  %v3237 = vpack.c.b16 %v2341, %v2333
  %v3238 = vpack.c.b16 %v2350, %v2342
  %v3239 = vpack.c.b16 %v2351, %v2343
  %v3240 = vpack.c.b16 %v2352, %v2344
  %v3241 = vpack.c.b16 %v2353, %v2345
  %v3242 = vpack.c.b16 %v2354, %v2346
  %v3243 = vpack.c.b16 %v2355, %v2347
  %v3244 = vpack.c.b16 %v2356, %v2348
  %v3245 = vpack.c.b16 %v2357, %v2349
  %v3246 = vpack.c.b16 %v2366, %v2358
  %v3247 = vpack.c.b16 %v2367, %v2359
  %v3248 = vpack.c.b16 %v2368, %v2360
  %v3249 = vpack.c.b16 %v2369, %v2361
  %v3250 = vpack.c.b16 %v2370, %v2362
  %v3251 = vpack.c.b16 %v2371, %v2363
  %v3252 = vpack.c.b16 %v2372, %v2364
  %v3253 = vpack.c.b16 %v2373, %v2365
  %v3254 = vpack.c.b16 %v2382, %v2374
  %v3255 = vpack.c.b16 %v2383, %v2375
  %v3256 = vpack.c.b16 %v2384, %v2376
  %v3257 = vpack.c.b16 %v2385, %v2377
  %v3258 = vpack.c.b16 %v2386, %v2378
  %v3259 = vpack.c.b16 %v2387, %v2379
  %v3260 = vpack.c.b16 %v2388, %v2380
  %v3261 = vpack.c.b16 %v2389, %v2381
  %v3262 = vpack.c.b16 %v2398, %v2390
  %v3263 = vpack.c.b16 %v2399, %v2391
  %v3264 = vpack.c.b16 %v2400, %v2392
  %v3265 = vpack.c.b16 %v2401, %v2393
  %v3266 = vpack.c.b16 %v2402, %v2394
  %v3267 = vpack.c.b16 %v2403, %v2395
  %v3268 = vpack.c.b16 %v2404, %v2396
  %v3269 = vpack.c.b16 %v2405, %v2397
  %v3270 = vpack.c.b16 %v2414, %v2406
  %v3271 = vpack.c.b16 %v2415, %v2407
  %v3272 = vpack.c.b16 %v2416, %v2408
  %v3273 = vpack.c.b16 %v2417, %v2409
  %v3274 = vpack.c.b16 %v2418, %v2410
  %v3275 = vpack.c.b16 %v2419, %v2411
  %v3276 = vpack.c.b16 %v2420, %v2412
  %v3277 = vpack.c.b16 %v2421, %v2413
  %v3278 = vpack.c.b16 %v2430, %v2422
  %v3279 = vpack.c.b16 %v2431, %v2423
  %v3280 = vpack.c.b16 %v2432, %v2424
  %v3281 = vpack.c.b16 %v2433, %v2425
  %v3282 = vpack.c.b16 %v2434, %v2426
  %v3283 = vpack.c.b16 %v2435, %v2427
  %v3284 = vpack.c.b16 %v2436, %v2428
  %v3285 = vpack.c.b16 %v2437, %v2429
  %v3286 = vpack.c.b16 %v2446, %v2438
  %v3287 = vpack.c.b16 %v2447, %v2439
  %v3288 = vpack.c.b16 %v2448, %v2440
  %v3289 = vpack.c.b16 %v2449, %v2441
  %v3290 = vpack.c.b16 %v2450, %v2442
  %v3291 = vpack.c.b16 %v2451, %v2443
  %v3292 = vpack.c.b16 %v2452, %v2444
  %v3293 = vpack.c.b16 %v2453, %v2445
  %v3294 = vpack.c.b16 %v2462, %v2454
  %v3295 = vpack.c.b16 %v2463, %v2455
  %v3296 = vpack.c.b16 %v2464, %v2456
  %v3297 = vpack.c.b16 %v2465, %v2457
  %v3298 = vpack.c.b16 %v2466, %v2458
  %v3299 = vpack.c.b16 %v2467, %v2459
  %v3300 = vpack.c.b16 %v2468, %v2460
  %v3301 = vpack.c.b16 %v2469, %v2461
  %v3302 = vpack.c.b16 %v2478, %v2470
  %v3303 = vpack.c.b16 %v2479, %v2471
  %v3304 = vpack.c.b16 %v2480, %v2472
  %v3305 = vpack.c.b16 %v2481, %v2473
  %v3306 = vpack.c.b16 %v2482, %v2474
  %v3307 = vpack.c.b16 %v2483, %v2475
  %v3308 = vpack.c.b16 %v2484, %v2476
  %v3309 = vpack.c.b16 %v2485, %v2477
  %v3310 = vpack.c.b16 %v2494, %v2486
  %v3311 = vpack.c.b16 %v2495, %v2487
  %v3312 = vpack.c.b16 %v2496, %v2488
  %v3313 = vpack.c.b16 %v2497, %v2489
  %v3314 = vpack.c.b16 %v2498, %v2490
  %v3315 = vpack.c.b16 %v2499, %v2491
  %v3316 = vpack.c.b16 %v2500, %v2492
  %v3317 = vpack.c.b16 %v2501, %v2493
  %v3318 = vpack.c.b16 %v2510, %v2502
  %v3319 = vpack.c.b16 %v2511, %v2503
  %v3320 = vpack.c.b16 %v2512, %v2504
  %v3321 = vpack.c.b16 %v2513, %v2505
  %v3322 = vpack.c.b16 %v2514, %v2506
  %v3323 = vpack.c.b16 %v2515, %v2507
  %v3324 = vpack.c.b16 %v2516, %v2508
  %v3325 = vpack.c.b16 %v2517, %v2509
  %v3326 = vpack.c.b16 %v2526, %v2518
  %v3327 = vpack.c.b16 %v2527, %v2519
  %v3328 = vpack.c.b16 %v2528, %v2520
  %v3329 = vpack.c.b16 %v2529, %v2521
  %v3330 = vpack.c.b16 %v2530, %v2522
  %v3331 = vpack.c.b16 %v2531, %v2523
  %v3332 = vpack.c.b16 %v2532, %v2524
  %v3333 = vpack.c.b16 %v2533, %v2525
  %v3334 = vpack.c.b16 %v2542, %v2534
  %v3335 = vpack.c.b16 %v2543, %v2535
  %v3336 = vpack.c.b16 %v2544, %v2536
  %v3337 = vpack.c.b16 %v2545, %v2537
  %v3338 = vpack.c.b16 %v2546, %v2538
  %v3339 = vpack.c.b16 %v2547, %v2539
  %v3340 = vpack.c.b16 %v2548, %v2540
  %v3341 = vpack.c.b16 %v2549, %v2541
  %v3342 = vpack.c.b16 %v2558, %v2550
  %v3343 = vpack.c.b16 %v2559, %v2551
  %v3344 = vpack.c.b16 %v2560, %v2552
  %v3345 = vpack.c.b16 %v2561, %v2553
  %v3346 = vpack.c.b16 %v2562, %v2554
  %v3347 = vpack.c.b16 %v2563, %v2555
  %v3348 = vpack.c.b16 %v2564, %v2556
  %v3349 = vpack.c.b16 %v2565, %v2557
  %v3350 = vpack.c.b16 %v2574, %v2566
  %v3351 = vpack.c.b16 %v2575, %v2567
  %v3352 = vpack.c.b16 %v2576, %v2568
  %v3353 = vpack.c.b16 %v2577, %v2569
  %v3354 = vpack.c.b16 %v2578, %v2570
  %v3355 = vpack.c.b16 %v2579, %v2571
  %v3356 = vpack.c.b16 %v2580, %v2572
  %v3357 = vpack.c.b16 %v2581, %v2573
  %v3358 = vpack.c.b16 %v2590, %v2582
  %v3359 = vpack.c.b16 %v2591, %v2583
  %v3360 = vpack.c.b16 %v2592, %v2584
  %v3361 = vpack.c.b16 %v2593, %v2585
  %v3362 = vpack.c.b16 %v2594, %v2586
  %v3363 = vpack.c.b16 %v2595, %v2587
  %v3364 = vpack.c.b16 %v2596, %v2588
  %v3365 = vpack.c.b16 %v2597, %v2589
  %v3366 = vpack.c.b16 %v2606, %v2598
  %v3367 = vpack.c.b16 %v2607, %v2599
  %v3368 = vpack.c.b16 %v2608, %v2600
  %v3369 = vpack.c.b16 %v2609, %v2601
  %v3370 = vpack.c.b16 %v2610, %v2602
  %v3371 = vpack.c.b16 %v2611, %v2603
  %v3372 = vpack.c.b16 %v2612, %v2604
  %v3373 = vpack.c.b16 %v2613, %v2605
  %v3374 = vpack.c.b16 %v2622, %v2614
  %v3375 = vpack.c.b16 %v2623, %v2615
  %v3376 = vpack.c.b16 %v2624, %v2616
  %v3377 = vpack.c.b16 %v2625, %v2617
  %v3378 = vpack.c.b16 %v2626, %v2618
  %v3379 = vpack.c.b16 %v2627, %v2619
  %v3380 = vpack.c.b16 %v2628, %v2620
  %v3381 = vpack.c.b16 %v2629, %v2621
  %v3382 = vpack.c.b16 %v2638, %v2630
  %v3383 = vpack.c.b16 %v2639, %v2631
  %v3384 = vpack.c.b16 %v2640, %v2632
  %v3385 = vpack.c.b16 %v2641, %v2633
  %v3386 = vpack.c.b16 %v2642, %v2634
  %v3387 = vpack.c.b16 %v2643, %v2635
  %v3388 = vpack.c.b16 %v2644, %v2636
  %v3389 = vpack.c.b16 %v2645, %v2637
  %v3390 = vpack.c.b16 %v2654, %v2646
  %v3391 = vpack.c.b16 %v2655, %v2647
  %v3392 = vpack.c.b16 %v2656, %v2648
  %v3393 = vpack.c.b16 %v2657, %v2649
  %v3394 = vpack.c.b16 %v2658, %v2650
  %v3395 = vpack.c.b16 %v2659, %v2651
  %v3396 = vpack.c.b16 %v2660, %v2652
  %v3397 = vpack.c.b16 %v2661, %v2653
  %v3398 = vpack.c.b16 %v2670, %v2662
  %v3399 = vpack.c.b16 %v2671, %v2663
  %v3400 = vpack.c.b16 %v2672, %v2664
  %v3401 = vpack.c.b16 %v2673, %v2665
  %v3402 = vpack.c.b16 %v2674, %v2666
  %v3403 = vpack.c.b16 %v2675, %v2667
  %v3404 = vpack.c.b16 %v2676, %v2668
  %v3405 = vpack.c.b16 %v2677, %v2669
  %v3406 = vpack.c.b16 %v2686, %v2678
  %v3407 = vpack.c.b16 %v2687, %v2679
  %v3408 = vpack.c.b16 %v2688, %v2680
  %v3409 = vpack.c.b16 %v2689, %v2681
  %v3410 = vpack.c.b16 %v2690, %v2682
  %v3411 = vpack.c.b16 %v2691, %v2683
  %v3412 = vpack.c.b16 %v2692, %v2684
  %v3413 = vpack.c.b16 %v2693, %v2685
  %v3414 = vpack.c.b16 %v2702, %v2694
  %v3415 = vpack.c.b16 %v2703, %v2695
  %v3416 = vpack.c.b16 %v2704, %v2696
  %v3417 = vpack.c.b16 %v2705, %v2697
  %v3418 = vpack.c.b16 %v2706, %v2698
  %v3419 = vpack.c.b16 %v2707, %v2699
  %v3420 = vpack.c.b16 %v2708, %v2700
  %v3421 = vpack.c.b16 %v2709, %v2701
  %v3422 = vpack.c.b16 %v2718, %v2710
  %v3423 = vpack.c.b16 %v2719, %v2711
  %v3424 = vpack.c.b16 %v2720, %v2712
  %v3425 = vpack.c.b16 %v2721, %v2713
  %v3426 = vpack.c.b16 %v2722, %v2714
  %v3427 = vpack.c.b16 %v2723, %v2715
  %v3428 = vpack.c.b16 %v2724, %v2716
  %v3429 = vpack.c.b16 %v2725, %v2717
  %v3430 = vpack.c.b16 %v2734, %v2726
  %v3431 = vpack.c.b16 %v2735, %v2727
  %v3432 = vpack.c.b16 %v2736, %v2728
  %v3433 = vpack.c.b16 %v2737, %v2729
  %v3434 = vpack.c.b16 %v2738, %v2730
  %v3435 = vpack.c.b16 %v2739, %v2731
  %v3436 = vpack.c.b16 %v2740, %v2732
  %v3437 = vpack.c.b16 %v2741, %v2733
  %v3438 = vpack.c.b16 %v2750, %v2742
  %v3439 = vpack.c.b16 %v2751, %v2743
  %v3440 = vpack.c.b16 %v2752, %v2744
  %v3441 = vpack.c.b16 %v2753, %v2745
  %v3442 = vpack.c.b16 %v2754, %v2746
  %v3443 = vpack.c.b16 %v2755, %v2747
  %v3444 = vpack.c.b16 %v2756, %v2748
  %v3445 = vpack.c.b16 %v2757, %v2749
  %v3446 = vpack.c.b16 %v2766, %v2758
  %v3447 = vpack.c.b16 %v2767, %v2759
  %v3448 = vpack.c.b16 %v2768, %v2760
  %v3449 = vpack.c.b16 %v2769, %v2761
  %v3450 = vpack.c.b16 %v2770, %v2762
  %v3451 = vpack.c.b16 %v2771, %v2763
  %v3452 = vpack.c.b16 %v2772, %v2764
  %v3453 = vpack.c.b16 %v2773, %v2765
  %v3454 = vpack.c.b16 %v2782, %v2774
  %v3455 = vpack.c.b16 %v2783, %v2775
  %v3456 = vpack.c.b16 %v2784, %v2776
  %v3457 = vpack.c.b16 %v2785, %v2777
  %v3458 = vpack.c.b16 %v2786, %v2778
  %v3459 = vpack.c.b16 %v2787, %v2779
  %v3460 = vpack.c.b16 %v2788, %v2780
  %v3461 = vpack.c.b16 %v2789, %v2781
  %v3462 = vpack.c.b16 %v2798, %v2790
  %v3463 = vpack.c.b16 %v2799, %v2791
  %v3464 = vpack.c.b16 %v2800, %v2792
  %v3465 = vpack.c.b16 %v2801, %v2793
  %v3466 = vpack.c.b16 %v2802, %v2794
  %v3467 = vpack.c.b16 %v2803, %v2795
  %v3468 = vpack.c.b16 %v2804, %v2796
  %v3469 = vpack.c.b16 %v2805, %v2797
  %v3470 = vpack.c.b16 %v2814, %v2806
  %v3471 = vpack.c.b16 %v2815, %v2807
  %v3472 = vpack.c.b16 %v2816, %v2808
  %v3473 = vpack.c.b16 %v2817, %v2809
  %v3474 = vpack.c.b16 %v2818, %v2810
  %v3475 = vpack.c.b16 %v2819, %v2811
  %v3476 = vpack.c.b16 %v2820, %v2812
  %v3477 = vpack.c.b16 %v2821, %v2813
  %v3478 = vpack.c.b16 %v2830, %v2822
  %v3479 = vpack.c.b16 %v2831, %v2823
  %v3480 = vpack.c.b16 %v2832, %v2824
  %v3481 = vpack.c.b16 %v2833, %v2825
  %v3482 = vpack.c.b16 %v2834, %v2826
  %v3483 = vpack.c.b16 %v2835, %v2827
  %v3484 = vpack.c.b16 %v2836, %v2828
  %v3485 = vpack.c.b16 %v2837, %v2829
  %v3486 = vpack.c.b16 %v2846, %v2838
  %v3487 = vpack.c.b16 %v2847, %v2839
  %v3488 = vpack.c.b16 %v2848, %v2840
  %v3489 = vpack.c.b16 %v2849, %v2841
  %v3490 = vpack.c.b16 %v2850, %v2842
  %v3491 = vpack.c.b16 %v2851, %v2843
  %v3492 = vpack.c.b16 %v2852, %v2844
  %v3493 = vpack.c.b16 %v2853, %v2845
  %v3494 = vpack.c.b16 %v2862, %v2854
  %v3495 = vpack.c.b16 %v2863, %v2855
  %v3496 = vpack.c.b16 %v2864, %v2856
  %v3497 = vpack.c.b16 %v2865, %v2857
  %v3498 = vpack.c.b16 %v2866, %v2858
  %v3499 = vpack.c.b16 %v2867, %v2859
  %v3500 = vpack.c.b16 %v2868, %v2860
  %v3501 = vpack.c.b16 %v2869, %v2861
  %v3502 = vpack.c.b16 %v2878, %v2870
  %v3503 = vpack.c.b16 %v2879, %v2871
  %v3504 = vpack.c.b16 %v2880, %v2872
  %v3505 = vpack.c.b16 %v2881, %v2873
  %v3506 = vpack.c.b16 %v2882, %v2874
  %v3507 = vpack.c.b16 %v2883, %v2875
  %v3508 = vpack.c.b16 %v2884, %v2876
  %v3509 = vpack.c.b16 %v2885, %v2877
  %v3510 = vpack.c.b16 %v2894, %v2886
  %v3511 = vpack.c.b16 %v2895, %v2887
  %v3512 = vpack.c.b16 %v2896, %v2888
  %v3513 = vpack.c.b16 %v2897, %v2889
  %v3514 = vpack.c.b16 %v2898, %v2890
  %v3515 = vpack.c.b16 %v2899, %v2891
  %v3516 = vpack.c.b16 %v2900, %v2892
  %v3517 = vpack.c.b16 %v2901, %v2893
  %v3518 = vpack.c.b16 %v2910, %v2902
  %v3519 = vpack.c.b16 %v2911, %v2903
  %v3520 = vpack.c.b16 %v2912, %v2904
  %v3521 = vpack.c.b16 %v2913, %v2905
  %v3522 = vpack.c.b16 %v2914, %v2906
  %v3523 = vpack.c.b16 %v2915, %v2907
  %v3524 = vpack.c.b16 %v2916, %v2908
  %v3525 = vpack.c.b16 %v2917, %v2909
  %v3526 = vpack.c.b16 %v2926, %v2918
  %v3527 = vpack.c.b16 %v2927, %v2919
  %v3528 = vpack.c.b16 %v2928, %v2920
  %v3529 = vpack.c.b16 %v2929, %v2921
  %v3530 = vpack.c.b16 %v2930, %v2922
  %v3531 = vpack.c.b16 %v2931, %v2923
  %v3532 = vpack.c.b16 %v2932, %v2924
  %v3533 = vpack.c.b16 %v2933, %v2925
  %v3534 = vpack.c.b16 %v2942, %v2934
  %v3535 = vpack.c.b16 %v2943, %v2935
  %v3536 = vpack.c.b16 %v2944, %v2936
  %v3537 = vpack.c.b16 %v2945, %v2937
  %v3538 = vpack.c.b16 %v2946, %v2938
  %v3539 = vpack.c.b16 %v2947, %v2939
  %v3540 = vpack.c.b16 %v2948, %v2940
  %v3541 = vpack.c.b16 %v2949, %v2941
  %v3542 = vpack.c.b16 %v2958, %v2950
  %v3543 = vpack.c.b16 %v2959, %v2951
  %v3544 = vpack.c.b16 %v2960, %v2952
  %v3545 = vpack.c.b16 %v2961, %v2953
  %v3546 = vpack.c.b16 %v2962, %v2954
  %v3547 = vpack.c.b16 %v2963, %v2955
  %v3548 = vpack.c.b16 %v2964, %v2956
  %v3549 = vpack.c.b16 %v2965, %v2957
  %v3550 = vpack.c.b16 %v2974, %v2966
  %v3551 = vpack.c.b16 %v2975, %v2967
  %v3552 = vpack.c.b16 %v2976, %v2968
  %v3553 = vpack.c.b16 %v2977, %v2969
  %v3554 = vpack.c.b16 %v2978, %v2970
  %v3555 = vpack.c.b16 %v2979, %v2971
  %v3556 = vpack.c.b16 %v2980, %v2972
  %v3557 = vpack.c.b16 %v2981, %v2973
  %v3558 = vpack.c.b16 %v2990, %v2982
  %v3559 = vpack.c.b16 %v2991, %v2983
  %v3560 = vpack.c.b16 %v2992, %v2984
  %v3561 = vpack.c.b16 %v2993, %v2985
  %v3562 = vpack.c.b16 %v2994, %v2986
  %v3563 = vpack.c.b16 %v2995, %v2987
  %v3564 = vpack.c.b16 %v2996, %v2988
  %v3565 = vpack.c.b16 %v2997, %v2989
  %v3566 = vpack.c.b16 %v3006, %v2998
  %v3567 = vpack.c.b16 %v3007, %v2999
  %v3568 = vpack.c.b16 %v3008, %v3000
  %v3569 = vpack.c.b16 %v3009, %v3001
  %v3570 = vpack.c.b16 %v3010, %v3002
  %v3571 = vpack.c.b16 %v3011, %v3003
  %v3572 = vpack.c.b16 %v3012, %v3004
  %v3573 = vpack.c.b16 %v3013, %v3005
  %v3574 = vpack.c.b16 %v3022, %v3014
  %v3575 = vpack.c.b16 %v3023, %v3015
  %v3576 = vpack.c.b16 %v3024, %v3016
  %v3577 = vpack.c.b16 %v3025, %v3017
  %v3578 = vpack.c.b16 %v3026, %v3018
  %v3579 = vpack.c.b16 %v3027, %v3019
  %v3580 = vpack.c.b16 %v3028, %v3020
  %v3581 = vpack.c.b16 %v3029, %v3021
  %v3582 = vpack.c.b16 %v3038, %v3030
  %v3583 = vpack.c.b16 %v3039, %v3031
  %v3584 = vpack.c.b16 %v3040, %v3032
  %v3585 = vpack.c.b16 %v3041, %v3033
  %v3586 = vpack.c.b16 %v3042, %v3034
  %v3587 = vpack.c.b16 %v3043, %v3035
  %v3588 = vpack.c.b16 %v3044, %v3036
  %v3589 = vpack.c.b16 %v3045, %v3037
  %v3590 = vpack.c.b16 %v3054, %v3046
  %v3591 = vpack.c.b16 %v3055, %v3047
  %v3592 = vpack.c.b16 %v3056, %v3048
  %v3593 = vpack.c.b16 %v3057, %v3049
  %v3594 = vpack.c.b16 %v3058, %v3050
  %v3595 = vpack.c.b16 %v3059, %v3051
  %v3596 = vpack.c.b16 %v3060, %v3052
  %v3597 = vpack.c.b16 %v3061, %v3053
  %v3598 = vpack.c.b16 %v3070, %v3062
  %v3599 = vpack.c.b16 %v3071, %v3063
  %v3600 = vpack.c.b16 %v3072, %v3064
  %v3601 = vpack.c.b16 %v3073, %v3065
  %v3602 = vpack.c.b16 %v3074, %v3066
  %v3603 = vpack.c.b16 %v3075, %v3067
  %v3604 = vpack.c.b16 %v3076, %v3068
  %v3605 = vpack.c.b16 %v3077, %v3069
  %v3606 = vpack.c.b16 %v3086, %v3078
  %v3607 = vpack.c.b16 %v3087, %v3079
  %v3608 = vpack.c.b16 %v3088, %v3080
  %v3609 = vpack.c.b16 %v3089, %v3081
  %v3610 = vpack.c.b16 %v3090, %v3082
  %v3611 = vpack.c.b16 %v3091, %v3083
  %v3612 = vpack.c.b16 %v3092, %v3084
  %v3613 = vpack.c.b16 %v3093, %v3085
  %v3614 = vpack.c.b16 %v3102, %v3094
  %v3615 = vpack.c.b16 %v3103, %v3095
  %v3616 = vpack.c.b16 %v3104, %v3096
  %v3617 = vpack.c.b16 %v3105, %v3097
  %v3618 = vpack.c.b16 %v3106, %v3098
  %v3619 = vpack.c.b16 %v3107, %v3099
  %v3620 = vpack.c.b16 %v3108, %v3100
  %v3621 = vpack.c.b16 %v3109, %v3101
  %4134 = vmatpush.bf16.msra.mxu0 %v3166
  %4135 = vmatpush.bf16.msra.mxu0 %v3158
  %4136 = vmatpush.bf16.msra.mxu0 %v3150
  %4137 = vmatpush.bf16.msra.mxu0 %v3142
  %4138 = vmatpush.bf16.msra.mxu0 %v3134
  %4139 = vmatpush.bf16.msra.mxu0 %v3126
  %4140 = vmatpush.bf16.msra.mxu0 %v3118
  %4141 = vmatpush.bf16.msra.mxu0 %v3110
  %4142 = vmatmul.bf16.gmra.mxu0 %v1036
  %v4143 = vpop.f32.mrf.mxu0
  %v4144 = vadd.f32 %v1558, %v4143
  %v4145 = vpop.f32.mrf.mxu0
  %4146 = vdwg.mxu0
  %4147 = vmatpush.bf16.msra.mxu0 %v3230
  %4148 = vmatpush.bf16.msra.mxu0 %v3222
  %4149 = vmatpush.bf16.msra.mxu0 %v3214
  %4150 = vmatpush.bf16.msra.mxu0 %v3206
  %4151 = vmatpush.bf16.msra.mxu0 %v3198
  %4152 = vmatpush.bf16.msra.mxu0 %v3190
  %4153 = vmatpush.bf16.msra.mxu0 %v3182
  %4154 = vmatpush.bf16.msra.mxu0 %v3174
  %4155 = vmatmul.bf16.gmra.mxu0 %v1037
  %v4156 = vpop.f32.mrf.mxu0
  %v4157 = vadd.f32 %v4144, %v4156
  %v4158 = vpop.f32.mrf.mxu0
  %4159 = vdwg.mxu0
  %4160 = vmatpush.bf16.msra.mxu0 %v3294
  %4161 = vmatpush.bf16.msra.mxu0 %v3286
  %4162 = vmatpush.bf16.msra.mxu0 %v3278
  %4163 = vmatpush.bf16.msra.mxu0 %v3270
  %4164 = vmatpush.bf16.msra.mxu0 %v3262
  %4165 = vmatpush.bf16.msra.mxu0 %v3254
  %4166 = vmatpush.bf16.msra.mxu0 %v3246
  %4167 = vmatpush.bf16.msra.mxu0 %v3238
  %4168 = vmatmul.bf16.gmra.mxu0 %v1038
  %v4169 = vpop.f32.mrf.mxu0
  %v4170 = vadd.f32 %v4157, %v4169
  %v4171 = vpop.f32.mrf.mxu0
  %4172 = vdwg.mxu0
  %4173 = vmatpush.bf16.msra.mxu0 %v3358
  %4174 = vmatpush.bf16.msra.mxu0 %v3350
  %4175 = vmatpush.bf16.msra.mxu0 %v3342
  %4176 = vmatpush.bf16.msra.mxu0 %v3334
  %4177 = vmatpush.bf16.msra.mxu0 %v3326
  %4178 = vmatpush.bf16.msra.mxu0 %v3318
  %4179 = vmatpush.bf16.msra.mxu0 %v3310
  %4180 = vmatpush.bf16.msra.mxu0 %v3302
  %4181 = vmatmul.bf16.gmra.mxu0 %v1039
  %v4182 = vpop.f32.mrf.mxu0
  %v4183 = vadd.f32 %v4170, %v4182
  %v4184 = vpop.f32.mrf.mxu0
  %4185 = vdwg.mxu0
  %4186 = vmatpush.bf16.msra.mxu0 %v3422
  %4187 = vmatpush.bf16.msra.mxu0 %v3414
  %4188 = vmatpush.bf16.msra.mxu0 %v3406
  %4189 = vmatpush.bf16.msra.mxu0 %v3398
  %4190 = vmatpush.bf16.msra.mxu0 %v3390
  %4191 = vmatpush.bf16.msra.mxu0 %v3382
  %4192 = vmatpush.bf16.msra.mxu0 %v3374
  %4193 = vmatpush.bf16.msra.mxu0 %v3366
  %4194 = vmatmul.bf16.gmra.mxu0 %v1040
  %v4195 = vpop.f32.mrf.mxu0
  %v4196 = vadd.f32 %v4183, %v4195
  %v4197 = vpop.f32.mrf.mxu0
  %4198 = vdwg.mxu0
  %4199 = vmatpush.bf16.msra.mxu0 %v3486
  %4200 = vmatpush.bf16.msra.mxu0 %v3478
  %4201 = vmatpush.bf16.msra.mxu0 %v3470
  %4202 = vmatpush.bf16.msra.mxu0 %v3462
  %4203 = vmatpush.bf16.msra.mxu0 %v3454
  %4204 = vmatpush.bf16.msra.mxu0 %v3446
  %4205 = vmatpush.bf16.msra.mxu0 %v3438
  %4206 = vmatpush.bf16.msra.mxu0 %v3430
  %4207 = vmatmul.bf16.gmra.mxu0 %v1041
  %v4208 = vpop.f32.mrf.mxu0
  %v4209 = vadd.f32 %v4196, %v4208
  %v4210 = vpop.f32.mrf.mxu0
  %4211 = vdwg.mxu0
  %4212 = vmatpush.bf16.msra.mxu0 %v3550
  %4213 = vmatpush.bf16.msra.mxu0 %v3542
  %4214 = vmatpush.bf16.msra.mxu0 %v3534
  %4215 = vmatpush.bf16.msra.mxu0 %v3526
  %4216 = vmatpush.bf16.msra.mxu0 %v3518
  %4217 = vmatpush.bf16.msra.mxu0 %v3510
  %4218 = vmatpush.bf16.msra.mxu0 %v3502
  %4219 = vmatpush.bf16.msra.mxu0 %v3494
  %4220 = vmatmul.bf16.gmra.mxu0 %v1042
  %v4221 = vpop.f32.mrf.mxu0
  %v4222 = vadd.f32 %v4209, %v4221
  %v4223 = vpop.f32.mrf.mxu0
  %4224 = vdwg.mxu0
  %4225 = vmatpush.bf16.msra.mxu0 %v3614
  %4226 = vmatpush.bf16.msra.mxu0 %v3606
  %4227 = vmatpush.bf16.msra.mxu0 %v3598
  %4228 = vmatpush.bf16.msra.mxu0 %v3590
  %4229 = vmatpush.bf16.msra.mxu0 %v3582
  %4230 = vmatpush.bf16.msra.mxu0 %v3574
  %4231 = vmatpush.bf16.msra.mxu0 %v3566
  %4232 = vmatpush.bf16.msra.mxu0 %v3558
  %4233 = vmatmul.bf16.gmra.mxu0 %v1043
  %v4234 = vpop.f32.mrf.mxu0
  %v4235 = vadd.f32 %v4222, %v4234
  %v4236 = vpop.f32.mrf.mxu0
  %4237 = vdwg.mxu0
  %4238 = vmatpush.bf16.msra.mxu0 %v3167
  %4239 = vmatpush.bf16.msra.mxu0 %v3159
  %4240 = vmatpush.bf16.msra.mxu0 %v3151
  %4241 = vmatpush.bf16.msra.mxu0 %v3143
  %4242 = vmatpush.bf16.msra.mxu0 %v3135
  %4243 = vmatpush.bf16.msra.mxu0 %v3127
  %4244 = vmatpush.bf16.msra.mxu0 %v3119
  %4245 = vmatpush.bf16.msra.mxu0 %v3111
  %4246 = vmatmul.bf16.gmra.mxu0 %v1036
  %v4247 = vpop.f32.mrf.mxu0
  %v4248 = vadd.f32 %v1559, %v4247
  %v4249 = vpop.f32.mrf.mxu0
  %4250 = vdwg.mxu0
  %4251 = vmatpush.bf16.msra.mxu0 %v3231
  %4252 = vmatpush.bf16.msra.mxu0 %v3223
  %4253 = vmatpush.bf16.msra.mxu0 %v3215
  %4254 = vmatpush.bf16.msra.mxu0 %v3207
  %4255 = vmatpush.bf16.msra.mxu0 %v3199
  %4256 = vmatpush.bf16.msra.mxu0 %v3191
  %4257 = vmatpush.bf16.msra.mxu0 %v3183
  %4258 = vmatpush.bf16.msra.mxu0 %v3175
  %4259 = vmatmul.bf16.gmra.mxu0 %v1037
  %v4260 = vpop.f32.mrf.mxu0
  %v4261 = vadd.f32 %v4248, %v4260
  %v4262 = vpop.f32.mrf.mxu0
  %4263 = vdwg.mxu0
  %4264 = vmatpush.bf16.msra.mxu0 %v3295
  %4265 = vmatpush.bf16.msra.mxu0 %v3287
  %4266 = vmatpush.bf16.msra.mxu0 %v3279
  %4267 = vmatpush.bf16.msra.mxu0 %v3271
  %4268 = vmatpush.bf16.msra.mxu0 %v3263
  %4269 = vmatpush.bf16.msra.mxu0 %v3255
  %4270 = vmatpush.bf16.msra.mxu0 %v3247
  %4271 = vmatpush.bf16.msra.mxu0 %v3239
  %4272 = vmatmul.bf16.gmra.mxu0 %v1038
  %v4273 = vpop.f32.mrf.mxu0
  %v4274 = vadd.f32 %v4261, %v4273
  %v4275 = vpop.f32.mrf.mxu0
  %4276 = vdwg.mxu0
  %4277 = vmatpush.bf16.msra.mxu0 %v3359
  %4278 = vmatpush.bf16.msra.mxu0 %v3351
  %4279 = vmatpush.bf16.msra.mxu0 %v3343
  %4280 = vmatpush.bf16.msra.mxu0 %v3335
  %4281 = vmatpush.bf16.msra.mxu0 %v3327
  %4282 = vmatpush.bf16.msra.mxu0 %v3319
  %4283 = vmatpush.bf16.msra.mxu0 %v3311
  %4284 = vmatpush.bf16.msra.mxu0 %v3303
  %4285 = vmatmul.bf16.gmra.mxu0 %v1039
  %v4286 = vpop.f32.mrf.mxu0
  %v4287 = vadd.f32 %v4274, %v4286
  %v4288 = vpop.f32.mrf.mxu0
  %4289 = vdwg.mxu0
  %4290 = vmatpush.bf16.msra.mxu0 %v3423
  %4291 = vmatpush.bf16.msra.mxu0 %v3415
  %4292 = vmatpush.bf16.msra.mxu0 %v3407
  %4293 = vmatpush.bf16.msra.mxu0 %v3399
  %4294 = vmatpush.bf16.msra.mxu0 %v3391
  %4295 = vmatpush.bf16.msra.mxu0 %v3383
  %4296 = vmatpush.bf16.msra.mxu0 %v3375
  %4297 = vmatpush.bf16.msra.mxu0 %v3367
  %4298 = vmatmul.bf16.gmra.mxu0 %v1040
  %v4299 = vpop.f32.mrf.mxu0
  %v4300 = vadd.f32 %v4287, %v4299
  %v4301 = vpop.f32.mrf.mxu0
  %4302 = vdwg.mxu0
  %4303 = vmatpush.bf16.msra.mxu0 %v3487
  %4304 = vmatpush.bf16.msra.mxu0 %v3479
  %4305 = vmatpush.bf16.msra.mxu0 %v3471
  %4306 = vmatpush.bf16.msra.mxu0 %v3463
  %4307 = vmatpush.bf16.msra.mxu0 %v3455
  %4308 = vmatpush.bf16.msra.mxu0 %v3447
  %4309 = vmatpush.bf16.msra.mxu0 %v3439
  %4310 = vmatpush.bf16.msra.mxu0 %v3431
  %4311 = vmatmul.bf16.gmra.mxu0 %v1041
  %v4312 = vpop.f32.mrf.mxu0
  %v4313 = vadd.f32 %v4300, %v4312
  %v4314 = vpop.f32.mrf.mxu0
  %4315 = vdwg.mxu0
  %4316 = vmatpush.bf16.msra.mxu0 %v3551
  %4317 = vmatpush.bf16.msra.mxu0 %v3543
  %4318 = vmatpush.bf16.msra.mxu0 %v3535
  %4319 = vmatpush.bf16.msra.mxu0 %v3527
  %4320 = vmatpush.bf16.msra.mxu0 %v3519
  %4321 = vmatpush.bf16.msra.mxu0 %v3511
  %4322 = vmatpush.bf16.msra.mxu0 %v3503
  %4323 = vmatpush.bf16.msra.mxu0 %v3495
  %4324 = vmatmul.bf16.gmra.mxu0 %v1042
  %v4325 = vpop.f32.mrf.mxu0
  %v4326 = vadd.f32 %v4313, %v4325
  %v4327 = vpop.f32.mrf.mxu0
  %4328 = vdwg.mxu0
  %4329 = vmatpush.bf16.msra.mxu0 %v3615
  %4330 = vmatpush.bf16.msra.mxu0 %v3607
  %4331 = vmatpush.bf16.msra.mxu0 %v3599
  %4332 = vmatpush.bf16.msra.mxu0 %v3591
  %4333 = vmatpush.bf16.msra.mxu0 %v3583
  %4334 = vmatpush.bf16.msra.mxu0 %v3575
  %4335 = vmatpush.bf16.msra.mxu0 %v3567
  %4336 = vmatpush.bf16.msra.mxu0 %v3559
  %4337 = vmatmul.bf16.gmra.mxu0 %v1043
  %v4338 = vpop.f32.mrf.mxu0
  %v4339 = vadd.f32 %v4326, %v4338
  %v4340 = vpop.f32.mrf.mxu0
  %4341 = vdwg.mxu0
  %4342 = vmatpush.bf16.msra.mxu0 %v3168
  %4343 = vmatpush.bf16.msra.mxu0 %v3160
  %4344 = vmatpush.bf16.msra.mxu0 %v3152
  %4345 = vmatpush.bf16.msra.mxu0 %v3144
  %4346 = vmatpush.bf16.msra.mxu0 %v3136
  %4347 = vmatpush.bf16.msra.mxu0 %v3128
  %4348 = vmatpush.bf16.msra.mxu0 %v3120
  %4349 = vmatpush.bf16.msra.mxu0 %v3112
  %4350 = vmatmul.bf16.gmra.mxu0 %v1036
  %v4351 = vpop.f32.mrf.mxu0
  %v4352 = vadd.f32 %v1560, %v4351
  %v4353 = vpop.f32.mrf.mxu0
  %4354 = vdwg.mxu0
  %4355 = vmatpush.bf16.msra.mxu0 %v3232
  %4356 = vmatpush.bf16.msra.mxu0 %v3224
  %4357 = vmatpush.bf16.msra.mxu0 %v3216
  %4358 = vmatpush.bf16.msra.mxu0 %v3208
  %4359 = vmatpush.bf16.msra.mxu0 %v3200
  %4360 = vmatpush.bf16.msra.mxu0 %v3192
  %4361 = vmatpush.bf16.msra.mxu0 %v3184
  %4362 = vmatpush.bf16.msra.mxu0 %v3176
  %4363 = vmatmul.bf16.gmra.mxu0 %v1037
  %v4364 = vpop.f32.mrf.mxu0
  %v4365 = vadd.f32 %v4352, %v4364
  %v4366 = vpop.f32.mrf.mxu0
  %4367 = vdwg.mxu0
  %4368 = vmatpush.bf16.msra.mxu0 %v3296
  %4369 = vmatpush.bf16.msra.mxu0 %v3288
  %4370 = vmatpush.bf16.msra.mxu0 %v3280
  %4371 = vmatpush.bf16.msra.mxu0 %v3272
  %4372 = vmatpush.bf16.msra.mxu0 %v3264
  %4373 = vmatpush.bf16.msra.mxu0 %v3256
  %4374 = vmatpush.bf16.msra.mxu0 %v3248
  %4375 = vmatpush.bf16.msra.mxu0 %v3240
  %4376 = vmatmul.bf16.gmra.mxu0 %v1038
  %v4377 = vpop.f32.mrf.mxu0
  %v4378 = vadd.f32 %v4365, %v4377
  %v4379 = vpop.f32.mrf.mxu0
  %4380 = vdwg.mxu0
  %4381 = vmatpush.bf16.msra.mxu0 %v3360
  %4382 = vmatpush.bf16.msra.mxu0 %v3352
  %4383 = vmatpush.bf16.msra.mxu0 %v3344
  %4384 = vmatpush.bf16.msra.mxu0 %v3336
  %4385 = vmatpush.bf16.msra.mxu0 %v3328
  %4386 = vmatpush.bf16.msra.mxu0 %v3320
  %4387 = vmatpush.bf16.msra.mxu0 %v3312
  %4388 = vmatpush.bf16.msra.mxu0 %v3304
  %4389 = vmatmul.bf16.gmra.mxu0 %v1039
  %v4390 = vpop.f32.mrf.mxu0
  %v4391 = vadd.f32 %v4378, %v4390
  %v4392 = vpop.f32.mrf.mxu0
  %4393 = vdwg.mxu0
  %4394 = vmatpush.bf16.msra.mxu0 %v3424
  %4395 = vmatpush.bf16.msra.mxu0 %v3416
  %4396 = vmatpush.bf16.msra.mxu0 %v3408
  %4397 = vmatpush.bf16.msra.mxu0 %v3400
  %4398 = vmatpush.bf16.msra.mxu0 %v3392
  %4399 = vmatpush.bf16.msra.mxu0 %v3384
  %4400 = vmatpush.bf16.msra.mxu0 %v3376
  %4401 = vmatpush.bf16.msra.mxu0 %v3368
  %4402 = vmatmul.bf16.gmra.mxu0 %v1040
  %v4403 = vpop.f32.mrf.mxu0
  %v4404 = vadd.f32 %v4391, %v4403
  %v4405 = vpop.f32.mrf.mxu0
  %4406 = vdwg.mxu0
  %4407 = vmatpush.bf16.msra.mxu0 %v3488
  %4408 = vmatpush.bf16.msra.mxu0 %v3480
  %4409 = vmatpush.bf16.msra.mxu0 %v3472
  %4410 = vmatpush.bf16.msra.mxu0 %v3464
  %4411 = vmatpush.bf16.msra.mxu0 %v3456
  %4412 = vmatpush.bf16.msra.mxu0 %v3448
  %4413 = vmatpush.bf16.msra.mxu0 %v3440
  %4414 = vmatpush.bf16.msra.mxu0 %v3432
  %4415 = vmatmul.bf16.gmra.mxu0 %v1041
  %v4416 = vpop.f32.mrf.mxu0
  %v4417 = vadd.f32 %v4404, %v4416
  %v4418 = vpop.f32.mrf.mxu0
  %4419 = vdwg.mxu0
  %4420 = vmatpush.bf16.msra.mxu0 %v3552
  %4421 = vmatpush.bf16.msra.mxu0 %v3544
  %4422 = vmatpush.bf16.msra.mxu0 %v3536
  %4423 = vmatpush.bf16.msra.mxu0 %v3528
  %4424 = vmatpush.bf16.msra.mxu0 %v3520
  %4425 = vmatpush.bf16.msra.mxu0 %v3512
  %4426 = vmatpush.bf16.msra.mxu0 %v3504
  %4427 = vmatpush.bf16.msra.mxu0 %v3496
  %4428 = vmatmul.bf16.gmra.mxu0 %v1042
  %v4429 = vpop.f32.mrf.mxu0
  %v4430 = vadd.f32 %v4417, %v4429
  %v4431 = vpop.f32.mrf.mxu0
  %4432 = vdwg.mxu0
  %4433 = vmatpush.bf16.msra.mxu0 %v3616
  %4434 = vmatpush.bf16.msra.mxu0 %v3608
  %4435 = vmatpush.bf16.msra.mxu0 %v3600
  %4436 = vmatpush.bf16.msra.mxu0 %v3592
  %4437 = vmatpush.bf16.msra.mxu0 %v3584
  %4438 = vmatpush.bf16.msra.mxu0 %v3576
  %4439 = vmatpush.bf16.msra.mxu0 %v3568
  %4440 = vmatpush.bf16.msra.mxu0 %v3560
  %4441 = vmatmul.bf16.gmra.mxu0 %v1043
  %v4442 = vpop.f32.mrf.mxu0
  %v4443 = vadd.f32 %v4430, %v4442
  %v4444 = vpop.f32.mrf.mxu0
  %4445 = vdwg.mxu0
  %4446 = vmatpush.bf16.msra.mxu0 %v3169
  %4447 = vmatpush.bf16.msra.mxu0 %v3161
  %4448 = vmatpush.bf16.msra.mxu0 %v3153
  %4449 = vmatpush.bf16.msra.mxu0 %v3145
  %4450 = vmatpush.bf16.msra.mxu0 %v3137
  %4451 = vmatpush.bf16.msra.mxu0 %v3129
  %4452 = vmatpush.bf16.msra.mxu0 %v3121
  %4453 = vmatpush.bf16.msra.mxu0 %v3113
  %4454 = vmatmul.bf16.gmra.mxu0 %v1036
  %v4455 = vpop.f32.mrf.mxu0
  %v4456 = vadd.f32 %v1561, %v4455
  %v4457 = vpop.f32.mrf.mxu0
  %4458 = vdwg.mxu0
  %4459 = vmatpush.bf16.msra.mxu0 %v3233
  %4460 = vmatpush.bf16.msra.mxu0 %v3225
  %4461 = vmatpush.bf16.msra.mxu0 %v3217
  %4462 = vmatpush.bf16.msra.mxu0 %v3209
  %4463 = vmatpush.bf16.msra.mxu0 %v3201
  %4464 = vmatpush.bf16.msra.mxu0 %v3193
  %4465 = vmatpush.bf16.msra.mxu0 %v3185
  %4466 = vmatpush.bf16.msra.mxu0 %v3177
  %4467 = vmatmul.bf16.gmra.mxu0 %v1037
  %v4468 = vpop.f32.mrf.mxu0
  %v4469 = vadd.f32 %v4456, %v4468
  %v4470 = vpop.f32.mrf.mxu0
  %4471 = vdwg.mxu0
  %4472 = vmatpush.bf16.msra.mxu0 %v3297
  %4473 = vmatpush.bf16.msra.mxu0 %v3289
  %4474 = vmatpush.bf16.msra.mxu0 %v3281
  %4475 = vmatpush.bf16.msra.mxu0 %v3273
  %4476 = vmatpush.bf16.msra.mxu0 %v3265
  %4477 = vmatpush.bf16.msra.mxu0 %v3257
  %4478 = vmatpush.bf16.msra.mxu0 %v3249
  %4479 = vmatpush.bf16.msra.mxu0 %v3241
  %4480 = vmatmul.bf16.gmra.mxu0 %v1038
  %v4481 = vpop.f32.mrf.mxu0
  %v4482 = vadd.f32 %v4469, %v4481
  %v4483 = vpop.f32.mrf.mxu0
  %4484 = vdwg.mxu0
  %4485 = vmatpush.bf16.msra.mxu0 %v3361
  %4486 = vmatpush.bf16.msra.mxu0 %v3353
  %4487 = vmatpush.bf16.msra.mxu0 %v3345
  %4488 = vmatpush.bf16.msra.mxu0 %v3337
  %4489 = vmatpush.bf16.msra.mxu0 %v3329
  %4490 = vmatpush.bf16.msra.mxu0 %v3321
  %4491 = vmatpush.bf16.msra.mxu0 %v3313
  %4492 = vmatpush.bf16.msra.mxu0 %v3305
  %4493 = vmatmul.bf16.gmra.mxu0 %v1039
  %v4494 = vpop.f32.mrf.mxu0
  %v4495 = vadd.f32 %v4482, %v4494
  %v4496 = vpop.f32.mrf.mxu0
  %4497 = vdwg.mxu0
  %4498 = vmatpush.bf16.msra.mxu0 %v3425
  %4499 = vmatpush.bf16.msra.mxu0 %v3417
  %4500 = vmatpush.bf16.msra.mxu0 %v3409
  %4501 = vmatpush.bf16.msra.mxu0 %v3401
  %4502 = vmatpush.bf16.msra.mxu0 %v3393
  %4503 = vmatpush.bf16.msra.mxu0 %v3385
  %4504 = vmatpush.bf16.msra.mxu0 %v3377
  %4505 = vmatpush.bf16.msra.mxu0 %v3369
  %4506 = vmatmul.bf16.gmra.mxu0 %v1040
  %v4507 = vpop.f32.mrf.mxu0
  %v4508 = vadd.f32 %v4495, %v4507
  %v4509 = vpop.f32.mrf.mxu0
  %4510 = vdwg.mxu0
  %4511 = vmatpush.bf16.msra.mxu0 %v3489
  %4512 = vmatpush.bf16.msra.mxu0 %v3481
  %4513 = vmatpush.bf16.msra.mxu0 %v3473
  %4514 = vmatpush.bf16.msra.mxu0 %v3465
  %4515 = vmatpush.bf16.msra.mxu0 %v3457
  %4516 = vmatpush.bf16.msra.mxu0 %v3449
  %4517 = vmatpush.bf16.msra.mxu0 %v3441
  %4518 = vmatpush.bf16.msra.mxu0 %v3433
  %4519 = vmatmul.bf16.gmra.mxu0 %v1041
  %v4520 = vpop.f32.mrf.mxu0
  %v4521 = vadd.f32 %v4508, %v4520
  %v4522 = vpop.f32.mrf.mxu0
  %4523 = vdwg.mxu0
  %4524 = vmatpush.bf16.msra.mxu0 %v3553
  %4525 = vmatpush.bf16.msra.mxu0 %v3545
  %4526 = vmatpush.bf16.msra.mxu0 %v3537
  %4527 = vmatpush.bf16.msra.mxu0 %v3529
  %4528 = vmatpush.bf16.msra.mxu0 %v3521
  %4529 = vmatpush.bf16.msra.mxu0 %v3513
  %4530 = vmatpush.bf16.msra.mxu0 %v3505
  %4531 = vmatpush.bf16.msra.mxu0 %v3497
  %4532 = vmatmul.bf16.gmra.mxu0 %v1042
  %v4533 = vpop.f32.mrf.mxu0
  %v4534 = vadd.f32 %v4521, %v4533
  %v4535 = vpop.f32.mrf.mxu0
  %4536 = vdwg.mxu0
  %4537 = vmatpush.bf16.msra.mxu0 %v3617
  %4538 = vmatpush.bf16.msra.mxu0 %v3609
  %4539 = vmatpush.bf16.msra.mxu0 %v3601
  %4540 = vmatpush.bf16.msra.mxu0 %v3593
  %4541 = vmatpush.bf16.msra.mxu0 %v3585
  %4542 = vmatpush.bf16.msra.mxu0 %v3577
  %4543 = vmatpush.bf16.msra.mxu0 %v3569
  %4544 = vmatpush.bf16.msra.mxu0 %v3561
  %4545 = vmatmul.bf16.gmra.mxu0 %v1043
  %v4546 = vpop.f32.mrf.mxu0
  %v4547 = vadd.f32 %v4534, %v4546
  %v4548 = vpop.f32.mrf.mxu0
  %4549 = vdwg.mxu0
  %4550 = vmatpush.bf16.msra.mxu0 %v3170
  %4551 = vmatpush.bf16.msra.mxu0 %v3162
  %4552 = vmatpush.bf16.msra.mxu0 %v3154
  %4553 = vmatpush.bf16.msra.mxu0 %v3146
  %4554 = vmatpush.bf16.msra.mxu0 %v3138
  %4555 = vmatpush.bf16.msra.mxu0 %v3130
  %4556 = vmatpush.bf16.msra.mxu0 %v3122
  %4557 = vmatpush.bf16.msra.mxu0 %v3114
  %4558 = vmatmul.bf16.gmra.mxu0 %v1036
  %v4559 = vpop.f32.mrf.mxu0
  %v4560 = vadd.f32 %v1562, %v4559
  %v4561 = vpop.f32.mrf.mxu0
  %4562 = vdwg.mxu0
  %4563 = vmatpush.bf16.msra.mxu0 %v3234
  %4564 = vmatpush.bf16.msra.mxu0 %v3226
  %4565 = vmatpush.bf16.msra.mxu0 %v3218
  %4566 = vmatpush.bf16.msra.mxu0 %v3210
  %4567 = vmatpush.bf16.msra.mxu0 %v3202
  %4568 = vmatpush.bf16.msra.mxu0 %v3194
  %4569 = vmatpush.bf16.msra.mxu0 %v3186
  %4570 = vmatpush.bf16.msra.mxu0 %v3178
  %4571 = vmatmul.bf16.gmra.mxu0 %v1037
  %v4572 = vpop.f32.mrf.mxu0
  %v4573 = vadd.f32 %v4560, %v4572
  %v4574 = vpop.f32.mrf.mxu0
  %4575 = vdwg.mxu0
  %4576 = vmatpush.bf16.msra.mxu0 %v3298
  %4577 = vmatpush.bf16.msra.mxu0 %v3290
  %4578 = vmatpush.bf16.msra.mxu0 %v3282
  %4579 = vmatpush.bf16.msra.mxu0 %v3274
  %4580 = vmatpush.bf16.msra.mxu0 %v3266
  %4581 = vmatpush.bf16.msra.mxu0 %v3258
  %4582 = vmatpush.bf16.msra.mxu0 %v3250
  %4583 = vmatpush.bf16.msra.mxu0 %v3242
  %4584 = vmatmul.bf16.gmra.mxu0 %v1038
  %v4585 = vpop.f32.mrf.mxu0
  %v4586 = vadd.f32 %v4573, %v4585
  %v4587 = vpop.f32.mrf.mxu0
  %4588 = vdwg.mxu0
  %4589 = vmatpush.bf16.msra.mxu0 %v3362
  %4590 = vmatpush.bf16.msra.mxu0 %v3354
  %4591 = vmatpush.bf16.msra.mxu0 %v3346
  %4592 = vmatpush.bf16.msra.mxu0 %v3338
  %4593 = vmatpush.bf16.msra.mxu0 %v3330
  %4594 = vmatpush.bf16.msra.mxu0 %v3322
  %4595 = vmatpush.bf16.msra.mxu0 %v3314
  %4596 = vmatpush.bf16.msra.mxu0 %v3306
  %4597 = vmatmul.bf16.gmra.mxu0 %v1039
  %v4598 = vpop.f32.mrf.mxu0
  %v4599 = vadd.f32 %v4586, %v4598
  %v4600 = vpop.f32.mrf.mxu0
  %4601 = vdwg.mxu0
  %4602 = vmatpush.bf16.msra.mxu0 %v3426
  %4603 = vmatpush.bf16.msra.mxu0 %v3418
  %4604 = vmatpush.bf16.msra.mxu0 %v3410
  %4605 = vmatpush.bf16.msra.mxu0 %v3402
  %4606 = vmatpush.bf16.msra.mxu0 %v3394
  %4607 = vmatpush.bf16.msra.mxu0 %v3386
  %4608 = vmatpush.bf16.msra.mxu0 %v3378
  %4609 = vmatpush.bf16.msra.mxu0 %v3370
  %4610 = vmatmul.bf16.gmra.mxu0 %v1040
  %v4611 = vpop.f32.mrf.mxu0
  %v4612 = vadd.f32 %v4599, %v4611
  %v4613 = vpop.f32.mrf.mxu0
  %4614 = vdwg.mxu0
  %4615 = vmatpush.bf16.msra.mxu0 %v3490
  %4616 = vmatpush.bf16.msra.mxu0 %v3482
  %4617 = vmatpush.bf16.msra.mxu0 %v3474
  %4618 = vmatpush.bf16.msra.mxu0 %v3466
  %4619 = vmatpush.bf16.msra.mxu0 %v3458
  %4620 = vmatpush.bf16.msra.mxu0 %v3450
  %4621 = vmatpush.bf16.msra.mxu0 %v3442
  %4622 = vmatpush.bf16.msra.mxu0 %v3434
  %4623 = vmatmul.bf16.gmra.mxu0 %v1041
  %v4624 = vpop.f32.mrf.mxu0
  %v4625 = vadd.f32 %v4612, %v4624
  %v4626 = vpop.f32.mrf.mxu0
  %4627 = vdwg.mxu0
  %4628 = vmatpush.bf16.msra.mxu0 %v3554
  %4629 = vmatpush.bf16.msra.mxu0 %v3546
  %4630 = vmatpush.bf16.msra.mxu0 %v3538
  %4631 = vmatpush.bf16.msra.mxu0 %v3530
  %4632 = vmatpush.bf16.msra.mxu0 %v3522
  %4633 = vmatpush.bf16.msra.mxu0 %v3514
  %4634 = vmatpush.bf16.msra.mxu0 %v3506
  %4635 = vmatpush.bf16.msra.mxu0 %v3498
  %4636 = vmatmul.bf16.gmra.mxu0 %v1042
  %v4637 = vpop.f32.mrf.mxu0
  %v4638 = vadd.f32 %v4625, %v4637
  %v4639 = vpop.f32.mrf.mxu0
  %4640 = vdwg.mxu0
  %4641 = vmatpush.bf16.msra.mxu0 %v3618
  %4642 = vmatpush.bf16.msra.mxu0 %v3610
  %4643 = vmatpush.bf16.msra.mxu0 %v3602
  %4644 = vmatpush.bf16.msra.mxu0 %v3594
  %4645 = vmatpush.bf16.msra.mxu0 %v3586
  %4646 = vmatpush.bf16.msra.mxu0 %v3578
  %4647 = vmatpush.bf16.msra.mxu0 %v3570
  %4648 = vmatpush.bf16.msra.mxu0 %v3562
  %4649 = vmatmul.bf16.gmra.mxu0 %v1043
  %v4650 = vpop.f32.mrf.mxu0
  %v4651 = vadd.f32 %v4638, %v4650
  %v4652 = vpop.f32.mrf.mxu0
  %4653 = vdwg.mxu0
  %4654 = vmatpush.bf16.msra.mxu0 %v3171
  %4655 = vmatpush.bf16.msra.mxu0 %v3163
  %4656 = vmatpush.bf16.msra.mxu0 %v3155
  %4657 = vmatpush.bf16.msra.mxu0 %v3147
  %4658 = vmatpush.bf16.msra.mxu0 %v3139
  %4659 = vmatpush.bf16.msra.mxu0 %v3131
  %4660 = vmatpush.bf16.msra.mxu0 %v3123
  %4661 = vmatpush.bf16.msra.mxu0 %v3115
  %4662 = vmatmul.bf16.gmra.mxu0 %v1036
  %v4663 = vpop.f32.mrf.mxu0
  %v4664 = vadd.f32 %v1563, %v4663
  %v4665 = vpop.f32.mrf.mxu0
  %4666 = vdwg.mxu0
  %4667 = vmatpush.bf16.msra.mxu0 %v3235
  %4668 = vmatpush.bf16.msra.mxu0 %v3227
  %4669 = vmatpush.bf16.msra.mxu0 %v3219
  %4670 = vmatpush.bf16.msra.mxu0 %v3211
  %4671 = vmatpush.bf16.msra.mxu0 %v3203
  %4672 = vmatpush.bf16.msra.mxu0 %v3195
  %4673 = vmatpush.bf16.msra.mxu0 %v3187
  %4674 = vmatpush.bf16.msra.mxu0 %v3179
  %4675 = vmatmul.bf16.gmra.mxu0 %v1037
  %v4676 = vpop.f32.mrf.mxu0
  %v4677 = vadd.f32 %v4664, %v4676
  %v4678 = vpop.f32.mrf.mxu0
  %4679 = vdwg.mxu0
  %4680 = vmatpush.bf16.msra.mxu0 %v3299
  %4681 = vmatpush.bf16.msra.mxu0 %v3291
  %4682 = vmatpush.bf16.msra.mxu0 %v3283
  %4683 = vmatpush.bf16.msra.mxu0 %v3275
  %4684 = vmatpush.bf16.msra.mxu0 %v3267
  %4685 = vmatpush.bf16.msra.mxu0 %v3259
  %4686 = vmatpush.bf16.msra.mxu0 %v3251
  %4687 = vmatpush.bf16.msra.mxu0 %v3243
  %4688 = vmatmul.bf16.gmra.mxu0 %v1038
  %v4689 = vpop.f32.mrf.mxu0
  %v4690 = vadd.f32 %v4677, %v4689
  %v4691 = vpop.f32.mrf.mxu0
  %4692 = vdwg.mxu0
  %4693 = vmatpush.bf16.msra.mxu0 %v3363
  %4694 = vmatpush.bf16.msra.mxu0 %v3355
  %4695 = vmatpush.bf16.msra.mxu0 %v3347
  %4696 = vmatpush.bf16.msra.mxu0 %v3339
  %4697 = vmatpush.bf16.msra.mxu0 %v3331
  %4698 = vmatpush.bf16.msra.mxu0 %v3323
  %4699 = vmatpush.bf16.msra.mxu0 %v3315
  %4700 = vmatpush.bf16.msra.mxu0 %v3307
  %4701 = vmatmul.bf16.gmra.mxu0 %v1039
  %v4702 = vpop.f32.mrf.mxu0
  %v4703 = vadd.f32 %v4690, %v4702
  %v4704 = vpop.f32.mrf.mxu0
  %4705 = vdwg.mxu0
  %4706 = vmatpush.bf16.msra.mxu0 %v3427
  %4707 = vmatpush.bf16.msra.mxu0 %v3419
  %4708 = vmatpush.bf16.msra.mxu0 %v3411
  %4709 = vmatpush.bf16.msra.mxu0 %v3403
  %4710 = vmatpush.bf16.msra.mxu0 %v3395
  %4711 = vmatpush.bf16.msra.mxu0 %v3387
  %4712 = vmatpush.bf16.msra.mxu0 %v3379
  %4713 = vmatpush.bf16.msra.mxu0 %v3371
  %4714 = vmatmul.bf16.gmra.mxu0 %v1040
  %v4715 = vpop.f32.mrf.mxu0
  %v4716 = vadd.f32 %v4703, %v4715
  %v4717 = vpop.f32.mrf.mxu0
  %4718 = vdwg.mxu0
  %4719 = vmatpush.bf16.msra.mxu0 %v3491
  %4720 = vmatpush.bf16.msra.mxu0 %v3483
  %4721 = vmatpush.bf16.msra.mxu0 %v3475
  %4722 = vmatpush.bf16.msra.mxu0 %v3467
  %4723 = vmatpush.bf16.msra.mxu0 %v3459
  %4724 = vmatpush.bf16.msra.mxu0 %v3451
  %4725 = vmatpush.bf16.msra.mxu0 %v3443
  %4726 = vmatpush.bf16.msra.mxu0 %v3435
  %4727 = vmatmul.bf16.gmra.mxu0 %v1041
  %v4728 = vpop.f32.mrf.mxu0
  %v4729 = vadd.f32 %v4716, %v4728
  %v4730 = vpop.f32.mrf.mxu0
  %4731 = vdwg.mxu0
  %4732 = vmatpush.bf16.msra.mxu0 %v3555
  %4733 = vmatpush.bf16.msra.mxu0 %v3547
  %4734 = vmatpush.bf16.msra.mxu0 %v3539
  %4735 = vmatpush.bf16.msra.mxu0 %v3531
  %4736 = vmatpush.bf16.msra.mxu0 %v3523
  %4737 = vmatpush.bf16.msra.mxu0 %v3515
  %4738 = vmatpush.bf16.msra.mxu0 %v3507
  %4739 = vmatpush.bf16.msra.mxu0 %v3499
  %4740 = vmatmul.bf16.gmra.mxu0 %v1042
  %v4741 = vpop.f32.mrf.mxu0
  %v4742 = vadd.f32 %v4729, %v4741
  %v4743 = vpop.f32.mrf.mxu0
  %4744 = vdwg.mxu0
  %4745 = vmatpush.bf16.msra.mxu0 %v3619
  %4746 = vmatpush.bf16.msra.mxu0 %v3611
  %4747 = vmatpush.bf16.msra.mxu0 %v3603
  %4748 = vmatpush.bf16.msra.mxu0 %v3595
  %4749 = vmatpush.bf16.msra.mxu0 %v3587
  %4750 = vmatpush.bf16.msra.mxu0 %v3579
  %4751 = vmatpush.bf16.msra.mxu0 %v3571
  %4752 = vmatpush.bf16.msra.mxu0 %v3563
  %4753 = vmatmul.bf16.gmra.mxu0 %v1043
  %v4754 = vpop.f32.mrf.mxu0
  %v4755 = vadd.f32 %v4742, %v4754
  %v4756 = vpop.f32.mrf.mxu0
  %4757 = vdwg.mxu0
  %4758 = vmatpush.bf16.msra.mxu0 %v3172
  %4759 = vmatpush.bf16.msra.mxu0 %v3164
  %4760 = vmatpush.bf16.msra.mxu0 %v3156
  %4761 = vmatpush.bf16.msra.mxu0 %v3148
  %4762 = vmatpush.bf16.msra.mxu0 %v3140
  %4763 = vmatpush.bf16.msra.mxu0 %v3132
  %4764 = vmatpush.bf16.msra.mxu0 %v3124
  %4765 = vmatpush.bf16.msra.mxu0 %v3116
  %4766 = vmatmul.bf16.gmra.mxu0 %v1036
  %v4767 = vpop.f32.mrf.mxu0
  %v4768 = vadd.f32 %v1564, %v4767
  %v4769 = vpop.f32.mrf.mxu0
  %4770 = vdwg.mxu0
  %4771 = vmatpush.bf16.msra.mxu0 %v3236
  %4772 = vmatpush.bf16.msra.mxu0 %v3228
  %4773 = vmatpush.bf16.msra.mxu0 %v3220
  %4774 = vmatpush.bf16.msra.mxu0 %v3212
  %4775 = vmatpush.bf16.msra.mxu0 %v3204
  %4776 = vmatpush.bf16.msra.mxu0 %v3196
  %4777 = vmatpush.bf16.msra.mxu0 %v3188
  %4778 = vmatpush.bf16.msra.mxu0 %v3180
  %4779 = vmatmul.bf16.gmra.mxu0 %v1037
  %v4780 = vpop.f32.mrf.mxu0
  %v4781 = vadd.f32 %v4768, %v4780
  %v4782 = vpop.f32.mrf.mxu0
  %4783 = vdwg.mxu0
  %4784 = vmatpush.bf16.msra.mxu0 %v3300
  %4785 = vmatpush.bf16.msra.mxu0 %v3292
  %4786 = vmatpush.bf16.msra.mxu0 %v3284
  %4787 = vmatpush.bf16.msra.mxu0 %v3276
  %4788 = vmatpush.bf16.msra.mxu0 %v3268
  %4789 = vmatpush.bf16.msra.mxu0 %v3260
  %4790 = vmatpush.bf16.msra.mxu0 %v3252
  %4791 = vmatpush.bf16.msra.mxu0 %v3244
  %4792 = vmatmul.bf16.gmra.mxu0 %v1038
  %v4793 = vpop.f32.mrf.mxu0
  %v4794 = vadd.f32 %v4781, %v4793
  %v4795 = vpop.f32.mrf.mxu0
  %4796 = vdwg.mxu0
  %4797 = vmatpush.bf16.msra.mxu0 %v3364
  %4798 = vmatpush.bf16.msra.mxu0 %v3356
  %4799 = vmatpush.bf16.msra.mxu0 %v3348
  %4800 = vmatpush.bf16.msra.mxu0 %v3340
  %4801 = vmatpush.bf16.msra.mxu0 %v3332
  %4802 = vmatpush.bf16.msra.mxu0 %v3324
  %4803 = vmatpush.bf16.msra.mxu0 %v3316
  %4804 = vmatpush.bf16.msra.mxu0 %v3308
  %4805 = vmatmul.bf16.gmra.mxu0 %v1039
  %v4806 = vpop.f32.mrf.mxu0
  %v4807 = vadd.f32 %v4794, %v4806
  %v4808 = vpop.f32.mrf.mxu0
  %4809 = vdwg.mxu0
  %4810 = vmatpush.bf16.msra.mxu0 %v3428
  %4811 = vmatpush.bf16.msra.mxu0 %v3420
  %4812 = vmatpush.bf16.msra.mxu0 %v3412
  %4813 = vmatpush.bf16.msra.mxu0 %v3404
  %4814 = vmatpush.bf16.msra.mxu0 %v3396
  %4815 = vmatpush.bf16.msra.mxu0 %v3388
  %4816 = vmatpush.bf16.msra.mxu0 %v3380
  %4817 = vmatpush.bf16.msra.mxu0 %v3372
  %4818 = vmatmul.bf16.gmra.mxu0 %v1040
  %v4819 = vpop.f32.mrf.mxu0
  %v4820 = vadd.f32 %v4807, %v4819
  %v4821 = vpop.f32.mrf.mxu0
  %4822 = vdwg.mxu0
  %4823 = vmatpush.bf16.msra.mxu0 %v3492
  %4824 = vmatpush.bf16.msra.mxu0 %v3484
  %4825 = vmatpush.bf16.msra.mxu0 %v3476
  %4826 = vmatpush.bf16.msra.mxu0 %v3468
  %4827 = vmatpush.bf16.msra.mxu0 %v3460
  %4828 = vmatpush.bf16.msra.mxu0 %v3452
  %4829 = vmatpush.bf16.msra.mxu0 %v3444
  %4830 = vmatpush.bf16.msra.mxu0 %v3436
  %4831 = vmatmul.bf16.gmra.mxu0 %v1041
  %v4832 = vpop.f32.mrf.mxu0
  %v4833 = vadd.f32 %v4820, %v4832
  %v4834 = vpop.f32.mrf.mxu0
  %4835 = vdwg.mxu0
  %4836 = vmatpush.bf16.msra.mxu0 %v3556
  %4837 = vmatpush.bf16.msra.mxu0 %v3548
  %4838 = vmatpush.bf16.msra.mxu0 %v3540
  %4839 = vmatpush.bf16.msra.mxu0 %v3532
  %4840 = vmatpush.bf16.msra.mxu0 %v3524
  %4841 = vmatpush.bf16.msra.mxu0 %v3516
  %4842 = vmatpush.bf16.msra.mxu0 %v3508
  %4843 = vmatpush.bf16.msra.mxu0 %v3500
  %4844 = vmatmul.bf16.gmra.mxu0 %v1042
  %v4845 = vpop.f32.mrf.mxu0
  %v4846 = vadd.f32 %v4833, %v4845
  %v4847 = vpop.f32.mrf.mxu0
  %4848 = vdwg.mxu0
  %4849 = vmatpush.bf16.msra.mxu0 %v3620
  %4850 = vmatpush.bf16.msra.mxu0 %v3612
  %4851 = vmatpush.bf16.msra.mxu0 %v3604
  %4852 = vmatpush.bf16.msra.mxu0 %v3596
  %4853 = vmatpush.bf16.msra.mxu0 %v3588
  %4854 = vmatpush.bf16.msra.mxu0 %v3580
  %4855 = vmatpush.bf16.msra.mxu0 %v3572
  %4856 = vmatpush.bf16.msra.mxu0 %v3564
  %4857 = vmatmul.bf16.gmra.mxu0 %v1043
  %v4858 = vpop.f32.mrf.mxu0
  %v4859 = vadd.f32 %v4846, %v4858
  %v4860 = vpop.f32.mrf.mxu0
  %4861 = vdwg.mxu0
  %4862 = vmatpush.bf16.msra.mxu0 %v3173
  %4863 = vmatpush.bf16.msra.mxu0 %v3165
  %4864 = vmatpush.bf16.msra.mxu0 %v3157
  %4865 = vmatpush.bf16.msra.mxu0 %v3149
  %4866 = vmatpush.bf16.msra.mxu0 %v3141
  %4867 = vmatpush.bf16.msra.mxu0 %v3133
  %4868 = vmatpush.bf16.msra.mxu0 %v3125
  %4869 = vmatpush.bf16.msra.mxu0 %v3117
  %4870 = vmatmul.bf16.gmra.mxu0 %v1036
  %v4871 = vpop.f32.mrf.mxu0
  %v4872 = vadd.f32 %v1565, %v4871
  %v4873 = vpop.f32.mrf.mxu0
  %4874 = vdwg.mxu0
  %4875 = vmatpush.bf16.msra.mxu0 %v3237
  %4876 = vmatpush.bf16.msra.mxu0 %v3229
  %4877 = vmatpush.bf16.msra.mxu0 %v3221
  %4878 = vmatpush.bf16.msra.mxu0 %v3213
  %4879 = vmatpush.bf16.msra.mxu0 %v3205
  %4880 = vmatpush.bf16.msra.mxu0 %v3197
  %4881 = vmatpush.bf16.msra.mxu0 %v3189
  %4882 = vmatpush.bf16.msra.mxu0 %v3181
  %4883 = vmatmul.bf16.gmra.mxu0 %v1037
  %v4884 = vpop.f32.mrf.mxu0
  %v4885 = vadd.f32 %v4872, %v4884
  %v4886 = vpop.f32.mrf.mxu0
  %4887 = vdwg.mxu0
  %4888 = vmatpush.bf16.msra.mxu0 %v3301
  %4889 = vmatpush.bf16.msra.mxu0 %v3293
  %4890 = vmatpush.bf16.msra.mxu0 %v3285
  %4891 = vmatpush.bf16.msra.mxu0 %v3277
  %4892 = vmatpush.bf16.msra.mxu0 %v3269
  %4893 = vmatpush.bf16.msra.mxu0 %v3261
  %4894 = vmatpush.bf16.msra.mxu0 %v3253
  %4895 = vmatpush.bf16.msra.mxu0 %v3245
  %4896 = vmatmul.bf16.gmra.mxu0 %v1038
  %v4897 = vpop.f32.mrf.mxu0
  %v4898 = vadd.f32 %v4885, %v4897
  %v4899 = vpop.f32.mrf.mxu0
  %4900 = vdwg.mxu0
  %4901 = vmatpush.bf16.msra.mxu0 %v3365
  %4902 = vmatpush.bf16.msra.mxu0 %v3357
  %4903 = vmatpush.bf16.msra.mxu0 %v3349
  %4904 = vmatpush.bf16.msra.mxu0 %v3341
  %4905 = vmatpush.bf16.msra.mxu0 %v3333
  %4906 = vmatpush.bf16.msra.mxu0 %v3325
  %4907 = vmatpush.bf16.msra.mxu0 %v3317
  %4908 = vmatpush.bf16.msra.mxu0 %v3309
  %4909 = vmatmul.bf16.gmra.mxu0 %v1039
  %v4910 = vpop.f32.mrf.mxu0
  %v4911 = vadd.f32 %v4898, %v4910
  %v4912 = vpop.f32.mrf.mxu0
  %4913 = vdwg.mxu0
  %4914 = vmatpush.bf16.msra.mxu0 %v3429
  %4915 = vmatpush.bf16.msra.mxu0 %v3421
  %4916 = vmatpush.bf16.msra.mxu0 %v3413
  %4917 = vmatpush.bf16.msra.mxu0 %v3405
  %4918 = vmatpush.bf16.msra.mxu0 %v3397
  %4919 = vmatpush.bf16.msra.mxu0 %v3389
  %4920 = vmatpush.bf16.msra.mxu0 %v3381
  %4921 = vmatpush.bf16.msra.mxu0 %v3373
  %4922 = vmatmul.bf16.gmra.mxu0 %v1040
  %v4923 = vpop.f32.mrf.mxu0
  %v4924 = vadd.f32 %v4911, %v4923
  %v4925 = vpop.f32.mrf.mxu0
  %4926 = vdwg.mxu0
  %4927 = vmatpush.bf16.msra.mxu0 %v3493
  %4928 = vmatpush.bf16.msra.mxu0 %v3485
  %4929 = vmatpush.bf16.msra.mxu0 %v3477
  %4930 = vmatpush.bf16.msra.mxu0 %v3469
  %4931 = vmatpush.bf16.msra.mxu0 %v3461
  %4932 = vmatpush.bf16.msra.mxu0 %v3453
  %4933 = vmatpush.bf16.msra.mxu0 %v3445
  %4934 = vmatpush.bf16.msra.mxu0 %v3437
  %4935 = vmatmul.bf16.gmra.mxu0 %v1041
  %v4936 = vpop.f32.mrf.mxu0
  %v4937 = vadd.f32 %v4924, %v4936
  %v4938 = vpop.f32.mrf.mxu0
  %4939 = vdwg.mxu0
  %4940 = vmatpush.bf16.msra.mxu0 %v3557
  %4941 = vmatpush.bf16.msra.mxu0 %v3549
  %4942 = vmatpush.bf16.msra.mxu0 %v3541
  %4943 = vmatpush.bf16.msra.mxu0 %v3533
  %4944 = vmatpush.bf16.msra.mxu0 %v3525
  %4945 = vmatpush.bf16.msra.mxu0 %v3517
  %4946 = vmatpush.bf16.msra.mxu0 %v3509
  %4947 = vmatpush.bf16.msra.mxu0 %v3501
  %4948 = vmatmul.bf16.gmra.mxu0 %v1042
  %v4949 = vpop.f32.mrf.mxu0
  %v4950 = vadd.f32 %v4937, %v4949
  %v4951 = vpop.f32.mrf.mxu0
  %4952 = vdwg.mxu0
  %4953 = vmatpush.bf16.msra.mxu0 %v3621
  %4954 = vmatpush.bf16.msra.mxu0 %v3613
  %4955 = vmatpush.bf16.msra.mxu0 %v3605
  %4956 = vmatpush.bf16.msra.mxu0 %v3597
  %4957 = vmatpush.bf16.msra.mxu0 %v3589
  %4958 = vmatpush.bf16.msra.mxu0 %v3581
  %4959 = vmatpush.bf16.msra.mxu0 %v3573
  %4960 = vmatpush.bf16.msra.mxu0 %v3565
  %4961 = vmatmul.bf16.gmra.mxu0 %v1043
  %v4962 = vpop.f32.mrf.mxu0
  %v4963 = vadd.f32 %v4950, %v4962
  %v4964 = vpop.f32.mrf.mxu0
  %4965 = vdwg.mxu0
  %v4966 = vmax.f32 %v4235, 0.0
  %v4967 = vmax.f32 %v4339, 0.0
  %v4968 = vmax.f32 %v4443, 0.0
  %v4969 = vmax.f32 %v4547, 0.0
  %v4970 = vmax.f32 %v4651, 0.0
  %v4971 = vmax.f32 %v4755, 0.0
  %v4972 = vmax.f32 %v4859, 0.0
  %v4973 = vmax.f32 %v4963, 0.0
  %v4974 = vld [vmem:[%s5] sm:$0xff]
  %v4976 = vperm.slane %v4974, 0
  %v4977 = vperm.slane %v4974, 1
  %v4978 = vperm.slane %v4974, 2
  %v4979 = vperm.slane %v4974, 3
  %v4980 = vperm.slane %v4974, 4
  %v4981 = vperm.slane %v4974, 5
  %v4982 = vperm.slane %v4974, 6
  %v4983 = vperm.slane %v4974, 7
  %v4992 = vmul.f32 %v4966, %v4976
  %v4993 = vmul.f32 %v4967, %v4977
  %v4994 = vmul.f32 %v4968, %v4978
  %v4995 = vmul.f32 %v4969, %v4979
  %v4996 = vmul.f32 %v4970, %v4980
  %v4997 = vmul.f32 %v4971, %v4981
  %v4998 = vmul.f32 %v4972, %v4982
  %v4999 = vmul.f32 %v4973, %v4983
  %v5000 = vadd.f32 %v4992, %v4993
  %v5001 = vadd.f32 %v5000, %v4994
  %v5002 = vadd.f32 %v5001, %v4995
  %v5003 = vadd.f32 %v5002, %v4996
  %v5004 = vadd.f32 %v5003, %v4997
  %v5005 = vadd.f32 %v5004, %v4998
  %v5006 = vadd.f32 %v5005, %v4999
  %5007 = vadd.xlane.f32.xlu0 %v5006
  %v5008 = vpop.xlane.xlu0 %5007
  %v5009 = vld [vmem:[#allocation2] sm:$0x1]
  %v5011 = vperm.slane %v5009, 0
  %v5013 = vadd.f32 %v5008, %v5011
  %vm5014 = vcmask 7168
  %5015 = vst.msk [vmem:[%s7] sm:$0xff] %vm5014, %v5013
  %v5016 = vxor.u32 %v5013, 2147483648
  %v5017 = vmul.f32 %v5016, 1.442695
  %v5018 = vpow.pop %v5017
  %v5019 = vadd.f32 %v5018, 1.0
  %v5020 = vrcp.pop %v5019
  %v5021 = vmul.f32 %v5019, %v5020
  %v5022 = vsub.f32 1.0, %v5021
  %v5023 = vmul.f32 %v5020, %v5022
  %v5024 = vadd.f32 %v5020, %v5023
  %vm5025 = vweird.f32 %v5019
  %vm5026 = vweird.f32 %v5020
  %vm5027 = vmor %vm5025, %vm5026
  %v5028 = vsel %vm5027, %v5020, %v5024
  %v5029 = vand.u32 2147483647, %v5019
  %vm5030 = vcmp.eq.f32.partialorder %v5029, 8.507059e+37
  %v5031 = vand.u32 %v5019, 2147483648
  %v5032 = vor.u32 1.1754944e-38, %v5031
  %v5033 = vsel %vm5030, %v5032, %v5028
  %v5034 = vmul.f32 1.0, %v5033
  %5035 = vst.msk [vmem:[%s8] sm:$0xff] %vm5014, %v5034
  // Predicated region
  $region30: #{domain_adaptation_forward.3} parent=0 // pred_check
    _
  $region31: #{domain_adaptation_forward.3} parent=0 // pred_check_branch
    %5037 = sbr.rel (0) target = $region33
  $region32: #{domain_adaptation_forward.3} parent=0 // pred_region
    _
  $region33: #{domain_adaptation_forward.3} parent=0 // pred_fallthru
    _
  // Predicated region
  $region34: #{domain_adaptation_forward.3} parent=0 // pred_check
    _
  $region35: #{domain_adaptation_forward.3} parent=0 // pred_check_branch
    %5039 = sbr.rel (0) target = $region37
  $region36: #{domain_adaptation_forward.3} parent=0 // pred_region
    _
  $region37: #{domain_adaptation_forward.3} parent=0 // pred_fallthru
    _
  // Predicated region
  $region38: #{domain_adaptation_forward.3} parent=0 // pred_check
    _
  $region39: #{domain_adaptation_forward.3} parent=0 // pred_check_branch
    %5041 = sbr.rel (0) target = $region41
  $region40: #{domain_adaptation_forward.3} parent=0 // pred_region
    _
  $region41: #{domain_adaptation_forward.3} parent=0 // pred_fallthru
    _
  // Predicated region
  $region42: #{domain_adaptation_forward.3} parent=0 // pred_check
    _
  $region43: #{domain_adaptation_forward.3} parent=0 // pred_check_branch
    %5043 = sbr.rel (0) target = $region45
  $region44: #{domain_adaptation_forward.3} parent=0 // pred_region
    _
  $region45: #{domain_adaptation_forward.3} parent=0 // pred_fallthru
    _

</llo_original>
